<compile_context>
chip_gen: v5e
topology: v5e:2x2
jax: 0.10.0
libtpu: 0.0.40
codegen_flags: <defaults>
</compile_context>

<pallas_src>
import numpy as np
import jax
import jax.numpy as jnp
from jax import lax
from jax.experimental import pallas as pl
from jax.experimental.pallas import tpu as pltpu

BN_EPS = 1e-5
IMAGE_SIZE = 84        # CelebA input is 3x84x84 -> 32x7x7 before fc1
C = 32                 # every conv has 32 output channels
P_IN = 8               # left zero-pad columns of each layer's padded-input buffer (=> aligned stores)
PC = 1                 # left pad column of each layer's conv-output buffer (for the pool)


def _rnd8(v):
    return ((v + 7) // 8) * 8


def _layer_cfg(H, W, cin, rows_per_chunk):
    """Static geometry of one conv+pool block (flat "row-stride Wp" layout)."""
    Ho, Wo = H // 2 + 1, W // 2 + 1                       # MaxPool2d(2,2,padding=1) output
    Wp = _rnd8(max(W + P_IN + 1, 2 * Wo - 1 + PC))        # shared flat row stride (multiple of 8)
    chunks = -(-H // rows_per_chunk)
    n_in = (chunks * rows_per_chunk + 2) * Wp + 8         # flat rows of padded-input buffer
    n_conv = max(2 * Ho, chunks * rows_per_chunk + 1) * Wp  # flat rows of conv-output buffer
    return dict(H=H, W=W, cin=cin, R=rows_per_chunk, Ho=Ho, Wo=Wo, Wp=Wp,
                chunks=chunks, n_in=n_in, n_conv=n_conv)


LAYERS = (
    _layer_cfg(84, 84, 8, 2),    # layer1 (Cin padded 3 -> 8)
    _layer_cfg(43, 43, 32, 3),   # layer2
    _layer_cfg(22, 22, 32, 4),   # layer3
    _layer_cfg(12, 12, 32, 6),   # layer4
)
FEAT_ROWS = 8 * LAYERS[-1]['Ho']      # 56: pool row i of layer4 stored at feat rows [8i, 8i+7)


# --------------------------------------------------------------------------
# In-kernel helpers (all operate on VMEM scratch refs, flat (rows, channels))
# --------------------------------------------------------------------------
def _zero(ref):
    """Zero a flat VMEM scratch buffer (its zero border is the conv padding)."""
    n, c = ref.shape
    chunk = 512
    nfull = n // chunk
    if nfull:
        zeros = jnp.zeros((chunk, c), ref.dtype)

        def body(i, carry):
            ref[pl.ds(pl.multiple_of(i * chunk, 8), chunk), :] = zeros
            return carry

        lax.fori_loop(0, nfull, body, 0)
    rem = n - nfull * chunk
    if rem:
        ref[pl.ds(nfull * chunk, rem), :] = jnp.zeros((rem, c), ref.dtype)


def _conv_layer(in_ref, w_ref, b_ref, conv_ref, cfg):
    """3x3 / stride-1 / pad-1 conv (+ folded BN affine) over the whole image.

    in_ref  : (n_in, Cin)   zero-padded input, flat; pixel (r, c) at (r+1)*Wp + c + P_IN
    w_ref   : (9, Cin, C)   taps, k = dy*3 + dx
    b_ref   : (1, C)        folded bias
    conv_ref: (n_conv, C)   conv output; pixel (r, c) at (r+1)*Wp + c + PC
    """
    H, Wp, R, chunks = cfg['H'], cfg['Wp'], cfg['R'], cfg['chunks']
    M = R * Wp
    cout = w_ref.shape[-1]
    bias = b_ref[...]

    # Top pool-pad row (conv row -1).  0 is equivalent to -inf because ReLU follows the pool.
    conv_ref[pl.ds(0, Wp), :] = jnp.zeros((Wp, cout), jnp.float32)

    def chunk_body(ci, carry):
        base = pl.multiple_of(ci * M, 8)
        acc = jnp.zeros((M, cout), jnp.float32)
        for dy in range(3):
            for dx in range(3):
                # contiguous flat slab == all pixels of R output rows shifted by this tap
                off = dy * Wp + dx + (P_IN - PC - 1)
                lhs = in_ref[pl.ds(base + off, M), :]
                acc = acc + jnp.dot(lhs, w_ref[dy * 3 + dx],
                                    preferred_element_type=jnp.float32)
        conv_ref[pl.ds(pl.multiple_of(base + Wp, 8), M), :] = acc + bias
        return carry

    lax.fori_loop(0, chunks, chunk_body, 0)

    if H % 2 == 0:
        # Bottom pool-pad row (conv row H); also overwrites any chunk-overrun garbage.
        conv_ref[pl.ds((H + 1) * Wp, Wp), :] = jnp.zeros((Wp, cout), jnp.float32)


def _pool_relu_layer(conv_ref, cfg, store_row):
    """MaxPool2d(2,2,padding=1) + ReLU, one pooled row per loop step.

    Column-pair selection is done with exact 0/1 selection matmuls (no strided or
    unaligned accesses); selector entries that would pick a pool-pad position are 0,
    which is equivalent to -inf padding because ReLU follows.
    """
    W, Wp, Ho, Wo = cfg['W'], cfg['Wp'], cfg['Ho'], cfg['Wo']
    w2 = 2 * Wo
    j = lax.broadcasted_iota(jnp.int32, (Wo, w2), 0)       # pooled column index
    k = lax.broadcasted_iota(jnp.int32, (Wo, w2), 1)       # conv-buffer column index
    sel_l = jnp.logical_and(k == 2 * j, k > 0).astype(jnp.float32)
    right_ok = k == 2 * j + 1
    if W % 2 == 0:
        right_ok = jnp.logical_and(right_ok, k < w2 - 1)
    sel_r = right_ok.astype(jnp.float32)

    def row_body(i, carry):
        base = pl.multiple_of(2 * i * Wp, 8)
        m = jnp.maximum(conv_ref[pl.ds(base, w2), :],
                        conv_ref[pl.ds(base + Wp, w2), :])         # max over the row pair
        left = jnp.dot(sel_l, m, preferred_element_type=jnp.float32)
        right = jnp.dot(sel_r, m, preferred_element_type=jnp.float32)
        store_row(i, jnp.maximum(jnp.maximum(left, right), 0.0))   # pool then ReLU
        return carry

    lax.fori_loop(0, Ho, row_body, 0)


# --------------------------------------------------------------------------
# The fused kernel: whole forward pass for one batch element
# --------------------------------------------------------------------------
def _fused_forward_kernel(x_ref, w1, b1, w2, b2, w3, b3, w4, b4, wfc, fcb,
                          o_ref,
                          in1, cv1, in2, cv2, in3, cv3, in4, cv4, feat):
    ins = (in1, in2, in3, in4)
    convs = (cv1, cv2, cv3, cv4)
    ws = (w1, w2, w3, w4)
    bs = (b1, b2, b3, b4)

    # Zero the padded-input buffers (their zero borders are the conv padding).
    for r in ins:
        _zero(r)
    _zero(feat)

    # Copy the flattened NHWC image into layer1's padded buffer (aligned stores).
    cfg0 = LAYERS[0]
    w0, wp0 = cfg0['W'], cfg0['Wp']

    def copy_row(r, carry):
        dst = pl.multiple_of((r + 1) * wp0 + P_IN, 8)
        in1[pl.ds(dst, w0), :] = x_ref[0, pl.ds(r * w0, w0), :]
        return carry

    lax.fori_loop(0, cfg0['H'], copy_row, 0)

    # 4 x (conv + folded BN) -> maxpool(2,2,pad=1) -> ReLU, all VMEM resident.
    for li, cfg in enumerate(LAYERS):
        _conv_layer(ins[li], ws[li], bs[li], convs[li], cfg)
        if li + 1 < len(LAYERS):
            nxt_ref = ins[li + 1]
            nxt_wp = LAYERS[li + 1]['Wp']

            def store_row(i, row, _ref=nxt_ref, _wp=nxt_wp, _wo=cfg['Wo']):
                _ref[pl.ds(pl.multiple_of((i + 1) * _wp + P_IN, 8), _wo), :] = row
        else:
            def store_row(i, row, _wo=cfg['Wo']):
                feat[pl.ds(pl.multiple_of(i * 8, 8), _wo), :] = row

        _pool_relu_layer(convs[li], cfg, store_row)

    # fc1 fused: logits = <features, fc_w> + fc_b.  fc_w was pre-permuted in the
    # wrapper to the kernel's (pool_row*8 + pool_col, channel) feature layout, so the
    # NCHW flatten order of torch.reshape is matched without transposing activations.
    f = feat[...]
    nc = wfc.shape[0]
    lane = lax.broadcasted_iota(jnp.int32, (1, nc), 1)
    logits = fcb[...]
    for n in range(nc):
        logits = logits + jnp.where(lane == n, jnp.sum(f * wfc[n]), 0.0)
    o_ref[0] = logits


# --------------------------------------------------------------------------
# Wrapper
# --------------------------------------------------------------------------
def fold_bn(layer, eps=BN_EPS):
    """Fold BatchNorm (inference) into the preceding conv's weight/bias."""
    s = layer["gamma"] / jnp.sqrt(layer["var"] + eps)
    w = layer["w"] * s[:, None, None, None]            # (Cout, Cin, 3, 3)
    b = (layer["b"] - layer["mean"]) * s + layer["beta"]
    return w, b


def pallas_forward(x_nchw, params):
    x = jnp.transpose(x_nchw.astype(jnp.float32), (0, 2, 3, 1))      # NCHW -> NHWC
    B = x.shape[0]
    cin0 = LAYERS[0]['cin']
    x = jnp.pad(x, ((0, 0), (0, 0), (0, 0), (0, cin0 - x.shape[-1])))
    x = x.reshape(B, IMAGE_SIZE * IMAGE_SIZE, cin0)                  # flat rows, channels last

    inputs = [x]
    in_specs = [pl.BlockSpec((1, IMAGE_SIZE * IMAGE_SIZE, cin0),
                             lambda b: (b, 0, 0))]
    for cfg, layer in zip(LAYERS, params["layers"]):
        w, bias = fold_bn(layer)                                     # (32, Cin, 3, 3), (32,)
        cin = w.shape[1]
        if cin < cfg['cin']:
            w = jnp.pad(w, ((0, 0), (0, cfg['cin'] - cin), (0, 0), (0, 0)))
        w9 = jnp.transpose(w, (2, 3, 1, 0)).reshape(9, cfg['cin'], C)  # k = dy*3 + dx
        inputs += [w9, bias.reshape(1, C)]
        in_specs += [pl.BlockSpec((9, cfg['cin'], C), lambda b: (0, 0, 0)),
                     pl.BlockSpec((1, C), lambda b: (0, 0))]

    # fc1: pre-permute (NC, 32*7*7) [NCHW flatten order] to the kernel feature
    # layout (pool_row*8 + pool_col, channel); pool_col==7 rows are zero padding.
    fc_w, fc_b = params["fc_w"], params["fc_b"]
    nc = fc_w.shape[0]
    ho, wo = LAYERS[-1]['Ho'], LAYERS[-1]['Wo']
    wfc = fc_w.reshape(nc, C, ho, wo)                 # (nc, ch, r, c)
    wfc = jnp.transpose(wfc, (0, 2, 3, 1))            # (nc, r, c, ch)
    wfc = jnp.pad(wfc, ((0, 0), (0, 0), (0, 8 - wo), (0, 0)))
    wfc = wfc.reshape(nc, FEAT_ROWS, C)
    inputs += [wfc, fc_b.reshape(1, nc)]
    in_specs += [pl.BlockSpec((nc, FEAT_ROWS, C), lambda b: (0, 0, 0)),
                 pl.BlockSpec((1, nc), lambda b: (0, 0))]

    scratch = []
    for cfg in LAYERS:
        scratch.append(pltpu.VMEM((cfg['n_in'], cfg['cin']), jnp.float32))   # padded input
        scratch.append(pltpu.VMEM((cfg['n_conv'], C), jnp.float32))          # conv output
    scratch.append(pltpu.VMEM((FEAT_ROWS, C), jnp.float32))                  # flattened features

    out = pl.pallas_call(
        _fused_forward_kernel,
        grid=(B,),
        in_specs=in_specs,
        out_specs=pl.BlockSpec((1, 1, nc), lambda b: (b, 0, 0)),
        out_shape=jax.ShapeDtypeStruct((B, 1, nc), jnp.float32),
        scratch_shapes=scratch,
        compiler_params=pltpu.CompilerParams(
            dimension_semantics=("parallel",)),       # shard batch across TCs on v7x
    )(*inputs)
    return out.reshape(B, nc)


# --------------------------------------------------------------------------
# Pure-JAX reference (NCHW, mirrors the PyTorch module) for validation
# --------------------------------------------------------------------------
def reference_forward(x_nchw, params):
    x = x_nchw.astype(jnp.float32)
    for layer in params["layers"]:
        w, b = fold_bn(layer)
        x = lax.conv_general_dilated(
            x, w, window_strides=(1, 1), padding=((1, 1), (1, 1)),
            dimension_numbers=("NCHW", "OIHW", "NCHW"),
            precision=lax.Precision.HIGHEST)
        x = x + b[None, :, None, None]
        B, Cc, H, W = x.shape
        Ho, Wo = H // 2 + 1, W // 2 + 1
        xp = jnp.pad(x, ((0, 0), (0, 0), (1, 2 * Ho - H - 1), (1, 2 * Wo - W - 1)),
                     constant_values=-jnp.inf)
        x = xp.reshape(B, Cc, Ho, 2, Wo, 2).max(axis=(3, 5))
        x = jnp.maximum(x, 0.0)
    xf = x.reshape(x.shape[0], -1)
    return xf @ params["fc_w"].T + params["fc_b"]


# --------------------------------------------------------------------------
# Deterministic parameter init (shapes from ClientModel.__init__)
# --------------------------------------------------------------------------
def init_params(key, num_classes=2):
    keys = jax.random.split(key, 26)
    params = {"layers": []}
    cin, idx = 3, 0
    for _ in range(4):
        cout = 32
        params["layers"].append(dict(
            w=0.1 * jax.random.normal(keys[idx + 0], (cout, cin, 3, 3), jnp.float32),
            b=0.05 * jax.random.normal(keys[idx + 1], (cout,), jnp.float32),
            gamma=1.0 + 0.1 * jax.random.normal(keys[idx + 2], (cout,), jnp.float32),
            beta=0.1 * jax.random.normal(keys[idx + 3], (cout,), jnp.float32),
            mean=0.1 * jax.random.normal(keys[idx + 4], (cout,), jnp.float32),
            var=jax.random.uniform(keys[idx + 5], (cout,), jnp.float32, 0.5, 1.5),
        ))
        cin, idx = cout, idx + 6
    params["fc_w"] = 0.02 * jax.random.normal(keys[idx], (num_classes, 32 * 7 * 7), jnp.float32)
    params["fc_b"] = 0.02 * jax.random.normal(keys[idx + 1], (num_classes,), jnp.float32)
    return params


if __name__ == "__main__":
    key = jax.random.PRNGKey(0)
    kx, kp = jax.random.split(key)
    B, num_classes = 2, 2
    x = jax.random.normal(kx, (B, 3, IMAGE_SIZE, IMAGE_SIZE), jnp.float32)  # NCHW, like PyTorch
    params = init_params(kp, num_classes)

    logits = jax.block_until_ready(jax.jit(pallas_forward)(x, params))
    ref = jax.block_until_ready(jax.jit(reference_forward)(x, params))

    assert logits.shape == (B, num_classes)
    assert bool(jnp.all(jnp.isfinite(logits)))
    rel_err = float(np.max(np.abs(np.asarray(logits) - np.asarray(ref)))
                    / (np.max(np.abs(np.asarray(ref))) + 1e-6))
    assert rel_err < 5e-2, f"mismatch vs reference: rel_err={rel_err}"
    print("KERNEL_OK")
</pallas_src>

<mosaic_0001>
module attributes {stable_mosaic.version = 11 : i64} {
  func.func @_fused_forward_kernel(%arg0: i32, %arg1: memref<1x7056x8xf32, #tpu.memory_space<vmem>>, %arg2: memref<9x8x32xf32, #tpu.memory_space<vmem>>, %arg3: memref<1x32xf32, #tpu.memory_space<vmem>>, %arg4: memref<9x32x32xf32, #tpu.memory_space<vmem>>, %arg5: memref<1x32xf32, #tpu.memory_space<vmem>>, %arg6: memref<9x32x32xf32, #tpu.memory_space<vmem>>, %arg7: memref<1x32xf32, #tpu.memory_space<vmem>>, %arg8: memref<9x32x32xf32, #tpu.memory_space<vmem>>, %arg9: memref<1x32xf32, #tpu.memory_space<vmem>>, %arg10: memref<2x56x32xf32, #tpu.memory_space<vmem>>, %arg11: memref<1x2xf32, #tpu.memory_space<vmem>>, %arg12: memref<1x1x2xf32, #tpu.memory_space<vmem>>, %arg13: memref<8264x8xf32, #tpu.memory_space<vmem>>, %arg14: memref<8256x32xf32, #tpu.memory_space<vmem>>, %arg15: memref<2640x32xf32, #tpu.memory_space<vmem>>, %arg16: memref<2576x32xf32, #tpu.memory_space<vmem>>, %arg17: memref<840x32xf32, #tpu.memory_space<vmem>>, %arg18: memref<800x32xf32, #tpu.memory_space<vmem>>, %arg19: memref<344x32xf32, #tpu.memory_space<vmem>>, %arg20: memref<336x32xf32, #tpu.memory_space<vmem>>, %arg21: memref<56x32xf32, #tpu.memory_space<vmem>>) attributes {dimension_semantics = [#tpu.dimension_semantics<parallel>], iteration_bounds = array<i64: 2>, scalar_prefetch = 0 : i64, scratch_operands = 9 : i64, tpu.core_type = #tpu.core_type<tc>, window_params = [{transform_indices = @transform_0, window_bounds = array<i64: 1, 7056, 8>}, {pipeline_mode = #tpu.pipeline_mode<synchronous>, transform_indices = @transform_1, window_bounds = array<i64: 9, 8, 32>}, {pipeline_mode = #tpu.pipeline_mode<synchronous>, transform_indices = @transform_2, window_bounds = array<i64: 1, 32>}, {pipeline_mode = #tpu.pipeline_mode<synchronous>, transform_indices = @transform_3, window_bounds = array<i64: 9, 32, 32>}, {pipeline_mode = #tpu.pipeline_mode<synchronous>, transform_indices = @transform_4, window_bounds = array<i64: 1, 32>}, {pipeline_mode = #tpu.pipeline_mode<synchronous>, transform_indices = @transform_5, window_bounds = array<i64: 9, 32, 32>}, {pipeline_mode = #tpu.pipeline_mode<synchronous>, transform_indices = @transform_6, window_bounds = array<i64: 1, 32>}, {pipeline_mode = #tpu.pipeline_mode<synchronous>, transform_indices = @transform_7, window_bounds = array<i64: 9, 32, 32>}, {pipeline_mode = #tpu.pipeline_mode<synchronous>, transform_indices = @transform_8, window_bounds = array<i64: 1, 32>}, {pipeline_mode = #tpu.pipeline_mode<synchronous>, transform_indices = @transform_9, window_bounds = array<i64: 2, 56, 32>}, {pipeline_mode = #tpu.pipeline_mode<synchronous>, transform_indices = @transform_10, window_bounds = array<i64: 1, 2>}, {transform_indices = @transform_11, window_bounds = array<i64: 1, 1, 2>}]} {
    %cst = arith.constant 0.000000e+00 : f32
    %0 = vector.broadcast %cst : f32 to vector<512x8xf32>
    %c0_i32 = arith.constant 0 : i32
    %c16_i32 = arith.constant 16 : i32
    %1 = arith.addi %c0_i32, %c16_i32 : i32
    %c1_i32 = arith.constant 1 : i32
    scf.for %arg22 = %c0_i32 to %1 step %c1_i32  : i32 {
      %c512_i32_107 = arith.constant 512 : i32
      %155 = arith.muli %arg22, %c512_i32_107 : i32
      %156 = tpu.assume_multiple %155, 8 : i32
      %157 = arith.index_cast %156 : i32 to index
      %c0_108 = arith.constant 0 : index
      %158 = vector.load %arg13[%157, %c0_108] : memref<8264x8xf32, #tpu.memory_space<vmem>>, vector<512x8xf32>
      tpu.vector_store %arg13[%157, %c0_108], %0 {strides = array<i32>} : memref<8264x8xf32, #tpu.memory_space<vmem>>, vector<512x8xf32>,
    }
    %c16_i32_0 = arith.constant 16 : i32
    %cst_1 = arith.constant 0.000000e+00 : f32
    %2 = vector.broadcast %cst_1 : f32 to vector<72x8xf32>
    %c8192 = arith.constant 8192 : index
    %c0 = arith.constant 0 : index
    %3 = vector.load %arg13[%c8192, %c0] : memref<8264x8xf32, #tpu.memory_space<vmem>>, vector<72x8xf32>
    tpu.vector_store %arg13[%c8192, %c0], %2 {strides = array<i32>} : memref<8264x8xf32, #tpu.memory_space<vmem>>, vector<72x8xf32>,
    %cst_2 = arith.constant 0.000000e+00 : f32
    %4 = vector.broadcast %cst_2 : f32 to vector<512x32xf32>
    %c0_i32_3 = arith.constant 0 : i32
    %c5_i32 = arith.constant 5 : i32
    %5 = arith.addi %c0_i32_3, %c5_i32 : i32
    %c1_i32_4 = arith.constant 1 : i32
    scf.for %arg22 = %c0_i32_3 to %5 step %c1_i32_4  : i32 {
      %c512_i32_107 = arith.constant 512 : i32
      %155 = arith.muli %arg22, %c512_i32_107 : i32
      %156 = tpu.assume_multiple %155, 8 : i32
      %157 = arith.index_cast %156 : i32 to index
      %c0_108 = arith.constant 0 : index
      %158 = vector.load %arg15[%157, %c0_108] : memref<2640x32xf32, #tpu.memory_space<vmem>>, vector<512x32xf32>
      tpu.vector_store %arg15[%157, %c0_108], %4 {strides = array<i32>} : memref<2640x32xf32, #tpu.memory_space<vmem>>, vector<512x32xf32>,
    }
    %c5_i32_5 = arith.constant 5 : i32
    %cst_6 = arith.constant 0.000000e+00 : f32
    %6 = vector.broadcast %cst_6 : f32 to vector<80x32xf32>
    %c2560 = arith.constant 2560 : index
    %c0_7 = arith.constant 0 : index
    %7 = vector.load %arg15[%c2560, %c0_7] : memref<2640x32xf32, #tpu.memory_space<vmem>>, vector<80x32xf32>
    tpu.vector_store %arg15[%c2560, %c0_7], %6 {strides = array<i32>} : memref<2640x32xf32, #tpu.memory_space<vmem>>, vector<80x32xf32>,
    %cst_8 = arith.constant 0.000000e+00 : f32
    %8 = vector.broadcast %cst_8 : f32 to vector<512x32xf32>
    %c0_i32_9 = arith.constant 0 : i32
    %c512_i32 = arith.constant 512 : i32
    %9 = arith.muli %c0_i32_9, %c512_i32 : i32
    %10 = tpu.assume_multiple %9, 8 : i32
    %11 = arith.index_cast %10 : i32 to index
    %c0_10 = arith.constant 0 : index
    %12 = vector.load %arg17[%11, %c0_10] : memref<840x32xf32, #tpu.memory_space<vmem>>, vector<512x32xf32>
    tpu.vector_store %arg17[%11, %c0_10], %8 {strides = array<i32>} : memref<840x32xf32, #tpu.memory_space<vmem>>, vector<512x32xf32>,
    %c1_i32_11 = arith.constant 1 : i32
    %cst_12 = arith.constant 0.000000e+00 : f32
    %13 = vector.broadcast %cst_12 : f32 to vector<328x32xf32>
    %c512 = arith.constant 512 : index
    %c0_13 = arith.constant 0 : index
    %14 = vector.load %arg17[%c512, %c0_13] : memref<840x32xf32, #tpu.memory_space<vmem>>, vector<328x32xf32>
    tpu.vector_store %arg17[%c512, %c0_13], %13 {strides = array<i32>} : memref<840x32xf32, #tpu.memory_space<vmem>>, vector<328x32xf32>,
    %cst_14 = arith.constant 0.000000e+00 : f32
    %15 = vector.broadcast %cst_14 : f32 to vector<344x32xf32>
    %c0_15 = arith.constant 0 : index
    %c0_16 = arith.constant 0 : index
    %16 = vector.load %arg19[%c0_15, %c0_16] : memref<344x32xf32, #tpu.memory_space<vmem>>, vector<344x32xf32>
    tpu.vector_store %arg19[%c0_15, %c0_16], %15 {strides = array<i32>} : memref<344x32xf32, #tpu.memory_space<vmem>>, vector<344x32xf32>,
    %cst_17 = arith.constant 0.000000e+00 : f32
    %17 = vector.broadcast %cst_17 : f32 to vector<56x32xf32>
    %c0_18 = arith.constant 0 : index
    %c0_19 = arith.constant 0 : index
    %18 = vector.load %arg21[%c0_18, %c0_19] : memref<56x32xf32, #tpu.memory_space<vmem>>, vector<56x32xf32>
    tpu.vector_store %arg21[%c0_18, %c0_19], %17 {strides = array<i32>} : memref<56x32xf32, #tpu.memory_space<vmem>>, vector<56x32xf32>,
    %c0_i32_20 = arith.constant 0 : i32
    %c84_i32 = arith.constant 84 : i32
    %19 = arith.addi %c0_i32_20, %c84_i32 : i32
    %c1_i32_21 = arith.constant 1 : i32
    scf.for %arg22 = %c0_i32_20 to %19 step %c1_i32_21  : i32 {
      %c1_i32_107 = arith.constant 1 : i32
      %155 = arith.addi %arg22, %c1_i32_107 : i32
      %c96_i32 = arith.constant 96 : i32
      %156 = arith.muli %155, %c96_i32 : i32
      %c8_i32 = arith.constant 8 : i32
      %157 = arith.addi %156, %c8_i32 : i32
      %158 = tpu.assume_multiple %157, 8 : i32
      %c84_i32_108 = arith.constant 84 : i32
      %159 = arith.muli %arg22, %c84_i32_108 : i32
      %c0_109 = arith.constant 0 : index
      %160 = arith.index_cast %159 : i32 to index
      %c0_110 = arith.constant 0 : index
      %161 = vector.load %arg1[%c0_109, %160, %c0_110] : memref<1x7056x8xf32, #tpu.memory_space<vmem>>, vector<1x84x8xf32>
      %162 = vector.shape_cast %161 : vector<1x84x8xf32> to vector<84x8xf32>
      %163 = arith.index_cast %158 : i32 to index
      %c0_111 = arith.constant 0 : index
      %164 = vector.load %arg13[%163, %c0_111] : memref<8264x8xf32, #tpu.memory_space<vmem>>, vector<84x8xf32>
      tpu.vector_store %arg13[%163, %c0_111], %162 {strides = array<i32>} : memref<8264x8xf32, #tpu.memory_space<vmem>>, vector<84x8xf32>,
    }
    %c84_i32_22 = arith.constant 84 : i32
    %c0_23 = arith.constant 0 : index
    %c0_24 = arith.constant 0 : index
    %20 = vector.load %arg3[%c0_23, %c0_24] : memref<1x32xf32, #tpu.memory_space<vmem>>, vector<1x32xf32>
    %cst_25 = arith.constant 0.000000e+00 : f32
    %21 = vector.broadcast %cst_25 : f32 to vector<96x32xf32>
    %c0_26 = arith.constant 0 : index
    %c0_27 = arith.constant 0 : index
    %22 = vector.load %arg14[%c0_26, %c0_27] : memref<8256x32xf32, #tpu.memory_space<vmem>>, vector<96x32xf32>
    tpu.vector_store %arg14[%c0_26, %c0_27], %21 {strides = array<i32>} : memref<8256x32xf32, #tpu.memory_space<vmem>>, vector<96x32xf32>,
    %c0_i32_28 = arith.constant 0 : i32
    %c42_i32 = arith.constant 42 : i32
    %23 = arith.addi %c0_i32_28, %c42_i32 : i32
    %c1_i32_29 = arith.constant 1 : i32
    scf.for %arg22 = %c0_i32_28 to %23 step %c1_i32_29  : i32 {
      %c192_i32 = arith.constant 192 : i32
      %155 = arith.muli %arg22, %c192_i32 : i32
      %156 = tpu.assume_multiple %155, 8 : i32
      %cst_107 = arith.constant 0.000000e+00 : f32
      %157 = vector.broadcast %cst_107 : f32 to vector<192x32xf32>
      %c6_i32_108 = arith.constant 6 : i32
      %158 = arith.addi %156, %c6_i32_108 : i32
      %159 = arith.index_cast %158 : i32 to index
      %c0_109 = arith.constant 0 : index
      %160 = vector.load %arg13[%159, %c0_109] : memref<8264x8xf32, #tpu.memory_space<vmem>>, vector<192x8xf32>
      %c0_110 = arith.constant 0 : index
      %c0_111 = arith.constant 0 : index
      %c0_112 = arith.constant 0 : index
      %161 = vector.load %arg2[%c0_110, %c0_111, %c0_112] : memref<9x8x32xf32, #tpu.memory_space<vmem>>, vector<1x8x32xf32>
      %162 = vector.shape_cast %161 : vector<1x8x32xf32> to vector<8x32xf32>
      %cst_113 = arith.constant dense<0.000000e+00> : vector<192x32xf32>
      %163 = tpu.matmul %160, %162, %cst_113 {dimension_numbers = #tpu.dot_dimension_numbers<[1], [0], [0], [1], [0, 0, 1, 1], [], []>} : vector<192x8xf32>, vector<8x32xf32>, vector<192x32xf32> -> vector<192x32xf32>
      %164 = arith.addf %157, %163 : vector<192x32xf32>
      %c7_i32_114 = arith.constant 7 : i32
      %165 = arith.addi %156, %c7_i32_114 : i32
      %166 = arith.index_cast %165 : i32 to index
      %c0_115 = arith.constant 0 : index
      %167 = vector.load %arg13[%166, %c0_115] : memref<8264x8xf32, #tpu.memory_space<vmem>>, vector<192x8xf32>
      %c1_116 = arith.constant 1 : index
      %c0_117 = arith.constant 0 : index
      %c0_118 = arith.constant 0 : index
      %168 = vector.load %arg2[%c1_116, %c0_117, %c0_118] : memref<9x8x32xf32, #tpu.memory_space<vmem>>, vector<1x8x32xf32>
      %169 = vector.shape_cast %168 : vector<1x8x32xf32> to vector<8x32xf32>
      %cst_119 = arith.constant dense<0.000000e+00> : vector<192x32xf32>
      %170 = tpu.matmul %167, %169, %cst_119 {dimension_numbers = #tpu.dot_dimension_numbers<[1], [0], [0], [1], [0, 0, 1, 1], [], []>} : vector<192x8xf32>, vector<8x32xf32>, vector<192x32xf32> -> vector<192x32xf32>
      %171 = arith.addf %164, %170 : vector<192x32xf32>
      %c8_i32 = arith.constant 8 : i32
      %172 = arith.addi %156, %c8_i32 : i32
      %173 = arith.index_cast %172 : i32 to index
      %c0_120 = arith.constant 0 : index
      %174 = vector.load %arg13[%173, %c0_120] : memref<8264x8xf32, #tpu.memory_space<vmem>>, vector<192x8xf32>
      %c2 = arith.constant 2 : index
      %c0_121 = arith.constant 0 : index
      %c0_122 = arith.constant 0 : index
      %175 = vector.load %arg2[%c2, %c0_121, %c0_122] : memref<9x8x32xf32, #tpu.memory_space<vmem>>, vector<1x8x32xf32>
      %176 = vector.shape_cast %175 : vector<1x8x32xf32> to vector<8x32xf32>
      %cst_123 = arith.constant dense<0.000000e+00> : vector<192x32xf32>
      %177 = tpu.matmul %174, %176, %cst_123 {dimension_numbers = #tpu.dot_dimension_numbers<[1], [0], [0], [1], [0, 0, 1, 1], [], []>} : vector<192x8xf32>, vector<8x32xf32>, vector<192x32xf32> -> vector<192x32xf32>
      %178 = arith.addf %171, %177 : vector<192x32xf32>
      %c102_i32 = arith.constant 102 : i32
      %179 = arith.addi %156, %c102_i32 : i32
      %180 = arith.index_cast %179 : i32 to index
      %c0_124 = arith.constant 0 : index
      %181 = vector.load %arg13[%180, %c0_124] : memref<8264x8xf32, #tpu.memory_space<vmem>>, vector<192x8xf32>
      %c3 = arith.constant 3 : index
      %c0_125 = arith.constant 0 : index
      %c0_126 = arith.constant 0 : index
      %182 = vector.load %arg2[%c3, %c0_125, %c0_126] : memref<9x8x32xf32, #tpu.memory_space<vmem>>, vector<1x8x32xf32>
      %183 = vector.shape_cast %182 : vector<1x8x32xf32> to vector<8x32xf32>
      %cst_127 = arith.constant dense<0.000000e+00> : vector<192x32xf32>
      %184 = tpu.matmul %181, %183, %cst_127 {dimension_numbers = #tpu.dot_dimension_numbers<[1], [0], [0], [1], [0, 0, 1, 1], [], []>} : vector<192x8xf32>, vector<8x32xf32>, vector<192x32xf32> -> vector<192x32xf32>
      %185 = arith.addf %178, %184 : vector<192x32xf32>
      %c103_i32 = arith.constant 103 : i32
      %186 = arith.addi %156, %c103_i32 : i32
      %187 = arith.index_cast %186 : i32 to index
      %c0_128 = arith.constant 0 : index
      %188 = vector.load %arg13[%187, %c0_128] : memref<8264x8xf32, #tpu.memory_space<vmem>>, vector<192x8xf32>
      %c4 = arith.constant 4 : index
      %c0_129 = arith.constant 0 : index
      %c0_130 = arith.constant 0 : index
      %189 = vector.load %arg2[%c4, %c0_129, %c0_130] : memref<9x8x32xf32, #tpu.memory_space<vmem>>, vector<1x8x32xf32>
      %190 = vector.shape_cast %189 : vector<1x8x32xf32> to vector<8x32xf32>
      %cst_131 = arith.constant dense<0.000000e+00> : vector<192x32xf32>
      %191 = tpu.matmul %188, %190, %cst_131 {dimension_numbers = #tpu.dot_dimension_numbers<[1], [0], [0], [1], [0, 0, 1, 1], [], []>} : vector<192x8xf32>, vector<8x32xf32>, vector<192x32xf32> -> vector<192x32xf32>
      %192 = arith.addf %185, %191 : vector<192x32xf32>
      %c104_i32 = arith.constant 104 : i32
      %193 = arith.addi %156, %c104_i32 : i32
      %194 = arith.index_cast %193 : i32 to index
      %c0_132 = arith.constant 0 : index
      %195 = vector.load %arg13[%194, %c0_132] : memref<8264x8xf32, #tpu.memory_space<vmem>>, vector<192x8xf32>
      %c5 = arith.constant 5 : index
      %c0_133 = arith.constant 0 : index
      %c0_134 = arith.constant 0 : index
      %196 = vector.load %arg2[%c5, %c0_133, %c0_134] : memref<9x8x32xf32, #tpu.memory_space<vmem>>, vector<1x8x32xf32>
      %197 = vector.shape_cast %196 : vector<1x8x32xf32> to vector<8x32xf32>
      %cst_135 = arith.constant dense<0.000000e+00> : vector<192x32xf32>
      %198 = tpu.matmul %195, %197, %cst_135 {dimension_numbers = #tpu.dot_dimension_numbers<[1], [0], [0], [1], [0, 0, 1, 1], [], []>} : vector<192x8xf32>, vector<8x32xf32>, vector<192x32xf32> -> vector<192x32xf32>
      %199 = arith.addf %192, %198 : vector<192x32xf32>
      %c198_i32 = arith.constant 198 : i32
      %200 = arith.addi %156, %c198_i32 : i32
      %201 = arith.index_cast %200 : i32 to index
      %c0_136 = arith.constant 0 : index
      %202 = vector.load %arg13[%201, %c0_136] : memref<8264x8xf32, #tpu.memory_space<vmem>>, vector<192x8xf32>
      %c6 = arith.constant 6 : index
      %c0_137 = arith.constant 0 : index
      %c0_138 = arith.constant 0 : index
      %203 = vector.load %arg2[%c6, %c0_137, %c0_138] : memref<9x8x32xf32, #tpu.memory_space<vmem>>, vector<1x8x32xf32>
      %204 = vector.shape_cast %203 : vector<1x8x32xf32> to vector<8x32xf32>
      %cst_139 = arith.constant dense<0.000000e+00> : vector<192x32xf32>
      %205 = tpu.matmul %202, %204, %cst_139 {dimension_numbers = #tpu.dot_dimension_numbers<[1], [0], [0], [1], [0, 0, 1, 1], [], []>} : vector<192x8xf32>, vector<8x32xf32>, vector<192x32xf32> -> vector<192x32xf32>
      %206 = arith.addf %199, %205 : vector<192x32xf32>
      %c199_i32 = arith.constant 199 : i32
      %207 = arith.addi %156, %c199_i32 : i32
      %208 = arith.index_cast %207 : i32 to index
      %c0_140 = arith.constant 0 : index
      %209 = vector.load %arg13[%208, %c0_140] : memref<8264x8xf32, #tpu.memory_space<vmem>>, vector<192x8xf32>
      %c7 = arith.constant 7 : index
      %c0_141 = arith.constant 0 : index
      %c0_142 = arith.constant 0 : index
      %210 = vector.load %arg2[%c7, %c0_141, %c0_142] : memref<9x8x32xf32, #tpu.memory_space<vmem>>, vector<1x8x32xf32>
      %211 = vector.shape_cast %210 : vector<1x8x32xf32> to vector<8x32xf32>
      %cst_143 = arith.constant dense<0.000000e+00> : vector<192x32xf32>
      %212 = tpu.matmul %209, %211, %cst_143 {dimension_numbers = #tpu.dot_dimension_numbers<[1], [0], [0], [1], [0, 0, 1, 1], [], []>} : vector<192x8xf32>, vector<8x32xf32>, vector<192x32xf32> -> vector<192x32xf32>
      %213 = arith.addf %206, %212 : vector<192x32xf32>
      %c200_i32 = arith.constant 200 : i32
      %214 = arith.addi %156, %c200_i32 : i32
      %215 = arith.index_cast %214 : i32 to index
      %c0_144 = arith.constant 0 : index
      %216 = vector.load %arg13[%215, %c0_144] : memref<8264x8xf32, #tpu.memory_space<vmem>>, vector<192x8xf32>
      %c8 = arith.constant 8 : index
      %c0_145 = arith.constant 0 : index
      %c0_146 = arith.constant 0 : index
      %217 = vector.load %arg2[%c8, %c0_145, %c0_146] : memref<9x8x32xf32, #tpu.memory_space<vmem>>, vector<1x8x32xf32>
      %218 = vector.shape_cast %217 : vector<1x8x32xf32> to vector<8x32xf32>
      %cst_147 = arith.constant dense<0.000000e+00> : vector<192x32xf32>
      %219 = tpu.matmul %216, %218, %cst_147 {dimension_numbers = #tpu.dot_dimension_numbers<[1], [0], [0], [1], [0, 0, 1, 1], [], []>} : vector<192x8xf32>, vector<8x32xf32>, vector<192x32xf32> -> vector<192x32xf32>
      %220 = arith.addf %213, %219 : vector<192x32xf32>
      %221 = vector.broadcast %20 : vector<1x32xf32> to vector<192x32xf32>
      %222 = arith.addf %220, %221 : vector<192x32xf32>
      %c96_i32 = arith.constant 96 : i32
      %223 = arith.addi %156, %c96_i32 : i32
      %224 = tpu.assume_multiple %223, 8 : i32
      %225 = arith.index_cast %224 : i32 to index
      %c0_148 = arith.constant 0 : index
      %226 = vector.load %arg14[%225, %c0_148] : memref<8256x32xf32, #tpu.memory_space<vmem>>, vector<192x32xf32>
      tpu.vector_store %arg14[%225, %c0_148], %222 {strides = array<i32>} : memref<8256x32xf32, #tpu.memory_space<vmem>>, vector<192x32xf32>,
    }
    %c42_i32_30 = arith.constant 42 : i32
    %cst_31 = arith.constant 0.000000e+00 : f32
    %24 = vector.broadcast %cst_31 : f32 to vector<96x32xf32>
    %c8160 = arith.constant 8160 : index
    %c0_32 = arith.constant 0 : index
    %25 = vector.load %arg14[%c8160, %c0_32] : memref<8256x32xf32, #tpu.memory_space<vmem>>, vector<96x32xf32>
    tpu.vector_store %arg14[%c8160, %c0_32], %24 {strides = array<i32>} : memref<8256x32xf32, #tpu.memory_space<vmem>>, vector<96x32xf32>,
    %26 = tpu.iota {dimensions = array<i32: 0>} : vector<43x86xi32>
    %27 = tpu.iota {dimensions = array<i32: 1>} : vector<43x86xi32>
    %c2_i32 = arith.constant 2 : i32
    %28 = vector.broadcast %c2_i32 : i32 to vector<43x86xi32>
    %29 = arith.muli %28, %26 : vector<43x86xi32>
    %30 = arith.cmpi eq, %27, %29 : vector<43x86xi32>
    %c0_i32_33 = arith.constant 0 : i32
    %31 = vector.broadcast %c0_i32_33 : i32 to vector<43x86xi32>
    %32 = arith.cmpi sgt, %27, %31 : vector<43x86xi32>
    %33 = arith.andi %30, %32 : vector<43x86xi1>
    %34 = arith.extui %33 : vector<43x86xi1> to vector<43x86xi32>
    %35 = arith.sitofp %34 : vector<43x86xi32> to vector<43x86xf32>
    %c2_i32_34 = arith.constant 2 : i32
    %36 = vector.broadcast %c2_i32_34 : i32 to vector<43x86xi32>
    %37 = arith.muli %36, %26 : vector<43x86xi32>
    %c1_i32_35 = arith.constant 1 : i32
    %38 = vector.broadcast %c1_i32_35 : i32 to vector<43x86xi32>
    %39 = arith.addi %37, %38 : vector<43x86xi32>
    %40 = arith.cmpi eq, %27, %39 : vector<43x86xi32>
    %c85_i32 = arith.constant 85 : i32
    %41 = vector.broadcast %c85_i32 : i32 to vector<43x86xi32>
    %42 = arith.cmpi slt, %27, %41 : vector<43x86xi32>
    %43 = arith.andi %40, %42 : vector<43x86xi1>
    %44 = arith.extui %43 : vector<43x86xi1> to vector<43x86xi32>
    %45 = arith.sitofp %44 : vector<43x86xi32> to vector<43x86xf32>
    %c0_i32_36 = arith.constant 0 : i32
    %c43_i32 = arith.constant 43 : i32
    %46 = arith.addi %c0_i32_36, %c43_i32 : i32
    %c1_i32_37 = arith.constant 1 : i32
    scf.for %arg22 = %c0_i32_36 to %46 step %c1_i32_37  : i32 {
      %c2_i32_107 = arith.constant 2 : i32
      %155 = arith.muli %c2_i32_107, %arg22 : i32
      %c96_i32 = arith.constant 96 : i32
      %156 = arith.muli %155, %c96_i32 : i32
      %157 = tpu.assume_multiple %156, 8 : i32
      %158 = arith.index_cast %157 : i32 to index
      %c0_108 = arith.constant 0 : index
      %159 = vector.load %arg14[%158, %c0_108] : memref<8256x32xf32, #tpu.memory_space<vmem>>, vector<86x32xf32>
      %c96_i32_109 = arith.constant 96 : i32
      %160 = arith.addi %157, %c96_i32_109 : i32
      %161 = arith.index_cast %160 : i32 to index
      %c0_110 = arith.constant 0 : index
      %162 = vector.load %arg14[%161, %c0_110] : memref<8256x32xf32, #tpu.memory_space<vmem>>, vector<86x32xf32>
      %163 = arith.maximumf %159, %162 : vector<86x32xf32>
      %cst_111 = arith.constant dense<0.000000e+00> : vector<43x32xf32>
      %164 = tpu.matmul %35, %163, %cst_111 {dimension_numbers = #tpu.dot_dimension_numbers<[1], [0], [0], [1], [0, 0, 1, 1], [], []>} : vector<43x86xf32>, vector<86x32xf32>, vector<43x32xf32> -> vector<43x32xf32>
      %cst_112 = arith.constant dense<0.000000e+00> : vector<43x32xf32>
      %165 = tpu.matmul %45, %163, %cst_112 {dimension_numbers = #tpu.dot_dimension_numbers<[1], [0], [0], [1], [0, 0, 1, 1], [], []>} : vector<43x86xf32>, vector<86x32xf32>, vector<43x32xf32> -> vector<43x32xf32>
      %166 = arith.maximumf %164, %165 : vector<43x32xf32>
      %cst_113 = arith.constant 0.000000e+00 : f32
      %167 = vector.broadcast %cst_113 : f32 to vector<43x32xf32>
      %168 = arith.maximumf %166, %167 : vector<43x32xf32>
      %c1_i32_114 = arith.constant 1 : i32
      %169 = arith.addi %arg22, %c1_i32_114 : i32
      %c56_i32 = arith.constant 56 : i32
      %170 = arith.muli %169, %c56_i32 : i32
      %c8_i32 = arith.constant 8 : i32
      %171 = arith.addi %170, %c8_i32 : i32
      %172 = tpu.assume_multiple %171, 8 : i32
      %173 = arith.index_cast %172 : i32 to index
      %c0_115 = arith.constant 0 : index
      %174 = vector.load %arg15[%173, %c0_115] : memref<2640x32xf32, #tpu.memory_space<vmem>>, vector<43x32xf32>
      tpu.vector_store %arg15[%173, %c0_115], %168 {strides = array<i32>} : memref<2640x32xf32, #tpu.memory_space<vmem>>, vector<43x32xf32>,
    }
    %c43_i32_38 = arith.constant 43 : i32
    %c0_39 = arith.constant 0 : index
    %c0_40 = arith.constant 0 : index
    %47 = vector.load %arg5[%c0_39, %c0_40] : memref<1x32xf32, #tpu.memory_space<vmem>>, vector<1x32xf32>
    %cst_41 = arith.constant 0.000000e+00 : f32
    %48 = vector.broadcast %cst_41 : f32 to vector<56x32xf32>
    %c0_42 = arith.constant 0 : index
    %c0_43 = arith.constant 0 : index
    %49 = vector.load %arg16[%c0_42, %c0_43] : memref<2576x32xf32, #tpu.memory_space<vmem>>, vector<56x32xf32>
    tpu.vector_store %arg16[%c0_42, %c0_43], %48 {strides = array<i32>} : memref<2576x32xf32, #tpu.memory_space<vmem>>, vector<56x32xf32>,
    %c0_i32_44 = arith.constant 0 : i32
    %c15_i32 = arith.constant 15 : i32
    %50 = arith.addi %c0_i32_44, %c15_i32 : i32
    %c1_i32_45 = arith.constant 1 : i32
    scf.for %arg22 = %c0_i32_44 to %50 step %c1_i32_45  : i32 {
      %c168_i32 = arith.constant 168 : i32
      %155 = arith.muli %arg22, %c168_i32 : i32
      %156 = tpu.assume_multiple %155, 8 : i32
      %cst_107 = arith.constant 0.000000e+00 : f32
      %157 = vector.broadcast %cst_107 : f32 to vector<168x32xf32>
      %c6_i32_108 = arith.constant 6 : i32
      %158 = arith.addi %156, %c6_i32_108 : i32
      %159 = arith.index_cast %158 : i32 to index
      %c0_109 = arith.constant 0 : index
      %160 = vector.load %arg15[%159, %c0_109] : memref<2640x32xf32, #tpu.memory_space<vmem>>, vector<168x32xf32>
      %c0_110 = arith.constant 0 : index
      %c0_111 = arith.constant 0 : index
      %c0_112 = arith.constant 0 : index
      %161 = vector.load %arg4[%c0_110, %c0_111, %c0_112] : memref<9x32x32xf32, #tpu.memory_space<vmem>>, vector<1x32x32xf32>
      %162 = vector.shape_cast %161 : vector<1x32x32xf32> to vector<32x32xf32>
      %cst_113 = arith.constant dense<0.000000e+00> : vector<168x32xf32>
      %163 = tpu.matmul %160, %162, %cst_113 {dimension_numbers = #tpu.dot_dimension_numbers<[1], [0], [0], [1], [0, 0, 1, 1], [], []>} : vector<168x32xf32>, vector<32x32xf32>, vector<168x32xf32> -> vector<168x32xf32>
      %164 = arith.addf %157, %163 : vector<168x32xf32>
      %c7_i32_114 = arith.constant 7 : i32
      %165 = arith.addi %156, %c7_i32_114 : i32
      %166 = arith.index_cast %165 : i32 to index
      %c0_115 = arith.constant 0 : index
      %167 = vector.load %arg15[%166, %c0_115] : memref<2640x32xf32, #tpu.memory_space<vmem>>, vector<168x32xf32>
      %c1_116 = arith.constant 1 : index
      %c0_117 = arith.constant 0 : index
      %c0_118 = arith.constant 0 : index
      %168 = vector.load %arg4[%c1_116, %c0_117, %c0_118] : memref<9x32x32xf32, #tpu.memory_space<vmem>>, vector<1x32x32xf32>
      %169 = vector.shape_cast %168 : vector<1x32x32xf32> to vector<32x32xf32>
      %cst_119 = arith.constant dense<0.000000e+00> : vector<168x32xf32>
      %170 = tpu.matmul %167, %169, %cst_119 {dimension_numbers = #tpu.dot_dimension_numbers<[1], [0], [0], [1], [0, 0, 1, 1], [], []>} : vector<168x32xf32>, vector<32x32xf32>, vector<168x32xf32> -> vector<168x32xf32>
      %171 = arith.addf %164, %170 : vector<168x32xf32>
      %c8_i32 = arith.constant 8 : i32
      %172 = arith.addi %156, %c8_i32 : i32
      %173 = arith.index_cast %172 : i32 to index
      %c0_120 = arith.constant 0 : index
      %174 = vector.load %arg15[%173, %c0_120] : memref<2640x32xf32, #tpu.memory_space<vmem>>, vector<168x32xf32>
      %c2 = arith.constant 2 : index
      %c0_121 = arith.constant 0 : index
      %c0_122 = arith.constant 0 : index
      %175 = vector.load %arg4[%c2, %c0_121, %c0_122] : memref<9x32x32xf32, #tpu.memory_space<vmem>>, vector<1x32x32xf32>
      %176 = vector.shape_cast %175 : vector<1x32x32xf32> to vector<32x32xf32>
      %cst_123 = arith.constant dense<0.000000e+00> : vector<168x32xf32>
      %177 = tpu.matmul %174, %176, %cst_123 {dimension_numbers = #tpu.dot_dimension_numbers<[1], [0], [0], [1], [0, 0, 1, 1], [], []>} : vector<168x32xf32>, vector<32x32xf32>, vector<168x32xf32> -> vector<168x32xf32>
      %178 = arith.addf %171, %177 : vector<168x32xf32>
      %c62_i32 = arith.constant 62 : i32
      %179 = arith.addi %156, %c62_i32 : i32
      %180 = arith.index_cast %179 : i32 to index
      %c0_124 = arith.constant 0 : index
      %181 = vector.load %arg15[%180, %c0_124] : memref<2640x32xf32, #tpu.memory_space<vmem>>, vector<168x32xf32>
      %c3 = arith.constant 3 : index
      %c0_125 = arith.constant 0 : index
      %c0_126 = arith.constant 0 : index
      %182 = vector.load %arg4[%c3, %c0_125, %c0_126] : memref<9x32x32xf32, #tpu.memory_space<vmem>>, vector<1x32x32xf32>
      %183 = vector.shape_cast %182 : vector<1x32x32xf32> to vector<32x32xf32>
      %cst_127 = arith.constant dense<0.000000e+00> : vector<168x32xf32>
      %184 = tpu.matmul %181, %183, %cst_127 {dimension_numbers = #tpu.dot_dimension_numbers<[1], [0], [0], [1], [0, 0, 1, 1], [], []>} : vector<168x32xf32>, vector<32x32xf32>, vector<168x32xf32> -> vector<168x32xf32>
      %185 = arith.addf %178, %184 : vector<168x32xf32>
      %c63_i32 = arith.constant 63 : i32
      %186 = arith.addi %156, %c63_i32 : i32
      %187 = arith.index_cast %186 : i32 to index
      %c0_128 = arith.constant 0 : index
      %188 = vector.load %arg15[%187, %c0_128] : memref<2640x32xf32, #tpu.memory_space<vmem>>, vector<168x32xf32>
      %c4 = arith.constant 4 : index
      %c0_129 = arith.constant 0 : index
      %c0_130 = arith.constant 0 : index
      %189 = vector.load %arg4[%c4, %c0_129, %c0_130] : memref<9x32x32xf32, #tpu.memory_space<vmem>>, vector<1x32x32xf32>
      %190 = vector.shape_cast %189 : vector<1x32x32xf32> to vector<32x32xf32>
      %cst_131 = arith.constant dense<0.000000e+00> : vector<168x32xf32>
      %191 = tpu.matmul %188, %190, %cst_131 {dimension_numbers = #tpu.dot_dimension_numbers<[1], [0], [0], [1], [0, 0, 1, 1], [], []>} : vector<168x32xf32>, vector<32x32xf32>, vector<168x32xf32> -> vector<168x32xf32>
      %192 = arith.addf %185, %191 : vector<168x32xf32>
      %c64_i32 = arith.constant 64 : i32
      %193 = arith.addi %156, %c64_i32 : i32
      %194 = arith.index_cast %193 : i32 to index
      %c0_132 = arith.constant 0 : index
      %195 = vector.load %arg15[%194, %c0_132] : memref<2640x32xf32, #tpu.memory_space<vmem>>, vector<168x32xf32>
      %c5 = arith.constant 5 : index
      %c0_133 = arith.constant 0 : index
      %c0_134 = arith.constant 0 : index
      %196 = vector.load %arg4[%c5, %c0_133, %c0_134] : memref<9x32x32xf32, #tpu.memory_space<vmem>>, vector<1x32x32xf32>
      %197 = vector.shape_cast %196 : vector<1x32x32xf32> to vector<32x32xf32>
      %cst_135 = arith.constant dense<0.000000e+00> : vector<168x32xf32>
      %198 = tpu.matmul %195, %197, %cst_135 {dimension_numbers = #tpu.dot_dimension_numbers<[1], [0], [0], [1], [0, 0, 1, 1], [], []>} : vector<168x32xf32>, vector<32x32xf32>, vector<168x32xf32> -> vector<168x32xf32>
      %199 = arith.addf %192, %198 : vector<168x32xf32>
      %c118_i32 = arith.constant 118 : i32
      %200 = arith.addi %156, %c118_i32 : i32
      %201 = arith.index_cast %200 : i32 to index
      %c0_136 = arith.constant 0 : index
      %202 = vector.load %arg15[%201, %c0_136] : memref<2640x32xf32, #tpu.memory_space<vmem>>, vector<168x32xf32>
      %c6 = arith.constant 6 : index
      %c0_137 = arith.constant 0 : index
      %c0_138 = arith.constant 0 : index
      %203 = vector.load %arg4[%c6, %c0_137, %c0_138] : memref<9x32x32xf32, #tpu.memory_space<vmem>>, vector<1x32x32xf32>
      %204 = vector.shape_cast %203 : vector<1x32x32xf32> to vector<32x32xf32>
      %cst_139 = arith.constant dense<0.000000e+00> : vector<168x32xf32>
      %205 = tpu.matmul %202, %204, %cst_139 {dimension_numbers = #tpu.dot_dimension_numbers<[1], [0], [0], [1], [0, 0, 1, 1], [], []>} : vector<168x32xf32>, vector<32x32xf32>, vector<168x32xf32> -> vector<168x32xf32>
      %206 = arith.addf %199, %205 : vector<168x32xf32>
      %c119_i32 = arith.constant 119 : i32
      %207 = arith.addi %156, %c119_i32 : i32
      %208 = arith.index_cast %207 : i32 to index
      %c0_140 = arith.constant 0 : index
      %209 = vector.load %arg15[%208, %c0_140] : memref<2640x32xf32, #tpu.memory_space<vmem>>, vector<168x32xf32>
      %c7 = arith.constant 7 : index
      %c0_141 = arith.constant 0 : index
      %c0_142 = arith.constant 0 : index
      %210 = vector.load %arg4[%c7, %c0_141, %c0_142] : memref<9x32x32xf32, #tpu.memory_space<vmem>>, vector<1x32x32xf32>
      %211 = vector.shape_cast %210 : vector<1x32x32xf32> to vector<32x32xf32>
      %cst_143 = arith.constant dense<0.000000e+00> : vector<168x32xf32>
      %212 = tpu.matmul %209, %211, %cst_143 {dimension_numbers = #tpu.dot_dimension_numbers<[1], [0], [0], [1], [0, 0, 1, 1], [], []>} : vector<168x32xf32>, vector<32x32xf32>, vector<168x32xf32> -> vector<168x32xf32>
      %213 = arith.addf %206, %212 : vector<168x32xf32>
      %c120_i32 = arith.constant 120 : i32
      %214 = arith.addi %156, %c120_i32 : i32
      %215 = arith.index_cast %214 : i32 to index
      %c0_144 = arith.constant 0 : index
      %216 = vector.load %arg15[%215, %c0_144] : memref<2640x32xf32, #tpu.memory_space<vmem>>, vector<168x32xf32>
      %c8 = arith.constant 8 : index
      %c0_145 = arith.constant 0 : index
      %c0_146 = arith.constant 0 : index
      %217 = vector.load %arg4[%c8, %c0_145, %c0_146] : memref<9x32x32xf32, #tpu.memory_space<vmem>>, vector<1x32x32xf32>
      %218 = vector.shape_cast %217 : vector<1x32x32xf32> to vector<32x32xf32>
      %cst_147 = arith.constant dense<0.000000e+00> : vector<168x32xf32>
      %219 = tpu.matmul %216, %218, %cst_147 {dimension_numbers = #tpu.dot_dimension_numbers<[1], [0], [0], [1], [0, 0, 1, 1], [], []>} : vector<168x32xf32>, vector<32x32xf32>, vector<168x32xf32> -> vector<168x32xf32>
      %220 = arith.addf %213, %219 : vector<168x32xf32>
      %221 = vector.broadcast %47 : vector<1x32xf32> to vector<168x32xf32>
      %222 = arith.addf %220, %221 : vector<168x32xf32>
      %c56_i32 = arith.constant 56 : i32
      %223 = arith.addi %156, %c56_i32 : i32
      %224 = tpu.assume_multiple %223, 8 : i32
      %225 = arith.index_cast %224 : i32 to index
      %c0_148 = arith.constant 0 : index
      %226 = vector.load %arg16[%225, %c0_148] : memref<2576x32xf32, #tpu.memory_space<vmem>>, vector<168x32xf32>
      tpu.vector_store %arg16[%225, %c0_148], %222 {strides = array<i32>} : memref<2576x32xf32, #tpu.memory_space<vmem>>, vector<168x32xf32>,
    }
    %c15_i32_46 = arith.constant 15 : i32
    %51 = tpu.iota {dimensions = array<i32: 0>} : vector<22x44xi32>
    %52 = tpu.iota {dimensions = array<i32: 1>} : vector<22x44xi32>
    %c2_i32_47 = arith.constant 2 : i32
    %53 = vector.broadcast %c2_i32_47 : i32 to vector<22x44xi32>
    %54 = arith.muli %53, %51 : vector<22x44xi32>
    %55 = arith.cmpi eq, %52, %54 : vector<22x44xi32>
    %c0_i32_48 = arith.constant 0 : i32
    %56 = vector.broadcast %c0_i32_48 : i32 to vector<22x44xi32>
    %57 = arith.cmpi sgt, %52, %56 : vector<22x44xi32>
    %58 = arith.andi %55, %57 : vector<22x44xi1>
    %59 = arith.extui %58 : vector<22x44xi1> to vector<22x44xi32>
    %60 = arith.sitofp %59 : vector<22x44xi32> to vector<22x44xf32>
    %c2_i32_49 = arith.constant 2 : i32
    %61 = vector.broadcast %c2_i32_49 : i32 to vector<22x44xi32>
    %62 = arith.muli %61, %51 : vector<22x44xi32>
    %c1_i32_50 = arith.constant 1 : i32
    %63 = vector.broadcast %c1_i32_50 : i32 to vector<22x44xi32>
    %64 = arith.addi %62, %63 : vector<22x44xi32>
    %65 = arith.cmpi eq, %52, %64 : vector<22x44xi32>
    %66 = arith.extui %65 : vector<22x44xi1> to vector<22x44xi32>
    %67 = arith.sitofp %66 : vector<22x44xi32> to vector<22x44xf32>
    %c0_i32_51 = arith.constant 0 : i32
    %c22_i32 = arith.constant 22 : i32
    %68 = arith.addi %c0_i32_51, %c22_i32 : i32
    %c1_i32_52 = arith.constant 1 : i32
    scf.for %arg22 = %c0_i32_51 to %68 step %c1_i32_52  : i32 {
      %c2_i32_107 = arith.constant 2 : i32
      %155 = arith.muli %c2_i32_107, %arg22 : i32
      %c56_i32 = arith.constant 56 : i32
      %156 = arith.muli %155, %c56_i32 : i32
      %157 = tpu.assume_multiple %156, 8 : i32
      %158 = arith.index_cast %157 : i32 to index
      %c0_108 = arith.constant 0 : index
      %159 = vector.load %arg16[%158, %c0_108] : memref<2576x32xf32, #tpu.memory_space<vmem>>, vector<44x32xf32>
      %c56_i32_109 = arith.constant 56 : i32
      %160 = arith.addi %157, %c56_i32_109 : i32
      %161 = arith.index_cast %160 : i32 to index
      %c0_110 = arith.constant 0 : index
      %162 = vector.load %arg16[%161, %c0_110] : memref<2576x32xf32, #tpu.memory_space<vmem>>, vector<44x32xf32>
      %163 = arith.maximumf %159, %162 : vector<44x32xf32>
      %cst_111 = arith.constant dense<0.000000e+00> : vector<22x32xf32>
      %164 = tpu.matmul %60, %163, %cst_111 {dimension_numbers = #tpu.dot_dimension_numbers<[1], [0], [0], [1], [0, 0, 1, 1], [], []>} : vector<22x44xf32>, vector<44x32xf32>, vector<22x32xf32> -> vector<22x32xf32>
      %cst_112 = arith.constant dense<0.000000e+00> : vector<22x32xf32>
      %165 = tpu.matmul %67, %163, %cst_112 {dimension_numbers = #tpu.dot_dimension_numbers<[1], [0], [0], [1], [0, 0, 1, 1], [], []>} : vector<22x44xf32>, vector<44x32xf32>, vector<22x32xf32> -> vector<22x32xf32>
      %166 = arith.maximumf %164, %165 : vector<22x32xf32>
      %cst_113 = arith.constant 0.000000e+00 : f32
      %167 = vector.broadcast %cst_113 : f32 to vector<22x32xf32>
      %168 = arith.maximumf %166, %167 : vector<22x32xf32>
      %c1_i32_114 = arith.constant 1 : i32
      %169 = arith.addi %arg22, %c1_i32_114 : i32
      %c32_i32 = arith.constant 32 : i32
      %170 = arith.muli %169, %c32_i32 : i32
      %c8_i32 = arith.constant 8 : i32
      %171 = arith.addi %170, %c8_i32 : i32
      %172 = tpu.assume_multiple %171, 8 : i32
      %173 = arith.index_cast %172 : i32 to index
      %c0_115 = arith.constant 0 : index
      %174 = vector.load %arg17[%173, %c0_115] : memref<840x32xf32, #tpu.memory_space<vmem>>, vector<22x32xf32>
      tpu.vector_store %arg17[%173, %c0_115], %168 {strides = array<i32>} : memref<840x32xf32, #tpu.memory_space<vmem>>, vector<22x32xf32>,
    }
    %c22_i32_53 = arith.constant 22 : i32
    %c0_54 = arith.constant 0 : index
    %c0_55 = arith.constant 0 : index
    %69 = vector.load %arg7[%c0_54, %c0_55] : memref<1x32xf32, #tpu.memory_space<vmem>>, vector<1x32xf32>
    %cst_56 = arith.constant 0.000000e+00 : f32
    %70 = vector.broadcast %cst_56 : f32 to vector<32x32xf32>
    %c0_57 = arith.constant 0 : index
    %c0_58 = arith.constant 0 : index
    %71 = vector.load %arg18[%c0_57, %c0_58] : memref<800x32xf32, #tpu.memory_space<vmem>>, vector<32x32xf32>
    tpu.vector_store %arg18[%c0_57, %c0_58], %70 {strides = array<i32>} : memref<800x32xf32, #tpu.memory_space<vmem>>, vector<32x32xf32>,
    %c0_i32_59 = arith.constant 0 : i32
    %c6_i32 = arith.constant 6 : i32
    %72 = arith.addi %c0_i32_59, %c6_i32 : i32
    %c1_i32_60 = arith.constant 1 : i32
    scf.for %arg22 = %c0_i32_59 to %72 step %c1_i32_60  : i32 {
      %c128_i32 = arith.constant 128 : i32
      %155 = arith.muli %arg22, %c128_i32 : i32
      %156 = tpu.assume_multiple %155, 8 : i32
      %cst_107 = arith.constant 0.000000e+00 : f32
      %157 = vector.broadcast %cst_107 : f32 to vector<128x32xf32>
      %c6_i32_108 = arith.constant 6 : i32
      %158 = arith.addi %156, %c6_i32_108 : i32
      %159 = arith.index_cast %158 : i32 to index
      %c0_109 = arith.constant 0 : index
      %160 = vector.load %arg17[%159, %c0_109] : memref<840x32xf32, #tpu.memory_space<vmem>>, vector<128x32xf32>
      %c0_110 = arith.constant 0 : index
      %c0_111 = arith.constant 0 : index
      %c0_112 = arith.constant 0 : index
      %161 = vector.load %arg6[%c0_110, %c0_111, %c0_112] : memref<9x32x32xf32, #tpu.memory_space<vmem>>, vector<1x32x32xf32>
      %162 = vector.shape_cast %161 : vector<1x32x32xf32> to vector<32x32xf32>
      %cst_113 = arith.constant dense<0.000000e+00> : vector<128x32xf32>
      %163 = tpu.matmul %160, %162, %cst_113 {dimension_numbers = #tpu.dot_dimension_numbers<[1], [0], [0], [1], [0, 0, 1, 1], [], []>} : vector<128x32xf32>, vector<32x32xf32>, vector<128x32xf32> -> vector<128x32xf32>
      %164 = arith.addf %157, %163 : vector<128x32xf32>
      %c7_i32_114 = arith.constant 7 : i32
      %165 = arith.addi %156, %c7_i32_114 : i32
      %166 = arith.index_cast %165 : i32 to index
      %c0_115 = arith.constant 0 : index
      %167 = vector.load %arg17[%166, %c0_115] : memref<840x32xf32, #tpu.memory_space<vmem>>, vector<128x32xf32>
      %c1_116 = arith.constant 1 : index
      %c0_117 = arith.constant 0 : index
      %c0_118 = arith.constant 0 : index
      %168 = vector.load %arg6[%c1_116, %c0_117, %c0_118] : memref<9x32x32xf32, #tpu.memory_space<vmem>>, vector<1x32x32xf32>
      %169 = vector.shape_cast %168 : vector<1x32x32xf32> to vector<32x32xf32>
      %cst_119 = arith.constant dense<0.000000e+00> : vector<128x32xf32>
      %170 = tpu.matmul %167, %169, %cst_119 {dimension_numbers = #tpu.dot_dimension_numbers<[1], [0], [0], [1], [0, 0, 1, 1], [], []>} : vector<128x32xf32>, vector<32x32xf32>, vector<128x32xf32> -> vector<128x32xf32>
      %171 = arith.addf %164, %170 : vector<128x32xf32>
      %c8_i32 = arith.constant 8 : i32
      %172 = arith.addi %156, %c8_i32 : i32
      %173 = arith.index_cast %172 : i32 to index
      %c0_120 = arith.constant 0 : index
      %174 = vector.load %arg17[%173, %c0_120] : memref<840x32xf32, #tpu.memory_space<vmem>>, vector<128x32xf32>
      %c2 = arith.constant 2 : index
      %c0_121 = arith.constant 0 : index
      %c0_122 = arith.constant 0 : index
      %175 = vector.load %arg6[%c2, %c0_121, %c0_122] : memref<9x32x32xf32, #tpu.memory_space<vmem>>, vector<1x32x32xf32>
      %176 = vector.shape_cast %175 : vector<1x32x32xf32> to vector<32x32xf32>
      %cst_123 = arith.constant dense<0.000000e+00> : vector<128x32xf32>
      %177 = tpu.matmul %174, %176, %cst_123 {dimension_numbers = #tpu.dot_dimension_numbers<[1], [0], [0], [1], [0, 0, 1, 1], [], []>} : vector<128x32xf32>, vector<32x32xf32>, vector<128x32xf32> -> vector<128x32xf32>
      %178 = arith.addf %171, %177 : vector<128x32xf32>
      %c38_i32 = arith.constant 38 : i32
      %179 = arith.addi %156, %c38_i32 : i32
      %180 = arith.index_cast %179 : i32 to index
      %c0_124 = arith.constant 0 : index
      %181 = vector.load %arg17[%180, %c0_124] : memref<840x32xf32, #tpu.memory_space<vmem>>, vector<128x32xf32>
      %c3 = arith.constant 3 : index
      %c0_125 = arith.constant 0 : index
      %c0_126 = arith.constant 0 : index
      %182 = vector.load %arg6[%c3, %c0_125, %c0_126] : memref<9x32x32xf32, #tpu.memory_space<vmem>>, vector<1x32x32xf32>
      %183 = vector.shape_cast %182 : vector<1x32x32xf32> to vector<32x32xf32>
      %cst_127 = arith.constant dense<0.000000e+00> : vector<128x32xf32>
      %184 = tpu.matmul %181, %183, %cst_127 {dimension_numbers = #tpu.dot_dimension_numbers<[1], [0], [0], [1], [0, 0, 1, 1], [], []>} : vector<128x32xf32>, vector<32x32xf32>, vector<128x32xf32> -> vector<128x32xf32>
      %185 = arith.addf %178, %184 : vector<128x32xf32>
      %c39_i32 = arith.constant 39 : i32
      %186 = arith.addi %156, %c39_i32 : i32
      %187 = arith.index_cast %186 : i32 to index
      %c0_128 = arith.constant 0 : index
      %188 = vector.load %arg17[%187, %c0_128] : memref<840x32xf32, #tpu.memory_space<vmem>>, vector<128x32xf32>
      %c4 = arith.constant 4 : index
      %c0_129 = arith.constant 0 : index
      %c0_130 = arith.constant 0 : index
      %189 = vector.load %arg6[%c4, %c0_129, %c0_130] : memref<9x32x32xf32, #tpu.memory_space<vmem>>, vector<1x32x32xf32>
      %190 = vector.shape_cast %189 : vector<1x32x32xf32> to vector<32x32xf32>
      %cst_131 = arith.constant dense<0.000000e+00> : vector<128x32xf32>
      %191 = tpu.matmul %188, %190, %cst_131 {dimension_numbers = #tpu.dot_dimension_numbers<[1], [0], [0], [1], [0, 0, 1, 1], [], []>} : vector<128x32xf32>, vector<32x32xf32>, vector<128x32xf32> -> vector<128x32xf32>
      %192 = arith.addf %185, %191 : vector<128x32xf32>
      %c40_i32 = arith.constant 40 : i32
      %193 = arith.addi %156, %c40_i32 : i32
      %194 = arith.index_cast %193 : i32 to index
      %c0_132 = arith.constant 0 : index
      %195 = vector.load %arg17[%194, %c0_132] : memref<840x32xf32, #tpu.memory_space<vmem>>, vector<128x32xf32>
      %c5 = arith.constant 5 : index
      %c0_133 = arith.constant 0 : index
      %c0_134 = arith.constant 0 : index
      %196 = vector.load %arg6[%c5, %c0_133, %c0_134] : memref<9x32x32xf32, #tpu.memory_space<vmem>>, vector<1x32x32xf32>
      %197 = vector.shape_cast %196 : vector<1x32x32xf32> to vector<32x32xf32>
      %cst_135 = arith.constant dense<0.000000e+00> : vector<128x32xf32>
      %198 = tpu.matmul %195, %197, %cst_135 {dimension_numbers = #tpu.dot_dimension_numbers<[1], [0], [0], [1], [0, 0, 1, 1], [], []>} : vector<128x32xf32>, vector<32x32xf32>, vector<128x32xf32> -> vector<128x32xf32>
      %199 = arith.addf %192, %198 : vector<128x32xf32>
      %c70_i32 = arith.constant 70 : i32
      %200 = arith.addi %156, %c70_i32 : i32
      %201 = arith.index_cast %200 : i32 to index
      %c0_136 = arith.constant 0 : index
      %202 = vector.load %arg17[%201, %c0_136] : memref<840x32xf32, #tpu.memory_space<vmem>>, vector<128x32xf32>
      %c6 = arith.constant 6 : index
      %c0_137 = arith.constant 0 : index
      %c0_138 = arith.constant 0 : index
      %203 = vector.load %arg6[%c6, %c0_137, %c0_138] : memref<9x32x32xf32, #tpu.memory_space<vmem>>, vector<1x32x32xf32>
      %204 = vector.shape_cast %203 : vector<1x32x32xf32> to vector<32x32xf32>
      %cst_139 = arith.constant dense<0.000000e+00> : vector<128x32xf32>
      %205 = tpu.matmul %202, %204, %cst_139 {dimension_numbers = #tpu.dot_dimension_numbers<[1], [0], [0], [1], [0, 0, 1, 1], [], []>} : vector<128x32xf32>, vector<32x32xf32>, vector<128x32xf32> -> vector<128x32xf32>
      %206 = arith.addf %199, %205 : vector<128x32xf32>
      %c71_i32 = arith.constant 71 : i32
      %207 = arith.addi %156, %c71_i32 : i32
      %208 = arith.index_cast %207 : i32 to index
      %c0_140 = arith.constant 0 : index
      %209 = vector.load %arg17[%208, %c0_140] : memref<840x32xf32, #tpu.memory_space<vmem>>, vector<128x32xf32>
      %c7 = arith.constant 7 : index
      %c0_141 = arith.constant 0 : index
      %c0_142 = arith.constant 0 : index
      %210 = vector.load %arg6[%c7, %c0_141, %c0_142] : memref<9x32x32xf32, #tpu.memory_space<vmem>>, vector<1x32x32xf32>
      %211 = vector.shape_cast %210 : vector<1x32x32xf32> to vector<32x32xf32>
      %cst_143 = arith.constant dense<0.000000e+00> : vector<128x32xf32>
      %212 = tpu.matmul %209, %211, %cst_143 {dimension_numbers = #tpu.dot_dimension_numbers<[1], [0], [0], [1], [0, 0, 1, 1], [], []>} : vector<128x32xf32>, vector<32x32xf32>, vector<128x32xf32> -> vector<128x32xf32>
      %213 = arith.addf %206, %212 : vector<128x32xf32>
      %c72_i32 = arith.constant 72 : i32
      %214 = arith.addi %156, %c72_i32 : i32
      %215 = arith.index_cast %214 : i32 to index
      %c0_144 = arith.constant 0 : index
      %216 = vector.load %arg17[%215, %c0_144] : memref<840x32xf32, #tpu.memory_space<vmem>>, vector<128x32xf32>
      %c8 = arith.constant 8 : index
      %c0_145 = arith.constant 0 : index
      %c0_146 = arith.constant 0 : index
      %217 = vector.load %arg6[%c8, %c0_145, %c0_146] : memref<9x32x32xf32, #tpu.memory_space<vmem>>, vector<1x32x32xf32>
      %218 = vector.shape_cast %217 : vector<1x32x32xf32> to vector<32x32xf32>
      %cst_147 = arith.constant dense<0.000000e+00> : vector<128x32xf32>
      %219 = tpu.matmul %216, %218, %cst_147 {dimension_numbers = #tpu.dot_dimension_numbers<[1], [0], [0], [1], [0, 0, 1, 1], [], []>} : vector<128x32xf32>, vector<32x32xf32>, vector<128x32xf32> -> vector<128x32xf32>
      %220 = arith.addf %213, %219 : vector<128x32xf32>
      %221 = vector.broadcast %69 : vector<1x32xf32> to vector<128x32xf32>
      %222 = arith.addf %220, %221 : vector<128x32xf32>
      %c32_i32 = arith.constant 32 : i32
      %223 = arith.addi %156, %c32_i32 : i32
      %224 = tpu.assume_multiple %223, 8 : i32
      %225 = arith.index_cast %224 : i32 to index
      %c0_148 = arith.constant 0 : index
      %226 = vector.load %arg18[%225, %c0_148] : memref<800x32xf32, #tpu.memory_space<vmem>>, vector<128x32xf32>
      tpu.vector_store %arg18[%225, %c0_148], %222 {strides = array<i32>} : memref<800x32xf32, #tpu.memory_space<vmem>>, vector<128x32xf32>,
    }
    %c6_i32_61 = arith.constant 6 : i32
    %cst_62 = arith.constant 0.000000e+00 : f32
    %73 = vector.broadcast %cst_62 : f32 to vector<32x32xf32>
    %c736 = arith.constant 736 : index
    %c0_63 = arith.constant 0 : index
    %74 = vector.load %arg18[%c736, %c0_63] : memref<800x32xf32, #tpu.memory_space<vmem>>, vector<32x32xf32>
    tpu.vector_store %arg18[%c736, %c0_63], %73 {strides = array<i32>} : memref<800x32xf32, #tpu.memory_space<vmem>>, vector<32x32xf32>,
    %75 = tpu.iota {dimensions = array<i32: 0>} : vector<12x24xi32>
    %76 = tpu.iota {dimensions = array<i32: 1>} : vector<12x24xi32>
    %c2_i32_64 = arith.constant 2 : i32
    %77 = vector.broadcast %c2_i32_64 : i32 to vector<12x24xi32>
    %78 = arith.muli %77, %75 : vector<12x24xi32>
    %79 = arith.cmpi eq, %76, %78 : vector<12x24xi32>
    %c0_i32_65 = arith.constant 0 : i32
    %80 = vector.broadcast %c0_i32_65 : i32 to vector<12x24xi32>
    %81 = arith.cmpi sgt, %76, %80 : vector<12x24xi32>
    %82 = arith.andi %79, %81 : vector<12x24xi1>
    %83 = arith.extui %82 : vector<12x24xi1> to vector<12x24xi32>
    %84 = arith.sitofp %83 : vector<12x24xi32> to vector<12x24xf32>
    %c2_i32_66 = arith.constant 2 : i32
    %85 = vector.broadcast %c2_i32_66 : i32 to vector<12x24xi32>
    %86 = arith.muli %85, %75 : vector<12x24xi32>
    %c1_i32_67 = arith.constant 1 : i32
    %87 = vector.broadcast %c1_i32_67 : i32 to vector<12x24xi32>
    %88 = arith.addi %86, %87 : vector<12x24xi32>
    %89 = arith.cmpi eq, %76, %88 : vector<12x24xi32>
    %c23_i32 = arith.constant 23 : i32
    %90 = vector.broadcast %c23_i32 : i32 to vector<12x24xi32>
    %91 = arith.cmpi slt, %76, %90 : vector<12x24xi32>
    %92 = arith.andi %89, %91 : vector<12x24xi1>
    %93 = arith.extui %92 : vector<12x24xi1> to vector<12x24xi32>
    %94 = arith.sitofp %93 : vector<12x24xi32> to vector<12x24xf32>
    %c0_i32_68 = arith.constant 0 : i32
    %c12_i32 = arith.constant 12 : i32
    %95 = arith.addi %c0_i32_68, %c12_i32 : i32
    %c1_i32_69 = arith.constant 1 : i32
    scf.for %arg22 = %c0_i32_68 to %95 step %c1_i32_69  : i32 {
      %c2_i32_107 = arith.constant 2 : i32
      %155 = arith.muli %c2_i32_107, %arg22 : i32
      %c32_i32 = arith.constant 32 : i32
      %156 = arith.muli %155, %c32_i32 : i32
      %157 = tpu.assume_multiple %156, 8 : i32
      %158 = arith.index_cast %157 : i32 to index
      %c0_108 = arith.constant 0 : index
      %159 = vector.load %arg18[%158, %c0_108] : memref<800x32xf32, #tpu.memory_space<vmem>>, vector<24x32xf32>
      %c32_i32_109 = arith.constant 32 : i32
      %160 = arith.addi %157, %c32_i32_109 : i32
      %161 = arith.index_cast %160 : i32 to index
      %c0_110 = arith.constant 0 : index
      %162 = vector.load %arg18[%161, %c0_110] : memref<800x32xf32, #tpu.memory_space<vmem>>, vector<24x32xf32>
      %163 = arith.maximumf %159, %162 : vector<24x32xf32>
      %cst_111 = arith.constant dense<0.000000e+00> : vector<12x32xf32>
      %164 = tpu.matmul %84, %163, %cst_111 {dimension_numbers = #tpu.dot_dimension_numbers<[1], [0], [0], [1], [0, 0, 1, 1], [], []>} : vector<12x24xf32>, vector<24x32xf32>, vector<12x32xf32> -> vector<12x32xf32>
      %cst_112 = arith.constant dense<0.000000e+00> : vector<12x32xf32>
      %165 = tpu.matmul %94, %163, %cst_112 {dimension_numbers = #tpu.dot_dimension_numbers<[1], [0], [0], [1], [0, 0, 1, 1], [], []>} : vector<12x24xf32>, vector<24x32xf32>, vector<12x32xf32> -> vector<12x32xf32>
      %166 = arith.maximumf %164, %165 : vector<12x32xf32>
      %cst_113 = arith.constant 0.000000e+00 : f32
      %167 = vector.broadcast %cst_113 : f32 to vector<12x32xf32>
      %168 = arith.maximumf %166, %167 : vector<12x32xf32>
      %c1_i32_114 = arith.constant 1 : i32
      %169 = arith.addi %arg22, %c1_i32_114 : i32
      %c24_i32 = arith.constant 24 : i32
      %170 = arith.muli %169, %c24_i32 : i32
      %c8_i32 = arith.constant 8 : i32
      %171 = arith.addi %170, %c8_i32 : i32
      %172 = tpu.assume_multiple %171, 8 : i32
      %173 = arith.index_cast %172 : i32 to index
      %c0_115 = arith.constant 0 : index
      %174 = vector.load %arg19[%173, %c0_115] : memref<344x32xf32, #tpu.memory_space<vmem>>, vector<12x32xf32>
      tpu.vector_store %arg19[%173, %c0_115], %168 {strides = array<i32>} : memref<344x32xf32, #tpu.memory_space<vmem>>, vector<12x32xf32>,
    }
    %c12_i32_70 = arith.constant 12 : i32
    %c0_71 = arith.constant 0 : index
    %c0_72 = arith.constant 0 : index
    %96 = vector.load %arg9[%c0_71, %c0_72] : memref<1x32xf32, #tpu.memory_space<vmem>>, vector<1x32xf32>
    %cst_73 = arith.constant 0.000000e+00 : f32
    %97 = vector.broadcast %cst_73 : f32 to vector<24x32xf32>
    %c0_74 = arith.constant 0 : index
    %c0_75 = arith.constant 0 : index
    %98 = vector.load %arg20[%c0_74, %c0_75] : memref<336x32xf32, #tpu.memory_space<vmem>>, vector<24x32xf32>
    tpu.vector_store %arg20[%c0_74, %c0_75], %97 {strides = array<i32>} : memref<336x32xf32, #tpu.memory_space<vmem>>, vector<24x32xf32>,
    %c0_i32_76 = arith.constant 0 : i32
    %c2_i32_77 = arith.constant 2 : i32
    %99 = arith.addi %c0_i32_76, %c2_i32_77 : i32
    %c1_i32_78 = arith.constant 1 : i32
    scf.for %arg22 = %c0_i32_76 to %99 step %c1_i32_78  : i32 {
      %c144_i32 = arith.constant 144 : i32
      %155 = arith.muli %arg22, %c144_i32 : i32
      %156 = tpu.assume_multiple %155, 8 : i32
      %cst_107 = arith.constant 0.000000e+00 : f32
      %157 = vector.broadcast %cst_107 : f32 to vector<144x32xf32>
      %c6_i32_108 = arith.constant 6 : i32
      %158 = arith.addi %156, %c6_i32_108 : i32
      %159 = arith.index_cast %158 : i32 to index
      %c0_109 = arith.constant 0 : index
      %160 = vector.load %arg19[%159, %c0_109] : memref<344x32xf32, #tpu.memory_space<vmem>>, vector<144x32xf32>
      %c0_110 = arith.constant 0 : index
      %c0_111 = arith.constant 0 : index
      %c0_112 = arith.constant 0 : index
      %161 = vector.load %arg8[%c0_110, %c0_111, %c0_112] : memref<9x32x32xf32, #tpu.memory_space<vmem>>, vector<1x32x32xf32>
      %162 = vector.shape_cast %161 : vector<1x32x32xf32> to vector<32x32xf32>
      %cst_113 = arith.constant dense<0.000000e+00> : vector<144x32xf32>
      %163 = tpu.matmul %160, %162, %cst_113 {dimension_numbers = #tpu.dot_dimension_numbers<[1], [0], [0], [1], [0, 0, 1, 1], [], []>} : vector<144x32xf32>, vector<32x32xf32>, vector<144x32xf32> -> vector<144x32xf32>
      %164 = arith.addf %157, %163 : vector<144x32xf32>
      %c7_i32_114 = arith.constant 7 : i32
      %165 = arith.addi %156, %c7_i32_114 : i32
      %166 = arith.index_cast %165 : i32 to index
      %c0_115 = arith.constant 0 : index
      %167 = vector.load %arg19[%166, %c0_115] : memref<344x32xf32, #tpu.memory_space<vmem>>, vector<144x32xf32>
      %c1_116 = arith.constant 1 : index
      %c0_117 = arith.constant 0 : index
      %c0_118 = arith.constant 0 : index
      %168 = vector.load %arg8[%c1_116, %c0_117, %c0_118] : memref<9x32x32xf32, #tpu.memory_space<vmem>>, vector<1x32x32xf32>
      %169 = vector.shape_cast %168 : vector<1x32x32xf32> to vector<32x32xf32>
      %cst_119 = arith.constant dense<0.000000e+00> : vector<144x32xf32>
      %170 = tpu.matmul %167, %169, %cst_119 {dimension_numbers = #tpu.dot_dimension_numbers<[1], [0], [0], [1], [0, 0, 1, 1], [], []>} : vector<144x32xf32>, vector<32x32xf32>, vector<144x32xf32> -> vector<144x32xf32>
      %171 = arith.addf %164, %170 : vector<144x32xf32>
      %c8_i32 = arith.constant 8 : i32
      %172 = arith.addi %156, %c8_i32 : i32
      %173 = arith.index_cast %172 : i32 to index
      %c0_120 = arith.constant 0 : index
      %174 = vector.load %arg19[%173, %c0_120] : memref<344x32xf32, #tpu.memory_space<vmem>>, vector<144x32xf32>
      %c2 = arith.constant 2 : index
      %c0_121 = arith.constant 0 : index
      %c0_122 = arith.constant 0 : index
      %175 = vector.load %arg8[%c2, %c0_121, %c0_122] : memref<9x32x32xf32, #tpu.memory_space<vmem>>, vector<1x32x32xf32>
      %176 = vector.shape_cast %175 : vector<1x32x32xf32> to vector<32x32xf32>
      %cst_123 = arith.constant dense<0.000000e+00> : vector<144x32xf32>
      %177 = tpu.matmul %174, %176, %cst_123 {dimension_numbers = #tpu.dot_dimension_numbers<[1], [0], [0], [1], [0, 0, 1, 1], [], []>} : vector<144x32xf32>, vector<32x32xf32>, vector<144x32xf32> -> vector<144x32xf32>
      %178 = arith.addf %171, %177 : vector<144x32xf32>
      %c30_i32 = arith.constant 30 : i32
      %179 = arith.addi %156, %c30_i32 : i32
      %180 = arith.index_cast %179 : i32 to index
      %c0_124 = arith.constant 0 : index
      %181 = vector.load %arg19[%180, %c0_124] : memref<344x32xf32, #tpu.memory_space<vmem>>, vector<144x32xf32>
      %c3 = arith.constant 3 : index
      %c0_125 = arith.constant 0 : index
      %c0_126 = arith.constant 0 : index
      %182 = vector.load %arg8[%c3, %c0_125, %c0_126] : memref<9x32x32xf32, #tpu.memory_space<vmem>>, vector<1x32x32xf32>
      %183 = vector.shape_cast %182 : vector<1x32x32xf32> to vector<32x32xf32>
      %cst_127 = arith.constant dense<0.000000e+00> : vector<144x32xf32>
      %184 = tpu.matmul %181, %183, %cst_127 {dimension_numbers = #tpu.dot_dimension_numbers<[1], [0], [0], [1], [0, 0, 1, 1], [], []>} : vector<144x32xf32>, vector<32x32xf32>, vector<144x32xf32> -> vector<144x32xf32>
      %185 = arith.addf %178, %184 : vector<144x32xf32>
      %c31_i32 = arith.constant 31 : i32
      %186 = arith.addi %156, %c31_i32 : i32
      %187 = arith.index_cast %186 : i32 to index
      %c0_128 = arith.constant 0 : index
      %188 = vector.load %arg19[%187, %c0_128] : memref<344x32xf32, #tpu.memory_space<vmem>>, vector<144x32xf32>
      %c4 = arith.constant 4 : index
      %c0_129 = arith.constant 0 : index
      %c0_130 = arith.constant 0 : index
      %189 = vector.load %arg8[%c4, %c0_129, %c0_130] : memref<9x32x32xf32, #tpu.memory_space<vmem>>, vector<1x32x32xf32>
      %190 = vector.shape_cast %189 : vector<1x32x32xf32> to vector<32x32xf32>
      %cst_131 = arith.constant dense<0.000000e+00> : vector<144x32xf32>
      %191 = tpu.matmul %188, %190, %cst_131 {dimension_numbers = #tpu.dot_dimension_numbers<[1], [0], [0], [1], [0, 0, 1, 1], [], []>} : vector<144x32xf32>, vector<32x32xf32>, vector<144x32xf32> -> vector<144x32xf32>
      %192 = arith.addf %185, %191 : vector<144x32xf32>
      %c32_i32 = arith.constant 32 : i32
      %193 = arith.addi %156, %c32_i32 : i32
      %194 = arith.index_cast %193 : i32 to index
      %c0_132 = arith.constant 0 : index
      %195 = vector.load %arg19[%194, %c0_132] : memref<344x32xf32, #tpu.memory_space<vmem>>, vector<144x32xf32>
      %c5 = arith.constant 5 : index
      %c0_133 = arith.constant 0 : index
      %c0_134 = arith.constant 0 : index
      %196 = vector.load %arg8[%c5, %c0_133, %c0_134] : memref<9x32x32xf32, #tpu.memory_space<vmem>>, vector<1x32x32xf32>
      %197 = vector.shape_cast %196 : vector<1x32x32xf32> to vector<32x32xf32>
      %cst_135 = arith.constant dense<0.000000e+00> : vector<144x32xf32>
      %198 = tpu.matmul %195, %197, %cst_135 {dimension_numbers = #tpu.dot_dimension_numbers<[1], [0], [0], [1], [0, 0, 1, 1], [], []>} : vector<144x32xf32>, vector<32x32xf32>, vector<144x32xf32> -> vector<144x32xf32>
      %199 = arith.addf %192, %198 : vector<144x32xf32>
      %c54_i32 = arith.constant 54 : i32
      %200 = arith.addi %156, %c54_i32 : i32
      %201 = arith.index_cast %200 : i32 to index
      %c0_136 = arith.constant 0 : index
      %202 = vector.load %arg19[%201, %c0_136] : memref<344x32xf32, #tpu.memory_space<vmem>>, vector<144x32xf32>
      %c6 = arith.constant 6 : index
      %c0_137 = arith.constant 0 : index
      %c0_138 = arith.constant 0 : index
      %203 = vector.load %arg8[%c6, %c0_137, %c0_138] : memref<9x32x32xf32, #tpu.memory_space<vmem>>, vector<1x32x32xf32>
      %204 = vector.shape_cast %203 : vector<1x32x32xf32> to vector<32x32xf32>
      %cst_139 = arith.constant dense<0.000000e+00> : vector<144x32xf32>
      %205 = tpu.matmul %202, %204, %cst_139 {dimension_numbers = #tpu.dot_dimension_numbers<[1], [0], [0], [1], [0, 0, 1, 1], [], []>} : vector<144x32xf32>, vector<32x32xf32>, vector<144x32xf32> -> vector<144x32xf32>
      %206 = arith.addf %199, %205 : vector<144x32xf32>
      %c55_i32 = arith.constant 55 : i32
      %207 = arith.addi %156, %c55_i32 : i32
      %208 = arith.index_cast %207 : i32 to index
      %c0_140 = arith.constant 0 : index
      %209 = vector.load %arg19[%208, %c0_140] : memref<344x32xf32, #tpu.memory_space<vmem>>, vector<144x32xf32>
      %c7 = arith.constant 7 : index
      %c0_141 = arith.constant 0 : index
      %c0_142 = arith.constant 0 : index
      %210 = vector.load %arg8[%c7, %c0_141, %c0_142] : memref<9x32x32xf32, #tpu.memory_space<vmem>>, vector<1x32x32xf32>
      %211 = vector.shape_cast %210 : vector<1x32x32xf32> to vector<32x32xf32>
      %cst_143 = arith.constant dense<0.000000e+00> : vector<144x32xf32>
      %212 = tpu.matmul %209, %211, %cst_143 {dimension_numbers = #tpu.dot_dimension_numbers<[1], [0], [0], [1], [0, 0, 1, 1], [], []>} : vector<144x32xf32>, vector<32x32xf32>, vector<144x32xf32> -> vector<144x32xf32>
      %213 = arith.addf %206, %212 : vector<144x32xf32>
      %c56_i32 = arith.constant 56 : i32
      %214 = arith.addi %156, %c56_i32 : i32
      %215 = arith.index_cast %214 : i32 to index
      %c0_144 = arith.constant 0 : index
      %216 = vector.load %arg19[%215, %c0_144] : memref<344x32xf32, #tpu.memory_space<vmem>>, vector<144x32xf32>
      %c8 = arith.constant 8 : index
      %c0_145 = arith.constant 0 : index
      %c0_146 = arith.constant 0 : index
      %217 = vector.load %arg8[%c8, %c0_145, %c0_146] : memref<9x32x32xf32, #tpu.memory_space<vmem>>, vector<1x32x32xf32>
      %218 = vector.shape_cast %217 : vector<1x32x32xf32> to vector<32x32xf32>
      %cst_147 = arith.constant dense<0.000000e+00> : vector<144x32xf32>
      %219 = tpu.matmul %216, %218, %cst_147 {dimension_numbers = #tpu.dot_dimension_numbers<[1], [0], [0], [1], [0, 0, 1, 1], [], []>} : vector<144x32xf32>, vector<32x32xf32>, vector<144x32xf32> -> vector<144x32xf32>
      %220 = arith.addf %213, %219 : vector<144x32xf32>
      %221 = vector.broadcast %96 : vector<1x32xf32> to vector<144x32xf32>
      %222 = arith.addf %220, %221 : vector<144x32xf32>
      %c24_i32 = arith.constant 24 : i32
      %223 = arith.addi %156, %c24_i32 : i32
      %224 = tpu.assume_multiple %223, 8 : i32
      %225 = arith.index_cast %224 : i32 to index
      %c0_148 = arith.constant 0 : index
      %226 = vector.load %arg20[%225, %c0_148] : memref<336x32xf32, #tpu.memory_space<vmem>>, vector<144x32xf32>
      tpu.vector_store %arg20[%225, %c0_148], %222 {strides = array<i32>} : memref<336x32xf32, #tpu.memory_space<vmem>>, vector<144x32xf32>,
    }
    %c2_i32_79 = arith.constant 2 : i32
    %cst_80 = arith.constant 0.000000e+00 : f32
    %100 = vector.broadcast %cst_80 : f32 to vector<24x32xf32>
    %c312 = arith.constant 312 : index
    %c0_81 = arith.constant 0 : index
    %101 = vector.load %arg20[%c312, %c0_81] : memref<336x32xf32, #tpu.memory_space<vmem>>, vector<24x32xf32>
    tpu.vector_store %arg20[%c312, %c0_81], %100 {strides = array<i32>} : memref<336x32xf32, #tpu.memory_space<vmem>>, vector<24x32xf32>,
    %102 = tpu.iota {dimensions = array<i32: 0>} : vector<7x14xi32>
    %103 = tpu.iota {dimensions = array<i32: 1>} : vector<7x14xi32>
    %c2_i32_82 = arith.constant 2 : i32
    %104 = vector.broadcast %c2_i32_82 : i32 to vector<7x14xi32>
    %105 = arith.muli %104, %102 : vector<7x14xi32>
    %106 = arith.cmpi eq, %103, %105 : vector<7x14xi32>
    %c0_i32_83 = arith.constant 0 : i32
    %107 = vector.broadcast %c0_i32_83 : i32 to vector<7x14xi32>
    %108 = arith.cmpi sgt, %103, %107 : vector<7x14xi32>
    %109 = arith.andi %106, %108 : vector<7x14xi1>
    %110 = arith.extui %109 : vector<7x14xi1> to vector<7x14xi32>
    %111 = arith.sitofp %110 : vector<7x14xi32> to vector<7x14xf32>
    %c2_i32_84 = arith.constant 2 : i32
    %112 = vector.broadcast %c2_i32_84 : i32 to vector<7x14xi32>
    %113 = arith.muli %112, %102 : vector<7x14xi32>
    %c1_i32_85 = arith.constant 1 : i32
    %114 = vector.broadcast %c1_i32_85 : i32 to vector<7x14xi32>
    %115 = arith.addi %113, %114 : vector<7x14xi32>
    %116 = arith.cmpi eq, %103, %115 : vector<7x14xi32>
    %c13_i32 = arith.constant 13 : i32
    %117 = vector.broadcast %c13_i32 : i32 to vector<7x14xi32>
    %118 = arith.cmpi slt, %103, %117 : vector<7x14xi32>
    %119 = arith.andi %116, %118 : vector<7x14xi1>
    %120 = arith.extui %119 : vector<7x14xi1> to vector<7x14xi32>
    %121 = arith.sitofp %120 : vector<7x14xi32> to vector<7x14xf32>
    %c0_i32_86 = arith.constant 0 : i32
    %c7_i32 = arith.constant 7 : i32
    %122 = arith.addi %c0_i32_86, %c7_i32 : i32
    %c1_i32_87 = arith.constant 1 : i32
    scf.for %arg22 = %c0_i32_86 to %122 step %c1_i32_87  : i32 {
      %c2_i32_107 = arith.constant 2 : i32
      %155 = arith.muli %c2_i32_107, %arg22 : i32
      %c24_i32 = arith.constant 24 : i32
      %156 = arith.muli %155, %c24_i32 : i32
      %157 = tpu.assume_multiple %156, 8 : i32
      %158 = arith.index_cast %157 : i32 to index
      %c0_108 = arith.constant 0 : index
      %159 = vector.load %arg20[%158, %c0_108] : memref<336x32xf32, #tpu.memory_space<vmem>>, vector<14x32xf32>
      %c24_i32_109 = arith.constant 24 : i32
      %160 = arith.addi %157, %c24_i32_109 : i32
      %161 = arith.index_cast %160 : i32 to index
      %c0_110 = arith.constant 0 : index
      %162 = vector.load %arg20[%161, %c0_110] : memref<336x32xf32, #tpu.memory_space<vmem>>, vector<14x32xf32>
      %163 = arith.maximumf %159, %162 : vector<14x32xf32>
      %cst_111 = arith.constant dense<0.000000e+00> : vector<7x32xf32>
      %164 = tpu.matmul %111, %163, %cst_111 {dimension_numbers = #tpu.dot_dimension_numbers<[1], [0], [0], [1], [0, 0, 1, 1], [], []>} : vector<7x14xf32>, vector<14x32xf32>, vector<7x32xf32> -> vector<7x32xf32>
      %cst_112 = arith.constant dense<0.000000e+00> : vector<7x32xf32>
      %165 = tpu.matmul %121, %163, %cst_112 {dimension_numbers = #tpu.dot_dimension_numbers<[1], [0], [0], [1], [0, 0, 1, 1], [], []>} : vector<7x14xf32>, vector<14x32xf32>, vector<7x32xf32> -> vector<7x32xf32>
      %166 = arith.maximumf %164, %165 : vector<7x32xf32>
      %cst_113 = arith.constant 0.000000e+00 : f32
      %167 = vector.broadcast %cst_113 : f32 to vector<7x32xf32>
      %168 = arith.maximumf %166, %167 : vector<7x32xf32>
      %c8_i32 = arith.constant 8 : i32
      %169 = arith.muli %arg22, %c8_i32 : i32
      %170 = tpu.assume_multiple %169, 8 : i32
      %171 = arith.index_cast %170 : i32 to index
      %c0_114 = arith.constant 0 : index
      %172 = vector.load %arg21[%171, %c0_114] : memref<56x32xf32, #tpu.memory_space<vmem>>, vector<7x32xf32>
      tpu.vector_store %arg21[%171, %c0_114], %168 {strides = array<i32>} : memref<56x32xf32, #tpu.memory_space<vmem>>, vector<7x32xf32>,
    }
    %c7_i32_88 = arith.constant 7 : i32
    %c0_89 = arith.constant 0 : index
    %c0_90 = arith.constant 0 : index
    %123 = vector.load %arg21[%c0_89, %c0_90] : memref<56x32xf32, #tpu.memory_space<vmem>>, vector<56x32xf32>
    %124 = tpu.iota {dimensions = array<i32: 1>} : vector<1x2xi32>
    %c0_91 = arith.constant 0 : index
    %c0_92 = arith.constant 0 : index
    %125 = vector.load %arg11[%c0_91, %c0_92] : memref<1x2xf32, #tpu.memory_space<vmem>>, vector<1x2xf32>
    %c0_i32_93 = arith.constant 0 : i32
    %126 = vector.broadcast %c0_i32_93 : i32 to vector<1x2xi32>
    %127 = arith.cmpi eq, %124, %126 : vector<1x2xi32>
    %c0_94 = arith.constant 0 : index
    %c0_95 = arith.constant 0 : index
    %c0_96 = arith.constant 0 : index
    %128 = vector.load %arg10[%c0_94, %c0_95, %c0_96] : memref<2x56x32xf32, #tpu.memory_space<vmem>>, vector<1x56x32xf32>
    %129 = vector.shape_cast %128 : vector<1x56x32xf32> to vector<56x32xf32>
    %130 = arith.mulf %123, %129 : vector<56x32xf32>
    %131 = vector.shape_cast %130 : vector<56x32xf32> to vector<1x56x32xf32>
    %cst_97 = arith.constant dense<0.000000e+00> : vector<1xf32>
    %132 = vector.multi_reduction <add>, %131, %cst_97 [1, 2] : vector<1x56x32xf32> to vector<1xf32>
    %133 = vector.shape_cast %132 : vector<1xf32> to vector<1x1x1xf32>
    %134 = vector.extract %133[0, 0, 0] : f32 from vector<1x1x1xf32>
    %cst_98 = arith.constant 0.000000e+00 : f32
    %135 = vector.broadcast %134 : f32 to vector<1x2xf32>
    %136 = vector.broadcast %cst_98 : f32 to vector<1x2xf32>
    %137 = arith.select %127, %135, %136 : vector<1x2xi1>, vector<1x2xf32>
    %138 = arith.addf %125, %137 : vector<1x2xf32>
    %c1_i32_99 = arith.constant 1 : i32
    %139 = vector.broadcast %c1_i32_99 : i32 to vector<1x2xi32>
    %140 = arith.cmpi eq, %124, %139 : vector<1x2xi32>
    %c1 = arith.constant 1 : index
    %c0_100 = arith.constant 0 : index
    %c0_101 = arith.constant 0 : index
    %141 = vector.load %arg10[%c1, %c0_100, %c0_101] : memref<2x56x32xf32, #tpu.memory_space<vmem>>, vector<1x56x32xf32>
    %142 = vector.shape_cast %141 : vector<1x56x32xf32> to vector<56x32xf32>
    %143 = arith.mulf %123, %142 : vector<56x32xf32>
    %144 = vector.shape_cast %143 : vector<56x32xf32> to vector<1x56x32xf32>
    %cst_102 = arith.constant dense<0.000000e+00> : vector<1xf32>
    %145 = vector.multi_reduction <add>, %144, %cst_102 [1, 2] : vector<1x56x32xf32> to vector<1xf32>
    %146 = vector.shape_cast %145 : vector<1xf32> to vector<1x1x1xf32>
    %147 = vector.extract %146[0, 0, 0] : f32 from vector<1x1x1xf32>
    %cst_103 = arith.constant 0.000000e+00 : f32
    %148 = vector.broadcast %147 : f32 to vector<1x2xf32>
    %149 = vector.broadcast %cst_103 : f32 to vector<1x2xf32>
    %150 = arith.select %140, %148, %149 : vector<1x2xi1>, vector<1x2xf32>
    %151 = arith.addf %138, %150 : vector<1x2xf32>
    %c0_104 = arith.constant 0 : index
    %c0_105 = arith.constant 0 : index
    %c0_106 = arith.constant 0 : index
    %152 = vector.load %arg12[%c0_104, %c0_105, %c0_106] : memref<1x1x2xf32, #tpu.memory_space<vmem>>, vector<1x1x2xf32>
    %153 = vector.shape_cast %152 : vector<1x1x2xf32> to vector<1x2xf32>
    %154 = vector.shape_cast %151 : vector<1x2xf32> to vector<1x1x2xf32>
    tpu.vector_store %arg12[%c0_104, %c0_105, %c0_106], %154 {strides = array<i32>} : memref<1x1x2xf32, #tpu.memory_space<vmem>>, vector<1x1x2xf32>,
    return
  }
  func.func @transform_0(%arg0: i32) -> (i32, i32, i32) {
    %c0_i32 = arith.constant 0 : i32
    %c0_i32_0 = arith.constant 0 : i32
    %c0_i32_1 = arith.constant 0 : i32
    return %arg0, %c0_i32, %c0_i32_0 : i32, i32, i32
  }
  func.func @transform_1(%arg0: i32) -> (i32, i32, i32) {
    %c0_i32 = arith.constant 0 : i32
    %c0_i32_0 = arith.constant 0 : i32
    %c0_i32_1 = arith.constant 0 : i32
    %c0_i32_2 = arith.constant 0 : i32
    return %c0_i32, %c0_i32_0, %c0_i32_1 : i32, i32, i32
  }
  func.func @transform_2(%arg0: i32) -> (i32, i32) {
    %c0_i32 = arith.constant 0 : i32
    %c0_i32_0 = arith.constant 0 : i32
    %c0_i32_1 = arith.constant 0 : i32
    return %c0_i32, %c0_i32_0 : i32, i32
  }
  func.func @transform_3(%arg0: i32) -> (i32, i32, i32) {
    %c0_i32 = arith.constant 0 : i32
    %c0_i32_0 = arith.constant 0 : i32
    %c0_i32_1 = arith.constant 0 : i32
    %c0_i32_2 = arith.constant 0 : i32
    return %c0_i32, %c0_i32_0, %c0_i32_1 : i32, i32, i32
  }
  func.func @transform_4(%arg0: i32) -> (i32, i32) {
    %c0_i32 = arith.constant 0 : i32
    %c0_i32_0 = arith.constant 0 : i32
    %c0_i32_1 = arith.constant 0 : i32
    return %c0_i32, %c0_i32_0 : i32, i32
  }
  func.func @transform_5(%arg0: i32) -> (i32, i32, i32) {
    %c0_i32 = arith.constant 0 : i32
    %c0_i32_0 = arith.constant 0 : i32
    %c0_i32_1 = arith.constant 0 : i32
    %c0_i32_2 = arith.constant 0 : i32
    return %c0_i32, %c0_i32_0, %c0_i32_1 : i32, i32, i32
  }
  func.func @transform_6(%arg0: i32) -> (i32, i32) {
    %c0_i32 = arith.constant 0 : i32
    %c0_i32_0 = arith.constant 0 : i32
    %c0_i32_1 = arith.constant 0 : i32
    return %c0_i32, %c0_i32_0 : i32, i32
  }
  func.func @transform_7(%arg0: i32) -> (i32, i32, i32) {
    %c0_i32 = arith.constant 0 : i32
    %c0_i32_0 = arith.constant 0 : i32
    %c0_i32_1 = arith.constant 0 : i32
    %c0_i32_2 = arith.constant 0 : i32
    return %c0_i32, %c0_i32_0, %c0_i32_1 : i32, i32, i32
  }
  func.func @transform_8(%arg0: i32) -> (i32, i32) {
    %c0_i32 = arith.constant 0 : i32
    %c0_i32_0 = arith.constant 0 : i32
    %c0_i32_1 = arith.constant 0 : i32
    return %c0_i32, %c0_i32_0 : i32, i32
  }
  func.func @transform_9(%arg0: i32) -> (i32, i32, i32) {
    %c0_i32 = arith.constant 0 : i32
    %c0_i32_0 = arith.constant 0 : i32
    %c0_i32_1 = arith.constant 0 : i32
    %c0_i32_2 = arith.constant 0 : i32
    return %c0_i32, %c0_i32_0, %c0_i32_1 : i32, i32, i32
  }
  func.func @transform_10(%arg0: i32) -> (i32, i32) {
    %c0_i32 = arith.constant 0 : i32
    %c0_i32_0 = arith.constant 0 : i32
    %c0_i32_1 = arith.constant 0 : i32
    return %c0_i32, %c0_i32_0 : i32, i32
  }
  func.func @transform_11(%arg0: i32) -> (i32, i32, i32) {
    %c0_i32 = arith.constant 0 : i32
    %c0_i32_0 = arith.constant 0 : i32
    %c0_i32_1 = arith.constant 0 : i32
    return %arg0, %c0_i32, %c0_i32_0 : i32, i32, i32
  }
}

</mosaic_0001>

<llo_original>
// kernel: pallas_forward.1
$region0: #{pallas_forward.1}
  #allocation0 [shape = 'u32[]', space=smem, size = 0x4, offset = 0x4, fixed_abs, tag = 'smem constant byte address 0x4 - core index']
  #allocation1 [shape = 'u32[72,128]{1,0:T(1,128)}', space=vmem, size = 0x9000, scoped, tag = 'internal scratch']
  #allocation2 [shape = 'f32[8264,8]{1,0:T(8,128)}', space=vmem, size = 0x409000, scoped, tag = 'scratch operand']
  #allocation3 [shape = 'f32[8256,32]{1,0:T(8,128)}', space=vmem, size = 0x408000, scoped, tag = 'scratch operand']
  #allocation4 [shape = 'f32[2640,32]{1,0:T(8,128)}', space=vmem, size = 0x14a000, scoped, tag = 'scratch operand']
  #allocation5 [shape = 'f32[2576,32]{1,0:T(8,128)}', space=vmem, size = 0x142000, scoped, tag = 'scratch operand']
  #allocation6 [shape = 'f32[840,32]{1,0:T(8,128)}', space=vmem, size = 0x69000, scoped, tag = 'scratch operand']
  #allocation7 [shape = 'f32[800,32]{1,0:T(8,128)}', space=vmem, size = 0x64000, scoped, tag = 'scratch operand']
  #allocation8 [shape = 'f32[344,32]{1,0:T(8,128)}', space=vmem, size = 0x2b000, scoped, tag = 'scratch operand']
  #allocation9 [shape = 'f32[336,32]{1,0:T(8,128)}', space=vmem, size = 0x2a000, scoped, tag = 'scratch operand']
  #allocation10 [shape = 'f32[56,32]{1,0:T(8,128)}', space=vmem, size = 0x7000, scoped, tag = 'scratch operand']
  %s0 = inlined_call_operand.vmem [shape: f32[2,7056,8], index: 0, kind: input, shape index: {}]
  %s1 = inlined_call_operand.vmem [shape: f32[9,8,32], index: 1, kind: input, shape index: {}]
  %s2 = inlined_call_operand.vmem [shape: f32[1,32], index: 2, kind: input, shape index: {}]
  %s3 = inlined_call_operand.vmem [shape: f32[9,32,32], index: 3, kind: input, shape index: {}]
  %s4 = inlined_call_operand.vmem [shape: f32[1,32], index: 4, kind: input, shape index: {}]
  %s5 = inlined_call_operand.vmem [shape: f32[9,32,32], index: 5, kind: input, shape index: {}]
  %s6 = inlined_call_operand.vmem [shape: f32[1,32], index: 6, kind: input, shape index: {}]
  %s7 = inlined_call_operand.vmem [shape: f32[9,32,32], index: 7, kind: input, shape index: {}]
  %s8 = inlined_call_operand.vmem [shape: f32[1,32], index: 8, kind: input, shape index: {}]
  %s9 = inlined_call_operand.vmem [shape: f32[2,56,32], index: 9, kind: input, shape index: {}]
  %s10 = inlined_call_operand.vmem [shape: f32[1,2], index: 10, kind: input, shape index: {}]
  %s11 = inlined_call_operand.hbm [shape: f32[2,1,2], index: 11, kind: output, shape index: {}]
  %s12 = sld [smem:[#allocation0]]
  $region154: #{pallas_forward.1} parent=0
    _
  %s14 = ssub.s32 1, %s12
  %s15 = scalar_select 0, %s14, %s12
  $region1: #{pallas_forward.1} parent=0
    #allocation11 [shape = 'u8[1024]{0}', space=vmem, size = 0x400, scoped, tag = 'output window, operand 0']
    #allocation12 [shape = 's32[2]{0}', space=sflag, size = 0x8, scoped, tag = 'scoped memory for pallas_forward.1']
    %16 = vsyncpa [#allocation12], 0
    %s17 = scalar_lea.sflag [#allocation12], 1
    %18 = vsyncpa %s17, 0
    loop: start=0, step=1, limit=4
    $region2: #{pallas_forward.1} parent=1 // loop_pre_header
      _
    $region3: #{pallas_forward.1} parent=1 // loop_header
      %s20 = sphi 0, %s24
      %p21 = scmp.ge.s32.totalorder %s20, 4
      %s30 = sphi 0, %s32
      %s33 = sphi 0, %s30
      %s34 = sphi 0, %s33
      %s50 = sphi 0, %s34
      %s54 = sphi 0, %s54
      %s56 = sphi 0, %s54
      %s57 = sphi 0, %s56
      %s71 = sphi 0, %s57
      %s75 = sphi 0, %s75
      %s77 = sphi 0, %s75
      %s78 = sphi 0, %s77
      %s92 = sphi 0, %s78
      %s96 = sphi 0, %s96
      %s98 = sphi 0, %s96
      %s99 = sphi 0, %s98
      %s113 = sphi 0, %s99
      %s117 = sphi 0, %s117
      %s119 = sphi 0, %s117
      %s120 = sphi 0, %s119
      %s134 = sphi 0, %s120
      %s138 = sphi 0, %s138
      %s140 = sphi 0, %s138
      %s141 = sphi 0, %s140
      %s155 = sphi 0, %s141
      %s159 = sphi 0, %s159
      %s161 = sphi 0, %s159
      %s162 = sphi 0, %s161
      %s176 = sphi 0, %s162
      %s180 = sphi 0, %s180
      %s182 = sphi 0, %s180
      %s183 = sphi 0, %s182
      %s197 = sphi 0, %s183
      %s201 = sphi 0, %s201
      %s203 = sphi 0, %s201
      %s204 = sphi 0, %s203
      %s218 = sphi 0, %s204
      %s222 = sphi 0, %s222
      %s224 = sphi 0, %s222
      %s225 = sphi 0, %s224
      %s239 = sphi 0, %s225
      %s243 = sphi 0, %s243
      %s245 = sphi 0, %s243
      %s246 = sphi 0, %s245
      %s260 = sphi 0, %s246
      %s266 = sphi 0, %s268
      %s269 = sphi 0, %s266
      %s270 = sphi 0, %s269
      %s286 = sphi 0, %s270
    $region4: #{pallas_forward.1} parent=1 // loop_header_branch
      %23 = sbr.rel (%p21) target = $region8
    $region5: #{pallas_forward.1} parent=1 // loop_body
      %s25 = ssub.s32 %s20, 1
      %s26 = ssub.s32 %s20, 2
      %s27 = sadd.s32 %s20, 1
      %s28 = ssub.s32 %s20, %s27
      %p29 = scmp.eq.s32.totalorder %s28, 0
      %s31 = sadd.s32 %s30, 1
      %s32 = scalar_select %p29, %s30, %s31
      %p35 = pneg %p29
      %p36 = scmp.eq.s32.totalorder %s20, 1
      %p37 = por %p35, %p36
      %p38 = scmp.ne.s32.totalorder %s30, %s33
      %p39 = scmp.eq.s32.totalorder %s20, 0
      %p40 = por %p38, %p39
      %p41 = scmp.ne.s32.totalorder %s30, %s33
      %p42 = scmp.eq.s32.totalorder %s25, 1
      %p43 = por %p41, %p42
      %p44 = scmp.ne.s32.totalorder %s33, %s34
      %p45 = scmp.eq.s32.totalorder %s25, 0
      %p46 = por %p44, %p45
      %p47 = scmp.ne.s32.totalorder %s33, %s34
      %p48 = scmp.eq.s32.totalorder %s26, 1
      %p49 = por %p47, %p48
      %p51 = scmp.ne.s32.totalorder %s34, %s50
      %p52 = scmp.eq.s32.totalorder %s26, 0
      %p53 = por %p51, %p52
      %s55 = sadd.s32 %s54, 1
      %p58 = scmp.eq.s32.totalorder %s20, 1
      %p59 = scmp.ne.s32.totalorder %s54, %s56
      %p60 = scmp.eq.s32.totalorder %s20, 0
      %p61 = por %p59, %p60
      %p62 = scmp.ne.s32.totalorder %s54, %s56
      %p63 = scmp.eq.s32.totalorder %s25, 1
      %p64 = por %p62, %p63
      %p65 = scmp.ne.s32.totalorder %s56, %s57
      %p66 = scmp.eq.s32.totalorder %s25, 0
      %p67 = por %p65, %p66
      %p68 = scmp.ne.s32.totalorder %s56, %s57
      %p69 = scmp.eq.s32.totalorder %s26, 1
      %p70 = por %p68, %p69
      %p72 = scmp.ne.s32.totalorder %s57, %s71
      %p73 = scmp.eq.s32.totalorder %s26, 0
      %p74 = por %p72, %p73
      %s76 = sadd.s32 %s75, 1
      %p79 = scmp.eq.s32.totalorder %s20, 1
      %p80 = scmp.ne.s32.totalorder %s75, %s77
      %p81 = scmp.eq.s32.totalorder %s20, 0
      %p82 = por %p80, %p81
      %p83 = scmp.ne.s32.totalorder %s75, %s77
      %p84 = scmp.eq.s32.totalorder %s25, 1
      %p85 = por %p83, %p84
      %p86 = scmp.ne.s32.totalorder %s77, %s78
      %p87 = scmp.eq.s32.totalorder %s25, 0
      %p88 = por %p86, %p87
      %p89 = scmp.ne.s32.totalorder %s77, %s78
      %p90 = scmp.eq.s32.totalorder %s26, 1
      %p91 = por %p89, %p90
      %p93 = scmp.ne.s32.totalorder %s78, %s92
      %p94 = scmp.eq.s32.totalorder %s26, 0
      %p95 = por %p93, %p94
      %s97 = sadd.s32 %s96, 1
      %p100 = scmp.eq.s32.totalorder %s20, 1
      %p101 = scmp.ne.s32.totalorder %s96, %s98
      %p102 = scmp.eq.s32.totalorder %s20, 0
      %p103 = por %p101, %p102
      %p104 = scmp.ne.s32.totalorder %s96, %s98
      %p105 = scmp.eq.s32.totalorder %s25, 1
      %p106 = por %p104, %p105
      %p107 = scmp.ne.s32.totalorder %s98, %s99
      %p108 = scmp.eq.s32.totalorder %s25, 0
      %p109 = por %p107, %p108
      %p110 = scmp.ne.s32.totalorder %s98, %s99
      %p111 = scmp.eq.s32.totalorder %s26, 1
      %p112 = por %p110, %p111
      %p114 = scmp.ne.s32.totalorder %s99, %s113
      %p115 = scmp.eq.s32.totalorder %s26, 0
      %p116 = por %p114, %p115
      %s118 = sadd.s32 %s117, 1
      %p121 = scmp.eq.s32.totalorder %s20, 1
      %p122 = scmp.ne.s32.totalorder %s117, %s119
      %p123 = scmp.eq.s32.totalorder %s20, 0
      %p124 = por %p122, %p123
      %p125 = scmp.ne.s32.totalorder %s117, %s119
      %p126 = scmp.eq.s32.totalorder %s25, 1
      %p127 = por %p125, %p126
      %p128 = scmp.ne.s32.totalorder %s119, %s120
      %p129 = scmp.eq.s32.totalorder %s25, 0
      %p130 = por %p128, %p129
      %p131 = scmp.ne.s32.totalorder %s119, %s120
      %p132 = scmp.eq.s32.totalorder %s26, 1
      %p133 = por %p131, %p132
      %p135 = scmp.ne.s32.totalorder %s120, %s134
      %p136 = scmp.eq.s32.totalorder %s26, 0
      %p137 = por %p135, %p136
      %s139 = sadd.s32 %s138, 1
      %p142 = scmp.eq.s32.totalorder %s20, 1
      %p143 = scmp.ne.s32.totalorder %s138, %s140
      %p144 = scmp.eq.s32.totalorder %s20, 0
      %p145 = por %p143, %p144
      %p146 = scmp.ne.s32.totalorder %s138, %s140
      %p147 = scmp.eq.s32.totalorder %s25, 1
      %p148 = por %p146, %p147
      %p149 = scmp.ne.s32.totalorder %s140, %s141
      %p150 = scmp.eq.s32.totalorder %s25, 0
      %p151 = por %p149, %p150
      %p152 = scmp.ne.s32.totalorder %s140, %s141
      %p153 = scmp.eq.s32.totalorder %s26, 1
      %p154 = por %p152, %p153
      %p156 = scmp.ne.s32.totalorder %s141, %s155
      %p157 = scmp.eq.s32.totalorder %s26, 0
      %p158 = por %p156, %p157
      %s160 = sadd.s32 %s159, 1
      %p163 = scmp.eq.s32.totalorder %s20, 1
      %p164 = scmp.ne.s32.totalorder %s159, %s161
      %p165 = scmp.eq.s32.totalorder %s20, 0
      %p166 = por %p164, %p165
      %p167 = scmp.ne.s32.totalorder %s159, %s161
      %p168 = scmp.eq.s32.totalorder %s25, 1
      %p169 = por %p167, %p168
      %p170 = scmp.ne.s32.totalorder %s161, %s162
      %p171 = scmp.eq.s32.totalorder %s25, 0
      %p172 = por %p170, %p171
      %p173 = scmp.ne.s32.totalorder %s161, %s162
      %p174 = scmp.eq.s32.totalorder %s26, 1
      %p175 = por %p173, %p174
      %p177 = scmp.ne.s32.totalorder %s162, %s176
      %p178 = scmp.eq.s32.totalorder %s26, 0
      %p179 = por %p177, %p178
      %s181 = sadd.s32 %s180, 1
      %p184 = scmp.eq.s32.totalorder %s20, 1
      %p185 = scmp.ne.s32.totalorder %s180, %s182
      %p186 = scmp.eq.s32.totalorder %s20, 0
      %p187 = por %p185, %p186
      %p188 = scmp.ne.s32.totalorder %s180, %s182
      %p189 = scmp.eq.s32.totalorder %s25, 1
      %p190 = por %p188, %p189
      %p191 = scmp.ne.s32.totalorder %s182, %s183
      %p192 = scmp.eq.s32.totalorder %s25, 0
      %p193 = por %p191, %p192
      %p194 = scmp.ne.s32.totalorder %s182, %s183
      %p195 = scmp.eq.s32.totalorder %s26, 1
      %p196 = por %p194, %p195
      %p198 = scmp.ne.s32.totalorder %s183, %s197
      %p199 = scmp.eq.s32.totalorder %s26, 0
      %p200 = por %p198, %p199
      %s202 = sadd.s32 %s201, 1
      %p205 = scmp.eq.s32.totalorder %s20, 1
      %p206 = scmp.ne.s32.totalorder %s201, %s203
      %p207 = scmp.eq.s32.totalorder %s20, 0
      %p208 = por %p206, %p207
      %p209 = scmp.ne.s32.totalorder %s201, %s203
      %p210 = scmp.eq.s32.totalorder %s25, 1
      %p211 = por %p209, %p210
      %p212 = scmp.ne.s32.totalorder %s203, %s204
      %p213 = scmp.eq.s32.totalorder %s25, 0
      %p214 = por %p212, %p213
      %p215 = scmp.ne.s32.totalorder %s203, %s204
      %p216 = scmp.eq.s32.totalorder %s26, 1
      %p217 = por %p215, %p216
      %p219 = scmp.ne.s32.totalorder %s204, %s218
      %p220 = scmp.eq.s32.totalorder %s26, 0
      %p221 = por %p219, %p220
      %s223 = sadd.s32 %s222, 1
      %p226 = scmp.eq.s32.totalorder %s20, 1
      %p227 = scmp.ne.s32.totalorder %s222, %s224
      %p228 = scmp.eq.s32.totalorder %s20, 0
      %p229 = por %p227, %p228
      %p230 = scmp.ne.s32.totalorder %s222, %s224
      %p231 = scmp.eq.s32.totalorder %s25, 1
      %p232 = por %p230, %p231
      %p233 = scmp.ne.s32.totalorder %s224, %s225
      %p234 = scmp.eq.s32.totalorder %s25, 0
      %p235 = por %p233, %p234
      %p236 = scmp.ne.s32.totalorder %s224, %s225
      %p237 = scmp.eq.s32.totalorder %s26, 1
      %p238 = por %p236, %p237
      %p240 = scmp.ne.s32.totalorder %s225, %s239
      %p241 = scmp.eq.s32.totalorder %s26, 0
      %p242 = por %p240, %p241
      %s244 = sadd.s32 %s243, 1
      %p247 = scmp.eq.s32.totalorder %s20, 1
      %p248 = scmp.ne.s32.totalorder %s243, %s245
      %p249 = scmp.eq.s32.totalorder %s20, 0
      %p250 = por %p248, %p249
      %p251 = scmp.ne.s32.totalorder %s243, %s245
      %p252 = scmp.eq.s32.totalorder %s25, 1
      %p253 = por %p251, %p252
      %p254 = scmp.ne.s32.totalorder %s245, %s246
      %p255 = scmp.eq.s32.totalorder %s25, 0
      %p256 = por %p254, %p255
      %p257 = scmp.ne.s32.totalorder %s245, %s246
      %p258 = scmp.eq.s32.totalorder %s26, 1
      %p259 = por %p257, %p258
      %p261 = scmp.ne.s32.totalorder %s246, %s260
      %p262 = scmp.eq.s32.totalorder %s26, 0
      %p263 = por %p261, %p262
      %s264 = ssub.s32 %s20, %s27
      %p265 = scmp.eq.s32.totalorder %s264, 0
      %s267 = sadd.s32 %s266, 1
      %s268 = scalar_select %p265, %s266, %s267
      %p271 = pneg %p265
      %p272 = scmp.eq.s32.totalorder %s20, 1
      %p273 = por %p271, %p272
      %p274 = scmp.ne.s32.totalorder %s266, %s269
      %p275 = scmp.eq.s32.totalorder %s20, 0
      %p276 = por %p274, %p275
      %p277 = scmp.ne.s32.totalorder %s266, %s269
      %p278 = scmp.eq.s32.totalorder %s25, 1
      %p279 = por %p277, %p278
      %p280 = scmp.ne.s32.totalorder %s269, %s270
      %p281 = scmp.eq.s32.totalorder %s25, 0
      %p282 = por %p280, %p281
      %p283 = scmp.ne.s32.totalorder %s269, %s270
      %p284 = scmp.eq.s32.totalorder %s26, 1
      %p285 = por %p283, %p284
      %p287 = scmp.ne.s32.totalorder %s270, %s286
      %p288 = scmp.eq.s32.totalorder %s26, 0
      %p289 = por %p287, %p288
      %p290 = scmp.le.s32.totalorder 1, %s20
      %p291 = scmp.lt.s32.totalorder %s20, 3
      %p292 = pnand %p290, %p291
      %p293 = pneg %p292
      // Predicated region
      $region9: #{pallas_forward.1} parent=5 // pred_check
        _
      $region10: #{pallas_forward.1} parent=5 // pred_check_branch
        %295 = sbr.rel (%p292) target = $region12
      $region11: #{pallas_forward.1} parent=5 // pred_region
        %s296 = ssub.s32 %s20, 1
        // Predicated region
        $region13: #{pallas_forward.1} parent=11 // pred_check
          %p297 = pneg %p67
        $region14: #{pallas_forward.1} parent=11 // pred_check_branch
          %299 = sbr.rel (%p297) target = $region16
        $region15: #{pallas_forward.1} parent=11 // pred_region
          _
        $region16: #{pallas_forward.1} parent=11 // pred_fallthru
          _
        // Predicated region
        $region17: #{pallas_forward.1} parent=11 // pred_check
          %p300 = pneg %p88
        $region18: #{pallas_forward.1} parent=11 // pred_check_branch
          %302 = sbr.rel (%p300) target = $region20
        $region19: #{pallas_forward.1} parent=11 // pred_region
          _
        $region20: #{pallas_forward.1} parent=11 // pred_fallthru
          _
        // Predicated region
        $region21: #{pallas_forward.1} parent=11 // pred_check
          %p303 = pneg %p109
        $region22: #{pallas_forward.1} parent=11 // pred_check_branch
          %305 = sbr.rel (%p303) target = $region24
        $region23: #{pallas_forward.1} parent=11 // pred_region
          _
        $region24: #{pallas_forward.1} parent=11 // pred_fallthru
          _
        // Predicated region
        $region25: #{pallas_forward.1} parent=11 // pred_check
          %p306 = pneg %p130
        $region26: #{pallas_forward.1} parent=11 // pred_check_branch
          %308 = sbr.rel (%p306) target = $region28
        $region27: #{pallas_forward.1} parent=11 // pred_region
          _
        $region28: #{pallas_forward.1} parent=11 // pred_fallthru
          _
        // Predicated region
        $region29: #{pallas_forward.1} parent=11 // pred_check
          %p309 = pneg %p151
        $region30: #{pallas_forward.1} parent=11 // pred_check_branch
          %311 = sbr.rel (%p309) target = $region32
        $region31: #{pallas_forward.1} parent=11 // pred_region
          _
        $region32: #{pallas_forward.1} parent=11 // pred_fallthru
          _
        // Predicated region
        $region33: #{pallas_forward.1} parent=11 // pred_check
          %p312 = pneg %p172
        $region34: #{pallas_forward.1} parent=11 // pred_check_branch
          %314 = sbr.rel (%p312) target = $region36
        $region35: #{pallas_forward.1} parent=11 // pred_region
          _
        $region36: #{pallas_forward.1} parent=11 // pred_fallthru
          _
        // Predicated region
        $region37: #{pallas_forward.1} parent=11 // pred_check
          %p315 = pneg %p193
        $region38: #{pallas_forward.1} parent=11 // pred_check_branch
          %317 = sbr.rel (%p315) target = $region40
        $region39: #{pallas_forward.1} parent=11 // pred_region
          _
        $region40: #{pallas_forward.1} parent=11 // pred_fallthru
          _
        // Predicated region
        $region41: #{pallas_forward.1} parent=11 // pred_check
          %p318 = pneg %p214
        $region42: #{pallas_forward.1} parent=11 // pred_check_branch
          %320 = sbr.rel (%p318) target = $region44
        $region43: #{pallas_forward.1} parent=11 // pred_region
          _
        $region44: #{pallas_forward.1} parent=11 // pred_fallthru
          _
        // Predicated region
        $region45: #{pallas_forward.1} parent=11 // pred_check
          %p321 = pneg %p235
        $region46: #{pallas_forward.1} parent=11 // pred_check_branch
          %323 = sbr.rel (%p321) target = $region48
        $region47: #{pallas_forward.1} parent=11 // pred_region
          _
        $region48: #{pallas_forward.1} parent=11 // pred_fallthru
          _
        // Predicated region
        $region49: #{pallas_forward.1} parent=11 // pred_check
          %p324 = pneg %p256
        $region50: #{pallas_forward.1} parent=11 // pred_check_branch
          %326 = sbr.rel (%p324) target = $region52
        $region51: #{pallas_forward.1} parent=11 // pred_region
          _
        $region52: #{pallas_forward.1} parent=11 // pred_fallthru
          _
      $region12: #{pallas_forward.1} parent=5 // pred_fallthru
        _
      %p327 = scmp.lt.s32.totalorder %s20, 2
      // Predicated region
      $region53: #{pallas_forward.1} parent=5 // pred_check
        %p328 = pneg %p327
      $region54: #{pallas_forward.1} parent=5 // pred_check_branch
        %330 = sbr.rel (%p328) target = $region56
      $region55: #{pallas_forward.1} parent=5 // pred_region
        // Predicated region
        $region57: #{pallas_forward.1} parent=55 // pred_check
          %p331 = pneg %p40
        $region58: #{pallas_forward.1} parent=55 // pred_check_branch
          %333 = sbr.rel (%p331) target = $region60
        $region59: #{pallas_forward.1} parent=55 // pred_region
          %p334 = scmp.lt.s32.totalorder %s20, 1
          %s335 = scalar_select %p334, %s20, 1
          %s336 = smul.addr %s335, 882
          %s337 = smul.addr %s336, 8
          %s338 = scalar_lea.vmem %s0, %s337
        $region60: #{pallas_forward.1} parent=55 // pred_fallthru
          _
      $region56: #{pallas_forward.1} parent=5 // pred_fallthru
        _
      %p339 = scmp.le.s32.totalorder 1, %s20
      %p340 = scmp.lt.s32.totalorder %s20, 3
      %p341 = pnand %p339, %p340
      %p342 = pneg %p341
      // Predicated region
      $region61: #{pallas_forward.1} parent=5 // pred_check
        _
      $region62: #{pallas_forward.1} parent=5 // pred_check_branch
        %344 = sbr.rel (%p341) target = $region64
      $region63: #{pallas_forward.1} parent=5 // pred_region
        %s345 = ssub.s32 %s20, 1
        %p346 = scmp.lt.s32.totalorder %s25, 1
        %s347 = scalar_select %p346, %s25, 1
        %s348 = smul.addr %s347, 882
        %s349 = smul.addr %s348, 8
        %s350 = scalar_lea.vmem %s0, %s349
        %p351 = pneg %p46
        %p352 = pneg %p43
        %p353 = pneg %p67
        %p354 = pneg %p64
        %p355 = pneg %p88
        %p356 = pneg %p85
        %p357 = pneg %p109
        %p358 = pneg %p106
        %p359 = pneg %p130
        %p360 = pneg %p127
        %p361 = pneg %p151
        %p362 = pneg %p148
        %p363 = pneg %p172
        %p364 = pneg %p169
        %p365 = pneg %p193
        %p366 = pneg %p190
        %p367 = pneg %p214
        %p368 = pneg %p211
        %p369 = pneg %p235
        %p370 = pneg %p232
        %p371 = pneg %p256
        %p372 = pneg %p253
        %p373 = pneg %p282
        %p374 = pneg %p279
        %s375 = sand.u32 %s269, 1
        %s376 = scalar_lea.sflag [#allocation12], %s375
        %s377 = sand.u32 %s269, 1
        %s378 = scalar_lea.vmem [#allocation11], %s377
        %p379 = scmp.lt.s32.totalorder %s25, 1
        %s380 = scalar_select %p379, %s25, 1
        %s381 = smul.addr %s380, 882
        %s382 = smul.addr %s381, 8
        %s383 = scalar_lea.vmem %s0, %s382
        loop: start=0, step=1, limit=16
        $region65: #{pallas_forward.1} parent=63 // loop_pre_header
          _
        $region66: #{pallas_forward.1} parent=63 // loop_header
          %s385 = sphi 0, %s389
          %p386 = scmp.ge.s32.totalorder %s385, 16
        $region67: #{pallas_forward.1} parent=63 // loop_header_branch
          %388 = sbr.rel (%p386) target = $region71
        $region68: #{pallas_forward.1} parent=63 // loop_body
          %s390 = smul.u32 %s385, 512
          %s391 = scalar_lea.vmem [#allocation2], %s390
          %vm392 = vcmask 64512
          %393 = vst.msk [vmem:[%s391] sm:$0xff] %vm392, 0.0
          %394 = vst.msk [vmem:[%s391 + $0x8] sm:$0xff] %vm392, 0.0
          %395 = vst.msk [vmem:[%s391 + $0x10] sm:$0xff] %vm392, 0.0
          %396 = vst.msk [vmem:[%s391 + $0x18] sm:$0xff] %vm392, 0.0
          %397 = vst.msk [vmem:[%s391 + $0x20] sm:$0xff] %vm392, 0.0
          %398 = vst.msk [vmem:[%s391 + $0x28] sm:$0xff] %vm392, 0.0
          %399 = vst.msk [vmem:[%s391 + $0x30] sm:$0xff] %vm392, 0.0
          %400 = vst.msk [vmem:[%s391 + $0x38] sm:$0xff] %vm392, 0.0
          %401 = vst.msk [vmem:[%s391 + $0x40] sm:$0xff] %vm392, 0.0
          %402 = vst.msk [vmem:[%s391 + $0x48] sm:$0xff] %vm392, 0.0
          %403 = vst.msk [vmem:[%s391 + $0x50] sm:$0xff] %vm392, 0.0
          %404 = vst.msk [vmem:[%s391 + $0x58] sm:$0xff] %vm392, 0.0
          %405 = vst.msk [vmem:[%s391 + $0x60] sm:$0xff] %vm392, 0.0
          %406 = vst.msk [vmem:[%s391 + $0x68] sm:$0xff] %vm392, 0.0
          %407 = vst.msk [vmem:[%s391 + $0x70] sm:$0xff] %vm392, 0.0
          %408 = vst.msk [vmem:[%s391 + $0x78] sm:$0xff] %vm392, 0.0
          %409 = vst.msk [vmem:[%s391 + $0x80] sm:$0xff] %vm392, 0.0
          %410 = vst.msk [vmem:[%s391 + $0x88] sm:$0xff] %vm392, 0.0
          %411 = vst.msk [vmem:[%s391 + $0x90] sm:$0xff] %vm392, 0.0
          %412 = vst.msk [vmem:[%s391 + $0x98] sm:$0xff] %vm392, 0.0
          %413 = vst.msk [vmem:[%s391 + $0xa0] sm:$0xff] %vm392, 0.0
          %414 = vst.msk [vmem:[%s391 + $0xa8] sm:$0xff] %vm392, 0.0
          %415 = vst.msk [vmem:[%s391 + $0xb0] sm:$0xff] %vm392, 0.0
          %416 = vst.msk [vmem:[%s391 + $0xb8] sm:$0xff] %vm392, 0.0
          %417 = vst.msk [vmem:[%s391 + $0xc0] sm:$0xff] %vm392, 0.0
          %418 = vst.msk [vmem:[%s391 + $0xc8] sm:$0xff] %vm392, 0.0
          %419 = vst.msk [vmem:[%s391 + $0xd0] sm:$0xff] %vm392, 0.0
          %420 = vst.msk [vmem:[%s391 + $0xd8] sm:$0xff] %vm392, 0.0
          %421 = vst.msk [vmem:[%s391 + $0xe0] sm:$0xff] %vm392, 0.0
          %422 = vst.msk [vmem:[%s391 + $0xe8] sm:$0xff] %vm392, 0.0
          %423 = vst.msk [vmem:[%s391 + $0xf0] sm:$0xff] %vm392, 0.0
          %424 = vst.msk [vmem:[%s391 + $0xf8] sm:$0xff] %vm392, 0.0
          %425 = vst.msk [vmem:[%s391 + $0x100] sm:$0xff] %vm392, 0.0
          %426 = vst.msk [vmem:[%s391 + $0x108] sm:$0xff] %vm392, 0.0
          %427 = vst.msk [vmem:[%s391 + $0x110] sm:$0xff] %vm392, 0.0
          %428 = vst.msk [vmem:[%s391 + $0x118] sm:$0xff] %vm392, 0.0
          %429 = vst.msk [vmem:[%s391 + $0x120] sm:$0xff] %vm392, 0.0
          %430 = vst.msk [vmem:[%s391 + $0x128] sm:$0xff] %vm392, 0.0
          %431 = vst.msk [vmem:[%s391 + $0x130] sm:$0xff] %vm392, 0.0
          %432 = vst.msk [vmem:[%s391 + $0x138] sm:$0xff] %vm392, 0.0
          %433 = vst.msk [vmem:[%s391 + $0x140] sm:$0xff] %vm392, 0.0
          %434 = vst.msk [vmem:[%s391 + $0x148] sm:$0xff] %vm392, 0.0
          %435 = vst.msk [vmem:[%s391 + $0x150] sm:$0xff] %vm392, 0.0
          %436 = vst.msk [vmem:[%s391 + $0x158] sm:$0xff] %vm392, 0.0
          %437 = vst.msk [vmem:[%s391 + $0x160] sm:$0xff] %vm392, 0.0
          %438 = vst.msk [vmem:[%s391 + $0x168] sm:$0xff] %vm392, 0.0
          %439 = vst.msk [vmem:[%s391 + $0x170] sm:$0xff] %vm392, 0.0
          %440 = vst.msk [vmem:[%s391 + $0x178] sm:$0xff] %vm392, 0.0
          %441 = vst.msk [vmem:[%s391 + $0x180] sm:$0xff] %vm392, 0.0
          %442 = vst.msk [vmem:[%s391 + $0x188] sm:$0xff] %vm392, 0.0
          %443 = vst.msk [vmem:[%s391 + $0x190] sm:$0xff] %vm392, 0.0
          %444 = vst.msk [vmem:[%s391 + $0x198] sm:$0xff] %vm392, 0.0
          %445 = vst.msk [vmem:[%s391 + $0x1a0] sm:$0xff] %vm392, 0.0
          %446 = vst.msk [vmem:[%s391 + $0x1a8] sm:$0xff] %vm392, 0.0
          %447 = vst.msk [vmem:[%s391 + $0x1b0] sm:$0xff] %vm392, 0.0
          %448 = vst.msk [vmem:[%s391 + $0x1b8] sm:$0xff] %vm392, 0.0
          %449 = vst.msk [vmem:[%s391 + $0x1c0] sm:$0xff] %vm392, 0.0
          %450 = vst.msk [vmem:[%s391 + $0x1c8] sm:$0xff] %vm392, 0.0
          %451 = vst.msk [vmem:[%s391 + $0x1d0] sm:$0xff] %vm392, 0.0
          %452 = vst.msk [vmem:[%s391 + $0x1d8] sm:$0xff] %vm392, 0.0
          %453 = vst.msk [vmem:[%s391 + $0x1e0] sm:$0xff] %vm392, 0.0
          %454 = vst.msk [vmem:[%s391 + $0x1e8] sm:$0xff] %vm392, 0.0
          %455 = vst.msk [vmem:[%s391 + $0x1f0] sm:$0xff] %vm392, 0.0
          %456 = vst.msk [vmem:[%s391 + $0x1f8] sm:$0xff] %vm392, 0.0
        $region69: #{pallas_forward.1} parent=63 // loop_footer
          %s389 = sadd.s32 1, %s385
        $region70: #{pallas_forward.1} parent=63 // loop_footer_branch
          %384 = sbr.rel target = $region66
        $region71: #{pallas_forward.1} parent=63 // loop_exit
          _
        %vm457 = vcmask 64512
        %458 = vst.msk [vmem:[#allocation2 + $0x2000] sm:$0xff] %vm457, 0.0
        %459 = vst.msk [vmem:[#allocation2 + $0x2008] sm:$0xff] %vm457, 0.0
        %460 = vst.msk [vmem:[#allocation2 + $0x2010] sm:$0xff] %vm457, 0.0
        %461 = vst.msk [vmem:[#allocation2 + $0x2018] sm:$0xff] %vm457, 0.0
        %462 = vst.msk [vmem:[#allocation2 + $0x2020] sm:$0xff] %vm457, 0.0
        %463 = vst.msk [vmem:[#allocation2 + $0x2028] sm:$0xff] %vm457, 0.0
        %464 = vst.msk [vmem:[#allocation2 + $0x2030] sm:$0xff] %vm457, 0.0
        %465 = vst.msk [vmem:[#allocation2 + $0x2038] sm:$0xff] %vm457, 0.0
        %466 = vst.msk [vmem:[#allocation2 + $0x2040] sm:$0xff] %vm457, 0.0
        loop: start=0, step=1, limit=5
        $region72: #{pallas_forward.1} parent=63 // loop_pre_header
          _
        $region73: #{pallas_forward.1} parent=63 // loop_header
          %s468 = sphi 0, %s472
          %p469 = scmp.ge.s32.totalorder %s468, 5
        $region74: #{pallas_forward.1} parent=63 // loop_header_branch
          %471 = sbr.rel (%p469) target = $region78
        $region75: #{pallas_forward.1} parent=63 // loop_body
          %s473 = smul.u32 %s468, 512
          %s474 = scalar_lea.vmem [#allocation4], %s473
          %vm475 = vcmask 261120
          %476 = vst.msk [vmem:[%s474] sm:$0xff] %vm475, 0.0
          %477 = vst.msk [vmem:[%s474 + $0x8] sm:$0xff] %vm475, 0.0
          %478 = vst.msk [vmem:[%s474 + $0x10] sm:$0xff] %vm475, 0.0
          %479 = vst.msk [vmem:[%s474 + $0x18] sm:$0xff] %vm475, 0.0
          %480 = vst.msk [vmem:[%s474 + $0x20] sm:$0xff] %vm475, 0.0
          %481 = vst.msk [vmem:[%s474 + $0x28] sm:$0xff] %vm475, 0.0
          %482 = vst.msk [vmem:[%s474 + $0x30] sm:$0xff] %vm475, 0.0
          %483 = vst.msk [vmem:[%s474 + $0x38] sm:$0xff] %vm475, 0.0
          %484 = vst.msk [vmem:[%s474 + $0x40] sm:$0xff] %vm475, 0.0
          %485 = vst.msk [vmem:[%s474 + $0x48] sm:$0xff] %vm475, 0.0
          %486 = vst.msk [vmem:[%s474 + $0x50] sm:$0xff] %vm475, 0.0
          %487 = vst.msk [vmem:[%s474 + $0x58] sm:$0xff] %vm475, 0.0
          %488 = vst.msk [vmem:[%s474 + $0x60] sm:$0xff] %vm475, 0.0
          %489 = vst.msk [vmem:[%s474 + $0x68] sm:$0xff] %vm475, 0.0
          %490 = vst.msk [vmem:[%s474 + $0x70] sm:$0xff] %vm475, 0.0
          %491 = vst.msk [vmem:[%s474 + $0x78] sm:$0xff] %vm475, 0.0
          %492 = vst.msk [vmem:[%s474 + $0x80] sm:$0xff] %vm475, 0.0
          %493 = vst.msk [vmem:[%s474 + $0x88] sm:$0xff] %vm475, 0.0
          %494 = vst.msk [vmem:[%s474 + $0x90] sm:$0xff] %vm475, 0.0
          %495 = vst.msk [vmem:[%s474 + $0x98] sm:$0xff] %vm475, 0.0
          %496 = vst.msk [vmem:[%s474 + $0xa0] sm:$0xff] %vm475, 0.0
          %497 = vst.msk [vmem:[%s474 + $0xa8] sm:$0xff] %vm475, 0.0
          %498 = vst.msk [vmem:[%s474 + $0xb0] sm:$0xff] %vm475, 0.0
          %499 = vst.msk [vmem:[%s474 + $0xb8] sm:$0xff] %vm475, 0.0
          %500 = vst.msk [vmem:[%s474 + $0xc0] sm:$0xff] %vm475, 0.0
          %501 = vst.msk [vmem:[%s474 + $0xc8] sm:$0xff] %vm475, 0.0
          %502 = vst.msk [vmem:[%s474 + $0xd0] sm:$0xff] %vm475, 0.0
          %503 = vst.msk [vmem:[%s474 + $0xd8] sm:$0xff] %vm475, 0.0
          %504 = vst.msk [vmem:[%s474 + $0xe0] sm:$0xff] %vm475, 0.0
          %505 = vst.msk [vmem:[%s474 + $0xe8] sm:$0xff] %vm475, 0.0
          %506 = vst.msk [vmem:[%s474 + $0xf0] sm:$0xff] %vm475, 0.0
          %507 = vst.msk [vmem:[%s474 + $0xf8] sm:$0xff] %vm475, 0.0
          %508 = vst.msk [vmem:[%s474 + $0x100] sm:$0xff] %vm475, 0.0
          %509 = vst.msk [vmem:[%s474 + $0x108] sm:$0xff] %vm475, 0.0
          %510 = vst.msk [vmem:[%s474 + $0x110] sm:$0xff] %vm475, 0.0
          %511 = vst.msk [vmem:[%s474 + $0x118] sm:$0xff] %vm475, 0.0
          %512 = vst.msk [vmem:[%s474 + $0x120] sm:$0xff] %vm475, 0.0
          %513 = vst.msk [vmem:[%s474 + $0x128] sm:$0xff] %vm475, 0.0
          %514 = vst.msk [vmem:[%s474 + $0x130] sm:$0xff] %vm475, 0.0
          %515 = vst.msk [vmem:[%s474 + $0x138] sm:$0xff] %vm475, 0.0
          %516 = vst.msk [vmem:[%s474 + $0x140] sm:$0xff] %vm475, 0.0
          %517 = vst.msk [vmem:[%s474 + $0x148] sm:$0xff] %vm475, 0.0
          %518 = vst.msk [vmem:[%s474 + $0x150] sm:$0xff] %vm475, 0.0
          %519 = vst.msk [vmem:[%s474 + $0x158] sm:$0xff] %vm475, 0.0
          %520 = vst.msk [vmem:[%s474 + $0x160] sm:$0xff] %vm475, 0.0
          %521 = vst.msk [vmem:[%s474 + $0x168] sm:$0xff] %vm475, 0.0
          %522 = vst.msk [vmem:[%s474 + $0x170] sm:$0xff] %vm475, 0.0
          %523 = vst.msk [vmem:[%s474 + $0x178] sm:$0xff] %vm475, 0.0
          %524 = vst.msk [vmem:[%s474 + $0x180] sm:$0xff] %vm475, 0.0
          %525 = vst.msk [vmem:[%s474 + $0x188] sm:$0xff] %vm475, 0.0
          %526 = vst.msk [vmem:[%s474 + $0x190] sm:$0xff] %vm475, 0.0
          %527 = vst.msk [vmem:[%s474 + $0x198] sm:$0xff] %vm475, 0.0
          %528 = vst.msk [vmem:[%s474 + $0x1a0] sm:$0xff] %vm475, 0.0
          %529 = vst.msk [vmem:[%s474 + $0x1a8] sm:$0xff] %vm475, 0.0
          %530 = vst.msk [vmem:[%s474 + $0x1b0] sm:$0xff] %vm475, 0.0
          %531 = vst.msk [vmem:[%s474 + $0x1b8] sm:$0xff] %vm475, 0.0
          %532 = vst.msk [vmem:[%s474 + $0x1c0] sm:$0xff] %vm475, 0.0
          %533 = vst.msk [vmem:[%s474 + $0x1c8] sm:$0xff] %vm475, 0.0
          %534 = vst.msk [vmem:[%s474 + $0x1d0] sm:$0xff] %vm475, 0.0
          %535 = vst.msk [vmem:[%s474 + $0x1d8] sm:$0xff] %vm475, 0.0
          %536 = vst.msk [vmem:[%s474 + $0x1e0] sm:$0xff] %vm475, 0.0
          %537 = vst.msk [vmem:[%s474 + $0x1e8] sm:$0xff] %vm475, 0.0
          %538 = vst.msk [vmem:[%s474 + $0x1f0] sm:$0xff] %vm475, 0.0
          %539 = vst.msk [vmem:[%s474 + $0x1f8] sm:$0xff] %vm475, 0.0
        $region76: #{pallas_forward.1} parent=63 // loop_footer
          %s472 = sadd.s32 1, %s468
        $region77: #{pallas_forward.1} parent=63 // loop_footer_branch
          %467 = sbr.rel target = $region73
        $region78: #{pallas_forward.1} parent=63 // loop_exit
          _
        %vm540 = vcmask 261120
        %541 = vst.msk [vmem:[#allocation4 + $0xa00] sm:$0xff] %vm540, 0.0
        %542 = vst.msk [vmem:[#allocation4 + $0xa08] sm:$0xff] %vm540, 0.0
        %543 = vst.msk [vmem:[#allocation4 + $0xa10] sm:$0xff] %vm540, 0.0
        %544 = vst.msk [vmem:[#allocation4 + $0xa18] sm:$0xff] %vm540, 0.0
        %545 = vst.msk [vmem:[#allocation4 + $0xa20] sm:$0xff] %vm540, 0.0
        %546 = vst.msk [vmem:[#allocation4 + $0xa28] sm:$0xff] %vm540, 0.0
        %547 = vst.msk [vmem:[#allocation4 + $0xa30] sm:$0xff] %vm540, 0.0
        %548 = vst.msk [vmem:[#allocation4 + $0xa38] sm:$0xff] %vm540, 0.0
        %549 = vst.msk [vmem:[#allocation4 + $0xa40] sm:$0xff] %vm540, 0.0
        %550 = vst.msk [vmem:[#allocation4 + $0xa48] sm:$0xff] %vm540, 0.0
        %551 = vst.msk [vmem:[#allocation6] sm:$0xff] %vm540, 0.0
        %552 = vst.msk [vmem:[#allocation6 + $0x8] sm:$0xff] %vm540, 0.0
        %553 = vst.msk [vmem:[#allocation6 + $0x10] sm:$0xff] %vm540, 0.0
        %554 = vst.msk [vmem:[#allocation6 + $0x18] sm:$0xff] %vm540, 0.0
        %555 = vst.msk [vmem:[#allocation6 + $0x20] sm:$0xff] %vm540, 0.0
        %556 = vst.msk [vmem:[#allocation6 + $0x28] sm:$0xff] %vm540, 0.0
        %557 = vst.msk [vmem:[#allocation6 + $0x30] sm:$0xff] %vm540, 0.0
        %558 = vst.msk [vmem:[#allocation6 + $0x38] sm:$0xff] %vm540, 0.0
        %559 = vst.msk [vmem:[#allocation6 + $0x40] sm:$0xff] %vm540, 0.0
        %560 = vst.msk [vmem:[#allocation6 + $0x48] sm:$0xff] %vm540, 0.0
        %561 = vst.msk [vmem:[#allocation6 + $0x50] sm:$0xff] %vm540, 0.0
        %562 = vst.msk [vmem:[#allocation6 + $0x58] sm:$0xff] %vm540, 0.0
        %563 = vst.msk [vmem:[#allocation6 + $0x60] sm:$0xff] %vm540, 0.0
        %564 = vst.msk [vmem:[#allocation6 + $0x68] sm:$0xff] %vm540, 0.0
        %565 = vst.msk [vmem:[#allocation6 + $0x70] sm:$0xff] %vm540, 0.0
        %566 = vst.msk [vmem:[#allocation6 + $0x78] sm:$0xff] %vm540, 0.0
        %567 = vst.msk [vmem:[#allocation6 + $0x80] sm:$0xff] %vm540, 0.0
        %568 = vst.msk [vmem:[#allocation6 + $0x88] sm:$0xff] %vm540, 0.0
        %569 = vst.msk [vmem:[#allocation6 + $0x90] sm:$0xff] %vm540, 0.0
        %570 = vst.msk [vmem:[#allocation6 + $0x98] sm:$0xff] %vm540, 0.0
        %571 = vst.msk [vmem:[#allocation6 + $0xa0] sm:$0xff] %vm540, 0.0
        %572 = vst.msk [vmem:[#allocation6 + $0xa8] sm:$0xff] %vm540, 0.0
        %573 = vst.msk [vmem:[#allocation6 + $0xb0] sm:$0xff] %vm540, 0.0
        %574 = vst.msk [vmem:[#allocation6 + $0xb8] sm:$0xff] %vm540, 0.0
        %575 = vst.msk [vmem:[#allocation6 + $0xc0] sm:$0xff] %vm540, 0.0
        %576 = vst.msk [vmem:[#allocation6 + $0xc8] sm:$0xff] %vm540, 0.0
        %577 = vst.msk [vmem:[#allocation6 + $0xd0] sm:$0xff] %vm540, 0.0
        %578 = vst.msk [vmem:[#allocation6 + $0xd8] sm:$0xff] %vm540, 0.0
        %579 = vst.msk [vmem:[#allocation6 + $0xe0] sm:$0xff] %vm540, 0.0
        %580 = vst.msk [vmem:[#allocation6 + $0xe8] sm:$0xff] %vm540, 0.0
        %581 = vst.msk [vmem:[#allocation6 + $0xf0] sm:$0xff] %vm540, 0.0
        %582 = vst.msk [vmem:[#allocation6 + $0xf8] sm:$0xff] %vm540, 0.0
        %583 = vst.msk [vmem:[#allocation6 + $0x100] sm:$0xff] %vm540, 0.0
        %584 = vst.msk [vmem:[#allocation6 + $0x108] sm:$0xff] %vm540, 0.0
        %585 = vst.msk [vmem:[#allocation6 + $0x110] sm:$0xff] %vm540, 0.0
        %586 = vst.msk [vmem:[#allocation6 + $0x118] sm:$0xff] %vm540, 0.0
        %587 = vst.msk [vmem:[#allocation6 + $0x120] sm:$0xff] %vm540, 0.0
        %588 = vst.msk [vmem:[#allocation6 + $0x128] sm:$0xff] %vm540, 0.0
        %589 = vst.msk [vmem:[#allocation6 + $0x130] sm:$0xff] %vm540, 0.0
        %590 = vst.msk [vmem:[#allocation6 + $0x138] sm:$0xff] %vm540, 0.0
        %591 = vst.msk [vmem:[#allocation6 + $0x140] sm:$0xff] %vm540, 0.0
        %592 = vst.msk [vmem:[#allocation6 + $0x148] sm:$0xff] %vm540, 0.0
        %593 = vst.msk [vmem:[#allocation6 + $0x150] sm:$0xff] %vm540, 0.0
        %594 = vst.msk [vmem:[#allocation6 + $0x158] sm:$0xff] %vm540, 0.0
        %595 = vst.msk [vmem:[#allocation6 + $0x160] sm:$0xff] %vm540, 0.0
        %596 = vst.msk [vmem:[#allocation6 + $0x168] sm:$0xff] %vm540, 0.0
        %597 = vst.msk [vmem:[#allocation6 + $0x170] sm:$0xff] %vm540, 0.0
        %598 = vst.msk [vmem:[#allocation6 + $0x178] sm:$0xff] %vm540, 0.0
        %599 = vst.msk [vmem:[#allocation6 + $0x180] sm:$0xff] %vm540, 0.0
        %600 = vst.msk [vmem:[#allocation6 + $0x188] sm:$0xff] %vm540, 0.0
        %601 = vst.msk [vmem:[#allocation6 + $0x190] sm:$0xff] %vm540, 0.0
        %602 = vst.msk [vmem:[#allocation6 + $0x198] sm:$0xff] %vm540, 0.0
        %603 = vst.msk [vmem:[#allocation6 + $0x1a0] sm:$0xff] %vm540, 0.0
        %604 = vst.msk [vmem:[#allocation6 + $0x1a8] sm:$0xff] %vm540, 0.0
        %605 = vst.msk [vmem:[#allocation6 + $0x1b0] sm:$0xff] %vm540, 0.0
        %606 = vst.msk [vmem:[#allocation6 + $0x1b8] sm:$0xff] %vm540, 0.0
        %607 = vst.msk [vmem:[#allocation6 + $0x1c0] sm:$0xff] %vm540, 0.0
        %608 = vst.msk [vmem:[#allocation6 + $0x1c8] sm:$0xff] %vm540, 0.0
        %609 = vst.msk [vmem:[#allocation6 + $0x1d0] sm:$0xff] %vm540, 0.0
        %610 = vst.msk [vmem:[#allocation6 + $0x1d8] sm:$0xff] %vm540, 0.0
        %611 = vst.msk [vmem:[#allocation6 + $0x1e0] sm:$0xff] %vm540, 0.0
        %612 = vst.msk [vmem:[#allocation6 + $0x1e8] sm:$0xff] %vm540, 0.0
        %613 = vst.msk [vmem:[#allocation6 + $0x1f0] sm:$0xff] %vm540, 0.0
        %614 = vst.msk [vmem:[#allocation6 + $0x1f8] sm:$0xff] %vm540, 0.0
        %615 = vst.msk [vmem:[#allocation6 + $0x200] sm:$0xff] %vm540, 0.0
        %616 = vst.msk [vmem:[#allocation6 + $0x208] sm:$0xff] %vm540, 0.0
        %617 = vst.msk [vmem:[#allocation6 + $0x210] sm:$0xff] %vm540, 0.0
        %618 = vst.msk [vmem:[#allocation6 + $0x218] sm:$0xff] %vm540, 0.0
        %619 = vst.msk [vmem:[#allocation6 + $0x220] sm:$0xff] %vm540, 0.0
        %620 = vst.msk [vmem:[#allocation6 + $0x228] sm:$0xff] %vm540, 0.0
        %621 = vst.msk [vmem:[#allocation6 + $0x230] sm:$0xff] %vm540, 0.0
        %622 = vst.msk [vmem:[#allocation6 + $0x238] sm:$0xff] %vm540, 0.0
        %623 = vst.msk [vmem:[#allocation6 + $0x240] sm:$0xff] %vm540, 0.0
        %624 = vst.msk [vmem:[#allocation6 + $0x248] sm:$0xff] %vm540, 0.0
        %625 = vst.msk [vmem:[#allocation6 + $0x250] sm:$0xff] %vm540, 0.0
        %626 = vst.msk [vmem:[#allocation6 + $0x258] sm:$0xff] %vm540, 0.0
        %627 = vst.msk [vmem:[#allocation6 + $0x260] sm:$0xff] %vm540, 0.0
        %628 = vst.msk [vmem:[#allocation6 + $0x268] sm:$0xff] %vm540, 0.0
        %629 = vst.msk [vmem:[#allocation6 + $0x270] sm:$0xff] %vm540, 0.0
        %630 = vst.msk [vmem:[#allocation6 + $0x278] sm:$0xff] %vm540, 0.0
        %631 = vst.msk [vmem:[#allocation6 + $0x280] sm:$0xff] %vm540, 0.0
        %632 = vst.msk [vmem:[#allocation6 + $0x288] sm:$0xff] %vm540, 0.0
        %633 = vst.msk [vmem:[#allocation6 + $0x290] sm:$0xff] %vm540, 0.0
        %634 = vst.msk [vmem:[#allocation6 + $0x298] sm:$0xff] %vm540, 0.0
        %635 = vst.msk [vmem:[#allocation6 + $0x2a0] sm:$0xff] %vm540, 0.0
        %636 = vst.msk [vmem:[#allocation6 + $0x2a8] sm:$0xff] %vm540, 0.0
        %637 = vst.msk [vmem:[#allocation6 + $0x2b0] sm:$0xff] %vm540, 0.0
        %638 = vst.msk [vmem:[#allocation6 + $0x2b8] sm:$0xff] %vm540, 0.0
        %639 = vst.msk [vmem:[#allocation6 + $0x2c0] sm:$0xff] %vm540, 0.0
        %640 = vst.msk [vmem:[#allocation6 + $0x2c8] sm:$0xff] %vm540, 0.0
        %641 = vst.msk [vmem:[#allocation6 + $0x2d0] sm:$0xff] %vm540, 0.0
        %642 = vst.msk [vmem:[#allocation6 + $0x2d8] sm:$0xff] %vm540, 0.0
        %643 = vst.msk [vmem:[#allocation6 + $0x2e0] sm:$0xff] %vm540, 0.0
        %644 = vst.msk [vmem:[#allocation6 + $0x2e8] sm:$0xff] %vm540, 0.0
        %645 = vst.msk [vmem:[#allocation6 + $0x2f0] sm:$0xff] %vm540, 0.0
        %646 = vst.msk [vmem:[#allocation6 + $0x2f8] sm:$0xff] %vm540, 0.0
        %647 = vst.msk [vmem:[#allocation6 + $0x300] sm:$0xff] %vm540, 0.0
        %648 = vst.msk [vmem:[#allocation6 + $0x308] sm:$0xff] %vm540, 0.0
        %649 = vst.msk [vmem:[#allocation6 + $0x310] sm:$0xff] %vm540, 0.0
        %650 = vst.msk [vmem:[#allocation6 + $0x318] sm:$0xff] %vm540, 0.0
        %651 = vst.msk [vmem:[#allocation6 + $0x320] sm:$0xff] %vm540, 0.0
        %652 = vst.msk [vmem:[#allocation6 + $0x328] sm:$0xff] %vm540, 0.0
        %653 = vst.msk [vmem:[#allocation6 + $0x330] sm:$0xff] %vm540, 0.0
        %654 = vst.msk [vmem:[#allocation6 + $0x338] sm:$0xff] %vm540, 0.0
        %655 = vst.msk [vmem:[#allocation6 + $0x340] sm:$0xff] %vm540, 0.0
        %656 = vst.msk [vmem:[#allocation8] sm:$0xff] %vm540, 0.0
        %657 = vst.msk [vmem:[#allocation8 + $0x8] sm:$0xff] %vm540, 0.0
        %658 = vst.msk [vmem:[#allocation8 + $0x10] sm:$0xff] %vm540, 0.0
        %659 = vst.msk [vmem:[#allocation8 + $0x18] sm:$0xff] %vm540, 0.0
        %660 = vst.msk [vmem:[#allocation8 + $0x20] sm:$0xff] %vm540, 0.0
        %661 = vst.msk [vmem:[#allocation8 + $0x28] sm:$0xff] %vm540, 0.0
        %662 = vst.msk [vmem:[#allocation8 + $0x30] sm:$0xff] %vm540, 0.0
        %663 = vst.msk [vmem:[#allocation8 + $0x38] sm:$0xff] %vm540, 0.0
        %664 = vst.msk [vmem:[#allocation8 + $0x40] sm:$0xff] %vm540, 0.0
        %665 = vst.msk [vmem:[#allocation8 + $0x48] sm:$0xff] %vm540, 0.0
        %666 = vst.msk [vmem:[#allocation8 + $0x50] sm:$0xff] %vm540, 0.0
        %667 = vst.msk [vmem:[#allocation8 + $0x58] sm:$0xff] %vm540, 0.0
        %668 = vst.msk [vmem:[#allocation8 + $0x60] sm:$0xff] %vm540, 0.0
        %669 = vst.msk [vmem:[#allocation8 + $0x68] sm:$0xff] %vm540, 0.0
        %670 = vst.msk [vmem:[#allocation8 + $0x70] sm:$0xff] %vm540, 0.0
        %671 = vst.msk [vmem:[#allocation8 + $0x78] sm:$0xff] %vm540, 0.0
        %672 = vst.msk [vmem:[#allocation8 + $0x80] sm:$0xff] %vm540, 0.0
        %673 = vst.msk [vmem:[#allocation8 + $0x88] sm:$0xff] %vm540, 0.0
        %674 = vst.msk [vmem:[#allocation8 + $0x90] sm:$0xff] %vm540, 0.0
        %675 = vst.msk [vmem:[#allocation8 + $0x98] sm:$0xff] %vm540, 0.0
        %676 = vst.msk [vmem:[#allocation8 + $0xa0] sm:$0xff] %vm540, 0.0
        %677 = vst.msk [vmem:[#allocation8 + $0xa8] sm:$0xff] %vm540, 0.0
        %678 = vst.msk [vmem:[#allocation8 + $0xb0] sm:$0xff] %vm540, 0.0
        %679 = vst.msk [vmem:[#allocation8 + $0xb8] sm:$0xff] %vm540, 0.0
        %680 = vst.msk [vmem:[#allocation8 + $0xc0] sm:$0xff] %vm540, 0.0
        %681 = vst.msk [vmem:[#allocation8 + $0xc8] sm:$0xff] %vm540, 0.0
        %682 = vst.msk [vmem:[#allocation8 + $0xd0] sm:$0xff] %vm540, 0.0
        %683 = vst.msk [vmem:[#allocation8 + $0xd8] sm:$0xff] %vm540, 0.0
        %684 = vst.msk [vmem:[#allocation8 + $0xe0] sm:$0xff] %vm540, 0.0
        %685 = vst.msk [vmem:[#allocation8 + $0xe8] sm:$0xff] %vm540, 0.0
        %686 = vst.msk [vmem:[#allocation8 + $0xf0] sm:$0xff] %vm540, 0.0
        %687 = vst.msk [vmem:[#allocation8 + $0xf8] sm:$0xff] %vm540, 0.0
        %688 = vst.msk [vmem:[#allocation8 + $0x100] sm:$0xff] %vm540, 0.0
        %689 = vst.msk [vmem:[#allocation8 + $0x108] sm:$0xff] %vm540, 0.0
        %690 = vst.msk [vmem:[#allocation8 + $0x110] sm:$0xff] %vm540, 0.0
        %691 = vst.msk [vmem:[#allocation8 + $0x118] sm:$0xff] %vm540, 0.0
        %692 = vst.msk [vmem:[#allocation8 + $0x120] sm:$0xff] %vm540, 0.0
        %693 = vst.msk [vmem:[#allocation8 + $0x128] sm:$0xff] %vm540, 0.0
        %694 = vst.msk [vmem:[#allocation8 + $0x130] sm:$0xff] %vm540, 0.0
        %695 = vst.msk [vmem:[#allocation8 + $0x138] sm:$0xff] %vm540, 0.0
        %696 = vst.msk [vmem:[#allocation8 + $0x140] sm:$0xff] %vm540, 0.0
        %697 = vst.msk [vmem:[#allocation8 + $0x148] sm:$0xff] %vm540, 0.0
        %698 = vst.msk [vmem:[#allocation8 + $0x150] sm:$0xff] %vm540, 0.0
        %699 = vst.msk [vmem:[#allocation10] sm:$0xff] %vm540, 0.0
        %700 = vst.msk [vmem:[#allocation10 + $0x8] sm:$0xff] %vm540, 0.0
        %701 = vst.msk [vmem:[#allocation10 + $0x10] sm:$0xff] %vm540, 0.0
        %702 = vst.msk [vmem:[#allocation10 + $0x18] sm:$0xff] %vm540, 0.0
        %703 = vst.msk [vmem:[#allocation10 + $0x20] sm:$0xff] %vm540, 0.0
        %704 = vst.msk [vmem:[#allocation10 + $0x28] sm:$0xff] %vm540, 0.0
        %705 = vst.msk [vmem:[#allocation10 + $0x30] sm:$0xff] %vm540, 0.0
        loop: start=0, step=1, limit=84
        $region79: #{pallas_forward.1} parent=63 // loop_pre_header
          _
        $region80: #{pallas_forward.1} parent=63 // loop_header
          %s707 = sphi 0, %s711
          %p708 = scmp.ge.s32.totalorder %s707, 84
        $region81: #{pallas_forward.1} parent=63 // loop_header_branch
          %710 = sbr.rel (%p708) target = $region85
        $region82: #{pallas_forward.1} parent=63 // loop_body
          %s712 = sadd.s32 %s707, 1
          %s713 = smul.u32 %s712, 96
          %s714 = sadd.s32 %s713, 8
          %s715 = smul.u32 %s707, 84
          %s716 = scalar_lea.vmem %s383, %s715
          %v717 = vld [vmem:[%s716] sm:$0xff]
          %v718 = vld [vmem:[%s716 + $0x8] sm:$0xff]
          %v719 = vld [vmem:[%s716 + $0x10] sm:$0xff]
          %v720 = vld [vmem:[%s716 + $0x18] sm:$0xff]
          %v721 = vld [vmem:[%s716 + $0x20] sm:$0xff]
          %v722 = vld [vmem:[%s716 + $0x28] sm:$0xff]
          %v723 = vld [vmem:[%s716 + $0x30] sm:$0xff]
          %v724 = vld [vmem:[%s716 + $0x38] sm:$0xff]
          %v725 = vld [vmem:[%s716 + $0x40] sm:$0xff]
          %v726 = vld [vmem:[%s716 + $0x48] sm:$0xff]
          %v727 = vld [vmem:[%s716 + $0x50] sm:$0xf]
          %s728 = scalar_lea.vmem [#allocation2], %s714
          %729 = vst.msk [vmem:[%s728] sm:$0xff] %vm457, %v717
          %730 = vst.msk [vmem:[%s728 + $0x8] sm:$0xff] %vm457, %v718
          %731 = vst.msk [vmem:[%s728 + $0x10] sm:$0xff] %vm457, %v719
          %732 = vst.msk [vmem:[%s728 + $0x18] sm:$0xff] %vm457, %v720
          %733 = vst.msk [vmem:[%s728 + $0x20] sm:$0xff] %vm457, %v721
          %734 = vst.msk [vmem:[%s728 + $0x28] sm:$0xff] %vm457, %v722
          %735 = vst.msk [vmem:[%s728 + $0x30] sm:$0xff] %vm457, %v723
          %736 = vst.msk [vmem:[%s728 + $0x38] sm:$0xff] %vm457, %v724
          %737 = vst.msk [vmem:[%s728 + $0x40] sm:$0xff] %vm457, %v725
          %738 = vst.msk [vmem:[%s728 + $0x48] sm:$0xff] %vm457, %v726
          %vm739 = vcmask 60416
          %740 = vst.msk [vmem:[%s728 + $0x50] sm:$0xf] %vm739, %v727
        $region83: #{pallas_forward.1} parent=63 // loop_footer
          %s711 = sadd.s32 1, %s707
        $region84: #{pallas_forward.1} parent=63 // loop_footer_branch
          %706 = sbr.rel target = $region80
        $region85: #{pallas_forward.1} parent=63 // loop_exit
          _
        %v741 = vld [vmem:[%s2] sm:$0x1]
        %742 = vst.msk [vmem:[#allocation3] sm:$0xff] %vm540, 0.0
        %743 = vst.msk [vmem:[#allocation3 + $0x8] sm:$0xff] %vm540, 0.0
        %744 = vst.msk [vmem:[#allocation3 + $0x10] sm:$0xff] %vm540, 0.0
        %745 = vst.msk [vmem:[#allocation3 + $0x18] sm:$0xff] %vm540, 0.0
        %746 = vst.msk [vmem:[#allocation3 + $0x20] sm:$0xff] %vm540, 0.0
        %747 = vst.msk [vmem:[#allocation3 + $0x28] sm:$0xff] %vm540, 0.0
        %748 = vst.msk [vmem:[#allocation3 + $0x30] sm:$0xff] %vm540, 0.0
        %749 = vst.msk [vmem:[#allocation3 + $0x38] sm:$0xff] %vm540, 0.0
        %750 = vst.msk [vmem:[#allocation3 + $0x40] sm:$0xff] %vm540, 0.0
        %751 = vst.msk [vmem:[#allocation3 + $0x48] sm:$0xff] %vm540, 0.0
        %752 = vst.msk [vmem:[#allocation3 + $0x50] sm:$0xff] %vm540, 0.0
        %753 = vst.msk [vmem:[#allocation3 + $0x58] sm:$0xff] %vm540, 0.0
        loop: start=0, step=1, limit=42
        $region86: #{pallas_forward.1} parent=63 // loop_pre_header
          _
        $region87: #{pallas_forward.1} parent=63 // loop_header
          %s755 = sphi 0, %s759
          %p756 = scmp.ge.s32.totalorder %s755, 42
        $region88: #{pallas_forward.1} parent=63 // loop_header_branch
          %758 = sbr.rel (%p756) target = $region92
        $region89: #{pallas_forward.1} parent=63 // loop_body
          %s760 = smul.u32 %s755, 192
          %s761 = sadd.s32 %s760, 6
          %s762 = scalar_lea.vmem [#allocation2], %s761
          %v763 = vld [vmem:[%s762] sm:$0xff]
          %v764 = vld [vmem:[%s762 + $0x8] sm:$0xff]
          %v765 = vld [vmem:[%s762 + $0x10] sm:$0xff]
          %v766 = vld [vmem:[%s762 + $0x18] sm:$0xff]
          %v767 = vld [vmem:[%s762 + $0x20] sm:$0xff]
          %v768 = vld [vmem:[%s762 + $0x28] sm:$0xff]
          %v769 = vld [vmem:[%s762 + $0x30] sm:$0xff]
          %v770 = vld [vmem:[%s762 + $0x38] sm:$0xff]
          %v771 = vld [vmem:[%s762 + $0x40] sm:$0xff]
          %v772 = vld [vmem:[%s762 + $0x48] sm:$0xff]
          %v773 = vld [vmem:[%s762 + $0x50] sm:$0xff]
          %v774 = vld [vmem:[%s762 + $0x58] sm:$0xff]
          %v775 = vld [vmem:[%s762 + $0x60] sm:$0xff]
          %v776 = vld [vmem:[%s762 + $0x68] sm:$0xff]
          %v777 = vld [vmem:[%s762 + $0x70] sm:$0xff]
          %v778 = vld [vmem:[%s762 + $0x78] sm:$0xff]
          %v779 = vld [vmem:[%s762 + $0x80] sm:$0xff]
          %v780 = vld [vmem:[%s762 + $0x88] sm:$0xff]
          %v781 = vld [vmem:[%s762 + $0x90] sm:$0xff]
          %v782 = vld [vmem:[%s762 + $0x98] sm:$0xff]
          %v783 = vld [vmem:[%s762 + $0xa0] sm:$0xff]
          %v784 = vld [vmem:[%s762 + $0xa8] sm:$0xff]
          %v785 = vld [vmem:[%s762 + $0xb0] sm:$0xff]
          %v786 = vld [vmem:[%s762 + $0xb8] sm:$0xff]
          %v787 = vld [vmem:[%s1] sm:$0xff]
          %s788 = sadd.s32 %s760, 7
          %s789 = scalar_lea.vmem [#allocation2], %s788
          %v790 = vld [vmem:[%s789] sm:$0xff]
          %v791 = vld [vmem:[%s789 + $0x8] sm:$0xff]
          %v792 = vld [vmem:[%s789 + $0x10] sm:$0xff]
          %v793 = vld [vmem:[%s789 + $0x18] sm:$0xff]
          %v794 = vld [vmem:[%s789 + $0x20] sm:$0xff]
          %v795 = vld [vmem:[%s789 + $0x28] sm:$0xff]
          %v796 = vld [vmem:[%s789 + $0x30] sm:$0xff]
          %v797 = vld [vmem:[%s789 + $0x38] sm:$0xff]
          %v798 = vld [vmem:[%s789 + $0x40] sm:$0xff]
          %v799 = vld [vmem:[%s789 + $0x48] sm:$0xff]
          %v800 = vld [vmem:[%s789 + $0x50] sm:$0xff]
          %v801 = vld [vmem:[%s789 + $0x58] sm:$0xff]
          %v802 = vld [vmem:[%s789 + $0x60] sm:$0xff]
          %v803 = vld [vmem:[%s789 + $0x68] sm:$0xff]
          %v804 = vld [vmem:[%s789 + $0x70] sm:$0xff]
          %v805 = vld [vmem:[%s789 + $0x78] sm:$0xff]
          %v806 = vld [vmem:[%s789 + $0x80] sm:$0xff]
          %v807 = vld [vmem:[%s789 + $0x88] sm:$0xff]
          %v808 = vld [vmem:[%s789 + $0x90] sm:$0xff]
          %v809 = vld [vmem:[%s789 + $0x98] sm:$0xff]
          %v810 = vld [vmem:[%s789 + $0xa0] sm:$0xff]
          %v811 = vld [vmem:[%s789 + $0xa8] sm:$0xff]
          %v812 = vld [vmem:[%s789 + $0xb0] sm:$0xff]
          %v813 = vld [vmem:[%s789 + $0xb8] sm:$0xff]
          %s814 = scalar_lea.vmem %s1, 8
          %v815 = vld [vmem:[%s814] sm:$0xff]
          %v817 = vsel %vm457, %v790, 0
          %v820 = vsel %vm457, %v791, 0
          %v823 = vsel %vm457, %v792, 0
          %v826 = vsel %vm457, %v793, 0
          %v829 = vsel %vm457, %v794, 0
          %v832 = vsel %vm457, %v795, 0
          %v835 = vsel %vm457, %v796, 0
          %v838 = vsel %vm457, %v797, 0
          %v841 = vsel %vm457, %v798, 0
          %v844 = vsel %vm457, %v799, 0
          %v847 = vsel %vm457, %v800, 0
          %v850 = vsel %vm457, %v801, 0
          %v853 = vsel %vm457, %v802, 0
          %v856 = vsel %vm457, %v803, 0
          %v859 = vsel %vm457, %v804, 0
          %v862 = vsel %vm457, %v805, 0
          %v865 = vsel %vm457, %v806, 0
          %v868 = vsel %vm457, %v807, 0
          %v871 = vsel %vm457, %v808, 0
          %v874 = vsel %vm457, %v809, 0
          %v877 = vsel %vm457, %v810, 0
          %v880 = vsel %vm457, %v811, 0
          %v883 = vsel %vm457, %v812, 0
          %v886 = vsel %vm457, %v813, 0
          %888 = vmatpush.msra.mxu0 0.0
          %889 = vmatpush.msra.mxu0 0.0
          %890 = vmatpush.msra.mxu0 0.0
          %891 = vmatpush.msra.mxu0 0.0
          %892 = vmatpush.msra.mxu0 0.0
          %893 = vmatpush.msra.mxu0 0.0
          %894 = vmatpush.msra.mxu0 0.0
          %895 = vmatpush.msra.mxu0 0.0
          %896 = vmatpush.msra.mxu0 0.0
          %897 = vmatpush.msra.mxu0 0.0
          %898 = vmatpush.msra.mxu0 0.0
          %899 = vmatpush.msra.mxu0 0.0
          %900 = vmatpush.msra.mxu0 0.0
          %901 = vmatpush.msra.mxu0 0.0
          %902 = vmatpush.msra.mxu0 0.0
          %903 = vmatpush.msra.mxu0 %v815
          %904 = vmatmul.f32.gmra.mxu0 %v817
          %v905 = vpop.f32.mrf.mxu0
          %v906 = vadd.f32 0.0, %v905
          %907 = vmatmul.f32.gmra.mxu0 %v820
          %v908 = vpop.f32.mrf.mxu0
          %v909 = vadd.f32 0.0, %v908
          %910 = vmatmul.f32.gmra.mxu0 %v823
          %v911 = vpop.f32.mrf.mxu0
          %v912 = vadd.f32 0.0, %v911
          %913 = vmatmul.f32.gmra.mxu0 %v826
          %v914 = vpop.f32.mrf.mxu0
          %v915 = vadd.f32 0.0, %v914
          %916 = vmatmul.f32.gmra.mxu0 %v829
          %v917 = vpop.f32.mrf.mxu0
          %v918 = vadd.f32 0.0, %v917
          %919 = vmatmul.f32.gmra.mxu0 %v832
          %v920 = vpop.f32.mrf.mxu0
          %v921 = vadd.f32 0.0, %v920
          %922 = vmatmul.f32.gmra.mxu0 %v835
          %v923 = vpop.f32.mrf.mxu0
          %v924 = vadd.f32 0.0, %v923
          %925 = vmatmul.f32.gmra.mxu0 %v838
          %v926 = vpop.f32.mrf.mxu0
          %v927 = vadd.f32 0.0, %v926
          %928 = vmatmul.f32.gmra.mxu0 %v841
          %v929 = vpop.f32.mrf.mxu0
          %v930 = vadd.f32 0.0, %v929
          %931 = vmatmul.f32.gmra.mxu0 %v844
          %v932 = vpop.f32.mrf.mxu0
          %v933 = vadd.f32 0.0, %v932
          %934 = vmatmul.f32.gmra.mxu0 %v847
          %v935 = vpop.f32.mrf.mxu0
          %v936 = vadd.f32 0.0, %v935
          %937 = vmatmul.f32.gmra.mxu0 %v850
          %v938 = vpop.f32.mrf.mxu0
          %v939 = vadd.f32 0.0, %v938
          %940 = vmatmul.f32.gmra.mxu0 %v853
          %v941 = vpop.f32.mrf.mxu0
          %v942 = vadd.f32 0.0, %v941
          %943 = vmatmul.f32.gmra.mxu0 %v856
          %v944 = vpop.f32.mrf.mxu0
          %v945 = vadd.f32 0.0, %v944
          %946 = vmatmul.f32.gmra.mxu0 %v859
          %v947 = vpop.f32.mrf.mxu0
          %v948 = vadd.f32 0.0, %v947
          %949 = vmatmul.f32.gmra.mxu0 %v862
          %v950 = vpop.f32.mrf.mxu0
          %v951 = vadd.f32 0.0, %v950
          %952 = vmatmul.f32.gmra.mxu0 %v865
          %v953 = vpop.f32.mrf.mxu0
          %v954 = vadd.f32 0.0, %v953
          %955 = vmatmul.f32.gmra.mxu0 %v868
          %v956 = vpop.f32.mrf.mxu0
          %v957 = vadd.f32 0.0, %v956
          %958 = vmatmul.f32.gmra.mxu0 %v871
          %v959 = vpop.f32.mrf.mxu0
          %v960 = vadd.f32 0.0, %v959
          %961 = vmatmul.f32.gmra.mxu0 %v874
          %v962 = vpop.f32.mrf.mxu0
          %v963 = vadd.f32 0.0, %v962
          %964 = vmatmul.f32.gmra.mxu0 %v877
          %v965 = vpop.f32.mrf.mxu0
          %v966 = vadd.f32 0.0, %v965
          %967 = vmatmul.f32.gmra.mxu0 %v880
          %v968 = vpop.f32.mrf.mxu0
          %v969 = vadd.f32 0.0, %v968
          %970 = vmatmul.f32.gmra.mxu0 %v883
          %v971 = vpop.f32.mrf.mxu0
          %v972 = vadd.f32 0.0, %v971
          %973 = vmatmul.f32.gmra.mxu0 %v886
          %v974 = vpop.f32.mrf.mxu0
          %v975 = vadd.f32 0.0, %v974
          %976 = vdwg.mxu0
          %v978 = vsel %vm457, %v763, 0
          %v981 = vsel %vm457, %v764, 0
          %v984 = vsel %vm457, %v765, 0
          %v987 = vsel %vm457, %v766, 0
          %v990 = vsel %vm457, %v767, 0
          %v993 = vsel %vm457, %v768, 0
          %v996 = vsel %vm457, %v769, 0
          %v999 = vsel %vm457, %v770, 0
          %v1002 = vsel %vm457, %v771, 0
          %v1005 = vsel %vm457, %v772, 0
          %v1008 = vsel %vm457, %v773, 0
          %v1011 = vsel %vm457, %v774, 0
          %v1014 = vsel %vm457, %v775, 0
          %v1017 = vsel %vm457, %v776, 0
          %v1020 = vsel %vm457, %v777, 0
          %v1023 = vsel %vm457, %v778, 0
          %v1026 = vsel %vm457, %v779, 0
          %v1029 = vsel %vm457, %v780, 0
          %v1032 = vsel %vm457, %v781, 0
          %v1035 = vsel %vm457, %v782, 0
          %v1038 = vsel %vm457, %v783, 0
          %v1041 = vsel %vm457, %v784, 0
          %v1044 = vsel %vm457, %v785, 0
          %v1047 = vsel %vm457, %v786, 0
          %1049 = vmatpush.msra.mxu0 0.0
          %1050 = vmatpush.msra.mxu0 0.0
          %1051 = vmatpush.msra.mxu0 0.0
          %1052 = vmatpush.msra.mxu0 0.0
          %1053 = vmatpush.msra.mxu0 0.0
          %1054 = vmatpush.msra.mxu0 0.0
          %1055 = vmatpush.msra.mxu0 0.0
          %1056 = vmatpush.msra.mxu0 0.0
          %1057 = vmatpush.msra.mxu0 0.0
          %1058 = vmatpush.msra.mxu0 0.0
          %1059 = vmatpush.msra.mxu0 0.0
          %1060 = vmatpush.msra.mxu0 0.0
          %1061 = vmatpush.msra.mxu0 0.0
          %1062 = vmatpush.msra.mxu0 0.0
          %1063 = vmatpush.msra.mxu0 0.0
          %1064 = vmatpush.msra.mxu0 %v787
          %1065 = vmatmul.f32.gmra.mxu0 %v978
          %v1066 = vpop.f32.mrf.mxu0
          %v1067 = vadd.f32 %v906, %v1066
          %1068 = vmatmul.f32.gmra.mxu0 %v981
          %v1069 = vpop.f32.mrf.mxu0
          %v1070 = vadd.f32 %v909, %v1069
          %1071 = vmatmul.f32.gmra.mxu0 %v984
          %v1072 = vpop.f32.mrf.mxu0
          %v1073 = vadd.f32 %v912, %v1072
          %1074 = vmatmul.f32.gmra.mxu0 %v987
          %v1075 = vpop.f32.mrf.mxu0
          %v1076 = vadd.f32 %v915, %v1075
          %1077 = vmatmul.f32.gmra.mxu0 %v990
          %v1078 = vpop.f32.mrf.mxu0
          %v1079 = vadd.f32 %v918, %v1078
          %1080 = vmatmul.f32.gmra.mxu0 %v993
          %v1081 = vpop.f32.mrf.mxu0
          %v1082 = vadd.f32 %v921, %v1081
          %1083 = vmatmul.f32.gmra.mxu0 %v996
          %v1084 = vpop.f32.mrf.mxu0
          %v1085 = vadd.f32 %v924, %v1084
          %1086 = vmatmul.f32.gmra.mxu0 %v999
          %v1087 = vpop.f32.mrf.mxu0
          %v1088 = vadd.f32 %v927, %v1087
          %1089 = vmatmul.f32.gmra.mxu0 %v1002
          %v1090 = vpop.f32.mrf.mxu0
          %v1091 = vadd.f32 %v930, %v1090
          %1092 = vmatmul.f32.gmra.mxu0 %v1005
          %v1093 = vpop.f32.mrf.mxu0
          %v1094 = vadd.f32 %v933, %v1093
          %1095 = vmatmul.f32.gmra.mxu0 %v1008
          %v1096 = vpop.f32.mrf.mxu0
          %v1097 = vadd.f32 %v936, %v1096
          %1098 = vmatmul.f32.gmra.mxu0 %v1011
          %v1099 = vpop.f32.mrf.mxu0
          %v1100 = vadd.f32 %v939, %v1099
          %1101 = vmatmul.f32.gmra.mxu0 %v1014
          %v1102 = vpop.f32.mrf.mxu0
          %v1103 = vadd.f32 %v942, %v1102
          %1104 = vmatmul.f32.gmra.mxu0 %v1017
          %v1105 = vpop.f32.mrf.mxu0
          %v1106 = vadd.f32 %v945, %v1105
          %1107 = vmatmul.f32.gmra.mxu0 %v1020
          %v1108 = vpop.f32.mrf.mxu0
          %v1109 = vadd.f32 %v948, %v1108
          %1110 = vmatmul.f32.gmra.mxu0 %v1023
          %v1111 = vpop.f32.mrf.mxu0
          %v1112 = vadd.f32 %v951, %v1111
          %1113 = vmatmul.f32.gmra.mxu0 %v1026
          %v1114 = vpop.f32.mrf.mxu0
          %v1115 = vadd.f32 %v954, %v1114
          %1116 = vmatmul.f32.gmra.mxu0 %v1029
          %v1117 = vpop.f32.mrf.mxu0
          %v1118 = vadd.f32 %v957, %v1117
          %1119 = vmatmul.f32.gmra.mxu0 %v1032
          %v1120 = vpop.f32.mrf.mxu0
          %v1121 = vadd.f32 %v960, %v1120
          %1122 = vmatmul.f32.gmra.mxu0 %v1035
          %v1123 = vpop.f32.mrf.mxu0
          %v1124 = vadd.f32 %v963, %v1123
          %1125 = vmatmul.f32.gmra.mxu0 %v1038
          %v1126 = vpop.f32.mrf.mxu0
          %v1127 = vadd.f32 %v966, %v1126
          %1128 = vmatmul.f32.gmra.mxu0 %v1041
          %v1129 = vpop.f32.mrf.mxu0
          %v1130 = vadd.f32 %v969, %v1129
          %1131 = vmatmul.f32.gmra.mxu0 %v1044
          %v1132 = vpop.f32.mrf.mxu0
          %v1133 = vadd.f32 %v972, %v1132
          %1134 = vmatmul.f32.gmra.mxu0 %v1047
          %v1135 = vpop.f32.mrf.mxu0
          %v1136 = vadd.f32 %v975, %v1135
          %1137 = vdwg.mxu0
          %s1138 = sadd.s32 %s760, 8
          %s1139 = scalar_lea.vmem [#allocation2], %s1138
          %v1140 = vld [vmem:[%s1139] sm:$0xff]
          %v1141 = vld [vmem:[%s1139 + $0x8] sm:$0xff]
          %v1142 = vld [vmem:[%s1139 + $0x10] sm:$0xff]
          %v1143 = vld [vmem:[%s1139 + $0x18] sm:$0xff]
          %v1144 = vld [vmem:[%s1139 + $0x20] sm:$0xff]
          %v1145 = vld [vmem:[%s1139 + $0x28] sm:$0xff]
          %v1146 = vld [vmem:[%s1139 + $0x30] sm:$0xff]
          %v1147 = vld [vmem:[%s1139 + $0x38] sm:$0xff]
          %v1148 = vld [vmem:[%s1139 + $0x40] sm:$0xff]
          %v1149 = vld [vmem:[%s1139 + $0x48] sm:$0xff]
          %v1150 = vld [vmem:[%s1139 + $0x50] sm:$0xff]
          %v1151 = vld [vmem:[%s1139 + $0x58] sm:$0xff]
          %v1152 = vld [vmem:[%s1139 + $0x60] sm:$0xff]
          %v1153 = vld [vmem:[%s1139 + $0x68] sm:$0xff]
          %v1154 = vld [vmem:[%s1139 + $0x70] sm:$0xff]
          %v1155 = vld [vmem:[%s1139 + $0x78] sm:$0xff]
          %v1156 = vld [vmem:[%s1139 + $0x80] sm:$0xff]
          %v1157 = vld [vmem:[%s1139 + $0x88] sm:$0xff]
          %v1158 = vld [vmem:[%s1139 + $0x90] sm:$0xff]
          %v1159 = vld [vmem:[%s1139 + $0x98] sm:$0xff]
          %v1160 = vld [vmem:[%s1139 + $0xa0] sm:$0xff]
          %v1161 = vld [vmem:[%s1139 + $0xa8] sm:$0xff]
          %v1162 = vld [vmem:[%s1139 + $0xb0] sm:$0xff]
          %v1163 = vld [vmem:[%s1139 + $0xb8] sm:$0xff]
          %s1164 = scalar_lea.vmem %s1, 16
          %v1165 = vld [vmem:[%s1164] sm:$0xff]
          %v1167 = vsel %vm457, %v1140, 0
          %v1170 = vsel %vm457, %v1141, 0
          %v1173 = vsel %vm457, %v1142, 0
          %v1176 = vsel %vm457, %v1143, 0
          %v1179 = vsel %vm457, %v1144, 0
          %v1182 = vsel %vm457, %v1145, 0
          %v1185 = vsel %vm457, %v1146, 0
          %v1188 = vsel %vm457, %v1147, 0
          %v1191 = vsel %vm457, %v1148, 0
          %v1194 = vsel %vm457, %v1149, 0
          %v1197 = vsel %vm457, %v1150, 0
          %v1200 = vsel %vm457, %v1151, 0
          %v1203 = vsel %vm457, %v1152, 0
          %v1206 = vsel %vm457, %v1153, 0
          %v1209 = vsel %vm457, %v1154, 0
          %v1212 = vsel %vm457, %v1155, 0
          %v1215 = vsel %vm457, %v1156, 0
          %v1218 = vsel %vm457, %v1157, 0
          %v1221 = vsel %vm457, %v1158, 0
          %v1224 = vsel %vm457, %v1159, 0
          %v1227 = vsel %vm457, %v1160, 0
          %v1230 = vsel %vm457, %v1161, 0
          %v1233 = vsel %vm457, %v1162, 0
          %v1236 = vsel %vm457, %v1163, 0
          %1238 = vmatpush.msra.mxu0 0.0
          %1239 = vmatpush.msra.mxu0 0.0
          %1240 = vmatpush.msra.mxu0 0.0
          %1241 = vmatpush.msra.mxu0 0.0
          %1242 = vmatpush.msra.mxu0 0.0
          %1243 = vmatpush.msra.mxu0 0.0
          %1244 = vmatpush.msra.mxu0 0.0
          %1245 = vmatpush.msra.mxu0 0.0
          %1246 = vmatpush.msra.mxu0 0.0
          %1247 = vmatpush.msra.mxu0 0.0
          %1248 = vmatpush.msra.mxu0 0.0
          %1249 = vmatpush.msra.mxu0 0.0
          %1250 = vmatpush.msra.mxu0 0.0
          %1251 = vmatpush.msra.mxu0 0.0
          %1252 = vmatpush.msra.mxu0 0.0
          %1253 = vmatpush.msra.mxu0 %v1165
          %1254 = vmatmul.f32.gmra.mxu0 %v1167
          %v1255 = vpop.f32.mrf.mxu0
          %v1256 = vadd.f32 0.0, %v1255
          %1257 = vmatmul.f32.gmra.mxu0 %v1170
          %v1258 = vpop.f32.mrf.mxu0
          %v1259 = vadd.f32 0.0, %v1258
          %1260 = vmatmul.f32.gmra.mxu0 %v1173
          %v1261 = vpop.f32.mrf.mxu0
          %v1262 = vadd.f32 0.0, %v1261
          %1263 = vmatmul.f32.gmra.mxu0 %v1176
          %v1264 = vpop.f32.mrf.mxu0
          %v1265 = vadd.f32 0.0, %v1264
          %1266 = vmatmul.f32.gmra.mxu0 %v1179
          %v1267 = vpop.f32.mrf.mxu0
          %v1268 = vadd.f32 0.0, %v1267
          %1269 = vmatmul.f32.gmra.mxu0 %v1182
          %v1270 = vpop.f32.mrf.mxu0
          %v1271 = vadd.f32 0.0, %v1270
          %1272 = vmatmul.f32.gmra.mxu0 %v1185
          %v1273 = vpop.f32.mrf.mxu0
          %v1274 = vadd.f32 0.0, %v1273
          %1275 = vmatmul.f32.gmra.mxu0 %v1188
          %v1276 = vpop.f32.mrf.mxu0
          %v1277 = vadd.f32 0.0, %v1276
          %1278 = vmatmul.f32.gmra.mxu0 %v1191
          %v1279 = vpop.f32.mrf.mxu0
          %v1280 = vadd.f32 0.0, %v1279
          %1281 = vmatmul.f32.gmra.mxu0 %v1194
          %v1282 = vpop.f32.mrf.mxu0
          %v1283 = vadd.f32 0.0, %v1282
          %1284 = vmatmul.f32.gmra.mxu0 %v1197
          %v1285 = vpop.f32.mrf.mxu0
          %v1286 = vadd.f32 0.0, %v1285
          %1287 = vmatmul.f32.gmra.mxu0 %v1200
          %v1288 = vpop.f32.mrf.mxu0
          %v1289 = vadd.f32 0.0, %v1288
          %1290 = vmatmul.f32.gmra.mxu0 %v1203
          %v1291 = vpop.f32.mrf.mxu0
          %v1292 = vadd.f32 0.0, %v1291
          %1293 = vmatmul.f32.gmra.mxu0 %v1206
          %v1294 = vpop.f32.mrf.mxu0
          %v1295 = vadd.f32 0.0, %v1294
          %1296 = vmatmul.f32.gmra.mxu0 %v1209
          %v1297 = vpop.f32.mrf.mxu0
          %v1298 = vadd.f32 0.0, %v1297
          %1299 = vmatmul.f32.gmra.mxu0 %v1212
          %v1300 = vpop.f32.mrf.mxu0
          %v1301 = vadd.f32 0.0, %v1300
          %1302 = vmatmul.f32.gmra.mxu0 %v1215
          %v1303 = vpop.f32.mrf.mxu0
          %v1304 = vadd.f32 0.0, %v1303
          %1305 = vmatmul.f32.gmra.mxu0 %v1218
          %v1306 = vpop.f32.mrf.mxu0
          %v1307 = vadd.f32 0.0, %v1306
          %1308 = vmatmul.f32.gmra.mxu0 %v1221
          %v1309 = vpop.f32.mrf.mxu0
          %v1310 = vadd.f32 0.0, %v1309
          %1311 = vmatmul.f32.gmra.mxu0 %v1224
          %v1312 = vpop.f32.mrf.mxu0
          %v1313 = vadd.f32 0.0, %v1312
          %1314 = vmatmul.f32.gmra.mxu0 %v1227
          %v1315 = vpop.f32.mrf.mxu0
          %v1316 = vadd.f32 0.0, %v1315
          %1317 = vmatmul.f32.gmra.mxu0 %v1230
          %v1318 = vpop.f32.mrf.mxu0
          %v1319 = vadd.f32 0.0, %v1318
          %1320 = vmatmul.f32.gmra.mxu0 %v1233
          %v1321 = vpop.f32.mrf.mxu0
          %v1322 = vadd.f32 0.0, %v1321
          %1323 = vmatmul.f32.gmra.mxu0 %v1236
          %v1324 = vpop.f32.mrf.mxu0
          %v1325 = vadd.f32 0.0, %v1324
          %1326 = vdwg.mxu0
          %v1327 = vadd.f32 %v1067, %v1256
          %v1328 = vadd.f32 %v1070, %v1259
          %v1329 = vadd.f32 %v1073, %v1262
          %v1330 = vadd.f32 %v1076, %v1265
          %v1331 = vadd.f32 %v1079, %v1268
          %v1332 = vadd.f32 %v1082, %v1271
          %v1333 = vadd.f32 %v1085, %v1274
          %v1334 = vadd.f32 %v1088, %v1277
          %v1335 = vadd.f32 %v1091, %v1280
          %v1336 = vadd.f32 %v1094, %v1283
          %v1337 = vadd.f32 %v1097, %v1286
          %v1338 = vadd.f32 %v1100, %v1289
          %v1339 = vadd.f32 %v1103, %v1292
          %v1340 = vadd.f32 %v1106, %v1295
          %v1341 = vadd.f32 %v1109, %v1298
          %v1342 = vadd.f32 %v1112, %v1301
          %v1343 = vadd.f32 %v1115, %v1304
          %v1344 = vadd.f32 %v1118, %v1307
          %v1345 = vadd.f32 %v1121, %v1310
          %v1346 = vadd.f32 %v1124, %v1313
          %v1347 = vadd.f32 %v1127, %v1316
          %v1348 = vadd.f32 %v1130, %v1319
          %v1349 = vadd.f32 %v1133, %v1322
          %v1350 = vadd.f32 %v1136, %v1325
          %s1351 = sadd.s32 %s760, 102
          %s1352 = scalar_lea.vmem [#allocation2], %s1351
          %v1353 = vld [vmem:[%s1352] sm:$0xff]
          %v1354 = vld [vmem:[%s1352 + $0x8] sm:$0xff]
          %v1355 = vld [vmem:[%s1352 + $0x10] sm:$0xff]
          %v1356 = vld [vmem:[%s1352 + $0x18] sm:$0xff]
          %v1357 = vld [vmem:[%s1352 + $0x20] sm:$0xff]
          %v1358 = vld [vmem:[%s1352 + $0x28] sm:$0xff]
          %v1359 = vld [vmem:[%s1352 + $0x30] sm:$0xff]
          %v1360 = vld [vmem:[%s1352 + $0x38] sm:$0xff]
          %v1361 = vld [vmem:[%s1352 + $0x40] sm:$0xff]
          %v1362 = vld [vmem:[%s1352 + $0x48] sm:$0xff]
          %v1363 = vld [vmem:[%s1352 + $0x50] sm:$0xff]
          %v1364 = vld [vmem:[%s1352 + $0x58] sm:$0xff]
          %v1365 = vld [vmem:[%s1352 + $0x60] sm:$0xff]
          %v1366 = vld [vmem:[%s1352 + $0x68] sm:$0xff]
          %v1367 = vld [vmem:[%s1352 + $0x70] sm:$0xff]
          %v1368 = vld [vmem:[%s1352 + $0x78] sm:$0xff]
          %v1369 = vld [vmem:[%s1352 + $0x80] sm:$0xff]
          %v1370 = vld [vmem:[%s1352 + $0x88] sm:$0xff]
          %v1371 = vld [vmem:[%s1352 + $0x90] sm:$0xff]
          %v1372 = vld [vmem:[%s1352 + $0x98] sm:$0xff]
          %v1373 = vld [vmem:[%s1352 + $0xa0] sm:$0xff]
          %v1374 = vld [vmem:[%s1352 + $0xa8] sm:$0xff]
          %v1375 = vld [vmem:[%s1352 + $0xb0] sm:$0xff]
          %v1376 = vld [vmem:[%s1352 + $0xb8] sm:$0xff]
          %s1377 = scalar_lea.vmem %s1, 24
          %v1378 = vld [vmem:[%s1377] sm:$0xff]
          %v1380 = vsel %vm457, %v1353, 0
          %v1383 = vsel %vm457, %v1354, 0
          %v1386 = vsel %vm457, %v1355, 0
          %v1389 = vsel %vm457, %v1356, 0
          %v1392 = vsel %vm457, %v1357, 0
          %v1395 = vsel %vm457, %v1358, 0
          %v1398 = vsel %vm457, %v1359, 0
          %v1401 = vsel %vm457, %v1360, 0
          %v1404 = vsel %vm457, %v1361, 0
          %v1407 = vsel %vm457, %v1362, 0
          %v1410 = vsel %vm457, %v1363, 0
          %v1413 = vsel %vm457, %v1364, 0
          %v1416 = vsel %vm457, %v1365, 0
          %v1419 = vsel %vm457, %v1366, 0
          %v1422 = vsel %vm457, %v1367, 0
          %v1425 = vsel %vm457, %v1368, 0
          %v1428 = vsel %vm457, %v1369, 0
          %v1431 = vsel %vm457, %v1370, 0
          %v1434 = vsel %vm457, %v1371, 0
          %v1437 = vsel %vm457, %v1372, 0
          %v1440 = vsel %vm457, %v1373, 0
          %v1443 = vsel %vm457, %v1374, 0
          %v1446 = vsel %vm457, %v1375, 0
          %v1449 = vsel %vm457, %v1376, 0
          %1451 = vmatpush.msra.mxu0 0.0
          %1452 = vmatpush.msra.mxu0 0.0
          %1453 = vmatpush.msra.mxu0 0.0
          %1454 = vmatpush.msra.mxu0 0.0
          %1455 = vmatpush.msra.mxu0 0.0
          %1456 = vmatpush.msra.mxu0 0.0
          %1457 = vmatpush.msra.mxu0 0.0
          %1458 = vmatpush.msra.mxu0 0.0
          %1459 = vmatpush.msra.mxu0 0.0
          %1460 = vmatpush.msra.mxu0 0.0
          %1461 = vmatpush.msra.mxu0 0.0
          %1462 = vmatpush.msra.mxu0 0.0
          %1463 = vmatpush.msra.mxu0 0.0
          %1464 = vmatpush.msra.mxu0 0.0
          %1465 = vmatpush.msra.mxu0 0.0
          %1466 = vmatpush.msra.mxu0 %v1378
          %1467 = vmatmul.f32.gmra.mxu0 %v1380
          %v1468 = vpop.f32.mrf.mxu0
          %v1469 = vadd.f32 0.0, %v1468
          %1470 = vmatmul.f32.gmra.mxu0 %v1383
          %v1471 = vpop.f32.mrf.mxu0
          %v1472 = vadd.f32 0.0, %v1471
          %1473 = vmatmul.f32.gmra.mxu0 %v1386
          %v1474 = vpop.f32.mrf.mxu0
          %v1475 = vadd.f32 0.0, %v1474
          %1476 = vmatmul.f32.gmra.mxu0 %v1389
          %v1477 = vpop.f32.mrf.mxu0
          %v1478 = vadd.f32 0.0, %v1477
          %1479 = vmatmul.f32.gmra.mxu0 %v1392
          %v1480 = vpop.f32.mrf.mxu0
          %v1481 = vadd.f32 0.0, %v1480
          %1482 = vmatmul.f32.gmra.mxu0 %v1395
          %v1483 = vpop.f32.mrf.mxu0
          %v1484 = vadd.f32 0.0, %v1483
          %1485 = vmatmul.f32.gmra.mxu0 %v1398
          %v1486 = vpop.f32.mrf.mxu0
          %v1487 = vadd.f32 0.0, %v1486
          %1488 = vmatmul.f32.gmra.mxu0 %v1401
          %v1489 = vpop.f32.mrf.mxu0
          %v1490 = vadd.f32 0.0, %v1489
          %1491 = vmatmul.f32.gmra.mxu0 %v1404
          %v1492 = vpop.f32.mrf.mxu0
          %v1493 = vadd.f32 0.0, %v1492
          %1494 = vmatmul.f32.gmra.mxu0 %v1407
          %v1495 = vpop.f32.mrf.mxu0
          %v1496 = vadd.f32 0.0, %v1495
          %1497 = vmatmul.f32.gmra.mxu0 %v1410
          %v1498 = vpop.f32.mrf.mxu0
          %v1499 = vadd.f32 0.0, %v1498
          %1500 = vmatmul.f32.gmra.mxu0 %v1413
          %v1501 = vpop.f32.mrf.mxu0
          %v1502 = vadd.f32 0.0, %v1501
          %1503 = vmatmul.f32.gmra.mxu0 %v1416
          %v1504 = vpop.f32.mrf.mxu0
          %v1505 = vadd.f32 0.0, %v1504
          %1506 = vmatmul.f32.gmra.mxu0 %v1419
          %v1507 = vpop.f32.mrf.mxu0
          %v1508 = vadd.f32 0.0, %v1507
          %1509 = vmatmul.f32.gmra.mxu0 %v1422
          %v1510 = vpop.f32.mrf.mxu0
          %v1511 = vadd.f32 0.0, %v1510
          %1512 = vmatmul.f32.gmra.mxu0 %v1425
          %v1513 = vpop.f32.mrf.mxu0
          %v1514 = vadd.f32 0.0, %v1513
          %1515 = vmatmul.f32.gmra.mxu0 %v1428
          %v1516 = vpop.f32.mrf.mxu0
          %v1517 = vadd.f32 0.0, %v1516
          %1518 = vmatmul.f32.gmra.mxu0 %v1431
          %v1519 = vpop.f32.mrf.mxu0
          %v1520 = vadd.f32 0.0, %v1519
          %1521 = vmatmul.f32.gmra.mxu0 %v1434
          %v1522 = vpop.f32.mrf.mxu0
          %v1523 = vadd.f32 0.0, %v1522
          %1524 = vmatmul.f32.gmra.mxu0 %v1437
          %v1525 = vpop.f32.mrf.mxu0
          %v1526 = vadd.f32 0.0, %v1525
          %1527 = vmatmul.f32.gmra.mxu0 %v1440
          %v1528 = vpop.f32.mrf.mxu0
          %v1529 = vadd.f32 0.0, %v1528
          %1530 = vmatmul.f32.gmra.mxu0 %v1443
          %v1531 = vpop.f32.mrf.mxu0
          %v1532 = vadd.f32 0.0, %v1531
          %1533 = vmatmul.f32.gmra.mxu0 %v1446
          %v1534 = vpop.f32.mrf.mxu0
          %v1535 = vadd.f32 0.0, %v1534
          %1536 = vmatmul.f32.gmra.mxu0 %v1449
          %v1537 = vpop.f32.mrf.mxu0
          %v1538 = vadd.f32 0.0, %v1537
          %1539 = vdwg.mxu0
          %v1540 = vadd.f32 %v1327, %v1469
          %v1541 = vadd.f32 %v1328, %v1472
          %v1542 = vadd.f32 %v1329, %v1475
          %v1543 = vadd.f32 %v1330, %v1478
          %v1544 = vadd.f32 %v1331, %v1481
          %v1545 = vadd.f32 %v1332, %v1484
          %v1546 = vadd.f32 %v1333, %v1487
          %v1547 = vadd.f32 %v1334, %v1490
          %v1548 = vadd.f32 %v1335, %v1493
          %v1549 = vadd.f32 %v1336, %v1496
          %v1550 = vadd.f32 %v1337, %v1499
          %v1551 = vadd.f32 %v1338, %v1502
          %v1552 = vadd.f32 %v1339, %v1505
          %v1553 = vadd.f32 %v1340, %v1508
          %v1554 = vadd.f32 %v1341, %v1511
          %v1555 = vadd.f32 %v1342, %v1514
          %v1556 = vadd.f32 %v1343, %v1517
          %v1557 = vadd.f32 %v1344, %v1520
          %v1558 = vadd.f32 %v1345, %v1523
          %v1559 = vadd.f32 %v1346, %v1526
          %v1560 = vadd.f32 %v1347, %v1529
          %v1561 = vadd.f32 %v1348, %v1532
          %v1562 = vadd.f32 %v1349, %v1535
          %v1563 = vadd.f32 %v1350, %v1538
          %s1564 = sadd.s32 %s760, 103
          %s1565 = scalar_lea.vmem [#allocation2], %s1564
          %v1566 = vld [vmem:[%s1565] sm:$0xff]
          %v1567 = vld [vmem:[%s1565 + $0x8] sm:$0xff]
          %v1568 = vld [vmem:[%s1565 + $0x10] sm:$0xff]
          %v1569 = vld [vmem:[%s1565 + $0x18] sm:$0xff]
          %v1570 = vld [vmem:[%s1565 + $0x20] sm:$0xff]
          %v1571 = vld [vmem:[%s1565 + $0x28] sm:$0xff]
          %v1572 = vld [vmem:[%s1565 + $0x30] sm:$0xff]
          %v1573 = vld [vmem:[%s1565 + $0x38] sm:$0xff]
          %v1574 = vld [vmem:[%s1565 + $0x40] sm:$0xff]
          %v1575 = vld [vmem:[%s1565 + $0x48] sm:$0xff]
          %v1576 = vld [vmem:[%s1565 + $0x50] sm:$0xff]
          %v1577 = vld [vmem:[%s1565 + $0x58] sm:$0xff]
          %v1578 = vld [vmem:[%s1565 + $0x60] sm:$0xff]
          %v1579 = vld [vmem:[%s1565 + $0x68] sm:$0xff]
          %v1580 = vld [vmem:[%s1565 + $0x70] sm:$0xff]
          %v1581 = vld [vmem:[%s1565 + $0x78] sm:$0xff]
          %v1582 = vld [vmem:[%s1565 + $0x80] sm:$0xff]
          %v1583 = vld [vmem:[%s1565 + $0x88] sm:$0xff]
          %v1584 = vld [vmem:[%s1565 + $0x90] sm:$0xff]
          %v1585 = vld [vmem:[%s1565 + $0x98] sm:$0xff]
          %v1586 = vld [vmem:[%s1565 + $0xa0] sm:$0xff]
          %v1587 = vld [vmem:[%s1565 + $0xa8] sm:$0xff]
          %v1588 = vld [vmem:[%s1565 + $0xb0] sm:$0xff]
          %v1589 = vld [vmem:[%s1565 + $0xb8] sm:$0xff]
          %s1590 = scalar_lea.vmem %s1, 32
          %v1591 = vld [vmem:[%s1590] sm:$0xff]
          %v1593 = vsel %vm457, %v1566, 0
          %v1596 = vsel %vm457, %v1567, 0
          %v1599 = vsel %vm457, %v1568, 0
          %v1602 = vsel %vm457, %v1569, 0
          %v1605 = vsel %vm457, %v1570, 0
          %v1608 = vsel %vm457, %v1571, 0
          %v1611 = vsel %vm457, %v1572, 0
          %v1614 = vsel %vm457, %v1573, 0
          %v1617 = vsel %vm457, %v1574, 0
          %v1620 = vsel %vm457, %v1575, 0
          %v1623 = vsel %vm457, %v1576, 0
          %v1626 = vsel %vm457, %v1577, 0
          %v1629 = vsel %vm457, %v1578, 0
          %v1632 = vsel %vm457, %v1579, 0
          %v1635 = vsel %vm457, %v1580, 0
          %v1638 = vsel %vm457, %v1581, 0
          %v1641 = vsel %vm457, %v1582, 0
          %v1644 = vsel %vm457, %v1583, 0
          %v1647 = vsel %vm457, %v1584, 0
          %v1650 = vsel %vm457, %v1585, 0
          %v1653 = vsel %vm457, %v1586, 0
          %v1656 = vsel %vm457, %v1587, 0
          %v1659 = vsel %vm457, %v1588, 0
          %v1662 = vsel %vm457, %v1589, 0
          %1664 = vmatpush.msra.mxu0 0.0
          %1665 = vmatpush.msra.mxu0 0.0
          %1666 = vmatpush.msra.mxu0 0.0
          %1667 = vmatpush.msra.mxu0 0.0
          %1668 = vmatpush.msra.mxu0 0.0
          %1669 = vmatpush.msra.mxu0 0.0
          %1670 = vmatpush.msra.mxu0 0.0
          %1671 = vmatpush.msra.mxu0 0.0
          %1672 = vmatpush.msra.mxu0 0.0
          %1673 = vmatpush.msra.mxu0 0.0
          %1674 = vmatpush.msra.mxu0 0.0
          %1675 = vmatpush.msra.mxu0 0.0
          %1676 = vmatpush.msra.mxu0 0.0
          %1677 = vmatpush.msra.mxu0 0.0
          %1678 = vmatpush.msra.mxu0 0.0
          %1679 = vmatpush.msra.mxu0 %v1591
          %1680 = vmatmul.f32.gmra.mxu0 %v1593
          %v1681 = vpop.f32.mrf.mxu0
          %v1682 = vadd.f32 0.0, %v1681
          %1683 = vmatmul.f32.gmra.mxu0 %v1596
          %v1684 = vpop.f32.mrf.mxu0
          %v1685 = vadd.f32 0.0, %v1684
          %1686 = vmatmul.f32.gmra.mxu0 %v1599
          %v1687 = vpop.f32.mrf.mxu0
          %v1688 = vadd.f32 0.0, %v1687
          %1689 = vmatmul.f32.gmra.mxu0 %v1602
          %v1690 = vpop.f32.mrf.mxu0
          %v1691 = vadd.f32 0.0, %v1690
          %1692 = vmatmul.f32.gmra.mxu0 %v1605
          %v1693 = vpop.f32.mrf.mxu0
          %v1694 = vadd.f32 0.0, %v1693
          %1695 = vmatmul.f32.gmra.mxu0 %v1608
          %v1696 = vpop.f32.mrf.mxu0
          %v1697 = vadd.f32 0.0, %v1696
          %1698 = vmatmul.f32.gmra.mxu0 %v1611
          %v1699 = vpop.f32.mrf.mxu0
          %v1700 = vadd.f32 0.0, %v1699
          %1701 = vmatmul.f32.gmra.mxu0 %v1614
          %v1702 = vpop.f32.mrf.mxu0
          %v1703 = vadd.f32 0.0, %v1702
          %1704 = vmatmul.f32.gmra.mxu0 %v1617
          %v1705 = vpop.f32.mrf.mxu0
          %v1706 = vadd.f32 0.0, %v1705
          %1707 = vmatmul.f32.gmra.mxu0 %v1620
          %v1708 = vpop.f32.mrf.mxu0
          %v1709 = vadd.f32 0.0, %v1708
          %1710 = vmatmul.f32.gmra.mxu0 %v1623
          %v1711 = vpop.f32.mrf.mxu0
          %v1712 = vadd.f32 0.0, %v1711
          %1713 = vmatmul.f32.gmra.mxu0 %v1626
          %v1714 = vpop.f32.mrf.mxu0
          %v1715 = vadd.f32 0.0, %v1714
          %1716 = vmatmul.f32.gmra.mxu0 %v1629
          %v1717 = vpop.f32.mrf.mxu0
          %v1718 = vadd.f32 0.0, %v1717
          %1719 = vmatmul.f32.gmra.mxu0 %v1632
          %v1720 = vpop.f32.mrf.mxu0
          %v1721 = vadd.f32 0.0, %v1720
          %1722 = vmatmul.f32.gmra.mxu0 %v1635
          %v1723 = vpop.f32.mrf.mxu0
          %v1724 = vadd.f32 0.0, %v1723
          %1725 = vmatmul.f32.gmra.mxu0 %v1638
          %v1726 = vpop.f32.mrf.mxu0
          %v1727 = vadd.f32 0.0, %v1726
          %1728 = vmatmul.f32.gmra.mxu0 %v1641
          %v1729 = vpop.f32.mrf.mxu0
          %v1730 = vadd.f32 0.0, %v1729
          %1731 = vmatmul.f32.gmra.mxu0 %v1644
          %v1732 = vpop.f32.mrf.mxu0
          %v1733 = vadd.f32 0.0, %v1732
          %1734 = vmatmul.f32.gmra.mxu0 %v1647
          %v1735 = vpop.f32.mrf.mxu0
          %v1736 = vadd.f32 0.0, %v1735
          %1737 = vmatmul.f32.gmra.mxu0 %v1650
          %v1738 = vpop.f32.mrf.mxu0
          %v1739 = vadd.f32 0.0, %v1738
          %1740 = vmatmul.f32.gmra.mxu0 %v1653
          %v1741 = vpop.f32.mrf.mxu0
          %v1742 = vadd.f32 0.0, %v1741
          %1743 = vmatmul.f32.gmra.mxu0 %v1656
          %v1744 = vpop.f32.mrf.mxu0
          %v1745 = vadd.f32 0.0, %v1744
          %1746 = vmatmul.f32.gmra.mxu0 %v1659
          %v1747 = vpop.f32.mrf.mxu0
          %v1748 = vadd.f32 0.0, %v1747
          %1749 = vmatmul.f32.gmra.mxu0 %v1662
          %v1750 = vpop.f32.mrf.mxu0
          %v1751 = vadd.f32 0.0, %v1750
          %1752 = vdwg.mxu0
          %v1753 = vadd.f32 %v1540, %v1682
          %v1754 = vadd.f32 %v1541, %v1685
          %v1755 = vadd.f32 %v1542, %v1688
          %v1756 = vadd.f32 %v1543, %v1691
          %v1757 = vadd.f32 %v1544, %v1694
          %v1758 = vadd.f32 %v1545, %v1697
          %v1759 = vadd.f32 %v1546, %v1700
          %v1760 = vadd.f32 %v1547, %v1703
          %v1761 = vadd.f32 %v1548, %v1706
          %v1762 = vadd.f32 %v1549, %v1709
          %v1763 = vadd.f32 %v1550, %v1712
          %v1764 = vadd.f32 %v1551, %v1715
          %v1765 = vadd.f32 %v1552, %v1718
          %v1766 = vadd.f32 %v1553, %v1721
          %v1767 = vadd.f32 %v1554, %v1724
          %v1768 = vadd.f32 %v1555, %v1727
          %v1769 = vadd.f32 %v1556, %v1730
          %v1770 = vadd.f32 %v1557, %v1733
          %v1771 = vadd.f32 %v1558, %v1736
          %v1772 = vadd.f32 %v1559, %v1739
          %v1773 = vadd.f32 %v1560, %v1742
          %v1774 = vadd.f32 %v1561, %v1745
          %v1775 = vadd.f32 %v1562, %v1748
          %v1776 = vadd.f32 %v1563, %v1751
          %s1777 = sadd.s32 %s760, 104
          %s1778 = scalar_lea.vmem [#allocation2], %s1777
          %v1779 = vld [vmem:[%s1778] sm:$0xff]
          %v1780 = vld [vmem:[%s1778 + $0x8] sm:$0xff]
          %v1781 = vld [vmem:[%s1778 + $0x10] sm:$0xff]
          %v1782 = vld [vmem:[%s1778 + $0x18] sm:$0xff]
          %v1783 = vld [vmem:[%s1778 + $0x20] sm:$0xff]
          %v1784 = vld [vmem:[%s1778 + $0x28] sm:$0xff]
          %v1785 = vld [vmem:[%s1778 + $0x30] sm:$0xff]
          %v1786 = vld [vmem:[%s1778 + $0x38] sm:$0xff]
          %v1787 = vld [vmem:[%s1778 + $0x40] sm:$0xff]
          %v1788 = vld [vmem:[%s1778 + $0x48] sm:$0xff]
          %v1789 = vld [vmem:[%s1778 + $0x50] sm:$0xff]
          %v1790 = vld [vmem:[%s1778 + $0x58] sm:$0xff]
          %v1791 = vld [vmem:[%s1778 + $0x60] sm:$0xff]
          %v1792 = vld [vmem:[%s1778 + $0x68] sm:$0xff]
          %v1793 = vld [vmem:[%s1778 + $0x70] sm:$0xff]
          %v1794 = vld [vmem:[%s1778 + $0x78] sm:$0xff]
          %v1795 = vld [vmem:[%s1778 + $0x80] sm:$0xff]
          %v1796 = vld [vmem:[%s1778 + $0x88] sm:$0xff]
          %v1797 = vld [vmem:[%s1778 + $0x90] sm:$0xff]
          %v1798 = vld [vmem:[%s1778 + $0x98] sm:$0xff]
          %v1799 = vld [vmem:[%s1778 + $0xa0] sm:$0xff]
          %v1800 = vld [vmem:[%s1778 + $0xa8] sm:$0xff]
          %v1801 = vld [vmem:[%s1778 + $0xb0] sm:$0xff]
          %v1802 = vld [vmem:[%s1778 + $0xb8] sm:$0xff]
          %s1803 = scalar_lea.vmem %s1, 40
          %v1804 = vld [vmem:[%s1803] sm:$0xff]
          %v1806 = vsel %vm457, %v1779, 0
          %v1809 = vsel %vm457, %v1780, 0
          %v1812 = vsel %vm457, %v1781, 0
          %v1815 = vsel %vm457, %v1782, 0
          %v1818 = vsel %vm457, %v1783, 0
          %v1821 = vsel %vm457, %v1784, 0
          %v1824 = vsel %vm457, %v1785, 0
          %v1827 = vsel %vm457, %v1786, 0
          %v1830 = vsel %vm457, %v1787, 0
          %v1833 = vsel %vm457, %v1788, 0
          %v1836 = vsel %vm457, %v1789, 0
          %v1839 = vsel %vm457, %v1790, 0
          %v1842 = vsel %vm457, %v1791, 0
          %v1845 = vsel %vm457, %v1792, 0
          %v1848 = vsel %vm457, %v1793, 0
          %v1851 = vsel %vm457, %v1794, 0
          %v1854 = vsel %vm457, %v1795, 0
          %v1857 = vsel %vm457, %v1796, 0
          %v1860 = vsel %vm457, %v1797, 0
          %v1863 = vsel %vm457, %v1798, 0
          %v1866 = vsel %vm457, %v1799, 0
          %v1869 = vsel %vm457, %v1800, 0
          %v1872 = vsel %vm457, %v1801, 0
          %v1875 = vsel %vm457, %v1802, 0
          %1877 = vmatpush.msra.mxu0 0.0
          %1878 = vmatpush.msra.mxu0 0.0
          %1879 = vmatpush.msra.mxu0 0.0
          %1880 = vmatpush.msra.mxu0 0.0
          %1881 = vmatpush.msra.mxu0 0.0
          %1882 = vmatpush.msra.mxu0 0.0
          %1883 = vmatpush.msra.mxu0 0.0
          %1884 = vmatpush.msra.mxu0 0.0
          %1885 = vmatpush.msra.mxu0 0.0
          %1886 = vmatpush.msra.mxu0 0.0
          %1887 = vmatpush.msra.mxu0 0.0
          %1888 = vmatpush.msra.mxu0 0.0
          %1889 = vmatpush.msra.mxu0 0.0
          %1890 = vmatpush.msra.mxu0 0.0
          %1891 = vmatpush.msra.mxu0 0.0
          %1892 = vmatpush.msra.mxu0 %v1804
          %1893 = vmatmul.f32.gmra.mxu0 %v1806
          %v1894 = vpop.f32.mrf.mxu0
          %v1895 = vadd.f32 0.0, %v1894
          %1896 = vmatmul.f32.gmra.mxu0 %v1809
          %v1897 = vpop.f32.mrf.mxu0
          %v1898 = vadd.f32 0.0, %v1897
          %1899 = vmatmul.f32.gmra.mxu0 %v1812
          %v1900 = vpop.f32.mrf.mxu0
          %v1901 = vadd.f32 0.0, %v1900
          %1902 = vmatmul.f32.gmra.mxu0 %v1815
          %v1903 = vpop.f32.mrf.mxu0
          %v1904 = vadd.f32 0.0, %v1903
          %1905 = vmatmul.f32.gmra.mxu0 %v1818
          %v1906 = vpop.f32.mrf.mxu0
          %v1907 = vadd.f32 0.0, %v1906
          %1908 = vmatmul.f32.gmra.mxu0 %v1821
          %v1909 = vpop.f32.mrf.mxu0
          %v1910 = vadd.f32 0.0, %v1909
          %1911 = vmatmul.f32.gmra.mxu0 %v1824
          %v1912 = vpop.f32.mrf.mxu0
          %v1913 = vadd.f32 0.0, %v1912
          %1914 = vmatmul.f32.gmra.mxu0 %v1827
          %v1915 = vpop.f32.mrf.mxu0
          %v1916 = vadd.f32 0.0, %v1915
          %1917 = vmatmul.f32.gmra.mxu0 %v1830
          %v1918 = vpop.f32.mrf.mxu0
          %v1919 = vadd.f32 0.0, %v1918
          %1920 = vmatmul.f32.gmra.mxu0 %v1833
          %v1921 = vpop.f32.mrf.mxu0
          %v1922 = vadd.f32 0.0, %v1921
          %1923 = vmatmul.f32.gmra.mxu0 %v1836
          %v1924 = vpop.f32.mrf.mxu0
          %v1925 = vadd.f32 0.0, %v1924
          %1926 = vmatmul.f32.gmra.mxu0 %v1839
          %v1927 = vpop.f32.mrf.mxu0
          %v1928 = vadd.f32 0.0, %v1927
          %1929 = vmatmul.f32.gmra.mxu0 %v1842
          %v1930 = vpop.f32.mrf.mxu0
          %v1931 = vadd.f32 0.0, %v1930
          %1932 = vmatmul.f32.gmra.mxu0 %v1845
          %v1933 = vpop.f32.mrf.mxu0
          %v1934 = vadd.f32 0.0, %v1933
          %1935 = vmatmul.f32.gmra.mxu0 %v1848
          %v1936 = vpop.f32.mrf.mxu0
          %v1937 = vadd.f32 0.0, %v1936
          %1938 = vmatmul.f32.gmra.mxu0 %v1851
          %v1939 = vpop.f32.mrf.mxu0
          %v1940 = vadd.f32 0.0, %v1939
          %1941 = vmatmul.f32.gmra.mxu0 %v1854
          %v1942 = vpop.f32.mrf.mxu0
          %v1943 = vadd.f32 0.0, %v1942
          %1944 = vmatmul.f32.gmra.mxu0 %v1857
          %v1945 = vpop.f32.mrf.mxu0
          %v1946 = vadd.f32 0.0, %v1945
          %1947 = vmatmul.f32.gmra.mxu0 %v1860
          %v1948 = vpop.f32.mrf.mxu0
          %v1949 = vadd.f32 0.0, %v1948
          %1950 = vmatmul.f32.gmra.mxu0 %v1863
          %v1951 = vpop.f32.mrf.mxu0
          %v1952 = vadd.f32 0.0, %v1951
          %1953 = vmatmul.f32.gmra.mxu0 %v1866
          %v1954 = vpop.f32.mrf.mxu0
          %v1955 = vadd.f32 0.0, %v1954
          %1956 = vmatmul.f32.gmra.mxu0 %v1869
          %v1957 = vpop.f32.mrf.mxu0
          %v1958 = vadd.f32 0.0, %v1957
          %1959 = vmatmul.f32.gmra.mxu0 %v1872
          %v1960 = vpop.f32.mrf.mxu0
          %v1961 = vadd.f32 0.0, %v1960
          %1962 = vmatmul.f32.gmra.mxu0 %v1875
          %v1963 = vpop.f32.mrf.mxu0
          %v1964 = vadd.f32 0.0, %v1963
          %1965 = vdwg.mxu0
          %v1966 = vadd.f32 %v1753, %v1895
          %v1967 = vadd.f32 %v1754, %v1898
          %v1968 = vadd.f32 %v1755, %v1901
          %v1969 = vadd.f32 %v1756, %v1904
          %v1970 = vadd.f32 %v1757, %v1907
          %v1971 = vadd.f32 %v1758, %v1910
          %v1972 = vadd.f32 %v1759, %v1913
          %v1973 = vadd.f32 %v1760, %v1916
          %v1974 = vadd.f32 %v1761, %v1919
          %v1975 = vadd.f32 %v1762, %v1922
          %v1976 = vadd.f32 %v1763, %v1925
          %v1977 = vadd.f32 %v1764, %v1928
          %v1978 = vadd.f32 %v1765, %v1931
          %v1979 = vadd.f32 %v1766, %v1934
          %v1980 = vadd.f32 %v1767, %v1937
          %v1981 = vadd.f32 %v1768, %v1940
          %v1982 = vadd.f32 %v1769, %v1943
          %v1983 = vadd.f32 %v1770, %v1946
          %v1984 = vadd.f32 %v1771, %v1949
          %v1985 = vadd.f32 %v1772, %v1952
          %v1986 = vadd.f32 %v1773, %v1955
          %v1987 = vadd.f32 %v1774, %v1958
          %v1988 = vadd.f32 %v1775, %v1961
          %v1989 = vadd.f32 %v1776, %v1964
          %s1990 = sadd.s32 %s760, 198
          %s1991 = scalar_lea.vmem [#allocation2], %s1990
          %v1992 = vld [vmem:[%s1991] sm:$0xff]
          %v1993 = vld [vmem:[%s1991 + $0x8] sm:$0xff]
          %v1994 = vld [vmem:[%s1991 + $0x10] sm:$0xff]
          %v1995 = vld [vmem:[%s1991 + $0x18] sm:$0xff]
          %v1996 = vld [vmem:[%s1991 + $0x20] sm:$0xff]
          %v1997 = vld [vmem:[%s1991 + $0x28] sm:$0xff]
          %v1998 = vld [vmem:[%s1991 + $0x30] sm:$0xff]
          %v1999 = vld [vmem:[%s1991 + $0x38] sm:$0xff]
          %v2000 = vld [vmem:[%s1991 + $0x40] sm:$0xff]
          %v2001 = vld [vmem:[%s1991 + $0x48] sm:$0xff]
          %v2002 = vld [vmem:[%s1991 + $0x50] sm:$0xff]
          %v2003 = vld [vmem:[%s1991 + $0x58] sm:$0xff]
          %v2004 = vld [vmem:[%s1991 + $0x60] sm:$0xff]
          %v2005 = vld [vmem:[%s1991 + $0x68] sm:$0xff]
          %v2006 = vld [vmem:[%s1991 + $0x70] sm:$0xff]
          %v2007 = vld [vmem:[%s1991 + $0x78] sm:$0xff]
          %v2008 = vld [vmem:[%s1991 + $0x80] sm:$0xff]
          %v2009 = vld [vmem:[%s1991 + $0x88] sm:$0xff]
          %v2010 = vld [vmem:[%s1991 + $0x90] sm:$0xff]
          %v2011 = vld [vmem:[%s1991 + $0x98] sm:$0xff]
          %v2012 = vld [vmem:[%s1991 + $0xa0] sm:$0xff]
          %v2013 = vld [vmem:[%s1991 + $0xa8] sm:$0xff]
          %v2014 = vld [vmem:[%s1991 + $0xb0] sm:$0xff]
          %v2015 = vld [vmem:[%s1991 + $0xb8] sm:$0xff]
          %s2016 = scalar_lea.vmem %s1, 48
          %v2017 = vld [vmem:[%s2016] sm:$0xff]
          %v2019 = vsel %vm457, %v1992, 0
          %v2022 = vsel %vm457, %v1993, 0
          %v2025 = vsel %vm457, %v1994, 0
          %v2028 = vsel %vm457, %v1995, 0
          %v2031 = vsel %vm457, %v1996, 0
          %v2034 = vsel %vm457, %v1997, 0
          %v2037 = vsel %vm457, %v1998, 0
          %v2040 = vsel %vm457, %v1999, 0
          %v2043 = vsel %vm457, %v2000, 0
          %v2046 = vsel %vm457, %v2001, 0
          %v2049 = vsel %vm457, %v2002, 0
          %v2052 = vsel %vm457, %v2003, 0
          %v2055 = vsel %vm457, %v2004, 0
          %v2058 = vsel %vm457, %v2005, 0
          %v2061 = vsel %vm457, %v2006, 0
          %v2064 = vsel %vm457, %v2007, 0
          %v2067 = vsel %vm457, %v2008, 0
          %v2070 = vsel %vm457, %v2009, 0
          %v2073 = vsel %vm457, %v2010, 0
          %v2076 = vsel %vm457, %v2011, 0
          %v2079 = vsel %vm457, %v2012, 0
          %v2082 = vsel %vm457, %v2013, 0
          %v2085 = vsel %vm457, %v2014, 0
          %v2088 = vsel %vm457, %v2015, 0
          %2090 = vmatpush.msra.mxu0 0.0
          %2091 = vmatpush.msra.mxu0 0.0
          %2092 = vmatpush.msra.mxu0 0.0
          %2093 = vmatpush.msra.mxu0 0.0
          %2094 = vmatpush.msra.mxu0 0.0
          %2095 = vmatpush.msra.mxu0 0.0
          %2096 = vmatpush.msra.mxu0 0.0
          %2097 = vmatpush.msra.mxu0 0.0
          %2098 = vmatpush.msra.mxu0 0.0
          %2099 = vmatpush.msra.mxu0 0.0
          %2100 = vmatpush.msra.mxu0 0.0
          %2101 = vmatpush.msra.mxu0 0.0
          %2102 = vmatpush.msra.mxu0 0.0
          %2103 = vmatpush.msra.mxu0 0.0
          %2104 = vmatpush.msra.mxu0 0.0
          %2105 = vmatpush.msra.mxu0 %v2017
          %2106 = vmatmul.f32.gmra.mxu0 %v2019
          %v2107 = vpop.f32.mrf.mxu0
          %v2108 = vadd.f32 0.0, %v2107
          %2109 = vmatmul.f32.gmra.mxu0 %v2022
          %v2110 = vpop.f32.mrf.mxu0
          %v2111 = vadd.f32 0.0, %v2110
          %2112 = vmatmul.f32.gmra.mxu0 %v2025
          %v2113 = vpop.f32.mrf.mxu0
          %v2114 = vadd.f32 0.0, %v2113
          %2115 = vmatmul.f32.gmra.mxu0 %v2028
          %v2116 = vpop.f32.mrf.mxu0
          %v2117 = vadd.f32 0.0, %v2116
          %2118 = vmatmul.f32.gmra.mxu0 %v2031
          %v2119 = vpop.f32.mrf.mxu0
          %v2120 = vadd.f32 0.0, %v2119
          %2121 = vmatmul.f32.gmra.mxu0 %v2034
          %v2122 = vpop.f32.mrf.mxu0
          %v2123 = vadd.f32 0.0, %v2122
          %2124 = vmatmul.f32.gmra.mxu0 %v2037
          %v2125 = vpop.f32.mrf.mxu0
          %v2126 = vadd.f32 0.0, %v2125
          %2127 = vmatmul.f32.gmra.mxu0 %v2040
          %v2128 = vpop.f32.mrf.mxu0
          %v2129 = vadd.f32 0.0, %v2128
          %2130 = vmatmul.f32.gmra.mxu0 %v2043
          %v2131 = vpop.f32.mrf.mxu0
          %v2132 = vadd.f32 0.0, %v2131
          %2133 = vmatmul.f32.gmra.mxu0 %v2046
          %v2134 = vpop.f32.mrf.mxu0
          %v2135 = vadd.f32 0.0, %v2134
          %2136 = vmatmul.f32.gmra.mxu0 %v2049
          %v2137 = vpop.f32.mrf.mxu0
          %v2138 = vadd.f32 0.0, %v2137
          %2139 = vmatmul.f32.gmra.mxu0 %v2052
          %v2140 = vpop.f32.mrf.mxu0
          %v2141 = vadd.f32 0.0, %v2140
          %2142 = vmatmul.f32.gmra.mxu0 %v2055
          %v2143 = vpop.f32.mrf.mxu0
          %v2144 = vadd.f32 0.0, %v2143
          %2145 = vmatmul.f32.gmra.mxu0 %v2058
          %v2146 = vpop.f32.mrf.mxu0
          %v2147 = vadd.f32 0.0, %v2146
          %2148 = vmatmul.f32.gmra.mxu0 %v2061
          %v2149 = vpop.f32.mrf.mxu0
          %v2150 = vadd.f32 0.0, %v2149
          %2151 = vmatmul.f32.gmra.mxu0 %v2064
          %v2152 = vpop.f32.mrf.mxu0
          %v2153 = vadd.f32 0.0, %v2152
          %2154 = vmatmul.f32.gmra.mxu0 %v2067
          %v2155 = vpop.f32.mrf.mxu0
          %v2156 = vadd.f32 0.0, %v2155
          %2157 = vmatmul.f32.gmra.mxu0 %v2070
          %v2158 = vpop.f32.mrf.mxu0
          %v2159 = vadd.f32 0.0, %v2158
          %2160 = vmatmul.f32.gmra.mxu0 %v2073
          %v2161 = vpop.f32.mrf.mxu0
          %v2162 = vadd.f32 0.0, %v2161
          %2163 = vmatmul.f32.gmra.mxu0 %v2076
          %v2164 = vpop.f32.mrf.mxu0
          %v2165 = vadd.f32 0.0, %v2164
          %2166 = vmatmul.f32.gmra.mxu0 %v2079
          %v2167 = vpop.f32.mrf.mxu0
          %v2168 = vadd.f32 0.0, %v2167
          %2169 = vmatmul.f32.gmra.mxu0 %v2082
          %v2170 = vpop.f32.mrf.mxu0
          %v2171 = vadd.f32 0.0, %v2170
          %2172 = vmatmul.f32.gmra.mxu0 %v2085
          %v2173 = vpop.f32.mrf.mxu0
          %v2174 = vadd.f32 0.0, %v2173
          %2175 = vmatmul.f32.gmra.mxu0 %v2088
          %v2176 = vpop.f32.mrf.mxu0
          %v2177 = vadd.f32 0.0, %v2176
          %2178 = vdwg.mxu0
          %v2179 = vadd.f32 %v1966, %v2108
          %v2180 = vadd.f32 %v1967, %v2111
          %v2181 = vadd.f32 %v1968, %v2114
          %v2182 = vadd.f32 %v1969, %v2117
          %v2183 = vadd.f32 %v1970, %v2120
          %v2184 = vadd.f32 %v1971, %v2123
          %v2185 = vadd.f32 %v1972, %v2126
          %v2186 = vadd.f32 %v1973, %v2129
          %v2187 = vadd.f32 %v1974, %v2132
          %v2188 = vadd.f32 %v1975, %v2135
          %v2189 = vadd.f32 %v1976, %v2138
          %v2190 = vadd.f32 %v1977, %v2141
          %v2191 = vadd.f32 %v1978, %v2144
          %v2192 = vadd.f32 %v1979, %v2147
          %v2193 = vadd.f32 %v1980, %v2150
          %v2194 = vadd.f32 %v1981, %v2153
          %v2195 = vadd.f32 %v1982, %v2156
          %v2196 = vadd.f32 %v1983, %v2159
          %v2197 = vadd.f32 %v1984, %v2162
          %v2198 = vadd.f32 %v1985, %v2165
          %v2199 = vadd.f32 %v1986, %v2168
          %v2200 = vadd.f32 %v1987, %v2171
          %v2201 = vadd.f32 %v1988, %v2174
          %v2202 = vadd.f32 %v1989, %v2177
          %s2203 = sadd.s32 %s760, 199
          %s2204 = scalar_lea.vmem [#allocation2], %s2203
          %v2205 = vld [vmem:[%s2204] sm:$0xff]
          %v2206 = vld [vmem:[%s2204 + $0x8] sm:$0xff]
          %v2207 = vld [vmem:[%s2204 + $0x10] sm:$0xff]
          %v2208 = vld [vmem:[%s2204 + $0x18] sm:$0xff]
          %v2209 = vld [vmem:[%s2204 + $0x20] sm:$0xff]
          %v2210 = vld [vmem:[%s2204 + $0x28] sm:$0xff]
          %v2211 = vld [vmem:[%s2204 + $0x30] sm:$0xff]
          %v2212 = vld [vmem:[%s2204 + $0x38] sm:$0xff]
          %v2213 = vld [vmem:[%s2204 + $0x40] sm:$0xff]
          %v2214 = vld [vmem:[%s2204 + $0x48] sm:$0xff]
          %v2215 = vld [vmem:[%s2204 + $0x50] sm:$0xff]
          %v2216 = vld [vmem:[%s2204 + $0x58] sm:$0xff]
          %v2217 = vld [vmem:[%s2204 + $0x60] sm:$0xff]
          %v2218 = vld [vmem:[%s2204 + $0x68] sm:$0xff]
          %v2219 = vld [vmem:[%s2204 + $0x70] sm:$0xff]
          %v2220 = vld [vmem:[%s2204 + $0x78] sm:$0xff]
          %v2221 = vld [vmem:[%s2204 + $0x80] sm:$0xff]
          %v2222 = vld [vmem:[%s2204 + $0x88] sm:$0xff]
          %v2223 = vld [vmem:[%s2204 + $0x90] sm:$0xff]
          %v2224 = vld [vmem:[%s2204 + $0x98] sm:$0xff]
          %v2225 = vld [vmem:[%s2204 + $0xa0] sm:$0xff]
          %v2226 = vld [vmem:[%s2204 + $0xa8] sm:$0xff]
          %v2227 = vld [vmem:[%s2204 + $0xb0] sm:$0xff]
          %v2228 = vld [vmem:[%s2204 + $0xb8] sm:$0xff]
          %s2229 = scalar_lea.vmem %s1, 56
          %v2230 = vld [vmem:[%s2229] sm:$0xff]
          %v2232 = vsel %vm457, %v2205, 0
          %v2235 = vsel %vm457, %v2206, 0
          %v2238 = vsel %vm457, %v2207, 0
          %v2241 = vsel %vm457, %v2208, 0
          %v2244 = vsel %vm457, %v2209, 0
          %v2247 = vsel %vm457, %v2210, 0
          %v2250 = vsel %vm457, %v2211, 0
          %v2253 = vsel %vm457, %v2212, 0
          %v2256 = vsel %vm457, %v2213, 0
          %v2259 = vsel %vm457, %v2214, 0
          %v2262 = vsel %vm457, %v2215, 0
          %v2265 = vsel %vm457, %v2216, 0
          %v2268 = vsel %vm457, %v2217, 0
          %v2271 = vsel %vm457, %v2218, 0
          %v2274 = vsel %vm457, %v2219, 0
          %v2277 = vsel %vm457, %v2220, 0
          %v2280 = vsel %vm457, %v2221, 0
          %v2283 = vsel %vm457, %v2222, 0
          %v2286 = vsel %vm457, %v2223, 0
          %v2289 = vsel %vm457, %v2224, 0
          %v2292 = vsel %vm457, %v2225, 0
          %v2295 = vsel %vm457, %v2226, 0
          %v2298 = vsel %vm457, %v2227, 0
          %v2301 = vsel %vm457, %v2228, 0
          %2303 = vmatpush.msra.mxu0 0.0
          %2304 = vmatpush.msra.mxu0 0.0
          %2305 = vmatpush.msra.mxu0 0.0
          %2306 = vmatpush.msra.mxu0 0.0
          %2307 = vmatpush.msra.mxu0 0.0
          %2308 = vmatpush.msra.mxu0 0.0
          %2309 = vmatpush.msra.mxu0 0.0
          %2310 = vmatpush.msra.mxu0 0.0
          %2311 = vmatpush.msra.mxu0 0.0
          %2312 = vmatpush.msra.mxu0 0.0
          %2313 = vmatpush.msra.mxu0 0.0
          %2314 = vmatpush.msra.mxu0 0.0
          %2315 = vmatpush.msra.mxu0 0.0
          %2316 = vmatpush.msra.mxu0 0.0
          %2317 = vmatpush.msra.mxu0 0.0
          %2318 = vmatpush.msra.mxu0 %v2230
          %2319 = vmatmul.f32.gmra.mxu0 %v2232
          %v2320 = vpop.f32.mrf.mxu0
          %v2321 = vadd.f32 0.0, %v2320
          %2322 = vmatmul.f32.gmra.mxu0 %v2235
          %v2323 = vpop.f32.mrf.mxu0
          %v2324 = vadd.f32 0.0, %v2323
          %2325 = vmatmul.f32.gmra.mxu0 %v2238
          %v2326 = vpop.f32.mrf.mxu0
          %v2327 = vadd.f32 0.0, %v2326
          %2328 = vmatmul.f32.gmra.mxu0 %v2241
          %v2329 = vpop.f32.mrf.mxu0
          %v2330 = vadd.f32 0.0, %v2329
          %2331 = vmatmul.f32.gmra.mxu0 %v2244
          %v2332 = vpop.f32.mrf.mxu0
          %v2333 = vadd.f32 0.0, %v2332
          %2334 = vmatmul.f32.gmra.mxu0 %v2247
          %v2335 = vpop.f32.mrf.mxu0
          %v2336 = vadd.f32 0.0, %v2335
          %2337 = vmatmul.f32.gmra.mxu0 %v2250
          %v2338 = vpop.f32.mrf.mxu0
          %v2339 = vadd.f32 0.0, %v2338
          %2340 = vmatmul.f32.gmra.mxu0 %v2253
          %v2341 = vpop.f32.mrf.mxu0
          %v2342 = vadd.f32 0.0, %v2341
          %2343 = vmatmul.f32.gmra.mxu0 %v2256
          %v2344 = vpop.f32.mrf.mxu0
          %v2345 = vadd.f32 0.0, %v2344
          %2346 = vmatmul.f32.gmra.mxu0 %v2259
          %v2347 = vpop.f32.mrf.mxu0
          %v2348 = vadd.f32 0.0, %v2347
          %2349 = vmatmul.f32.gmra.mxu0 %v2262
          %v2350 = vpop.f32.mrf.mxu0
          %v2351 = vadd.f32 0.0, %v2350
          %2352 = vmatmul.f32.gmra.mxu0 %v2265
          %v2353 = vpop.f32.mrf.mxu0
          %v2354 = vadd.f32 0.0, %v2353
          %2355 = vmatmul.f32.gmra.mxu0 %v2268
          %v2356 = vpop.f32.mrf.mxu0
          %v2357 = vadd.f32 0.0, %v2356
          %2358 = vmatmul.f32.gmra.mxu0 %v2271
          %v2359 = vpop.f32.mrf.mxu0
          %v2360 = vadd.f32 0.0, %v2359
          %2361 = vmatmul.f32.gmra.mxu0 %v2274
          %v2362 = vpop.f32.mrf.mxu0
          %v2363 = vadd.f32 0.0, %v2362
          %2364 = vmatmul.f32.gmra.mxu0 %v2277
          %v2365 = vpop.f32.mrf.mxu0
          %v2366 = vadd.f32 0.0, %v2365
          %2367 = vmatmul.f32.gmra.mxu0 %v2280
          %v2368 = vpop.f32.mrf.mxu0
          %v2369 = vadd.f32 0.0, %v2368
          %2370 = vmatmul.f32.gmra.mxu0 %v2283
          %v2371 = vpop.f32.mrf.mxu0
          %v2372 = vadd.f32 0.0, %v2371
          %2373 = vmatmul.f32.gmra.mxu0 %v2286
          %v2374 = vpop.f32.mrf.mxu0
          %v2375 = vadd.f32 0.0, %v2374
          %2376 = vmatmul.f32.gmra.mxu0 %v2289
          %v2377 = vpop.f32.mrf.mxu0
          %v2378 = vadd.f32 0.0, %v2377
          %2379 = vmatmul.f32.gmra.mxu0 %v2292
          %v2380 = vpop.f32.mrf.mxu0
          %v2381 = vadd.f32 0.0, %v2380
          %2382 = vmatmul.f32.gmra.mxu0 %v2295
          %v2383 = vpop.f32.mrf.mxu0
          %v2384 = vadd.f32 0.0, %v2383
          %2385 = vmatmul.f32.gmra.mxu0 %v2298
          %v2386 = vpop.f32.mrf.mxu0
          %v2387 = vadd.f32 0.0, %v2386
          %2388 = vmatmul.f32.gmra.mxu0 %v2301
          %v2389 = vpop.f32.mrf.mxu0
          %v2390 = vadd.f32 0.0, %v2389
          %2391 = vdwg.mxu0
          %v2392 = vadd.f32 %v2179, %v2321
          %v2393 = vadd.f32 %v2180, %v2324
          %v2394 = vadd.f32 %v2181, %v2327
          %v2395 = vadd.f32 %v2182, %v2330
          %v2396 = vadd.f32 %v2183, %v2333
          %v2397 = vadd.f32 %v2184, %v2336
          %v2398 = vadd.f32 %v2185, %v2339
          %v2399 = vadd.f32 %v2186, %v2342
          %v2400 = vadd.f32 %v2187, %v2345
          %v2401 = vadd.f32 %v2188, %v2348
          %v2402 = vadd.f32 %v2189, %v2351
          %v2403 = vadd.f32 %v2190, %v2354
          %v2404 = vadd.f32 %v2191, %v2357
          %v2405 = vadd.f32 %v2192, %v2360
          %v2406 = vadd.f32 %v2193, %v2363
          %v2407 = vadd.f32 %v2194, %v2366
          %v2408 = vadd.f32 %v2195, %v2369
          %v2409 = vadd.f32 %v2196, %v2372
          %v2410 = vadd.f32 %v2197, %v2375
          %v2411 = vadd.f32 %v2198, %v2378
          %v2412 = vadd.f32 %v2199, %v2381
          %v2413 = vadd.f32 %v2200, %v2384
          %v2414 = vadd.f32 %v2201, %v2387
          %v2415 = vadd.f32 %v2202, %v2390
          %s2416 = sadd.s32 %s760, 200
          %s2417 = scalar_lea.vmem [#allocation2], %s2416
          %v2418 = vld [vmem:[%s2417] sm:$0xff]
          %v2419 = vld [vmem:[%s2417 + $0x8] sm:$0xff]
          %v2420 = vld [vmem:[%s2417 + $0x10] sm:$0xff]
          %v2421 = vld [vmem:[%s2417 + $0x18] sm:$0xff]
          %v2422 = vld [vmem:[%s2417 + $0x20] sm:$0xff]
          %v2423 = vld [vmem:[%s2417 + $0x28] sm:$0xff]
          %v2424 = vld [vmem:[%s2417 + $0x30] sm:$0xff]
          %v2425 = vld [vmem:[%s2417 + $0x38] sm:$0xff]
          %v2426 = vld [vmem:[%s2417 + $0x40] sm:$0xff]
          %v2427 = vld [vmem:[%s2417 + $0x48] sm:$0xff]
          %v2428 = vld [vmem:[%s2417 + $0x50] sm:$0xff]
          %v2429 = vld [vmem:[%s2417 + $0x58] sm:$0xff]
          %v2430 = vld [vmem:[%s2417 + $0x60] sm:$0xff]
          %v2431 = vld [vmem:[%s2417 + $0x68] sm:$0xff]
          %v2432 = vld [vmem:[%s2417 + $0x70] sm:$0xff]
          %v2433 = vld [vmem:[%s2417 + $0x78] sm:$0xff]
          %v2434 = vld [vmem:[%s2417 + $0x80] sm:$0xff]
          %v2435 = vld [vmem:[%s2417 + $0x88] sm:$0xff]
          %v2436 = vld [vmem:[%s2417 + $0x90] sm:$0xff]
          %v2437 = vld [vmem:[%s2417 + $0x98] sm:$0xff]
          %v2438 = vld [vmem:[%s2417 + $0xa0] sm:$0xff]
          %v2439 = vld [vmem:[%s2417 + $0xa8] sm:$0xff]
          %v2440 = vld [vmem:[%s2417 + $0xb0] sm:$0xff]
          %v2441 = vld [vmem:[%s2417 + $0xb8] sm:$0xff]
          %s2442 = scalar_lea.vmem %s1, 64
          %v2443 = vld [vmem:[%s2442] sm:$0xff]
          %v2445 = vsel %vm457, %v2418, 0
          %v2448 = vsel %vm457, %v2419, 0
          %v2451 = vsel %vm457, %v2420, 0
          %v2454 = vsel %vm457, %v2421, 0
          %v2457 = vsel %vm457, %v2422, 0
          %v2460 = vsel %vm457, %v2423, 0
          %v2463 = vsel %vm457, %v2424, 0
          %v2466 = vsel %vm457, %v2425, 0
          %v2469 = vsel %vm457, %v2426, 0
          %v2472 = vsel %vm457, %v2427, 0
          %v2475 = vsel %vm457, %v2428, 0
          %v2478 = vsel %vm457, %v2429, 0
          %v2481 = vsel %vm457, %v2430, 0
          %v2484 = vsel %vm457, %v2431, 0
          %v2487 = vsel %vm457, %v2432, 0
          %v2490 = vsel %vm457, %v2433, 0
          %v2493 = vsel %vm457, %v2434, 0
          %v2496 = vsel %vm457, %v2435, 0
          %v2499 = vsel %vm457, %v2436, 0
          %v2502 = vsel %vm457, %v2437, 0
          %v2505 = vsel %vm457, %v2438, 0
          %v2508 = vsel %vm457, %v2439, 0
          %v2511 = vsel %vm457, %v2440, 0
          %v2514 = vsel %vm457, %v2441, 0
          %2516 = vmatpush.msra.mxu0 0.0
          %2517 = vmatpush.msra.mxu0 0.0
          %2518 = vmatpush.msra.mxu0 0.0
          %2519 = vmatpush.msra.mxu0 0.0
          %2520 = vmatpush.msra.mxu0 0.0
          %2521 = vmatpush.msra.mxu0 0.0
          %2522 = vmatpush.msra.mxu0 0.0
          %2523 = vmatpush.msra.mxu0 0.0
          %2524 = vmatpush.msra.mxu0 0.0
          %2525 = vmatpush.msra.mxu0 0.0
          %2526 = vmatpush.msra.mxu0 0.0
          %2527 = vmatpush.msra.mxu0 0.0
          %2528 = vmatpush.msra.mxu0 0.0
          %2529 = vmatpush.msra.mxu0 0.0
          %2530 = vmatpush.msra.mxu0 0.0
          %2531 = vmatpush.msra.mxu0 %v2443
          %2532 = vmatmul.f32.gmra.mxu0 %v2445
          %v2533 = vpop.f32.mrf.mxu0
          %v2534 = vadd.f32 0.0, %v2533
          %2535 = vmatmul.f32.gmra.mxu0 %v2448
          %v2536 = vpop.f32.mrf.mxu0
          %v2537 = vadd.f32 0.0, %v2536
          %2538 = vmatmul.f32.gmra.mxu0 %v2451
          %v2539 = vpop.f32.mrf.mxu0
          %v2540 = vadd.f32 0.0, %v2539
          %2541 = vmatmul.f32.gmra.mxu0 %v2454
          %v2542 = vpop.f32.mrf.mxu0
          %v2543 = vadd.f32 0.0, %v2542
          %2544 = vmatmul.f32.gmra.mxu0 %v2457
          %v2545 = vpop.f32.mrf.mxu0
          %v2546 = vadd.f32 0.0, %v2545
          %2547 = vmatmul.f32.gmra.mxu0 %v2460
          %v2548 = vpop.f32.mrf.mxu0
          %v2549 = vadd.f32 0.0, %v2548
          %2550 = vmatmul.f32.gmra.mxu0 %v2463
          %v2551 = vpop.f32.mrf.mxu0
          %v2552 = vadd.f32 0.0, %v2551
          %2553 = vmatmul.f32.gmra.mxu0 %v2466
          %v2554 = vpop.f32.mrf.mxu0
          %v2555 = vadd.f32 0.0, %v2554
          %2556 = vmatmul.f32.gmra.mxu0 %v2469
          %v2557 = vpop.f32.mrf.mxu0
          %v2558 = vadd.f32 0.0, %v2557
          %2559 = vmatmul.f32.gmra.mxu0 %v2472
          %v2560 = vpop.f32.mrf.mxu0
          %v2561 = vadd.f32 0.0, %v2560
          %2562 = vmatmul.f32.gmra.mxu0 %v2475
          %v2563 = vpop.f32.mrf.mxu0
          %v2564 = vadd.f32 0.0, %v2563
          %2565 = vmatmul.f32.gmra.mxu0 %v2478
          %v2566 = vpop.f32.mrf.mxu0
          %v2567 = vadd.f32 0.0, %v2566
          %2568 = vmatmul.f32.gmra.mxu0 %v2481
          %v2569 = vpop.f32.mrf.mxu0
          %v2570 = vadd.f32 0.0, %v2569
          %2571 = vmatmul.f32.gmra.mxu0 %v2484
          %v2572 = vpop.f32.mrf.mxu0
          %v2573 = vadd.f32 0.0, %v2572
          %2574 = vmatmul.f32.gmra.mxu0 %v2487
          %v2575 = vpop.f32.mrf.mxu0
          %v2576 = vadd.f32 0.0, %v2575
          %2577 = vmatmul.f32.gmra.mxu0 %v2490
          %v2578 = vpop.f32.mrf.mxu0
          %v2579 = vadd.f32 0.0, %v2578
          %2580 = vmatmul.f32.gmra.mxu0 %v2493
          %v2581 = vpop.f32.mrf.mxu0
          %v2582 = vadd.f32 0.0, %v2581
          %2583 = vmatmul.f32.gmra.mxu0 %v2496
          %v2584 = vpop.f32.mrf.mxu0
          %v2585 = vadd.f32 0.0, %v2584
          %2586 = vmatmul.f32.gmra.mxu0 %v2499
          %v2587 = vpop.f32.mrf.mxu0
          %v2588 = vadd.f32 0.0, %v2587
          %2589 = vmatmul.f32.gmra.mxu0 %v2502
          %v2590 = vpop.f32.mrf.mxu0
          %v2591 = vadd.f32 0.0, %v2590
          %2592 = vmatmul.f32.gmra.mxu0 %v2505
          %v2593 = vpop.f32.mrf.mxu0
          %v2594 = vadd.f32 0.0, %v2593
          %2595 = vmatmul.f32.gmra.mxu0 %v2508
          %v2596 = vpop.f32.mrf.mxu0
          %v2597 = vadd.f32 0.0, %v2596
          %2598 = vmatmul.f32.gmra.mxu0 %v2511
          %v2599 = vpop.f32.mrf.mxu0
          %v2600 = vadd.f32 0.0, %v2599
          %2601 = vmatmul.f32.gmra.mxu0 %v2514
          %v2602 = vpop.f32.mrf.mxu0
          %v2603 = vadd.f32 0.0, %v2602
          %2604 = vdwg.mxu0
          %v2605 = vadd.f32 %v2392, %v2534
          %v2606 = vadd.f32 %v2393, %v2537
          %v2607 = vadd.f32 %v2394, %v2540
          %v2608 = vadd.f32 %v2395, %v2543
          %v2609 = vadd.f32 %v2396, %v2546
          %v2610 = vadd.f32 %v2397, %v2549
          %v2611 = vadd.f32 %v2398, %v2552
          %v2612 = vadd.f32 %v2399, %v2555
          %v2613 = vadd.f32 %v2400, %v2558
          %v2614 = vadd.f32 %v2401, %v2561
          %v2615 = vadd.f32 %v2402, %v2564
          %v2616 = vadd.f32 %v2403, %v2567
          %v2617 = vadd.f32 %v2404, %v2570
          %v2618 = vadd.f32 %v2405, %v2573
          %v2619 = vadd.f32 %v2406, %v2576
          %v2620 = vadd.f32 %v2407, %v2579
          %v2621 = vadd.f32 %v2408, %v2582
          %v2622 = vadd.f32 %v2409, %v2585
          %v2623 = vadd.f32 %v2410, %v2588
          %v2624 = vadd.f32 %v2411, %v2591
          %v2625 = vadd.f32 %v2412, %v2594
          %v2626 = vadd.f32 %v2413, %v2597
          %v2627 = vadd.f32 %v2414, %v2600
          %v2628 = vadd.f32 %v2415, %v2603
          %v2630 = vperm.slane %v741, 0
          %v2632 = vadd.f32 %v2605, %v2630
          %v2633 = vadd.f32 %v2606, %v2630
          %v2634 = vadd.f32 %v2607, %v2630
          %v2635 = vadd.f32 %v2608, %v2630
          %v2636 = vadd.f32 %v2609, %v2630
          %v2637 = vadd.f32 %v2610, %v2630
          %v2638 = vadd.f32 %v2611, %v2630
          %v2639 = vadd.f32 %v2612, %v2630
          %v2640 = vadd.f32 %v2613, %v2630
          %v2641 = vadd.f32 %v2614, %v2630
          %v2642 = vadd.f32 %v2615, %v2630
          %v2643 = vadd.f32 %v2616, %v2630
          %v2644 = vadd.f32 %v2617, %v2630
          %v2645 = vadd.f32 %v2618, %v2630
          %v2646 = vadd.f32 %v2619, %v2630
          %v2647 = vadd.f32 %v2620, %v2630
          %v2648 = vadd.f32 %v2621, %v2630
          %v2649 = vadd.f32 %v2622, %v2630
          %v2650 = vadd.f32 %v2623, %v2630
          %v2651 = vadd.f32 %v2624, %v2630
          %v2652 = vadd.f32 %v2625, %v2630
          %v2653 = vadd.f32 %v2626, %v2630
          %v2654 = vadd.f32 %v2627, %v2630
          %v2655 = vadd.f32 %v2628, %v2630
          %s2656 = sadd.s32 %s760, 96
          %s2657 = scalar_lea.vmem [#allocation3], %s2656
          %2658 = vst.msk [vmem:[%s2657] sm:$0xff] %vm540, %v2632
          %2659 = vst.msk [vmem:[%s2657 + $0x8] sm:$0xff] %vm540, %v2633
          %2660 = vst.msk [vmem:[%s2657 + $0x10] sm:$0xff] %vm540, %v2634
          %2661 = vst.msk [vmem:[%s2657 + $0x18] sm:$0xff] %vm540, %v2635
          %2662 = vst.msk [vmem:[%s2657 + $0x20] sm:$0xff] %vm540, %v2636
          %2663 = vst.msk [vmem:[%s2657 + $0x28] sm:$0xff] %vm540, %v2637
          %2664 = vst.msk [vmem:[%s2657 + $0x30] sm:$0xff] %vm540, %v2638
          %2665 = vst.msk [vmem:[%s2657 + $0x38] sm:$0xff] %vm540, %v2639
          %2666 = vst.msk [vmem:[%s2657 + $0x40] sm:$0xff] %vm540, %v2640
          %2667 = vst.msk [vmem:[%s2657 + $0x48] sm:$0xff] %vm540, %v2641
          %2668 = vst.msk [vmem:[%s2657 + $0x50] sm:$0xff] %vm540, %v2642
          %2669 = vst.msk [vmem:[%s2657 + $0x58] sm:$0xff] %vm540, %v2643
          %2670 = vst.msk [vmem:[%s2657 + $0x60] sm:$0xff] %vm540, %v2644
          %2671 = vst.msk [vmem:[%s2657 + $0x68] sm:$0xff] %vm540, %v2645
          %2672 = vst.msk [vmem:[%s2657 + $0x70] sm:$0xff] %vm540, %v2646
          %2673 = vst.msk [vmem:[%s2657 + $0x78] sm:$0xff] %vm540, %v2647
          %2674 = vst.msk [vmem:[%s2657 + $0x80] sm:$0xff] %vm540, %v2648
          %2675 = vst.msk [vmem:[%s2657 + $0x88] sm:$0xff] %vm540, %v2649
          %2676 = vst.msk [vmem:[%s2657 + $0x90] sm:$0xff] %vm540, %v2650
          %2677 = vst.msk [vmem:[%s2657 + $0x98] sm:$0xff] %vm540, %v2651
          %2678 = vst.msk [vmem:[%s2657 + $0xa0] sm:$0xff] %vm540, %v2652
          %2679 = vst.msk [vmem:[%s2657 + $0xa8] sm:$0xff] %vm540, %v2653
          %2680 = vst.msk [vmem:[%s2657 + $0xb0] sm:$0xff] %vm540, %v2654
          %2681 = vst.msk [vmem:[%s2657 + $0xb8] sm:$0xff] %vm540, %v2655
        $region90: #{pallas_forward.1} parent=63 // loop_footer
          %s759 = sadd.s32 1, %s755
        $region91: #{pallas_forward.1} parent=63 // loop_footer_branch
          %754 = sbr.rel target = $region87
        $region92: #{pallas_forward.1} parent=63 // loop_exit
          _
        %2682 = vst.msk [vmem:[#allocation3 + $0x1fe0] sm:$0xff] %vm540, 0.0
        %2683 = vst.msk [vmem:[#allocation3 + $0x1fe8] sm:$0xff] %vm540, 0.0
        %2684 = vst.msk [vmem:[#allocation3 + $0x1ff0] sm:$0xff] %vm540, 0.0
        %2685 = vst.msk [vmem:[#allocation3 + $0x1ff8] sm:$0xff] %vm540, 0.0
        %2686 = vst.msk [vmem:[#allocation3 + $0x2000] sm:$0xff] %vm540, 0.0
        %2687 = vst.msk [vmem:[#allocation3 + $0x2008] sm:$0xff] %vm540, 0.0
        %2688 = vst.msk [vmem:[#allocation3 + $0x2010] sm:$0xff] %vm540, 0.0
        %2689 = vst.msk [vmem:[#allocation3 + $0x2018] sm:$0xff] %vm540, 0.0
        %2690 = vst.msk [vmem:[#allocation3 + $0x2020] sm:$0xff] %vm540, 0.0
        %2691 = vst.msk [vmem:[#allocation3 + $0x2028] sm:$0xff] %vm540, 0.0
        %2692 = vst.msk [vmem:[#allocation3 + $0x2030] sm:$0xff] %vm540, 0.0
        %2693 = vst.msk [vmem:[#allocation3 + $0x2038] sm:$0xff] %vm540, 0.0
        %v2694 = vlaneseq
        %v2695 = vshrl.u32 %v2694, 7
        %v2696 = vadd.s32 %v2695, 8
        %v2697 = vadd.s32 %v2695, 16
        %v2698 = vadd.s32 %v2695, 24
        %v2699 = vadd.s32 %v2695, 32
        %v2700 = vadd.s32 %v2695, 40
        %v2701 = vlaneseq
        %v2702 = vand.u32 %v2701, 127
        %v2703 = vmul.u32 %v2695, 2
        %v2704 = vmul.u32 %v2696, 2
        %v2705 = vmul.u32 %v2697, 2
        %v2706 = vmul.u32 %v2698, 2
        %v2707 = vmul.u32 %v2699, 2
        %v2708 = vmul.u32 %v2700, 2
        %vm2709 = vcmp.eq.s32.totalorder %v2702, %v2703
        %vm2710 = vcmp.eq.s32.totalorder %v2702, %v2704
        %vm2711 = vcmp.eq.s32.totalorder %v2702, %v2705
        %vm2712 = vcmp.eq.s32.totalorder %v2702, %v2706
        %vm2713 = vcmp.eq.s32.totalorder %v2702, %v2707
        %vm2714 = vcmp.eq.s32.totalorder %v2702, %v2708
        %vm2715 = vcmp.gt.s32.totalorder %v2702, 0
        %vm2716 = vmand %vm2709, %vm2715
        %vm2717 = vmand %vm2710, %vm2715
        %vm2718 = vmand %vm2711, %vm2715
        %vm2719 = vmand %vm2712, %vm2715
        %vm2720 = vmand %vm2713, %vm2715
        %vm2721 = vmand %vm2714, %vm2715
        %v2722 = vsel %vm2716, 1, 0
        %v2723 = vsel %vm2717, 1, 0
        %v2724 = vsel %vm2718, 1, 0
        %v2725 = vsel %vm2719, 1, 0
        %v2726 = vsel %vm2720, 1, 0
        %v2727 = vsel %vm2721, 1, 0
        %v2728 = vcvt.s32.f32 %v2722
        %v2729 = vcvt.s32.f32 %v2723
        %v2730 = vcvt.s32.f32 %v2724
        %v2731 = vcvt.s32.f32 %v2725
        %v2732 = vcvt.s32.f32 %v2726
        %v2733 = vcvt.s32.f32 %v2727
        %v2734 = vadd.s32 %v2703, 1
        %v2735 = vadd.s32 %v2704, 1
        %v2736 = vadd.s32 %v2705, 1
        %v2737 = vadd.s32 %v2706, 1
        %v2738 = vadd.s32 %v2707, 1
        %v2739 = vadd.s32 %v2708, 1
        %vm2740 = vcmp.eq.s32.totalorder %v2702, %v2734
        %vm2741 = vcmp.eq.s32.totalorder %v2702, %v2735
        %vm2742 = vcmp.eq.s32.totalorder %v2702, %v2736
        %vm2743 = vcmp.eq.s32.totalorder %v2702, %v2737
        %vm2744 = vcmp.eq.s32.totalorder %v2702, %v2738
        %vm2745 = vcmp.eq.s32.totalorder %v2702, %v2739
        %vm2746 = vcmp.lt.s32.totalorder %v2702, 85
        %vm2747 = vmand %vm2740, %vm2746
        %vm2748 = vmand %vm2741, %vm2746
        %vm2749 = vmand %vm2742, %vm2746
        %vm2750 = vmand %vm2743, %vm2746
        %vm2751 = vmand %vm2744, %vm2746
        %vm2752 = vmand %vm2745, %vm2746
        %v2753 = vsel %vm2747, 1, 0
        %v2754 = vsel %vm2748, 1, 0
        %v2755 = vsel %vm2749, 1, 0
        %v2756 = vsel %vm2750, 1, 0
        %v2757 = vsel %vm2751, 1, 0
        %v2758 = vsel %vm2752, 1, 0
        %v2759 = vcvt.s32.f32 %v2753
        %v2760 = vcvt.s32.f32 %v2754
        %v2761 = vcvt.s32.f32 %v2755
        %v2762 = vcvt.s32.f32 %v2756
        %v2763 = vcvt.s32.f32 %v2757
        %v2764 = vcvt.s32.f32 %v2758
        loop: start=0, step=1, limit=43
        $region93: #{pallas_forward.1} parent=63 // loop_pre_header
          _
        $region94: #{pallas_forward.1} parent=63 // loop_header
          %s2766 = sphi 0, %s2770
          %p2767 = scmp.ge.s32.totalorder %s2766, 43
        $region95: #{pallas_forward.1} parent=63 // loop_header_branch
          %2769 = sbr.rel (%p2767) target = $region99
        $region96: #{pallas_forward.1} parent=63 // loop_body
          %s2771 = smul.u32 %s2766, 192
          %s2772 = scalar_lea.vmem [#allocation3], %s2771
          %v2773 = vld [vmem:[%s2772] sm:$0xff]
          %v2774 = vld [vmem:[%s2772 + $0x8] sm:$0xff]
          %v2775 = vld [vmem:[%s2772 + $0x10] sm:$0xff]
          %v2776 = vld [vmem:[%s2772 + $0x18] sm:$0xff]
          %v2777 = vld [vmem:[%s2772 + $0x20] sm:$0xff]
          %v2778 = vld [vmem:[%s2772 + $0x28] sm:$0xff]
          %v2779 = vld [vmem:[%s2772 + $0x30] sm:$0xff]
          %v2780 = vld [vmem:[%s2772 + $0x38] sm:$0xff]
          %v2781 = vld [vmem:[%s2772 + $0x40] sm:$0xff]
          %v2782 = vld [vmem:[%s2772 + $0x48] sm:$0xff]
          %v2783 = vld [vmem:[%s2772 + $0x50] sm:$0x3f]
          %s2784 = sadd.s32 %s2771, 96
          %s2785 = scalar_lea.vmem [#allocation3], %s2784
          %v2786 = vld [vmem:[%s2785] sm:$0xff]
          %v2787 = vld [vmem:[%s2785 + $0x8] sm:$0xff]
          %v2788 = vld [vmem:[%s2785 + $0x10] sm:$0xff]
          %v2789 = vld [vmem:[%s2785 + $0x18] sm:$0xff]
          %v2790 = vld [vmem:[%s2785 + $0x20] sm:$0xff]
          %v2791 = vld [vmem:[%s2785 + $0x28] sm:$0xff]
          %v2792 = vld [vmem:[%s2785 + $0x30] sm:$0xff]
          %v2793 = vld [vmem:[%s2785 + $0x38] sm:$0xff]
          %v2794 = vld [vmem:[%s2785 + $0x40] sm:$0xff]
          %v2795 = vld [vmem:[%s2785 + $0x48] sm:$0xff]
          %v2796 = vld [vmem:[%s2785 + $0x50] sm:$0x3f]
          %v2797 = vmax.f32 %v2773, %v2786
          %v2798 = vmax.f32 %v2774, %v2787
          %v2799 = vmax.f32 %v2775, %v2788
          %v2800 = vmax.f32 %v2776, %v2789
          %v2801 = vmax.f32 %v2777, %v2790
          %v2802 = vmax.f32 %v2778, %v2791
          %v2803 = vmax.f32 %v2779, %v2792
          %v2804 = vmax.f32 %v2780, %v2793
          %v2805 = vmax.f32 %v2781, %v2794
          %v2806 = vmax.f32 %v2782, %v2795
          %v2807 = vmax.f32 %v2783, %v2796
          %vm2808 = vcmask 703488
          %v2810 = vsel %vm2808, %v2728, 0
          %v2813 = vsel %vm2808, %v2729, 0
          %v2816 = vsel %vm2808, %v2730, 0
          %v2819 = vsel %vm2808, %v2731, 0
          %v2822 = vsel %vm2808, %v2732, 0
          %v2825 = vsel %vm2808, %v2733, 0
          %vm2827 = vcmask 1045504
          %v2829 = vsel %vm2827, %v2807, 0
          %2831 = vmatpush.msra.mxu0 0.0
          %2832 = vmatpush.msra.mxu0 0.0
          %2833 = vmatpush.msra.mxu0 0.0
          %2834 = vmatpush.msra.mxu0 0.0
          %2835 = vmatpush.msra.mxu0 0.0
          %2836 = vmatpush.msra.mxu0 %v2829
          %2837 = vmatpush.msra.mxu0 %v2806
          %2838 = vmatpush.msra.mxu0 %v2805
          %2839 = vmatpush.msra.mxu0 %v2804
          %2840 = vmatpush.msra.mxu0 %v2803
          %2841 = vmatpush.msra.mxu0 %v2802
          %2842 = vmatpush.msra.mxu0 %v2801
          %2843 = vmatpush.msra.mxu0 %v2800
          %2844 = vmatpush.msra.mxu0 %v2799
          %2845 = vmatpush.msra.mxu0 %v2798
          %2846 = vmatpush.msra.mxu0 %v2797
          %2847 = vmatmul.f32.gmra.mxu0 %v2810
          %v2848 = vpop.f32.mrf.mxu0
          %v2849 = vadd.f32 0.0, %v2848
          %2850 = vmatmul.f32.gmra.mxu0 %v2813
          %v2851 = vpop.f32.mrf.mxu0
          %v2852 = vadd.f32 0.0, %v2851
          %2853 = vmatmul.f32.gmra.mxu0 %v2816
          %v2854 = vpop.f32.mrf.mxu0
          %v2855 = vadd.f32 0.0, %v2854
          %2856 = vmatmul.f32.gmra.mxu0 %v2819
          %v2857 = vpop.f32.mrf.mxu0
          %v2858 = vadd.f32 0.0, %v2857
          %2859 = vmatmul.f32.gmra.mxu0 %v2822
          %v2860 = vpop.f32.mrf.mxu0
          %v2861 = vadd.f32 0.0, %v2860
          %2862 = vmatmul.f32.gmra.mxu0 %v2825
          %v2863 = vpop.f32.mrf.mxu0
          %v2864 = vadd.f32 0.0, %v2863
          %2865 = vdwg.mxu0
          %v2867 = vsel %vm2808, %v2759, 0
          %v2870 = vsel %vm2808, %v2760, 0
          %v2873 = vsel %vm2808, %v2761, 0
          %v2876 = vsel %vm2808, %v2762, 0
          %v2879 = vsel %vm2808, %v2763, 0
          %v2882 = vsel %vm2808, %v2764, 0
          %2884 = vmatpush.msra.mxu0 0.0
          %2885 = vmatpush.msra.mxu0 0.0
          %2886 = vmatpush.msra.mxu0 0.0
          %2887 = vmatpush.msra.mxu0 0.0
          %2888 = vmatpush.msra.mxu0 0.0
          %2889 = vmatpush.msra.mxu0 %v2829
          %2890 = vmatpush.msra.mxu0 %v2806
          %2891 = vmatpush.msra.mxu0 %v2805
          %2892 = vmatpush.msra.mxu0 %v2804
          %2893 = vmatpush.msra.mxu0 %v2803
          %2894 = vmatpush.msra.mxu0 %v2802
          %2895 = vmatpush.msra.mxu0 %v2801
          %2896 = vmatpush.msra.mxu0 %v2800
          %2897 = vmatpush.msra.mxu0 %v2799
          %2898 = vmatpush.msra.mxu0 %v2798
          %2899 = vmatpush.msra.mxu0 %v2797
          %2900 = vmatmul.f32.gmra.mxu0 %v2867
          %v2901 = vpop.f32.mrf.mxu0
          %v2902 = vadd.f32 0.0, %v2901
          %2903 = vmatmul.f32.gmra.mxu0 %v2870
          %v2904 = vpop.f32.mrf.mxu0
          %v2905 = vadd.f32 0.0, %v2904
          %2906 = vmatmul.f32.gmra.mxu0 %v2873
          %v2907 = vpop.f32.mrf.mxu0
          %v2908 = vadd.f32 0.0, %v2907
          %2909 = vmatmul.f32.gmra.mxu0 %v2876
          %v2910 = vpop.f32.mrf.mxu0
          %v2911 = vadd.f32 0.0, %v2910
          %2912 = vmatmul.f32.gmra.mxu0 %v2879
          %v2913 = vpop.f32.mrf.mxu0
          %v2914 = vadd.f32 0.0, %v2913
          %2915 = vmatmul.f32.gmra.mxu0 %v2882
          %v2916 = vpop.f32.mrf.mxu0
          %v2917 = vadd.f32 0.0, %v2916
          %2918 = vdwg.mxu0
          %v2919 = vmax.f32 %v2849, %v2902
          %v2920 = vmax.f32 %v2852, %v2905
          %v2921 = vmax.f32 %v2855, %v2908
          %v2922 = vmax.f32 %v2858, %v2911
          %v2923 = vmax.f32 %v2861, %v2914
          %v2924 = vmax.f32 %v2864, %v2917
          %v2925 = vmax.f32 %v2919, 0.0
          %v2926 = vmax.f32 %v2920, 0.0
          %v2927 = vmax.f32 %v2921, 0.0
          %v2928 = vmax.f32 %v2922, 0.0
          %v2929 = vmax.f32 %v2923, 0.0
          %v2930 = vmax.f32 %v2924, 0.0
          %s2931 = sadd.s32 %s2766, 1
          %s2932 = smul.u32 %s2931, 56
          %s2933 = sadd.s32 %s2932, 8
          %s2934 = scalar_lea.vmem [#allocation4], %s2933
          %2935 = vst.msk [vmem:[%s2934] sm:$0xff] %vm540, %v2925
          %2936 = vst.msk [vmem:[%s2934 + $0x8] sm:$0xff] %vm540, %v2926
          %2937 = vst.msk [vmem:[%s2934 + $0x10] sm:$0xff] %vm540, %v2927
          %2938 = vst.msk [vmem:[%s2934 + $0x18] sm:$0xff] %vm540, %v2928
          %2939 = vst.msk [vmem:[%s2934 + $0x20] sm:$0xff] %vm540, %v2929
          %vm2940 = vcmask 256000
          %2941 = vst.msk [vmem:[%s2934 + $0x28] sm:$0x7] %vm2940, %v2930
        $region97: #{pallas_forward.1} parent=63 // loop_footer
          %s2770 = sadd.s32 1, %s2766
        $region98: #{pallas_forward.1} parent=63 // loop_footer_branch
          %2765 = sbr.rel target = $region94
        $region99: #{pallas_forward.1} parent=63 // loop_exit
          _
        %v2942 = vld [vmem:[%s4] sm:$0x1]
        %2943 = vst.msk [vmem:[#allocation5] sm:$0xff] %vm540, 0.0
        %2944 = vst.msk [vmem:[#allocation5 + $0x8] sm:$0xff] %vm540, 0.0
        %2945 = vst.msk [vmem:[#allocation5 + $0x10] sm:$0xff] %vm540, 0.0
        %2946 = vst.msk [vmem:[#allocation5 + $0x18] sm:$0xff] %vm540, 0.0
        %2947 = vst.msk [vmem:[#allocation5 + $0x20] sm:$0xff] %vm540, 0.0
        %2948 = vst.msk [vmem:[#allocation5 + $0x28] sm:$0xff] %vm540, 0.0
        %2949 = vst.msk [vmem:[#allocation5 + $0x30] sm:$0xff] %vm540, 0.0
        loop: start=0, step=1, limit=15
        $region100: #{pallas_forward.1} parent=63 // loop_pre_header
          _
        $region101: #{pallas_forward.1} parent=63 // loop_header
          %s2951 = sphi 0, %s2955
          %p2952 = scmp.ge.s32.totalorder %s2951, 15
        $region102: #{pallas_forward.1} parent=63 // loop_header_branch
          %2954 = sbr.rel (%p2952) target = $region106
        $region103: #{pallas_forward.1} parent=63 // loop_body
          %s2956 = smul.u32 %s2951, 168
          %s2957 = sadd.s32 %s2956, 6
          %s2958 = scalar_lea.vmem [#allocation4], %s2957
          %v2959 = vld [vmem:[%s2958] sm:$0xff]
          %v2960 = vld [vmem:[%s2958 + $0x8] sm:$0xff]
          %v2961 = vld [vmem:[%s2958 + $0x10] sm:$0xff]
          %v2962 = vld [vmem:[%s2958 + $0x18] sm:$0xff]
          %v2963 = vld [vmem:[%s2958 + $0x20] sm:$0xff]
          %v2964 = vld [vmem:[%s2958 + $0x28] sm:$0xff]
          %v2965 = vld [vmem:[%s2958 + $0x30] sm:$0xff]
          %v2966 = vld [vmem:[%s2958 + $0x38] sm:$0xff]
          %v2967 = vld [vmem:[%s2958 + $0x40] sm:$0xff]
          %v2968 = vld [vmem:[%s2958 + $0x48] sm:$0xff]
          %v2969 = vld [vmem:[%s2958 + $0x50] sm:$0xff]
          %v2970 = vld [vmem:[%s2958 + $0x58] sm:$0xff]
          %v2971 = vld [vmem:[%s2958 + $0x60] sm:$0xff]
          %v2972 = vld [vmem:[%s2958 + $0x68] sm:$0xff]
          %v2973 = vld [vmem:[%s2958 + $0x70] sm:$0xff]
          %v2974 = vld [vmem:[%s2958 + $0x78] sm:$0xff]
          %v2975 = vld [vmem:[%s2958 + $0x80] sm:$0xff]
          %v2976 = vld [vmem:[%s2958 + $0x88] sm:$0xff]
          %v2977 = vld [vmem:[%s2958 + $0x90] sm:$0xff]
          %v2978 = vld [vmem:[%s2958 + $0x98] sm:$0xff]
          %v2979 = vld [vmem:[%s2958 + $0xa0] sm:$0xff]
          %v2980 = vld [vmem:[%s3] sm:$0xff]
          %v2981 = vld [vmem:[%s3 + $0x8] sm:$0xff]
          %v2982 = vld [vmem:[%s3 + $0x10] sm:$0xff]
          %v2983 = vld [vmem:[%s3 + $0x18] sm:$0xff]
          %s2984 = sadd.s32 %s2956, 7
          %s2985 = scalar_lea.vmem [#allocation4], %s2984
          %v2986 = vld [vmem:[%s2985] sm:$0xff]
          %v2987 = vld [vmem:[%s2985 + $0x8] sm:$0xff]
          %v2988 = vld [vmem:[%s2985 + $0x10] sm:$0xff]
          %v2989 = vld [vmem:[%s2985 + $0x18] sm:$0xff]
          %v2990 = vld [vmem:[%s2985 + $0x20] sm:$0xff]
          %v2991 = vld [vmem:[%s2985 + $0x28] sm:$0xff]
          %v2992 = vld [vmem:[%s2985 + $0x30] sm:$0xff]
          %v2993 = vld [vmem:[%s2985 + $0x38] sm:$0xff]
          %v2994 = vld [vmem:[%s2985 + $0x40] sm:$0xff]
          %v2995 = vld [vmem:[%s2985 + $0x48] sm:$0xff]
          %v2996 = vld [vmem:[%s2985 + $0x50] sm:$0xff]
          %v2997 = vld [vmem:[%s2985 + $0x58] sm:$0xff]
          %v2998 = vld [vmem:[%s2985 + $0x60] sm:$0xff]
          %v2999 = vld [vmem:[%s2985 + $0x68] sm:$0xff]
          %v3000 = vld [vmem:[%s2985 + $0x70] sm:$0xff]
          %v3001 = vld [vmem:[%s2985 + $0x78] sm:$0xff]
          %v3002 = vld [vmem:[%s2985 + $0x80] sm:$0xff]
          %v3003 = vld [vmem:[%s2985 + $0x88] sm:$0xff]
          %v3004 = vld [vmem:[%s2985 + $0x90] sm:$0xff]
          %v3005 = vld [vmem:[%s2985 + $0x98] sm:$0xff]
          %v3006 = vld [vmem:[%s2985 + $0xa0] sm:$0xff]
          %s3007 = scalar_lea.vmem %s3, 32
          %v3008 = vld [vmem:[%s3007] sm:$0xff]
          %v3009 = vld [vmem:[%s3007 + $0x8] sm:$0xff]
          %v3010 = vld [vmem:[%s3007 + $0x10] sm:$0xff]
          %v3011 = vld [vmem:[%s3007 + $0x18] sm:$0xff]
          %v3013 = vsel %vm540, %v2986, 0
          %v3016 = vsel %vm540, %v2987, 0
          %v3019 = vsel %vm540, %v2988, 0
          %v3022 = vsel %vm540, %v2989, 0
          %v3025 = vsel %vm540, %v2990, 0
          %v3028 = vsel %vm540, %v2991, 0
          %v3031 = vsel %vm540, %v2992, 0
          %v3034 = vsel %vm540, %v2993, 0
          %v3037 = vsel %vm540, %v2994, 0
          %v3040 = vsel %vm540, %v2995, 0
          %v3043 = vsel %vm540, %v2996, 0
          %v3046 = vsel %vm540, %v2997, 0
          %v3049 = vsel %vm540, %v2998, 0
          %v3052 = vsel %vm540, %v2999, 0
          %v3055 = vsel %vm540, %v3000, 0
          %v3058 = vsel %vm540, %v3001, 0
          %v3061 = vsel %vm540, %v3002, 0
          %v3064 = vsel %vm540, %v3003, 0
          %v3067 = vsel %vm540, %v3004, 0
          %v3070 = vsel %vm540, %v3005, 0
          %v3073 = vsel %vm540, %v3006, 0
          %3075 = vmatpush.msra.mxu0 0.0
          %3076 = vmatpush.msra.mxu0 0.0
          %3077 = vmatpush.msra.mxu0 0.0
          %3078 = vmatpush.msra.mxu0 0.0
          %3079 = vmatpush.msra.mxu0 0.0
          %3080 = vmatpush.msra.mxu0 0.0
          %3081 = vmatpush.msra.mxu0 0.0
          %3082 = vmatpush.msra.mxu0 0.0
          %3083 = vmatpush.msra.mxu0 0.0
          %3084 = vmatpush.msra.mxu0 0.0
          %3085 = vmatpush.msra.mxu0 0.0
          %3086 = vmatpush.msra.mxu0 0.0
          %3087 = vmatpush.msra.mxu0 %v3011
          %3088 = vmatpush.msra.mxu0 %v3010
          %3089 = vmatpush.msra.mxu0 %v3009
          %3090 = vmatpush.msra.mxu0 %v3008
          %3091 = vmatmul.f32.gmra.mxu0 %v3013
          %v3092 = vpop.f32.mrf.mxu0
          %v3093 = vadd.f32 0.0, %v3092
          %3094 = vmatmul.f32.gmra.mxu0 %v3016
          %v3095 = vpop.f32.mrf.mxu0
          %v3096 = vadd.f32 0.0, %v3095
          %3097 = vmatmul.f32.gmra.mxu0 %v3019
          %v3098 = vpop.f32.mrf.mxu0
          %v3099 = vadd.f32 0.0, %v3098
          %3100 = vmatmul.f32.gmra.mxu0 %v3022
          %v3101 = vpop.f32.mrf.mxu0
          %v3102 = vadd.f32 0.0, %v3101
          %3103 = vmatmul.f32.gmra.mxu0 %v3025
          %v3104 = vpop.f32.mrf.mxu0
          %v3105 = vadd.f32 0.0, %v3104
          %3106 = vmatmul.f32.gmra.mxu0 %v3028
          %v3107 = vpop.f32.mrf.mxu0
          %v3108 = vadd.f32 0.0, %v3107
          %3109 = vmatmul.f32.gmra.mxu0 %v3031
          %v3110 = vpop.f32.mrf.mxu0
          %v3111 = vadd.f32 0.0, %v3110
          %3112 = vmatmul.f32.gmra.mxu0 %v3034
          %v3113 = vpop.f32.mrf.mxu0
          %v3114 = vadd.f32 0.0, %v3113
          %3115 = vmatmul.f32.gmra.mxu0 %v3037
          %v3116 = vpop.f32.mrf.mxu0
          %v3117 = vadd.f32 0.0, %v3116
          %3118 = vmatmul.f32.gmra.mxu0 %v3040
          %v3119 = vpop.f32.mrf.mxu0
          %v3120 = vadd.f32 0.0, %v3119
          %3121 = vmatmul.f32.gmra.mxu0 %v3043
          %v3122 = vpop.f32.mrf.mxu0
          %v3123 = vadd.f32 0.0, %v3122
          %3124 = vmatmul.f32.gmra.mxu0 %v3046
          %v3125 = vpop.f32.mrf.mxu0
          %v3126 = vadd.f32 0.0, %v3125
          %3127 = vmatmul.f32.gmra.mxu0 %v3049
          %v3128 = vpop.f32.mrf.mxu0
          %v3129 = vadd.f32 0.0, %v3128
          %3130 = vmatmul.f32.gmra.mxu0 %v3052
          %v3131 = vpop.f32.mrf.mxu0
          %v3132 = vadd.f32 0.0, %v3131
          %3133 = vmatmul.f32.gmra.mxu0 %v3055
          %v3134 = vpop.f32.mrf.mxu0
          %v3135 = vadd.f32 0.0, %v3134
          %3136 = vmatmul.f32.gmra.mxu0 %v3058
          %v3137 = vpop.f32.mrf.mxu0
          %v3138 = vadd.f32 0.0, %v3137
          %3139 = vmatmul.f32.gmra.mxu0 %v3061
          %v3140 = vpop.f32.mrf.mxu0
          %v3141 = vadd.f32 0.0, %v3140
          %3142 = vmatmul.f32.gmra.mxu0 %v3064
          %v3143 = vpop.f32.mrf.mxu0
          %v3144 = vadd.f32 0.0, %v3143
          %3145 = vmatmul.f32.gmra.mxu0 %v3067
          %v3146 = vpop.f32.mrf.mxu0
          %v3147 = vadd.f32 0.0, %v3146
          %3148 = vmatmul.f32.gmra.mxu0 %v3070
          %v3149 = vpop.f32.mrf.mxu0
          %v3150 = vadd.f32 0.0, %v3149
          %3151 = vmatmul.f32.gmra.mxu0 %v3073
          %v3152 = vpop.f32.mrf.mxu0
          %v3153 = vadd.f32 0.0, %v3152
          %3154 = vdwg.mxu0
          %v3156 = vsel %vm540, %v2959, 0
          %v3159 = vsel %vm540, %v2960, 0
          %v3162 = vsel %vm540, %v2961, 0
          %v3165 = vsel %vm540, %v2962, 0
          %v3168 = vsel %vm540, %v2963, 0
          %v3171 = vsel %vm540, %v2964, 0
          %v3174 = vsel %vm540, %v2965, 0
          %v3177 = vsel %vm540, %v2966, 0
          %v3180 = vsel %vm540, %v2967, 0
          %v3183 = vsel %vm540, %v2968, 0
          %v3186 = vsel %vm540, %v2969, 0
          %v3189 = vsel %vm540, %v2970, 0
          %v3192 = vsel %vm540, %v2971, 0
          %v3195 = vsel %vm540, %v2972, 0
          %v3198 = vsel %vm540, %v2973, 0
          %v3201 = vsel %vm540, %v2974, 0
          %v3204 = vsel %vm540, %v2975, 0
          %v3207 = vsel %vm540, %v2976, 0
          %v3210 = vsel %vm540, %v2977, 0
          %v3213 = vsel %vm540, %v2978, 0
          %v3216 = vsel %vm540, %v2979, 0
          %3218 = vmatpush.msra.mxu0 0.0
          %3219 = vmatpush.msra.mxu0 0.0
          %3220 = vmatpush.msra.mxu0 0.0
          %3221 = vmatpush.msra.mxu0 0.0
          %3222 = vmatpush.msra.mxu0 0.0
          %3223 = vmatpush.msra.mxu0 0.0
          %3224 = vmatpush.msra.mxu0 0.0
          %3225 = vmatpush.msra.mxu0 0.0
          %3226 = vmatpush.msra.mxu0 0.0
          %3227 = vmatpush.msra.mxu0 0.0
          %3228 = vmatpush.msra.mxu0 0.0
          %3229 = vmatpush.msra.mxu0 0.0
          %3230 = vmatpush.msra.mxu0 %v2983
          %3231 = vmatpush.msra.mxu0 %v2982
          %3232 = vmatpush.msra.mxu0 %v2981
          %3233 = vmatpush.msra.mxu0 %v2980
          %3234 = vmatmul.f32.gmra.mxu0 %v3156
          %v3235 = vpop.f32.mrf.mxu0
          %v3236 = vadd.f32 %v3093, %v3235
          %3237 = vmatmul.f32.gmra.mxu0 %v3159
          %v3238 = vpop.f32.mrf.mxu0
          %v3239 = vadd.f32 %v3096, %v3238
          %3240 = vmatmul.f32.gmra.mxu0 %v3162
          %v3241 = vpop.f32.mrf.mxu0
          %v3242 = vadd.f32 %v3099, %v3241
          %3243 = vmatmul.f32.gmra.mxu0 %v3165
          %v3244 = vpop.f32.mrf.mxu0
          %v3245 = vadd.f32 %v3102, %v3244
          %3246 = vmatmul.f32.gmra.mxu0 %v3168
          %v3247 = vpop.f32.mrf.mxu0
          %v3248 = vadd.f32 %v3105, %v3247
          %3249 = vmatmul.f32.gmra.mxu0 %v3171
          %v3250 = vpop.f32.mrf.mxu0
          %v3251 = vadd.f32 %v3108, %v3250
          %3252 = vmatmul.f32.gmra.mxu0 %v3174
          %v3253 = vpop.f32.mrf.mxu0
          %v3254 = vadd.f32 %v3111, %v3253
          %3255 = vmatmul.f32.gmra.mxu0 %v3177
          %v3256 = vpop.f32.mrf.mxu0
          %v3257 = vadd.f32 %v3114, %v3256
          %3258 = vmatmul.f32.gmra.mxu0 %v3180
          %v3259 = vpop.f32.mrf.mxu0
          %v3260 = vadd.f32 %v3117, %v3259
          %3261 = vmatmul.f32.gmra.mxu0 %v3183
          %v3262 = vpop.f32.mrf.mxu0
          %v3263 = vadd.f32 %v3120, %v3262
          %3264 = vmatmul.f32.gmra.mxu0 %v3186
          %v3265 = vpop.f32.mrf.mxu0
          %v3266 = vadd.f32 %v3123, %v3265
          %3267 = vmatmul.f32.gmra.mxu0 %v3189
          %v3268 = vpop.f32.mrf.mxu0
          %v3269 = vadd.f32 %v3126, %v3268
          %3270 = vmatmul.f32.gmra.mxu0 %v3192
          %v3271 = vpop.f32.mrf.mxu0
          %v3272 = vadd.f32 %v3129, %v3271
          %3273 = vmatmul.f32.gmra.mxu0 %v3195
          %v3274 = vpop.f32.mrf.mxu0
          %v3275 = vadd.f32 %v3132, %v3274
          %3276 = vmatmul.f32.gmra.mxu0 %v3198
          %v3277 = vpop.f32.mrf.mxu0
          %v3278 = vadd.f32 %v3135, %v3277
          %3279 = vmatmul.f32.gmra.mxu0 %v3201
          %v3280 = vpop.f32.mrf.mxu0
          %v3281 = vadd.f32 %v3138, %v3280
          %3282 = vmatmul.f32.gmra.mxu0 %v3204
          %v3283 = vpop.f32.mrf.mxu0
          %v3284 = vadd.f32 %v3141, %v3283
          %3285 = vmatmul.f32.gmra.mxu0 %v3207
          %v3286 = vpop.f32.mrf.mxu0
          %v3287 = vadd.f32 %v3144, %v3286
          %3288 = vmatmul.f32.gmra.mxu0 %v3210
          %v3289 = vpop.f32.mrf.mxu0
          %v3290 = vadd.f32 %v3147, %v3289
          %3291 = vmatmul.f32.gmra.mxu0 %v3213
          %v3292 = vpop.f32.mrf.mxu0
          %v3293 = vadd.f32 %v3150, %v3292
          %3294 = vmatmul.f32.gmra.mxu0 %v3216
          %v3295 = vpop.f32.mrf.mxu0
          %v3296 = vadd.f32 %v3153, %v3295
          %3297 = vdwg.mxu0
          %s3298 = sadd.s32 %s2956, 8
          %s3299 = scalar_lea.vmem [#allocation4], %s3298
          %v3300 = vld [vmem:[%s3299] sm:$0xff]
          %v3301 = vld [vmem:[%s3299 + $0x8] sm:$0xff]
          %v3302 = vld [vmem:[%s3299 + $0x10] sm:$0xff]
          %v3303 = vld [vmem:[%s3299 + $0x18] sm:$0xff]
          %v3304 = vld [vmem:[%s3299 + $0x20] sm:$0xff]
          %v3305 = vld [vmem:[%s3299 + $0x28] sm:$0xff]
          %v3306 = vld [vmem:[%s3299 + $0x30] sm:$0xff]
          %v3307 = vld [vmem:[%s3299 + $0x38] sm:$0xff]
          %v3308 = vld [vmem:[%s3299 + $0x40] sm:$0xff]
          %v3309 = vld [vmem:[%s3299 + $0x48] sm:$0xff]
          %v3310 = vld [vmem:[%s3299 + $0x50] sm:$0xff]
          %v3311 = vld [vmem:[%s3299 + $0x58] sm:$0xff]
          %v3312 = vld [vmem:[%s3299 + $0x60] sm:$0xff]
          %v3313 = vld [vmem:[%s3299 + $0x68] sm:$0xff]
          %v3314 = vld [vmem:[%s3299 + $0x70] sm:$0xff]
          %v3315 = vld [vmem:[%s3299 + $0x78] sm:$0xff]
          %v3316 = vld [vmem:[%s3299 + $0x80] sm:$0xff]
          %v3317 = vld [vmem:[%s3299 + $0x88] sm:$0xff]
          %v3318 = vld [vmem:[%s3299 + $0x90] sm:$0xff]
          %v3319 = vld [vmem:[%s3299 + $0x98] sm:$0xff]
          %v3320 = vld [vmem:[%s3299 + $0xa0] sm:$0xff]
          %s3321 = scalar_lea.vmem %s3, 64
          %v3322 = vld [vmem:[%s3321] sm:$0xff]
          %v3323 = vld [vmem:[%s3321 + $0x8] sm:$0xff]
          %v3324 = vld [vmem:[%s3321 + $0x10] sm:$0xff]
          %v3325 = vld [vmem:[%s3321 + $0x18] sm:$0xff]
          %v3327 = vsel %vm540, %v3300, 0
          %v3330 = vsel %vm540, %v3301, 0
          %v3333 = vsel %vm540, %v3302, 0
          %v3336 = vsel %vm540, %v3303, 0
          %v3339 = vsel %vm540, %v3304, 0
          %v3342 = vsel %vm540, %v3305, 0
          %v3345 = vsel %vm540, %v3306, 0
          %v3348 = vsel %vm540, %v3307, 0
          %v3351 = vsel %vm540, %v3308, 0
          %v3354 = vsel %vm540, %v3309, 0
          %v3357 = vsel %vm540, %v3310, 0
          %v3360 = vsel %vm540, %v3311, 0
          %v3363 = vsel %vm540, %v3312, 0
          %v3366 = vsel %vm540, %v3313, 0
          %v3369 = vsel %vm540, %v3314, 0
          %v3372 = vsel %vm540, %v3315, 0
          %v3375 = vsel %vm540, %v3316, 0
          %v3378 = vsel %vm540, %v3317, 0
          %v3381 = vsel %vm540, %v3318, 0
          %v3384 = vsel %vm540, %v3319, 0
          %v3387 = vsel %vm540, %v3320, 0
          %3389 = vmatpush.msra.mxu0 0.0
          %3390 = vmatpush.msra.mxu0 0.0
          %3391 = vmatpush.msra.mxu0 0.0
          %3392 = vmatpush.msra.mxu0 0.0
          %3393 = vmatpush.msra.mxu0 0.0
          %3394 = vmatpush.msra.mxu0 0.0
          %3395 = vmatpush.msra.mxu0 0.0
          %3396 = vmatpush.msra.mxu0 0.0
          %3397 = vmatpush.msra.mxu0 0.0
          %3398 = vmatpush.msra.mxu0 0.0
          %3399 = vmatpush.msra.mxu0 0.0
          %3400 = vmatpush.msra.mxu0 0.0
          %3401 = vmatpush.msra.mxu0 %v3325
          %3402 = vmatpush.msra.mxu0 %v3324
          %3403 = vmatpush.msra.mxu0 %v3323
          %3404 = vmatpush.msra.mxu0 %v3322
          %3405 = vmatmul.f32.gmra.mxu0 %v3327
          %v3406 = vpop.f32.mrf.mxu0
          %v3407 = vadd.f32 0.0, %v3406
          %3408 = vmatmul.f32.gmra.mxu0 %v3330
          %v3409 = vpop.f32.mrf.mxu0
          %v3410 = vadd.f32 0.0, %v3409
          %3411 = vmatmul.f32.gmra.mxu0 %v3333
          %v3412 = vpop.f32.mrf.mxu0
          %v3413 = vadd.f32 0.0, %v3412
          %3414 = vmatmul.f32.gmra.mxu0 %v3336
          %v3415 = vpop.f32.mrf.mxu0
          %v3416 = vadd.f32 0.0, %v3415
          %3417 = vmatmul.f32.gmra.mxu0 %v3339
          %v3418 = vpop.f32.mrf.mxu0
          %v3419 = vadd.f32 0.0, %v3418
          %3420 = vmatmul.f32.gmra.mxu0 %v3342
          %v3421 = vpop.f32.mrf.mxu0
          %v3422 = vadd.f32 0.0, %v3421
          %3423 = vmatmul.f32.gmra.mxu0 %v3345
          %v3424 = vpop.f32.mrf.mxu0
          %v3425 = vadd.f32 0.0, %v3424
          %3426 = vmatmul.f32.gmra.mxu0 %v3348
          %v3427 = vpop.f32.mrf.mxu0
          %v3428 = vadd.f32 0.0, %v3427
          %3429 = vmatmul.f32.gmra.mxu0 %v3351
          %v3430 = vpop.f32.mrf.mxu0
          %v3431 = vadd.f32 0.0, %v3430
          %3432 = vmatmul.f32.gmra.mxu0 %v3354
          %v3433 = vpop.f32.mrf.mxu0
          %v3434 = vadd.f32 0.0, %v3433
          %3435 = vmatmul.f32.gmra.mxu0 %v3357
          %v3436 = vpop.f32.mrf.mxu0
          %v3437 = vadd.f32 0.0, %v3436
          %3438 = vmatmul.f32.gmra.mxu0 %v3360
          %v3439 = vpop.f32.mrf.mxu0
          %v3440 = vadd.f32 0.0, %v3439
          %3441 = vmatmul.f32.gmra.mxu0 %v3363
          %v3442 = vpop.f32.mrf.mxu0
          %v3443 = vadd.f32 0.0, %v3442
          %3444 = vmatmul.f32.gmra.mxu0 %v3366
          %v3445 = vpop.f32.mrf.mxu0
          %v3446 = vadd.f32 0.0, %v3445
          %3447 = vmatmul.f32.gmra.mxu0 %v3369
          %v3448 = vpop.f32.mrf.mxu0
          %v3449 = vadd.f32 0.0, %v3448
          %3450 = vmatmul.f32.gmra.mxu0 %v3372
          %v3451 = vpop.f32.mrf.mxu0
          %v3452 = vadd.f32 0.0, %v3451
          %3453 = vmatmul.f32.gmra.mxu0 %v3375
          %v3454 = vpop.f32.mrf.mxu0
          %v3455 = vadd.f32 0.0, %v3454
          %3456 = vmatmul.f32.gmra.mxu0 %v3378
          %v3457 = vpop.f32.mrf.mxu0
          %v3458 = vadd.f32 0.0, %v3457
          %3459 = vmatmul.f32.gmra.mxu0 %v3381
          %v3460 = vpop.f32.mrf.mxu0
          %v3461 = vadd.f32 0.0, %v3460
          %3462 = vmatmul.f32.gmra.mxu0 %v3384
          %v3463 = vpop.f32.mrf.mxu0
          %v3464 = vadd.f32 0.0, %v3463
          %3465 = vmatmul.f32.gmra.mxu0 %v3387
          %v3466 = vpop.f32.mrf.mxu0
          %v3467 = vadd.f32 0.0, %v3466
          %3468 = vdwg.mxu0
          %v3469 = vadd.f32 %v3236, %v3407
          %v3470 = vadd.f32 %v3239, %v3410
          %v3471 = vadd.f32 %v3242, %v3413
          %v3472 = vadd.f32 %v3245, %v3416
          %v3473 = vadd.f32 %v3248, %v3419
          %v3474 = vadd.f32 %v3251, %v3422
          %v3475 = vadd.f32 %v3254, %v3425
          %v3476 = vadd.f32 %v3257, %v3428
          %v3477 = vadd.f32 %v3260, %v3431
          %v3478 = vadd.f32 %v3263, %v3434
          %v3479 = vadd.f32 %v3266, %v3437
          %v3480 = vadd.f32 %v3269, %v3440
          %v3481 = vadd.f32 %v3272, %v3443
          %v3482 = vadd.f32 %v3275, %v3446
          %v3483 = vadd.f32 %v3278, %v3449
          %v3484 = vadd.f32 %v3281, %v3452
          %v3485 = vadd.f32 %v3284, %v3455
          %v3486 = vadd.f32 %v3287, %v3458
          %v3487 = vadd.f32 %v3290, %v3461
          %v3488 = vadd.f32 %v3293, %v3464
          %v3489 = vadd.f32 %v3296, %v3467
          %s3490 = sadd.s32 %s2956, 62
          %s3491 = scalar_lea.vmem [#allocation4], %s3490
          %v3492 = vld [vmem:[%s3491] sm:$0xff]
          %v3493 = vld [vmem:[%s3491 + $0x8] sm:$0xff]
          %v3494 = vld [vmem:[%s3491 + $0x10] sm:$0xff]
          %v3495 = vld [vmem:[%s3491 + $0x18] sm:$0xff]
          %v3496 = vld [vmem:[%s3491 + $0x20] sm:$0xff]
          %v3497 = vld [vmem:[%s3491 + $0x28] sm:$0xff]
          %v3498 = vld [vmem:[%s3491 + $0x30] sm:$0xff]
          %v3499 = vld [vmem:[%s3491 + $0x38] sm:$0xff]
          %v3500 = vld [vmem:[%s3491 + $0x40] sm:$0xff]
          %v3501 = vld [vmem:[%s3491 + $0x48] sm:$0xff]
          %v3502 = vld [vmem:[%s3491 + $0x50] sm:$0xff]
          %v3503 = vld [vmem:[%s3491 + $0x58] sm:$0xff]
          %v3504 = vld [vmem:[%s3491 + $0x60] sm:$0xff]
          %v3505 = vld [vmem:[%s3491 + $0x68] sm:$0xff]
          %v3506 = vld [vmem:[%s3491 + $0x70] sm:$0xff]
          %v3507 = vld [vmem:[%s3491 + $0x78] sm:$0xff]
          %v3508 = vld [vmem:[%s3491 + $0x80] sm:$0xff]
          %v3509 = vld [vmem:[%s3491 + $0x88] sm:$0xff]
          %v3510 = vld [vmem:[%s3491 + $0x90] sm:$0xff]
          %v3511 = vld [vmem:[%s3491 + $0x98] sm:$0xff]
          %v3512 = vld [vmem:[%s3491 + $0xa0] sm:$0xff]
          %s3513 = scalar_lea.vmem %s3, 96
          %v3514 = vld [vmem:[%s3513] sm:$0xff]
          %v3515 = vld [vmem:[%s3513 + $0x8] sm:$0xff]
          %v3516 = vld [vmem:[%s3513 + $0x10] sm:$0xff]
          %v3517 = vld [vmem:[%s3513 + $0x18] sm:$0xff]
          %v3519 = vsel %vm540, %v3492, 0
          %v3522 = vsel %vm540, %v3493, 0
          %v3525 = vsel %vm540, %v3494, 0
          %v3528 = vsel %vm540, %v3495, 0
          %v3531 = vsel %vm540, %v3496, 0
          %v3534 = vsel %vm540, %v3497, 0
          %v3537 = vsel %vm540, %v3498, 0
          %v3540 = vsel %vm540, %v3499, 0
          %v3543 = vsel %vm540, %v3500, 0
          %v3546 = vsel %vm540, %v3501, 0
          %v3549 = vsel %vm540, %v3502, 0
          %v3552 = vsel %vm540, %v3503, 0
          %v3555 = vsel %vm540, %v3504, 0
          %v3558 = vsel %vm540, %v3505, 0
          %v3561 = vsel %vm540, %v3506, 0
          %v3564 = vsel %vm540, %v3507, 0
          %v3567 = vsel %vm540, %v3508, 0
          %v3570 = vsel %vm540, %v3509, 0
          %v3573 = vsel %vm540, %v3510, 0
          %v3576 = vsel %vm540, %v3511, 0
          %v3579 = vsel %vm540, %v3512, 0
          %3581 = vmatpush.msra.mxu0 0.0
          %3582 = vmatpush.msra.mxu0 0.0
          %3583 = vmatpush.msra.mxu0 0.0
          %3584 = vmatpush.msra.mxu0 0.0
          %3585 = vmatpush.msra.mxu0 0.0
          %3586 = vmatpush.msra.mxu0 0.0
          %3587 = vmatpush.msra.mxu0 0.0
          %3588 = vmatpush.msra.mxu0 0.0
          %3589 = vmatpush.msra.mxu0 0.0
          %3590 = vmatpush.msra.mxu0 0.0
          %3591 = vmatpush.msra.mxu0 0.0
          %3592 = vmatpush.msra.mxu0 0.0
          %3593 = vmatpush.msra.mxu0 %v3517
          %3594 = vmatpush.msra.mxu0 %v3516
          %3595 = vmatpush.msra.mxu0 %v3515
          %3596 = vmatpush.msra.mxu0 %v3514
          %3597 = vmatmul.f32.gmra.mxu0 %v3519
          %v3598 = vpop.f32.mrf.mxu0
          %v3599 = vadd.f32 0.0, %v3598
          %3600 = vmatmul.f32.gmra.mxu0 %v3522
          %v3601 = vpop.f32.mrf.mxu0
          %v3602 = vadd.f32 0.0, %v3601
          %3603 = vmatmul.f32.gmra.mxu0 %v3525
          %v3604 = vpop.f32.mrf.mxu0
          %v3605 = vadd.f32 0.0, %v3604
          %3606 = vmatmul.f32.gmra.mxu0 %v3528
          %v3607 = vpop.f32.mrf.mxu0
          %v3608 = vadd.f32 0.0, %v3607
          %3609 = vmatmul.f32.gmra.mxu0 %v3531
          %v3610 = vpop.f32.mrf.mxu0
          %v3611 = vadd.f32 0.0, %v3610
          %3612 = vmatmul.f32.gmra.mxu0 %v3534
          %v3613 = vpop.f32.mrf.mxu0
          %v3614 = vadd.f32 0.0, %v3613
          %3615 = vmatmul.f32.gmra.mxu0 %v3537
          %v3616 = vpop.f32.mrf.mxu0
          %v3617 = vadd.f32 0.0, %v3616
          %3618 = vmatmul.f32.gmra.mxu0 %v3540
          %v3619 = vpop.f32.mrf.mxu0
          %v3620 = vadd.f32 0.0, %v3619
          %3621 = vmatmul.f32.gmra.mxu0 %v3543
          %v3622 = vpop.f32.mrf.mxu0
          %v3623 = vadd.f32 0.0, %v3622
          %3624 = vmatmul.f32.gmra.mxu0 %v3546
          %v3625 = vpop.f32.mrf.mxu0
          %v3626 = vadd.f32 0.0, %v3625
          %3627 = vmatmul.f32.gmra.mxu0 %v3549
          %v3628 = vpop.f32.mrf.mxu0
          %v3629 = vadd.f32 0.0, %v3628
          %3630 = vmatmul.f32.gmra.mxu0 %v3552
          %v3631 = vpop.f32.mrf.mxu0
          %v3632 = vadd.f32 0.0, %v3631
          %3633 = vmatmul.f32.gmra.mxu0 %v3555
          %v3634 = vpop.f32.mrf.mxu0
          %v3635 = vadd.f32 0.0, %v3634
          %3636 = vmatmul.f32.gmra.mxu0 %v3558
          %v3637 = vpop.f32.mrf.mxu0
          %v3638 = vadd.f32 0.0, %v3637
          %3639 = vmatmul.f32.gmra.mxu0 %v3561
          %v3640 = vpop.f32.mrf.mxu0
          %v3641 = vadd.f32 0.0, %v3640
          %3642 = vmatmul.f32.gmra.mxu0 %v3564
          %v3643 = vpop.f32.mrf.mxu0
          %v3644 = vadd.f32 0.0, %v3643
          %3645 = vmatmul.f32.gmra.mxu0 %v3567
          %v3646 = vpop.f32.mrf.mxu0
          %v3647 = vadd.f32 0.0, %v3646
          %3648 = vmatmul.f32.gmra.mxu0 %v3570
          %v3649 = vpop.f32.mrf.mxu0
          %v3650 = vadd.f32 0.0, %v3649
          %3651 = vmatmul.f32.gmra.mxu0 %v3573
          %v3652 = vpop.f32.mrf.mxu0
          %v3653 = vadd.f32 0.0, %v3652
          %3654 = vmatmul.f32.gmra.mxu0 %v3576
          %v3655 = vpop.f32.mrf.mxu0
          %v3656 = vadd.f32 0.0, %v3655
          %3657 = vmatmul.f32.gmra.mxu0 %v3579
          %v3658 = vpop.f32.mrf.mxu0
          %v3659 = vadd.f32 0.0, %v3658
          %3660 = vdwg.mxu0
          %v3661 = vadd.f32 %v3469, %v3599
          %v3662 = vadd.f32 %v3470, %v3602
          %v3663 = vadd.f32 %v3471, %v3605
          %v3664 = vadd.f32 %v3472, %v3608
          %v3665 = vadd.f32 %v3473, %v3611
          %v3666 = vadd.f32 %v3474, %v3614
          %v3667 = vadd.f32 %v3475, %v3617
          %v3668 = vadd.f32 %v3476, %v3620
          %v3669 = vadd.f32 %v3477, %v3623
          %v3670 = vadd.f32 %v3478, %v3626
          %v3671 = vadd.f32 %v3479, %v3629
          %v3672 = vadd.f32 %v3480, %v3632
          %v3673 = vadd.f32 %v3481, %v3635
          %v3674 = vadd.f32 %v3482, %v3638
          %v3675 = vadd.f32 %v3483, %v3641
          %v3676 = vadd.f32 %v3484, %v3644
          %v3677 = vadd.f32 %v3485, %v3647
          %v3678 = vadd.f32 %v3486, %v3650
          %v3679 = vadd.f32 %v3487, %v3653
          %v3680 = vadd.f32 %v3488, %v3656
          %v3681 = vadd.f32 %v3489, %v3659
          %s3682 = sadd.s32 %s2956, 63
          %s3683 = scalar_lea.vmem [#allocation4], %s3682
          %v3684 = vld [vmem:[%s3683] sm:$0xff]
          %v3685 = vld [vmem:[%s3683 + $0x8] sm:$0xff]
          %v3686 = vld [vmem:[%s3683 + $0x10] sm:$0xff]
          %v3687 = vld [vmem:[%s3683 + $0x18] sm:$0xff]
          %v3688 = vld [vmem:[%s3683 + $0x20] sm:$0xff]
          %v3689 = vld [vmem:[%s3683 + $0x28] sm:$0xff]
          %v3690 = vld [vmem:[%s3683 + $0x30] sm:$0xff]
          %v3691 = vld [vmem:[%s3683 + $0x38] sm:$0xff]
          %v3692 = vld [vmem:[%s3683 + $0x40] sm:$0xff]
          %v3693 = vld [vmem:[%s3683 + $0x48] sm:$0xff]
          %v3694 = vld [vmem:[%s3683 + $0x50] sm:$0xff]
          %v3695 = vld [vmem:[%s3683 + $0x58] sm:$0xff]
          %v3696 = vld [vmem:[%s3683 + $0x60] sm:$0xff]
          %v3697 = vld [vmem:[%s3683 + $0x68] sm:$0xff]
          %v3698 = vld [vmem:[%s3683 + $0x70] sm:$0xff]
          %v3699 = vld [vmem:[%s3683 + $0x78] sm:$0xff]
          %v3700 = vld [vmem:[%s3683 + $0x80] sm:$0xff]
          %v3701 = vld [vmem:[%s3683 + $0x88] sm:$0xff]
          %v3702 = vld [vmem:[%s3683 + $0x90] sm:$0xff]
          %v3703 = vld [vmem:[%s3683 + $0x98] sm:$0xff]
          %v3704 = vld [vmem:[%s3683 + $0xa0] sm:$0xff]
          %s3705 = scalar_lea.vmem %s3, 128
          %v3706 = vld [vmem:[%s3705] sm:$0xff]
          %v3707 = vld [vmem:[%s3705 + $0x8] sm:$0xff]
          %v3708 = vld [vmem:[%s3705 + $0x10] sm:$0xff]
          %v3709 = vld [vmem:[%s3705 + $0x18] sm:$0xff]
          %v3711 = vsel %vm540, %v3684, 0
          %v3714 = vsel %vm540, %v3685, 0
          %v3717 = vsel %vm540, %v3686, 0
          %v3720 = vsel %vm540, %v3687, 0
          %v3723 = vsel %vm540, %v3688, 0
          %v3726 = vsel %vm540, %v3689, 0
          %v3729 = vsel %vm540, %v3690, 0
          %v3732 = vsel %vm540, %v3691, 0
          %v3735 = vsel %vm540, %v3692, 0
          %v3738 = vsel %vm540, %v3693, 0
          %v3741 = vsel %vm540, %v3694, 0
          %v3744 = vsel %vm540, %v3695, 0
          %v3747 = vsel %vm540, %v3696, 0
          %v3750 = vsel %vm540, %v3697, 0
          %v3753 = vsel %vm540, %v3698, 0
          %v3756 = vsel %vm540, %v3699, 0
          %v3759 = vsel %vm540, %v3700, 0
          %v3762 = vsel %vm540, %v3701, 0
          %v3765 = vsel %vm540, %v3702, 0
          %v3768 = vsel %vm540, %v3703, 0
          %v3771 = vsel %vm540, %v3704, 0
          %3773 = vmatpush.msra.mxu0 0.0
          %3774 = vmatpush.msra.mxu0 0.0
          %3775 = vmatpush.msra.mxu0 0.0
          %3776 = vmatpush.msra.mxu0 0.0
          %3777 = vmatpush.msra.mxu0 0.0
          %3778 = vmatpush.msra.mxu0 0.0
          %3779 = vmatpush.msra.mxu0 0.0
          %3780 = vmatpush.msra.mxu0 0.0
          %3781 = vmatpush.msra.mxu0 0.0
          %3782 = vmatpush.msra.mxu0 0.0
          %3783 = vmatpush.msra.mxu0 0.0
          %3784 = vmatpush.msra.mxu0 0.0
          %3785 = vmatpush.msra.mxu0 %v3709
          %3786 = vmatpush.msra.mxu0 %v3708
          %3787 = vmatpush.msra.mxu0 %v3707
          %3788 = vmatpush.msra.mxu0 %v3706
          %3789 = vmatmul.f32.gmra.mxu0 %v3711
          %v3790 = vpop.f32.mrf.mxu0
          %v3791 = vadd.f32 0.0, %v3790
          %3792 = vmatmul.f32.gmra.mxu0 %v3714
          %v3793 = vpop.f32.mrf.mxu0
          %v3794 = vadd.f32 0.0, %v3793
          %3795 = vmatmul.f32.gmra.mxu0 %v3717
          %v3796 = vpop.f32.mrf.mxu0
          %v3797 = vadd.f32 0.0, %v3796
          %3798 = vmatmul.f32.gmra.mxu0 %v3720
          %v3799 = vpop.f32.mrf.mxu0
          %v3800 = vadd.f32 0.0, %v3799
          %3801 = vmatmul.f32.gmra.mxu0 %v3723
          %v3802 = vpop.f32.mrf.mxu0
          %v3803 = vadd.f32 0.0, %v3802
          %3804 = vmatmul.f32.gmra.mxu0 %v3726
          %v3805 = vpop.f32.mrf.mxu0
          %v3806 = vadd.f32 0.0, %v3805
          %3807 = vmatmul.f32.gmra.mxu0 %v3729
          %v3808 = vpop.f32.mrf.mxu0
          %v3809 = vadd.f32 0.0, %v3808
          %3810 = vmatmul.f32.gmra.mxu0 %v3732
          %v3811 = vpop.f32.mrf.mxu0
          %v3812 = vadd.f32 0.0, %v3811
          %3813 = vmatmul.f32.gmra.mxu0 %v3735
          %v3814 = vpop.f32.mrf.mxu0
          %v3815 = vadd.f32 0.0, %v3814
          %3816 = vmatmul.f32.gmra.mxu0 %v3738
          %v3817 = vpop.f32.mrf.mxu0
          %v3818 = vadd.f32 0.0, %v3817
          %3819 = vmatmul.f32.gmra.mxu0 %v3741
          %v3820 = vpop.f32.mrf.mxu0
          %v3821 = vadd.f32 0.0, %v3820
          %3822 = vmatmul.f32.gmra.mxu0 %v3744
          %v3823 = vpop.f32.mrf.mxu0
          %v3824 = vadd.f32 0.0, %v3823
          %3825 = vmatmul.f32.gmra.mxu0 %v3747
          %v3826 = vpop.f32.mrf.mxu0
          %v3827 = vadd.f32 0.0, %v3826
          %3828 = vmatmul.f32.gmra.mxu0 %v3750
          %v3829 = vpop.f32.mrf.mxu0
          %v3830 = vadd.f32 0.0, %v3829
          %3831 = vmatmul.f32.gmra.mxu0 %v3753
          %v3832 = vpop.f32.mrf.mxu0
          %v3833 = vadd.f32 0.0, %v3832
          %3834 = vmatmul.f32.gmra.mxu0 %v3756
          %v3835 = vpop.f32.mrf.mxu0
          %v3836 = vadd.f32 0.0, %v3835
          %3837 = vmatmul.f32.gmra.mxu0 %v3759
          %v3838 = vpop.f32.mrf.mxu0
          %v3839 = vadd.f32 0.0, %v3838
          %3840 = vmatmul.f32.gmra.mxu0 %v3762
          %v3841 = vpop.f32.mrf.mxu0
          %v3842 = vadd.f32 0.0, %v3841
          %3843 = vmatmul.f32.gmra.mxu0 %v3765
          %v3844 = vpop.f32.mrf.mxu0
          %v3845 = vadd.f32 0.0, %v3844
          %3846 = vmatmul.f32.gmra.mxu0 %v3768
          %v3847 = vpop.f32.mrf.mxu0
          %v3848 = vadd.f32 0.0, %v3847
          %3849 = vmatmul.f32.gmra.mxu0 %v3771
          %v3850 = vpop.f32.mrf.mxu0
          %v3851 = vadd.f32 0.0, %v3850
          %3852 = vdwg.mxu0
          %v3853 = vadd.f32 %v3661, %v3791
          %v3854 = vadd.f32 %v3662, %v3794
          %v3855 = vadd.f32 %v3663, %v3797
          %v3856 = vadd.f32 %v3664, %v3800
          %v3857 = vadd.f32 %v3665, %v3803
          %v3858 = vadd.f32 %v3666, %v3806
          %v3859 = vadd.f32 %v3667, %v3809
          %v3860 = vadd.f32 %v3668, %v3812
          %v3861 = vadd.f32 %v3669, %v3815
          %v3862 = vadd.f32 %v3670, %v3818
          %v3863 = vadd.f32 %v3671, %v3821
          %v3864 = vadd.f32 %v3672, %v3824
          %v3865 = vadd.f32 %v3673, %v3827
          %v3866 = vadd.f32 %v3674, %v3830
          %v3867 = vadd.f32 %v3675, %v3833
          %v3868 = vadd.f32 %v3676, %v3836
          %v3869 = vadd.f32 %v3677, %v3839
          %v3870 = vadd.f32 %v3678, %v3842
          %v3871 = vadd.f32 %v3679, %v3845
          %v3872 = vadd.f32 %v3680, %v3848
          %v3873 = vadd.f32 %v3681, %v3851
          %s3874 = sadd.s32 %s2956, 64
          %s3875 = scalar_lea.vmem [#allocation4], %s3874
          %v3876 = vld [vmem:[%s3875] sm:$0xff]
          %v3877 = vld [vmem:[%s3875 + $0x8] sm:$0xff]
          %v3878 = vld [vmem:[%s3875 + $0x10] sm:$0xff]
          %v3879 = vld [vmem:[%s3875 + $0x18] sm:$0xff]
          %v3880 = vld [vmem:[%s3875 + $0x20] sm:$0xff]
          %v3881 = vld [vmem:[%s3875 + $0x28] sm:$0xff]
          %v3882 = vld [vmem:[%s3875 + $0x30] sm:$0xff]
          %v3883 = vld [vmem:[%s3875 + $0x38] sm:$0xff]
          %v3884 = vld [vmem:[%s3875 + $0x40] sm:$0xff]
          %v3885 = vld [vmem:[%s3875 + $0x48] sm:$0xff]
          %v3886 = vld [vmem:[%s3875 + $0x50] sm:$0xff]
          %v3887 = vld [vmem:[%s3875 + $0x58] sm:$0xff]
          %v3888 = vld [vmem:[%s3875 + $0x60] sm:$0xff]
          %v3889 = vld [vmem:[%s3875 + $0x68] sm:$0xff]
          %v3890 = vld [vmem:[%s3875 + $0x70] sm:$0xff]
          %v3891 = vld [vmem:[%s3875 + $0x78] sm:$0xff]
          %v3892 = vld [vmem:[%s3875 + $0x80] sm:$0xff]
          %v3893 = vld [vmem:[%s3875 + $0x88] sm:$0xff]
          %v3894 = vld [vmem:[%s3875 + $0x90] sm:$0xff]
          %v3895 = vld [vmem:[%s3875 + $0x98] sm:$0xff]
          %v3896 = vld [vmem:[%s3875 + $0xa0] sm:$0xff]
          %s3897 = scalar_lea.vmem %s3, 160
          %v3898 = vld [vmem:[%s3897] sm:$0xff]
          %v3899 = vld [vmem:[%s3897 + $0x8] sm:$0xff]
          %v3900 = vld [vmem:[%s3897 + $0x10] sm:$0xff]
          %v3901 = vld [vmem:[%s3897 + $0x18] sm:$0xff]
          %v3903 = vsel %vm540, %v3876, 0
          %v3906 = vsel %vm540, %v3877, 0
          %v3909 = vsel %vm540, %v3878, 0
          %v3912 = vsel %vm540, %v3879, 0
          %v3915 = vsel %vm540, %v3880, 0
          %v3918 = vsel %vm540, %v3881, 0
          %v3921 = vsel %vm540, %v3882, 0
          %v3924 = vsel %vm540, %v3883, 0
          %v3927 = vsel %vm540, %v3884, 0
          %v3930 = vsel %vm540, %v3885, 0
          %v3933 = vsel %vm540, %v3886, 0
          %v3936 = vsel %vm540, %v3887, 0
          %v3939 = vsel %vm540, %v3888, 0
          %v3942 = vsel %vm540, %v3889, 0
          %v3945 = vsel %vm540, %v3890, 0
          %v3948 = vsel %vm540, %v3891, 0
          %v3951 = vsel %vm540, %v3892, 0
          %v3954 = vsel %vm540, %v3893, 0
          %v3957 = vsel %vm540, %v3894, 0
          %v3960 = vsel %vm540, %v3895, 0
          %v3963 = vsel %vm540, %v3896, 0
          %3965 = vmatpush.msra.mxu0 0.0
          %3966 = vmatpush.msra.mxu0 0.0
          %3967 = vmatpush.msra.mxu0 0.0
          %3968 = vmatpush.msra.mxu0 0.0
          %3969 = vmatpush.msra.mxu0 0.0
          %3970 = vmatpush.msra.mxu0 0.0
          %3971 = vmatpush.msra.mxu0 0.0
          %3972 = vmatpush.msra.mxu0 0.0
          %3973 = vmatpush.msra.mxu0 0.0
          %3974 = vmatpush.msra.mxu0 0.0
          %3975 = vmatpush.msra.mxu0 0.0
          %3976 = vmatpush.msra.mxu0 0.0
          %3977 = vmatpush.msra.mxu0 %v3901
          %3978 = vmatpush.msra.mxu0 %v3900
          %3979 = vmatpush.msra.mxu0 %v3899
          %3980 = vmatpush.msra.mxu0 %v3898
          %3981 = vmatmul.f32.gmra.mxu0 %v3903
          %v3982 = vpop.f32.mrf.mxu0
          %v3983 = vadd.f32 0.0, %v3982
          %3984 = vmatmul.f32.gmra.mxu0 %v3906
          %v3985 = vpop.f32.mrf.mxu0
          %v3986 = vadd.f32 0.0, %v3985
          %3987 = vmatmul.f32.gmra.mxu0 %v3909
          %v3988 = vpop.f32.mrf.mxu0
          %v3989 = vadd.f32 0.0, %v3988
          %3990 = vmatmul.f32.gmra.mxu0 %v3912
          %v3991 = vpop.f32.mrf.mxu0
          %v3992 = vadd.f32 0.0, %v3991
          %3993 = vmatmul.f32.gmra.mxu0 %v3915
          %v3994 = vpop.f32.mrf.mxu0
          %v3995 = vadd.f32 0.0, %v3994
          %3996 = vmatmul.f32.gmra.mxu0 %v3918
          %v3997 = vpop.f32.mrf.mxu0
          %v3998 = vadd.f32 0.0, %v3997
          %3999 = vmatmul.f32.gmra.mxu0 %v3921
          %v4000 = vpop.f32.mrf.mxu0
          %v4001 = vadd.f32 0.0, %v4000
          %4002 = vmatmul.f32.gmra.mxu0 %v3924
          %v4003 = vpop.f32.mrf.mxu0
          %v4004 = vadd.f32 0.0, %v4003
          %4005 = vmatmul.f32.gmra.mxu0 %v3927
          %v4006 = vpop.f32.mrf.mxu0
          %v4007 = vadd.f32 0.0, %v4006
          %4008 = vmatmul.f32.gmra.mxu0 %v3930
          %v4009 = vpop.f32.mrf.mxu0
          %v4010 = vadd.f32 0.0, %v4009
          %4011 = vmatmul.f32.gmra.mxu0 %v3933
          %v4012 = vpop.f32.mrf.mxu0
          %v4013 = vadd.f32 0.0, %v4012
          %4014 = vmatmul.f32.gmra.mxu0 %v3936
          %v4015 = vpop.f32.mrf.mxu0
          %v4016 = vadd.f32 0.0, %v4015
          %4017 = vmatmul.f32.gmra.mxu0 %v3939
          %v4018 = vpop.f32.mrf.mxu0
          %v4019 = vadd.f32 0.0, %v4018
          %4020 = vmatmul.f32.gmra.mxu0 %v3942
          %v4021 = vpop.f32.mrf.mxu0
          %v4022 = vadd.f32 0.0, %v4021
          %4023 = vmatmul.f32.gmra.mxu0 %v3945
          %v4024 = vpop.f32.mrf.mxu0
          %v4025 = vadd.f32 0.0, %v4024
          %4026 = vmatmul.f32.gmra.mxu0 %v3948
          %v4027 = vpop.f32.mrf.mxu0
          %v4028 = vadd.f32 0.0, %v4027
          %4029 = vmatmul.f32.gmra.mxu0 %v3951
          %v4030 = vpop.f32.mrf.mxu0
          %v4031 = vadd.f32 0.0, %v4030
          %4032 = vmatmul.f32.gmra.mxu0 %v3954
          %v4033 = vpop.f32.mrf.mxu0
          %v4034 = vadd.f32 0.0, %v4033
          %4035 = vmatmul.f32.gmra.mxu0 %v3957
          %v4036 = vpop.f32.mrf.mxu0
          %v4037 = vadd.f32 0.0, %v4036
          %4038 = vmatmul.f32.gmra.mxu0 %v3960
          %v4039 = vpop.f32.mrf.mxu0
          %v4040 = vadd.f32 0.0, %v4039
          %4041 = vmatmul.f32.gmra.mxu0 %v3963
          %v4042 = vpop.f32.mrf.mxu0
          %v4043 = vadd.f32 0.0, %v4042
          %4044 = vdwg.mxu0
          %v4045 = vadd.f32 %v3853, %v3983
          %v4046 = vadd.f32 %v3854, %v3986
          %v4047 = vadd.f32 %v3855, %v3989
          %v4048 = vadd.f32 %v3856, %v3992
          %v4049 = vadd.f32 %v3857, %v3995
          %v4050 = vadd.f32 %v3858, %v3998
          %v4051 = vadd.f32 %v3859, %v4001
          %v4052 = vadd.f32 %v3860, %v4004
          %v4053 = vadd.f32 %v3861, %v4007
          %v4054 = vadd.f32 %v3862, %v4010
          %v4055 = vadd.f32 %v3863, %v4013
          %v4056 = vadd.f32 %v3864, %v4016
          %v4057 = vadd.f32 %v3865, %v4019
          %v4058 = vadd.f32 %v3866, %v4022
          %v4059 = vadd.f32 %v3867, %v4025
          %v4060 = vadd.f32 %v3868, %v4028
          %v4061 = vadd.f32 %v3869, %v4031
          %v4062 = vadd.f32 %v3870, %v4034
          %v4063 = vadd.f32 %v3871, %v4037
          %v4064 = vadd.f32 %v3872, %v4040
          %v4065 = vadd.f32 %v3873, %v4043
          %s4066 = sadd.s32 %s2956, 118
          %s4067 = scalar_lea.vmem [#allocation4], %s4066
          %v4068 = vld [vmem:[%s4067] sm:$0xff]
          %v4069 = vld [vmem:[%s4067 + $0x8] sm:$0xff]
          %v4070 = vld [vmem:[%s4067 + $0x10] sm:$0xff]
          %v4071 = vld [vmem:[%s4067 + $0x18] sm:$0xff]
          %v4072 = vld [vmem:[%s4067 + $0x20] sm:$0xff]
          %v4073 = vld [vmem:[%s4067 + $0x28] sm:$0xff]
          %v4074 = vld [vmem:[%s4067 + $0x30] sm:$0xff]
          %v4075 = vld [vmem:[%s4067 + $0x38] sm:$0xff]
          %v4076 = vld [vmem:[%s4067 + $0x40] sm:$0xff]
          %v4077 = vld [vmem:[%s4067 + $0x48] sm:$0xff]
          %v4078 = vld [vmem:[%s4067 + $0x50] sm:$0xff]
          %v4079 = vld [vmem:[%s4067 + $0x58] sm:$0xff]
          %v4080 = vld [vmem:[%s4067 + $0x60] sm:$0xff]
          %v4081 = vld [vmem:[%s4067 + $0x68] sm:$0xff]
          %v4082 = vld [vmem:[%s4067 + $0x70] sm:$0xff]
          %v4083 = vld [vmem:[%s4067 + $0x78] sm:$0xff]
          %v4084 = vld [vmem:[%s4067 + $0x80] sm:$0xff]
          %v4085 = vld [vmem:[%s4067 + $0x88] sm:$0xff]
          %v4086 = vld [vmem:[%s4067 + $0x90] sm:$0xff]
          %v4087 = vld [vmem:[%s4067 + $0x98] sm:$0xff]
          %v4088 = vld [vmem:[%s4067 + $0xa0] sm:$0xff]
          %s4089 = scalar_lea.vmem %s3, 192
          %v4090 = vld [vmem:[%s4089] sm:$0xff]
          %v4091 = vld [vmem:[%s4089 + $0x8] sm:$0xff]
          %v4092 = vld [vmem:[%s4089 + $0x10] sm:$0xff]
          %v4093 = vld [vmem:[%s4089 + $0x18] sm:$0xff]
          %v4095 = vsel %vm540, %v4068, 0
          %v4098 = vsel %vm540, %v4069, 0
          %v4101 = vsel %vm540, %v4070, 0
          %v4104 = vsel %vm540, %v4071, 0
          %v4107 = vsel %vm540, %v4072, 0
          %v4110 = vsel %vm540, %v4073, 0
          %v4113 = vsel %vm540, %v4074, 0
          %v4116 = vsel %vm540, %v4075, 0
          %v4119 = vsel %vm540, %v4076, 0
          %v4122 = vsel %vm540, %v4077, 0
          %v4125 = vsel %vm540, %v4078, 0
          %v4128 = vsel %vm540, %v4079, 0
          %v4131 = vsel %vm540, %v4080, 0
          %v4134 = vsel %vm540, %v4081, 0
          %v4137 = vsel %vm540, %v4082, 0
          %v4140 = vsel %vm540, %v4083, 0
          %v4143 = vsel %vm540, %v4084, 0
          %v4146 = vsel %vm540, %v4085, 0
          %v4149 = vsel %vm540, %v4086, 0
          %v4152 = vsel %vm540, %v4087, 0
          %v4155 = vsel %vm540, %v4088, 0
          %4157 = vmatpush.msra.mxu0 0.0
          %4158 = vmatpush.msra.mxu0 0.0
          %4159 = vmatpush.msra.mxu0 0.0
          %4160 = vmatpush.msra.mxu0 0.0
          %4161 = vmatpush.msra.mxu0 0.0
          %4162 = vmatpush.msra.mxu0 0.0
          %4163 = vmatpush.msra.mxu0 0.0
          %4164 = vmatpush.msra.mxu0 0.0
          %4165 = vmatpush.msra.mxu0 0.0
          %4166 = vmatpush.msra.mxu0 0.0
          %4167 = vmatpush.msra.mxu0 0.0
          %4168 = vmatpush.msra.mxu0 0.0
          %4169 = vmatpush.msra.mxu0 %v4093
          %4170 = vmatpush.msra.mxu0 %v4092
          %4171 = vmatpush.msra.mxu0 %v4091
          %4172 = vmatpush.msra.mxu0 %v4090
          %4173 = vmatmul.f32.gmra.mxu0 %v4095
          %v4174 = vpop.f32.mrf.mxu0
          %v4175 = vadd.f32 0.0, %v4174
          %4176 = vmatmul.f32.gmra.mxu0 %v4098
          %v4177 = vpop.f32.mrf.mxu0
          %v4178 = vadd.f32 0.0, %v4177
          %4179 = vmatmul.f32.gmra.mxu0 %v4101
          %v4180 = vpop.f32.mrf.mxu0
          %v4181 = vadd.f32 0.0, %v4180
          %4182 = vmatmul.f32.gmra.mxu0 %v4104
          %v4183 = vpop.f32.mrf.mxu0
          %v4184 = vadd.f32 0.0, %v4183
          %4185 = vmatmul.f32.gmra.mxu0 %v4107
          %v4186 = vpop.f32.mrf.mxu0
          %v4187 = vadd.f32 0.0, %v4186
          %4188 = vmatmul.f32.gmra.mxu0 %v4110
          %v4189 = vpop.f32.mrf.mxu0
          %v4190 = vadd.f32 0.0, %v4189
          %4191 = vmatmul.f32.gmra.mxu0 %v4113
          %v4192 = vpop.f32.mrf.mxu0
          %v4193 = vadd.f32 0.0, %v4192
          %4194 = vmatmul.f32.gmra.mxu0 %v4116
          %v4195 = vpop.f32.mrf.mxu0
          %v4196 = vadd.f32 0.0, %v4195
          %4197 = vmatmul.f32.gmra.mxu0 %v4119
          %v4198 = vpop.f32.mrf.mxu0
          %v4199 = vadd.f32 0.0, %v4198
          %4200 = vmatmul.f32.gmra.mxu0 %v4122
          %v4201 = vpop.f32.mrf.mxu0
          %v4202 = vadd.f32 0.0, %v4201
          %4203 = vmatmul.f32.gmra.mxu0 %v4125
          %v4204 = vpop.f32.mrf.mxu0
          %v4205 = vadd.f32 0.0, %v4204
          %4206 = vmatmul.f32.gmra.mxu0 %v4128
          %v4207 = vpop.f32.mrf.mxu0
          %v4208 = vadd.f32 0.0, %v4207
          %4209 = vmatmul.f32.gmra.mxu0 %v4131
          %v4210 = vpop.f32.mrf.mxu0
          %v4211 = vadd.f32 0.0, %v4210
          %4212 = vmatmul.f32.gmra.mxu0 %v4134
          %v4213 = vpop.f32.mrf.mxu0
          %v4214 = vadd.f32 0.0, %v4213
          %4215 = vmatmul.f32.gmra.mxu0 %v4137
          %v4216 = vpop.f32.mrf.mxu0
          %v4217 = vadd.f32 0.0, %v4216
          %4218 = vmatmul.f32.gmra.mxu0 %v4140
          %v4219 = vpop.f32.mrf.mxu0
          %v4220 = vadd.f32 0.0, %v4219
          %4221 = vmatmul.f32.gmra.mxu0 %v4143
          %v4222 = vpop.f32.mrf.mxu0
          %v4223 = vadd.f32 0.0, %v4222
          %4224 = vmatmul.f32.gmra.mxu0 %v4146
          %v4225 = vpop.f32.mrf.mxu0
          %v4226 = vadd.f32 0.0, %v4225
          %4227 = vmatmul.f32.gmra.mxu0 %v4149
          %v4228 = vpop.f32.mrf.mxu0
          %v4229 = vadd.f32 0.0, %v4228
          %4230 = vmatmul.f32.gmra.mxu0 %v4152
          %v4231 = vpop.f32.mrf.mxu0
          %v4232 = vadd.f32 0.0, %v4231
          %4233 = vmatmul.f32.gmra.mxu0 %v4155
          %v4234 = vpop.f32.mrf.mxu0
          %v4235 = vadd.f32 0.0, %v4234
          %4236 = vdwg.mxu0
          %v4237 = vadd.f32 %v4045, %v4175
          %v4238 = vadd.f32 %v4046, %v4178
          %v4239 = vadd.f32 %v4047, %v4181
          %v4240 = vadd.f32 %v4048, %v4184
          %v4241 = vadd.f32 %v4049, %v4187
          %v4242 = vadd.f32 %v4050, %v4190
          %v4243 = vadd.f32 %v4051, %v4193
          %v4244 = vadd.f32 %v4052, %v4196
          %v4245 = vadd.f32 %v4053, %v4199
          %v4246 = vadd.f32 %v4054, %v4202
          %v4247 = vadd.f32 %v4055, %v4205
          %v4248 = vadd.f32 %v4056, %v4208
          %v4249 = vadd.f32 %v4057, %v4211
          %v4250 = vadd.f32 %v4058, %v4214
          %v4251 = vadd.f32 %v4059, %v4217
          %v4252 = vadd.f32 %v4060, %v4220
          %v4253 = vadd.f32 %v4061, %v4223
          %v4254 = vadd.f32 %v4062, %v4226
          %v4255 = vadd.f32 %v4063, %v4229
          %v4256 = vadd.f32 %v4064, %v4232
          %v4257 = vadd.f32 %v4065, %v4235
          %s4258 = sadd.s32 %s2956, 119
          %s4259 = scalar_lea.vmem [#allocation4], %s4258
          %v4260 = vld [vmem:[%s4259] sm:$0xff]
          %v4261 = vld [vmem:[%s4259 + $0x8] sm:$0xff]
          %v4262 = vld [vmem:[%s4259 + $0x10] sm:$0xff]
          %v4263 = vld [vmem:[%s4259 + $0x18] sm:$0xff]
          %v4264 = vld [vmem:[%s4259 + $0x20] sm:$0xff]
          %v4265 = vld [vmem:[%s4259 + $0x28] sm:$0xff]
          %v4266 = vld [vmem:[%s4259 + $0x30] sm:$0xff]
          %v4267 = vld [vmem:[%s4259 + $0x38] sm:$0xff]
          %v4268 = vld [vmem:[%s4259 + $0x40] sm:$0xff]
          %v4269 = vld [vmem:[%s4259 + $0x48] sm:$0xff]
          %v4270 = vld [vmem:[%s4259 + $0x50] sm:$0xff]
          %v4271 = vld [vmem:[%s4259 + $0x58] sm:$0xff]
          %v4272 = vld [vmem:[%s4259 + $0x60] sm:$0xff]
          %v4273 = vld [vmem:[%s4259 + $0x68] sm:$0xff]
          %v4274 = vld [vmem:[%s4259 + $0x70] sm:$0xff]
          %v4275 = vld [vmem:[%s4259 + $0x78] sm:$0xff]
          %v4276 = vld [vmem:[%s4259 + $0x80] sm:$0xff]
          %v4277 = vld [vmem:[%s4259 + $0x88] sm:$0xff]
          %v4278 = vld [vmem:[%s4259 + $0x90] sm:$0xff]
          %v4279 = vld [vmem:[%s4259 + $0x98] sm:$0xff]
          %v4280 = vld [vmem:[%s4259 + $0xa0] sm:$0xff]
          %s4281 = scalar_lea.vmem %s3, 224
          %v4282 = vld [vmem:[%s4281] sm:$0xff]
          %v4283 = vld [vmem:[%s4281 + $0x8] sm:$0xff]
          %v4284 = vld [vmem:[%s4281 + $0x10] sm:$0xff]
          %v4285 = vld [vmem:[%s4281 + $0x18] sm:$0xff]
          %v4287 = vsel %vm540, %v4260, 0
          %v4290 = vsel %vm540, %v4261, 0
          %v4293 = vsel %vm540, %v4262, 0
          %v4296 = vsel %vm540, %v4263, 0
          %v4299 = vsel %vm540, %v4264, 0
          %v4302 = vsel %vm540, %v4265, 0
          %v4305 = vsel %vm540, %v4266, 0
          %v4308 = vsel %vm540, %v4267, 0
          %v4311 = vsel %vm540, %v4268, 0
          %v4314 = vsel %vm540, %v4269, 0
          %v4317 = vsel %vm540, %v4270, 0
          %v4320 = vsel %vm540, %v4271, 0
          %v4323 = vsel %vm540, %v4272, 0
          %v4326 = vsel %vm540, %v4273, 0
          %v4329 = vsel %vm540, %v4274, 0
          %v4332 = vsel %vm540, %v4275, 0
          %v4335 = vsel %vm540, %v4276, 0
          %v4338 = vsel %vm540, %v4277, 0
          %v4341 = vsel %vm540, %v4278, 0
          %v4344 = vsel %vm540, %v4279, 0
          %v4347 = vsel %vm540, %v4280, 0
          %4349 = vmatpush.msra.mxu0 0.0
          %4350 = vmatpush.msra.mxu0 0.0
          %4351 = vmatpush.msra.mxu0 0.0
          %4352 = vmatpush.msra.mxu0 0.0
          %4353 = vmatpush.msra.mxu0 0.0
          %4354 = vmatpush.msra.mxu0 0.0
          %4355 = vmatpush.msra.mxu0 0.0
          %4356 = vmatpush.msra.mxu0 0.0
          %4357 = vmatpush.msra.mxu0 0.0
          %4358 = vmatpush.msra.mxu0 0.0
          %4359 = vmatpush.msra.mxu0 0.0
          %4360 = vmatpush.msra.mxu0 0.0
          %4361 = vmatpush.msra.mxu0 %v4285
          %4362 = vmatpush.msra.mxu0 %v4284
          %4363 = vmatpush.msra.mxu0 %v4283
          %4364 = vmatpush.msra.mxu0 %v4282
          %4365 = vmatmul.f32.gmra.mxu0 %v4287
          %v4366 = vpop.f32.mrf.mxu0
          %v4367 = vadd.f32 0.0, %v4366
          %4368 = vmatmul.f32.gmra.mxu0 %v4290
          %v4369 = vpop.f32.mrf.mxu0
          %v4370 = vadd.f32 0.0, %v4369
          %4371 = vmatmul.f32.gmra.mxu0 %v4293
          %v4372 = vpop.f32.mrf.mxu0
          %v4373 = vadd.f32 0.0, %v4372
          %4374 = vmatmul.f32.gmra.mxu0 %v4296
          %v4375 = vpop.f32.mrf.mxu0
          %v4376 = vadd.f32 0.0, %v4375
          %4377 = vmatmul.f32.gmra.mxu0 %v4299
          %v4378 = vpop.f32.mrf.mxu0
          %v4379 = vadd.f32 0.0, %v4378
          %4380 = vmatmul.f32.gmra.mxu0 %v4302
          %v4381 = vpop.f32.mrf.mxu0
          %v4382 = vadd.f32 0.0, %v4381
          %4383 = vmatmul.f32.gmra.mxu0 %v4305
          %v4384 = vpop.f32.mrf.mxu0
          %v4385 = vadd.f32 0.0, %v4384
          %4386 = vmatmul.f32.gmra.mxu0 %v4308
          %v4387 = vpop.f32.mrf.mxu0
          %v4388 = vadd.f32 0.0, %v4387
          %4389 = vmatmul.f32.gmra.mxu0 %v4311
          %v4390 = vpop.f32.mrf.mxu0
          %v4391 = vadd.f32 0.0, %v4390
          %4392 = vmatmul.f32.gmra.mxu0 %v4314
          %v4393 = vpop.f32.mrf.mxu0
          %v4394 = vadd.f32 0.0, %v4393
          %4395 = vmatmul.f32.gmra.mxu0 %v4317
          %v4396 = vpop.f32.mrf.mxu0
          %v4397 = vadd.f32 0.0, %v4396
          %4398 = vmatmul.f32.gmra.mxu0 %v4320
          %v4399 = vpop.f32.mrf.mxu0
          %v4400 = vadd.f32 0.0, %v4399
          %4401 = vmatmul.f32.gmra.mxu0 %v4323
          %v4402 = vpop.f32.mrf.mxu0
          %v4403 = vadd.f32 0.0, %v4402
          %4404 = vmatmul.f32.gmra.mxu0 %v4326
          %v4405 = vpop.f32.mrf.mxu0
          %v4406 = vadd.f32 0.0, %v4405
          %4407 = vmatmul.f32.gmra.mxu0 %v4329
          %v4408 = vpop.f32.mrf.mxu0
          %v4409 = vadd.f32 0.0, %v4408
          %4410 = vmatmul.f32.gmra.mxu0 %v4332
          %v4411 = vpop.f32.mrf.mxu0
          %v4412 = vadd.f32 0.0, %v4411
          %4413 = vmatmul.f32.gmra.mxu0 %v4335
          %v4414 = vpop.f32.mrf.mxu0
          %v4415 = vadd.f32 0.0, %v4414
          %4416 = vmatmul.f32.gmra.mxu0 %v4338
          %v4417 = vpop.f32.mrf.mxu0
          %v4418 = vadd.f32 0.0, %v4417
          %4419 = vmatmul.f32.gmra.mxu0 %v4341
          %v4420 = vpop.f32.mrf.mxu0
          %v4421 = vadd.f32 0.0, %v4420
          %4422 = vmatmul.f32.gmra.mxu0 %v4344
          %v4423 = vpop.f32.mrf.mxu0
          %v4424 = vadd.f32 0.0, %v4423
          %4425 = vmatmul.f32.gmra.mxu0 %v4347
          %v4426 = vpop.f32.mrf.mxu0
          %v4427 = vadd.f32 0.0, %v4426
          %4428 = vdwg.mxu0
          %v4429 = vadd.f32 %v4237, %v4367
          %v4430 = vadd.f32 %v4238, %v4370
          %v4431 = vadd.f32 %v4239, %v4373
          %v4432 = vadd.f32 %v4240, %v4376
          %v4433 = vadd.f32 %v4241, %v4379
          %v4434 = vadd.f32 %v4242, %v4382
          %v4435 = vadd.f32 %v4243, %v4385
          %v4436 = vadd.f32 %v4244, %v4388
          %v4437 = vadd.f32 %v4245, %v4391
          %v4438 = vadd.f32 %v4246, %v4394
          %v4439 = vadd.f32 %v4247, %v4397
          %v4440 = vadd.f32 %v4248, %v4400
          %v4441 = vadd.f32 %v4249, %v4403
          %v4442 = vadd.f32 %v4250, %v4406
          %v4443 = vadd.f32 %v4251, %v4409
          %v4444 = vadd.f32 %v4252, %v4412
          %v4445 = vadd.f32 %v4253, %v4415
          %v4446 = vadd.f32 %v4254, %v4418
          %v4447 = vadd.f32 %v4255, %v4421
          %v4448 = vadd.f32 %v4256, %v4424
          %v4449 = vadd.f32 %v4257, %v4427
          %s4450 = sadd.s32 %s2956, 120
          %s4451 = scalar_lea.vmem [#allocation4], %s4450
          %v4452 = vld [vmem:[%s4451] sm:$0xff]
          %v4453 = vld [vmem:[%s4451 + $0x8] sm:$0xff]
          %v4454 = vld [vmem:[%s4451 + $0x10] sm:$0xff]
          %v4455 = vld [vmem:[%s4451 + $0x18] sm:$0xff]
          %v4456 = vld [vmem:[%s4451 + $0x20] sm:$0xff]
          %v4457 = vld [vmem:[%s4451 + $0x28] sm:$0xff]
          %v4458 = vld [vmem:[%s4451 + $0x30] sm:$0xff]
          %v4459 = vld [vmem:[%s4451 + $0x38] sm:$0xff]
          %v4460 = vld [vmem:[%s4451 + $0x40] sm:$0xff]
          %v4461 = vld [vmem:[%s4451 + $0x48] sm:$0xff]
          %v4462 = vld [vmem:[%s4451 + $0x50] sm:$0xff]
          %v4463 = vld [vmem:[%s4451 + $0x58] sm:$0xff]
          %v4464 = vld [vmem:[%s4451 + $0x60] sm:$0xff]
          %v4465 = vld [vmem:[%s4451 + $0x68] sm:$0xff]
          %v4466 = vld [vmem:[%s4451 + $0x70] sm:$0xff]
          %v4467 = vld [vmem:[%s4451 + $0x78] sm:$0xff]
          %v4468 = vld [vmem:[%s4451 + $0x80] sm:$0xff]
          %v4469 = vld [vmem:[%s4451 + $0x88] sm:$0xff]
          %v4470 = vld [vmem:[%s4451 + $0x90] sm:$0xff]
          %v4471 = vld [vmem:[%s4451 + $0x98] sm:$0xff]
          %v4472 = vld [vmem:[%s4451 + $0xa0] sm:$0xff]
          %s4473 = scalar_lea.vmem %s3, 256
          %v4474 = vld [vmem:[%s4473] sm:$0xff]
          %v4475 = vld [vmem:[%s4473 + $0x8] sm:$0xff]
          %v4476 = vld [vmem:[%s4473 + $0x10] sm:$0xff]
          %v4477 = vld [vmem:[%s4473 + $0x18] sm:$0xff]
          %v4479 = vsel %vm540, %v4452, 0
          %v4482 = vsel %vm540, %v4453, 0
          %v4485 = vsel %vm540, %v4454, 0
          %v4488 = vsel %vm540, %v4455, 0
          %v4491 = vsel %vm540, %v4456, 0
          %v4494 = vsel %vm540, %v4457, 0
          %v4497 = vsel %vm540, %v4458, 0
          %v4500 = vsel %vm540, %v4459, 0
          %v4503 = vsel %vm540, %v4460, 0
          %v4506 = vsel %vm540, %v4461, 0
          %v4509 = vsel %vm540, %v4462, 0
          %v4512 = vsel %vm540, %v4463, 0
          %v4515 = vsel %vm540, %v4464, 0
          %v4518 = vsel %vm540, %v4465, 0
          %v4521 = vsel %vm540, %v4466, 0
          %v4524 = vsel %vm540, %v4467, 0
          %v4527 = vsel %vm540, %v4468, 0
          %v4530 = vsel %vm540, %v4469, 0
          %v4533 = vsel %vm540, %v4470, 0
          %v4536 = vsel %vm540, %v4471, 0
          %v4539 = vsel %vm540, %v4472, 0
          %4541 = vmatpush.msra.mxu0 0.0
          %4542 = vmatpush.msra.mxu0 0.0
          %4543 = vmatpush.msra.mxu0 0.0
          %4544 = vmatpush.msra.mxu0 0.0
          %4545 = vmatpush.msra.mxu0 0.0
          %4546 = vmatpush.msra.mxu0 0.0
          %4547 = vmatpush.msra.mxu0 0.0
          %4548 = vmatpush.msra.mxu0 0.0
          %4549 = vmatpush.msra.mxu0 0.0
          %4550 = vmatpush.msra.mxu0 0.0
          %4551 = vmatpush.msra.mxu0 0.0
          %4552 = vmatpush.msra.mxu0 0.0
          %4553 = vmatpush.msra.mxu0 %v4477
          %4554 = vmatpush.msra.mxu0 %v4476
          %4555 = vmatpush.msra.mxu0 %v4475
          %4556 = vmatpush.msra.mxu0 %v4474
          %4557 = vmatmul.f32.gmra.mxu0 %v4479
          %v4558 = vpop.f32.mrf.mxu0
          %v4559 = vadd.f32 0.0, %v4558
          %4560 = vmatmul.f32.gmra.mxu0 %v4482
          %v4561 = vpop.f32.mrf.mxu0
          %v4562 = vadd.f32 0.0, %v4561
          %4563 = vmatmul.f32.gmra.mxu0 %v4485
          %v4564 = vpop.f32.mrf.mxu0
          %v4565 = vadd.f32 0.0, %v4564
          %4566 = vmatmul.f32.gmra.mxu0 %v4488
          %v4567 = vpop.f32.mrf.mxu0
          %v4568 = vadd.f32 0.0, %v4567
          %4569 = vmatmul.f32.gmra.mxu0 %v4491
          %v4570 = vpop.f32.mrf.mxu0
          %v4571 = vadd.f32 0.0, %v4570
          %4572 = vmatmul.f32.gmra.mxu0 %v4494
          %v4573 = vpop.f32.mrf.mxu0
          %v4574 = vadd.f32 0.0, %v4573
          %4575 = vmatmul.f32.gmra.mxu0 %v4497
          %v4576 = vpop.f32.mrf.mxu0
          %v4577 = vadd.f32 0.0, %v4576
          %4578 = vmatmul.f32.gmra.mxu0 %v4500
          %v4579 = vpop.f32.mrf.mxu0
          %v4580 = vadd.f32 0.0, %v4579
          %4581 = vmatmul.f32.gmra.mxu0 %v4503
          %v4582 = vpop.f32.mrf.mxu0
          %v4583 = vadd.f32 0.0, %v4582
          %4584 = vmatmul.f32.gmra.mxu0 %v4506
          %v4585 = vpop.f32.mrf.mxu0
          %v4586 = vadd.f32 0.0, %v4585
          %4587 = vmatmul.f32.gmra.mxu0 %v4509
          %v4588 = vpop.f32.mrf.mxu0
          %v4589 = vadd.f32 0.0, %v4588
          %4590 = vmatmul.f32.gmra.mxu0 %v4512
          %v4591 = vpop.f32.mrf.mxu0
          %v4592 = vadd.f32 0.0, %v4591
          %4593 = vmatmul.f32.gmra.mxu0 %v4515
          %v4594 = vpop.f32.mrf.mxu0
          %v4595 = vadd.f32 0.0, %v4594
          %4596 = vmatmul.f32.gmra.mxu0 %v4518
          %v4597 = vpop.f32.mrf.mxu0
          %v4598 = vadd.f32 0.0, %v4597
          %4599 = vmatmul.f32.gmra.mxu0 %v4521
          %v4600 = vpop.f32.mrf.mxu0
          %v4601 = vadd.f32 0.0, %v4600
          %4602 = vmatmul.f32.gmra.mxu0 %v4524
          %v4603 = vpop.f32.mrf.mxu0
          %v4604 = vadd.f32 0.0, %v4603
          %4605 = vmatmul.f32.gmra.mxu0 %v4527
          %v4606 = vpop.f32.mrf.mxu0
          %v4607 = vadd.f32 0.0, %v4606
          %4608 = vmatmul.f32.gmra.mxu0 %v4530
          %v4609 = vpop.f32.mrf.mxu0
          %v4610 = vadd.f32 0.0, %v4609
          %4611 = vmatmul.f32.gmra.mxu0 %v4533
          %v4612 = vpop.f32.mrf.mxu0
          %v4613 = vadd.f32 0.0, %v4612
          %4614 = vmatmul.f32.gmra.mxu0 %v4536
          %v4615 = vpop.f32.mrf.mxu0
          %v4616 = vadd.f32 0.0, %v4615
          %4617 = vmatmul.f32.gmra.mxu0 %v4539
          %v4618 = vpop.f32.mrf.mxu0
          %v4619 = vadd.f32 0.0, %v4618
          %4620 = vdwg.mxu0
          %v4621 = vadd.f32 %v4429, %v4559
          %v4622 = vadd.f32 %v4430, %v4562
          %v4623 = vadd.f32 %v4431, %v4565
          %v4624 = vadd.f32 %v4432, %v4568
          %v4625 = vadd.f32 %v4433, %v4571
          %v4626 = vadd.f32 %v4434, %v4574
          %v4627 = vadd.f32 %v4435, %v4577
          %v4628 = vadd.f32 %v4436, %v4580
          %v4629 = vadd.f32 %v4437, %v4583
          %v4630 = vadd.f32 %v4438, %v4586
          %v4631 = vadd.f32 %v4439, %v4589
          %v4632 = vadd.f32 %v4440, %v4592
          %v4633 = vadd.f32 %v4441, %v4595
          %v4634 = vadd.f32 %v4442, %v4598
          %v4635 = vadd.f32 %v4443, %v4601
          %v4636 = vadd.f32 %v4444, %v4604
          %v4637 = vadd.f32 %v4445, %v4607
          %v4638 = vadd.f32 %v4446, %v4610
          %v4639 = vadd.f32 %v4447, %v4613
          %v4640 = vadd.f32 %v4448, %v4616
          %v4641 = vadd.f32 %v4449, %v4619
          %v4643 = vperm.slane %v2942, 0
          %v4645 = vadd.f32 %v4621, %v4643
          %v4646 = vadd.f32 %v4622, %v4643
          %v4647 = vadd.f32 %v4623, %v4643
          %v4648 = vadd.f32 %v4624, %v4643
          %v4649 = vadd.f32 %v4625, %v4643
          %v4650 = vadd.f32 %v4626, %v4643
          %v4651 = vadd.f32 %v4627, %v4643
          %v4652 = vadd.f32 %v4628, %v4643
          %v4653 = vadd.f32 %v4629, %v4643
          %v4654 = vadd.f32 %v4630, %v4643
          %v4655 = vadd.f32 %v4631, %v4643
          %v4656 = vadd.f32 %v4632, %v4643
          %v4657 = vadd.f32 %v4633, %v4643
          %v4658 = vadd.f32 %v4634, %v4643
          %v4659 = vadd.f32 %v4635, %v4643
          %v4660 = vadd.f32 %v4636, %v4643
          %v4661 = vadd.f32 %v4637, %v4643
          %v4662 = vadd.f32 %v4638, %v4643
          %v4663 = vadd.f32 %v4639, %v4643
          %v4664 = vadd.f32 %v4640, %v4643
          %v4665 = vadd.f32 %v4641, %v4643
          %s4666 = sadd.s32 %s2956, 56
          %s4667 = scalar_lea.vmem [#allocation5], %s4666
          %4668 = vst.msk [vmem:[%s4667] sm:$0xff] %vm540, %v4645
          %4669 = vst.msk [vmem:[%s4667 + $0x8] sm:$0xff] %vm540, %v4646
          %4670 = vst.msk [vmem:[%s4667 + $0x10] sm:$0xff] %vm540, %v4647
          %4671 = vst.msk [vmem:[%s4667 + $0x18] sm:$0xff] %vm540, %v4648
          %4672 = vst.msk [vmem:[%s4667 + $0x20] sm:$0xff] %vm540, %v4649
          %4673 = vst.msk [vmem:[%s4667 + $0x28] sm:$0xff] %vm540, %v4650
          %4674 = vst.msk [vmem:[%s4667 + $0x30] sm:$0xff] %vm540, %v4651
          %4675 = vst.msk [vmem:[%s4667 + $0x38] sm:$0xff] %vm540, %v4652
          %4676 = vst.msk [vmem:[%s4667 + $0x40] sm:$0xff] %vm540, %v4653
          %4677 = vst.msk [vmem:[%s4667 + $0x48] sm:$0xff] %vm540, %v4654
          %4678 = vst.msk [vmem:[%s4667 + $0x50] sm:$0xff] %vm540, %v4655
          %4679 = vst.msk [vmem:[%s4667 + $0x58] sm:$0xff] %vm540, %v4656
          %4680 = vst.msk [vmem:[%s4667 + $0x60] sm:$0xff] %vm540, %v4657
          %4681 = vst.msk [vmem:[%s4667 + $0x68] sm:$0xff] %vm540, %v4658
          %4682 = vst.msk [vmem:[%s4667 + $0x70] sm:$0xff] %vm540, %v4659
          %4683 = vst.msk [vmem:[%s4667 + $0x78] sm:$0xff] %vm540, %v4660
          %4684 = vst.msk [vmem:[%s4667 + $0x80] sm:$0xff] %vm540, %v4661
          %4685 = vst.msk [vmem:[%s4667 + $0x88] sm:$0xff] %vm540, %v4662
          %4686 = vst.msk [vmem:[%s4667 + $0x90] sm:$0xff] %vm540, %v4663
          %4687 = vst.msk [vmem:[%s4667 + $0x98] sm:$0xff] %vm540, %v4664
          %4688 = vst.msk [vmem:[%s4667 + $0xa0] sm:$0xff] %vm540, %v4665
        $region104: #{pallas_forward.1} parent=63 // loop_footer
          %s2955 = sadd.s32 1, %s2951
        $region105: #{pallas_forward.1} parent=63 // loop_footer_branch
          %2950 = sbr.rel target = $region101
        $region106: #{pallas_forward.1} parent=63 // loop_exit
          _
        %v4689 = vsel %vm2740, 1, 0
        %v4690 = vsel %vm2741, 1, 0
        %v4691 = vsel %vm2742, 1, 0
        %v4692 = vcvt.s32.f32 %v4689
        %v4693 = vcvt.s32.f32 %v4690
        %v4694 = vcvt.s32.f32 %v4691
        loop: start=0, step=1, limit=22
        $region107: #{pallas_forward.1} parent=63 // loop_pre_header
          _
        $region108: #{pallas_forward.1} parent=63 // loop_header
          %s4696 = sphi 0, %s4700
          %p4697 = scmp.ge.s32.totalorder %s4696, 22
        $region109: #{pallas_forward.1} parent=63 // loop_header_branch
          %4699 = sbr.rel (%p4697) target = $region113
        $region110: #{pallas_forward.1} parent=63 // loop_body
          %s4701 = smul.u32 %s4696, 112
          %s4702 = scalar_lea.vmem [#allocation5], %s4701
          %v4703 = vld [vmem:[%s4702] sm:$0xff]
          %v4704 = vld [vmem:[%s4702 + $0x8] sm:$0xff]
          %v4705 = vld [vmem:[%s4702 + $0x10] sm:$0xff]
          %v4706 = vld [vmem:[%s4702 + $0x18] sm:$0xff]
          %v4707 = vld [vmem:[%s4702 + $0x20] sm:$0xff]
          %v4708 = vld [vmem:[%s4702 + $0x28] sm:$0xf]
          %s4709 = sadd.s32 %s4701, 56
          %s4710 = scalar_lea.vmem [#allocation5], %s4709
          %v4711 = vld [vmem:[%s4710] sm:$0xff]
          %v4712 = vld [vmem:[%s4710 + $0x8] sm:$0xff]
          %v4713 = vld [vmem:[%s4710 + $0x10] sm:$0xff]
          %v4714 = vld [vmem:[%s4710 + $0x18] sm:$0xff]
          %v4715 = vld [vmem:[%s4710 + $0x20] sm:$0xff]
          %v4716 = vld [vmem:[%s4710 + $0x28] sm:$0xf]
          %v4717 = vmax.f32 %v4703, %v4711
          %v4718 = vmax.f32 %v4704, %v4712
          %v4719 = vmax.f32 %v4705, %v4713
          %v4720 = vmax.f32 %v4706, %v4714
          %v4721 = vmax.f32 %v4707, %v4715
          %v4722 = vmax.f32 %v4708, %v4716
          %vm4723 = vcmask 359424
          %v4725 = vsel %vm4723, %v2728, 0
          %v4728 = vsel %vm4723, %v2729, 0
          %v4731 = vsel %vm4723, %v2730, 0
          %vm4733 = vcmask 1043456
          %v4735 = vsel %vm4733, %v4722, 0
          %4737 = vmatpush.msra.mxu0 0.0
          %4738 = vmatpush.msra.mxu0 0.0
          %4739 = vmatpush.msra.mxu0 0.0
          %4740 = vmatpush.msra.mxu0 0.0
          %4741 = vmatpush.msra.mxu0 0.0
          %4742 = vmatpush.msra.mxu0 0.0
          %4743 = vmatpush.msra.mxu0 0.0
          %4744 = vmatpush.msra.mxu0 0.0
          %4745 = vmatpush.msra.mxu0 0.0
          %4746 = vmatpush.msra.mxu0 0.0
          %4747 = vmatpush.msra.mxu0 %v4735
          %4748 = vmatpush.msra.mxu0 %v4721
          %4749 = vmatpush.msra.mxu0 %v4720
          %4750 = vmatpush.msra.mxu0 %v4719
          %4751 = vmatpush.msra.mxu0 %v4718
          %4752 = vmatpush.msra.mxu0 %v4717
          %4753 = vmatmul.f32.gmra.mxu0 %v4725
          %v4754 = vpop.f32.mrf.mxu0
          %v4755 = vadd.f32 0.0, %v4754
          %4756 = vmatmul.f32.gmra.mxu0 %v4728
          %v4757 = vpop.f32.mrf.mxu0
          %v4758 = vadd.f32 0.0, %v4757
          %4759 = vmatmul.f32.gmra.mxu0 %v4731
          %v4760 = vpop.f32.mrf.mxu0
          %v4761 = vadd.f32 0.0, %v4760
          %4762 = vdwg.mxu0
          %v4764 = vsel %vm4723, %v4692, 0
          %v4767 = vsel %vm4723, %v4693, 0
          %v4770 = vsel %vm4723, %v4694, 0
          %4772 = vmatpush.msra.mxu0 0.0
          %4773 = vmatpush.msra.mxu0 0.0
          %4774 = vmatpush.msra.mxu0 0.0
          %4775 = vmatpush.msra.mxu0 0.0
          %4776 = vmatpush.msra.mxu0 0.0
          %4777 = vmatpush.msra.mxu0 0.0
          %4778 = vmatpush.msra.mxu0 0.0
          %4779 = vmatpush.msra.mxu0 0.0
          %4780 = vmatpush.msra.mxu0 0.0
          %4781 = vmatpush.msra.mxu0 0.0
          %4782 = vmatpush.msra.mxu0 %v4735
          %4783 = vmatpush.msra.mxu0 %v4721
          %4784 = vmatpush.msra.mxu0 %v4720
          %4785 = vmatpush.msra.mxu0 %v4719
          %4786 = vmatpush.msra.mxu0 %v4718
          %4787 = vmatpush.msra.mxu0 %v4717
          %4788 = vmatmul.f32.gmra.mxu0 %v4764
          %v4789 = vpop.f32.mrf.mxu0
          %v4790 = vadd.f32 0.0, %v4789
          %4791 = vmatmul.f32.gmra.mxu0 %v4767
          %v4792 = vpop.f32.mrf.mxu0
          %v4793 = vadd.f32 0.0, %v4792
          %4794 = vmatmul.f32.gmra.mxu0 %v4770
          %v4795 = vpop.f32.mrf.mxu0
          %v4796 = vadd.f32 0.0, %v4795
          %4797 = vdwg.mxu0
          %v4798 = vmax.f32 %v4755, %v4790
          %v4799 = vmax.f32 %v4758, %v4793
          %v4800 = vmax.f32 %v4761, %v4796
          %v4801 = vmax.f32 %v4798, 0.0
          %v4802 = vmax.f32 %v4799, 0.0
          %v4803 = vmax.f32 %v4800, 0.0
          %s4804 = sadd.s32 %s4696, 1
          %s4805 = smul.u32 %s4804, 32
          %s4806 = sadd.s32 %s4805, 8
          %s4807 = scalar_lea.vmem [#allocation6], %s4806
          %4808 = vst.msk [vmem:[%s4807] sm:$0xff] %vm540, %v4801
          %4809 = vst.msk [vmem:[%s4807 + $0x8] sm:$0xff] %vm540, %v4802
          %vm4810 = vcmask 259072
          %4811 = vst.msk [vmem:[%s4807 + $0x10] sm:$0x3f] %vm4810, %v4803
        $region111: #{pallas_forward.1} parent=63 // loop_footer
          %s4700 = sadd.s32 1, %s4696
        $region112: #{pallas_forward.1} parent=63 // loop_footer_branch
          %4695 = sbr.rel target = $region108
        $region113: #{pallas_forward.1} parent=63 // loop_exit
          _
        %v4812 = vld [vmem:[%s6] sm:$0x1]
        %4813 = vst.msk [vmem:[#allocation7] sm:$0xff] %vm540, 0.0
        %4814 = vst.msk [vmem:[#allocation7 + $0x8] sm:$0xff] %vm540, 0.0
        %4815 = vst.msk [vmem:[#allocation7 + $0x10] sm:$0xff] %vm540, 0.0
        %4816 = vst.msk [vmem:[#allocation7 + $0x18] sm:$0xff] %vm540, 0.0
        loop: start=0, step=1, limit=6
        $region114: #{pallas_forward.1} parent=63 // loop_pre_header
          _
        $region115: #{pallas_forward.1} parent=63 // loop_header
          %s4818 = sphi 0, %s4822
          %p4819 = scmp.ge.s32.totalorder %s4818, 6
        $region116: #{pallas_forward.1} parent=63 // loop_header_branch
          %4821 = sbr.rel (%p4819) target = $region120
        $region117: #{pallas_forward.1} parent=63 // loop_body
          %s4823 = smul.u32 %s4818, 128
          %s4824 = sadd.s32 %s4823, 6
          %s4825 = scalar_lea.vmem [#allocation6], %s4824
          %v4826 = vld [vmem:[%s4825] sm:$0xff]
          %v4827 = vld [vmem:[%s4825 + $0x8] sm:$0xff]
          %v4828 = vld [vmem:[%s4825 + $0x10] sm:$0xff]
          %v4829 = vld [vmem:[%s4825 + $0x18] sm:$0xff]
          %v4830 = vld [vmem:[%s4825 + $0x20] sm:$0xff]
          %v4831 = vld [vmem:[%s4825 + $0x28] sm:$0xff]
          %v4832 = vld [vmem:[%s4825 + $0x30] sm:$0xff]
          %v4833 = vld [vmem:[%s4825 + $0x38] sm:$0xff]
          %v4834 = vld [vmem:[%s4825 + $0x40] sm:$0xff]
          %v4835 = vld [vmem:[%s4825 + $0x48] sm:$0xff]
          %v4836 = vld [vmem:[%s4825 + $0x50] sm:$0xff]
          %v4837 = vld [vmem:[%s4825 + $0x58] sm:$0xff]
          %v4838 = vld [vmem:[%s4825 + $0x60] sm:$0xff]
          %v4839 = vld [vmem:[%s4825 + $0x68] sm:$0xff]
          %v4840 = vld [vmem:[%s4825 + $0x70] sm:$0xff]
          %v4841 = vld [vmem:[%s4825 + $0x78] sm:$0xff]
          %v4842 = vld [vmem:[%s5] sm:$0xff]
          %v4843 = vld [vmem:[%s5 + $0x8] sm:$0xff]
          %v4844 = vld [vmem:[%s5 + $0x10] sm:$0xff]
          %v4845 = vld [vmem:[%s5 + $0x18] sm:$0xff]
          %s4846 = sadd.s32 %s4823, 7
          %s4847 = scalar_lea.vmem [#allocation6], %s4846
          %v4848 = vld [vmem:[%s4847] sm:$0xff]
          %v4849 = vld [vmem:[%s4847 + $0x8] sm:$0xff]
          %v4850 = vld [vmem:[%s4847 + $0x10] sm:$0xff]
          %v4851 = vld [vmem:[%s4847 + $0x18] sm:$0xff]
          %v4852 = vld [vmem:[%s4847 + $0x20] sm:$0xff]
          %v4853 = vld [vmem:[%s4847 + $0x28] sm:$0xff]
          %v4854 = vld [vmem:[%s4847 + $0x30] sm:$0xff]
          %v4855 = vld [vmem:[%s4847 + $0x38] sm:$0xff]
          %v4856 = vld [vmem:[%s4847 + $0x40] sm:$0xff]
          %v4857 = vld [vmem:[%s4847 + $0x48] sm:$0xff]
          %v4858 = vld [vmem:[%s4847 + $0x50] sm:$0xff]
          %v4859 = vld [vmem:[%s4847 + $0x58] sm:$0xff]
          %v4860 = vld [vmem:[%s4847 + $0x60] sm:$0xff]
          %v4861 = vld [vmem:[%s4847 + $0x68] sm:$0xff]
          %v4862 = vld [vmem:[%s4847 + $0x70] sm:$0xff]
          %v4863 = vld [vmem:[%s4847 + $0x78] sm:$0xff]
          %s4864 = scalar_lea.vmem %s5, 32
          %v4865 = vld [vmem:[%s4864] sm:$0xff]
          %v4866 = vld [vmem:[%s4864 + $0x8] sm:$0xff]
          %v4867 = vld [vmem:[%s4864 + $0x10] sm:$0xff]
          %v4868 = vld [vmem:[%s4864 + $0x18] sm:$0xff]
          %v4870 = vsel %vm540, %v4848, 0
          %v4873 = vsel %vm540, %v4849, 0
          %v4876 = vsel %vm540, %v4850, 0
          %v4879 = vsel %vm540, %v4851, 0
          %v4882 = vsel %vm540, %v4852, 0
          %v4885 = vsel %vm540, %v4853, 0
          %v4888 = vsel %vm540, %v4854, 0
          %v4891 = vsel %vm540, %v4855, 0
          %v4894 = vsel %vm540, %v4856, 0
          %v4897 = vsel %vm540, %v4857, 0
          %v4900 = vsel %vm540, %v4858, 0
          %v4903 = vsel %vm540, %v4859, 0
          %v4906 = vsel %vm540, %v4860, 0
          %v4909 = vsel %vm540, %v4861, 0
          %v4912 = vsel %vm540, %v4862, 0
          %v4915 = vsel %vm540, %v4863, 0
          %4917 = vmatpush.msra.mxu0 0.0
          %4918 = vmatpush.msra.mxu0 0.0
          %4919 = vmatpush.msra.mxu0 0.0
          %4920 = vmatpush.msra.mxu0 0.0
          %4921 = vmatpush.msra.mxu0 0.0
          %4922 = vmatpush.msra.mxu0 0.0
          %4923 = vmatpush.msra.mxu0 0.0
          %4924 = vmatpush.msra.mxu0 0.0
          %4925 = vmatpush.msra.mxu0 0.0
          %4926 = vmatpush.msra.mxu0 0.0
          %4927 = vmatpush.msra.mxu0 0.0
          %4928 = vmatpush.msra.mxu0 0.0
          %4929 = vmatpush.msra.mxu0 %v4868
          %4930 = vmatpush.msra.mxu0 %v4867
          %4931 = vmatpush.msra.mxu0 %v4866
          %4932 = vmatpush.msra.mxu0 %v4865
          %4933 = vmatmul.f32.gmra.mxu0 %v4870
          %v4934 = vpop.f32.mrf.mxu0
          %v4935 = vadd.f32 0.0, %v4934
          %4936 = vmatmul.f32.gmra.mxu0 %v4873
          %v4937 = vpop.f32.mrf.mxu0
          %v4938 = vadd.f32 0.0, %v4937
          %4939 = vmatmul.f32.gmra.mxu0 %v4876
          %v4940 = vpop.f32.mrf.mxu0
          %v4941 = vadd.f32 0.0, %v4940
          %4942 = vmatmul.f32.gmra.mxu0 %v4879
          %v4943 = vpop.f32.mrf.mxu0
          %v4944 = vadd.f32 0.0, %v4943
          %4945 = vmatmul.f32.gmra.mxu0 %v4882
          %v4946 = vpop.f32.mrf.mxu0
          %v4947 = vadd.f32 0.0, %v4946
          %4948 = vmatmul.f32.gmra.mxu0 %v4885
          %v4949 = vpop.f32.mrf.mxu0
          %v4950 = vadd.f32 0.0, %v4949
          %4951 = vmatmul.f32.gmra.mxu0 %v4888
          %v4952 = vpop.f32.mrf.mxu0
          %v4953 = vadd.f32 0.0, %v4952
          %4954 = vmatmul.f32.gmra.mxu0 %v4891
          %v4955 = vpop.f32.mrf.mxu0
          %v4956 = vadd.f32 0.0, %v4955
          %4957 = vmatmul.f32.gmra.mxu0 %v4894
          %v4958 = vpop.f32.mrf.mxu0
          %v4959 = vadd.f32 0.0, %v4958
          %4960 = vmatmul.f32.gmra.mxu0 %v4897
          %v4961 = vpop.f32.mrf.mxu0
          %v4962 = vadd.f32 0.0, %v4961
          %4963 = vmatmul.f32.gmra.mxu0 %v4900
          %v4964 = vpop.f32.mrf.mxu0
          %v4965 = vadd.f32 0.0, %v4964
          %4966 = vmatmul.f32.gmra.mxu0 %v4903
          %v4967 = vpop.f32.mrf.mxu0
          %v4968 = vadd.f32 0.0, %v4967
          %4969 = vmatmul.f32.gmra.mxu0 %v4906
          %v4970 = vpop.f32.mrf.mxu0
          %v4971 = vadd.f32 0.0, %v4970
          %4972 = vmatmul.f32.gmra.mxu0 %v4909
          %v4973 = vpop.f32.mrf.mxu0
          %v4974 = vadd.f32 0.0, %v4973
          %4975 = vmatmul.f32.gmra.mxu0 %v4912
          %v4976 = vpop.f32.mrf.mxu0
          %v4977 = vadd.f32 0.0, %v4976
          %4978 = vmatmul.f32.gmra.mxu0 %v4915
          %v4979 = vpop.f32.mrf.mxu0
          %v4980 = vadd.f32 0.0, %v4979
          %4981 = vdwg.mxu0
          %v4983 = vsel %vm540, %v4826, 0
          %v4986 = vsel %vm540, %v4827, 0
          %v4989 = vsel %vm540, %v4828, 0
          %v4992 = vsel %vm540, %v4829, 0
          %v4995 = vsel %vm540, %v4830, 0
          %v4998 = vsel %vm540, %v4831, 0
          %v5001 = vsel %vm540, %v4832, 0
          %v5004 = vsel %vm540, %v4833, 0
          %v5007 = vsel %vm540, %v4834, 0
          %v5010 = vsel %vm540, %v4835, 0
          %v5013 = vsel %vm540, %v4836, 0
          %v5016 = vsel %vm540, %v4837, 0
          %v5019 = vsel %vm540, %v4838, 0
          %v5022 = vsel %vm540, %v4839, 0
          %v5025 = vsel %vm540, %v4840, 0
          %v5028 = vsel %vm540, %v4841, 0
          %5030 = vmatpush.msra.mxu0 0.0
          %5031 = vmatpush.msra.mxu0 0.0
          %5032 = vmatpush.msra.mxu0 0.0
          %5033 = vmatpush.msra.mxu0 0.0
          %5034 = vmatpush.msra.mxu0 0.0
          %5035 = vmatpush.msra.mxu0 0.0
          %5036 = vmatpush.msra.mxu0 0.0
          %5037 = vmatpush.msra.mxu0 0.0
          %5038 = vmatpush.msra.mxu0 0.0
          %5039 = vmatpush.msra.mxu0 0.0
          %5040 = vmatpush.msra.mxu0 0.0
          %5041 = vmatpush.msra.mxu0 0.0
          %5042 = vmatpush.msra.mxu0 %v4845
          %5043 = vmatpush.msra.mxu0 %v4844
          %5044 = vmatpush.msra.mxu0 %v4843
          %5045 = vmatpush.msra.mxu0 %v4842
          %5046 = vmatmul.f32.gmra.mxu0 %v4983
          %v5047 = vpop.f32.mrf.mxu0
          %v5048 = vadd.f32 %v4935, %v5047
          %5049 = vmatmul.f32.gmra.mxu0 %v4986
          %v5050 = vpop.f32.mrf.mxu0
          %v5051 = vadd.f32 %v4938, %v5050
          %5052 = vmatmul.f32.gmra.mxu0 %v4989
          %v5053 = vpop.f32.mrf.mxu0
          %v5054 = vadd.f32 %v4941, %v5053
          %5055 = vmatmul.f32.gmra.mxu0 %v4992
          %v5056 = vpop.f32.mrf.mxu0
          %v5057 = vadd.f32 %v4944, %v5056
          %5058 = vmatmul.f32.gmra.mxu0 %v4995
          %v5059 = vpop.f32.mrf.mxu0
          %v5060 = vadd.f32 %v4947, %v5059
          %5061 = vmatmul.f32.gmra.mxu0 %v4998
          %v5062 = vpop.f32.mrf.mxu0
          %v5063 = vadd.f32 %v4950, %v5062
          %5064 = vmatmul.f32.gmra.mxu0 %v5001
          %v5065 = vpop.f32.mrf.mxu0
          %v5066 = vadd.f32 %v4953, %v5065
          %5067 = vmatmul.f32.gmra.mxu0 %v5004
          %v5068 = vpop.f32.mrf.mxu0
          %v5069 = vadd.f32 %v4956, %v5068
          %5070 = vmatmul.f32.gmra.mxu0 %v5007
          %v5071 = vpop.f32.mrf.mxu0
          %v5072 = vadd.f32 %v4959, %v5071
          %5073 = vmatmul.f32.gmra.mxu0 %v5010
          %v5074 = vpop.f32.mrf.mxu0
          %v5075 = vadd.f32 %v4962, %v5074
          %5076 = vmatmul.f32.gmra.mxu0 %v5013
          %v5077 = vpop.f32.mrf.mxu0
          %v5078 = vadd.f32 %v4965, %v5077
          %5079 = vmatmul.f32.gmra.mxu0 %v5016
          %v5080 = vpop.f32.mrf.mxu0
          %v5081 = vadd.f32 %v4968, %v5080
          %5082 = vmatmul.f32.gmra.mxu0 %v5019
          %v5083 = vpop.f32.mrf.mxu0
          %v5084 = vadd.f32 %v4971, %v5083
          %5085 = vmatmul.f32.gmra.mxu0 %v5022
          %v5086 = vpop.f32.mrf.mxu0
          %v5087 = vadd.f32 %v4974, %v5086
          %5088 = vmatmul.f32.gmra.mxu0 %v5025
          %v5089 = vpop.f32.mrf.mxu0
          %v5090 = vadd.f32 %v4977, %v5089
          %5091 = vmatmul.f32.gmra.mxu0 %v5028
          %v5092 = vpop.f32.mrf.mxu0
          %v5093 = vadd.f32 %v4980, %v5092
          %5094 = vdwg.mxu0
          %s5095 = sadd.s32 %s4823, 8
          %s5096 = scalar_lea.vmem [#allocation6], %s5095
          %v5097 = vld [vmem:[%s5096] sm:$0xff]
          %v5098 = vld [vmem:[%s5096 + $0x8] sm:$0xff]
          %v5099 = vld [vmem:[%s5096 + $0x10] sm:$0xff]
          %v5100 = vld [vmem:[%s5096 + $0x18] sm:$0xff]
          %v5101 = vld [vmem:[%s5096 + $0x20] sm:$0xff]
          %v5102 = vld [vmem:[%s5096 + $0x28] sm:$0xff]
          %v5103 = vld [vmem:[%s5096 + $0x30] sm:$0xff]
          %v5104 = vld [vmem:[%s5096 + $0x38] sm:$0xff]
          %v5105 = vld [vmem:[%s5096 + $0x40] sm:$0xff]
          %v5106 = vld [vmem:[%s5096 + $0x48] sm:$0xff]
          %v5107 = vld [vmem:[%s5096 + $0x50] sm:$0xff]
          %v5108 = vld [vmem:[%s5096 + $0x58] sm:$0xff]
          %v5109 = vld [vmem:[%s5096 + $0x60] sm:$0xff]
          %v5110 = vld [vmem:[%s5096 + $0x68] sm:$0xff]
          %v5111 = vld [vmem:[%s5096 + $0x70] sm:$0xff]
          %v5112 = vld [vmem:[%s5096 + $0x78] sm:$0xff]
          %s5113 = scalar_lea.vmem %s5, 64
          %v5114 = vld [vmem:[%s5113] sm:$0xff]
          %v5115 = vld [vmem:[%s5113 + $0x8] sm:$0xff]
          %v5116 = vld [vmem:[%s5113 + $0x10] sm:$0xff]
          %v5117 = vld [vmem:[%s5113 + $0x18] sm:$0xff]
          %v5119 = vsel %vm540, %v5097, 0
          %v5122 = vsel %vm540, %v5098, 0
          %v5125 = vsel %vm540, %v5099, 0
          %v5128 = vsel %vm540, %v5100, 0
          %v5131 = vsel %vm540, %v5101, 0
          %v5134 = vsel %vm540, %v5102, 0
          %v5137 = vsel %vm540, %v5103, 0
          %v5140 = vsel %vm540, %v5104, 0
          %v5143 = vsel %vm540, %v5105, 0
          %v5146 = vsel %vm540, %v5106, 0
          %v5149 = vsel %vm540, %v5107, 0
          %v5152 = vsel %vm540, %v5108, 0
          %v5155 = vsel %vm540, %v5109, 0
          %v5158 = vsel %vm540, %v5110, 0
          %v5161 = vsel %vm540, %v5111, 0
          %v5164 = vsel %vm540, %v5112, 0
          %5166 = vmatpush.msra.mxu0 0.0
          %5167 = vmatpush.msra.mxu0 0.0
          %5168 = vmatpush.msra.mxu0 0.0
          %5169 = vmatpush.msra.mxu0 0.0
          %5170 = vmatpush.msra.mxu0 0.0
          %5171 = vmatpush.msra.mxu0 0.0
          %5172 = vmatpush.msra.mxu0 0.0
          %5173 = vmatpush.msra.mxu0 0.0
          %5174 = vmatpush.msra.mxu0 0.0
          %5175 = vmatpush.msra.mxu0 0.0
          %5176 = vmatpush.msra.mxu0 0.0
          %5177 = vmatpush.msra.mxu0 0.0
          %5178 = vmatpush.msra.mxu0 %v5117
          %5179 = vmatpush.msra.mxu0 %v5116
          %5180 = vmatpush.msra.mxu0 %v5115
          %5181 = vmatpush.msra.mxu0 %v5114
          %5182 = vmatmul.f32.gmra.mxu0 %v5119
          %v5183 = vpop.f32.mrf.mxu0
          %v5184 = vadd.f32 0.0, %v5183
          %5185 = vmatmul.f32.gmra.mxu0 %v5122
          %v5186 = vpop.f32.mrf.mxu0
          %v5187 = vadd.f32 0.0, %v5186
          %5188 = vmatmul.f32.gmra.mxu0 %v5125
          %v5189 = vpop.f32.mrf.mxu0
          %v5190 = vadd.f32 0.0, %v5189
          %5191 = vmatmul.f32.gmra.mxu0 %v5128
          %v5192 = vpop.f32.mrf.mxu0
          %v5193 = vadd.f32 0.0, %v5192
          %5194 = vmatmul.f32.gmra.mxu0 %v5131
          %v5195 = vpop.f32.mrf.mxu0
          %v5196 = vadd.f32 0.0, %v5195
          %5197 = vmatmul.f32.gmra.mxu0 %v5134
          %v5198 = vpop.f32.mrf.mxu0
          %v5199 = vadd.f32 0.0, %v5198
          %5200 = vmatmul.f32.gmra.mxu0 %v5137
          %v5201 = vpop.f32.mrf.mxu0
          %v5202 = vadd.f32 0.0, %v5201
          %5203 = vmatmul.f32.gmra.mxu0 %v5140
          %v5204 = vpop.f32.mrf.mxu0
          %v5205 = vadd.f32 0.0, %v5204
          %5206 = vmatmul.f32.gmra.mxu0 %v5143
          %v5207 = vpop.f32.mrf.mxu0
          %v5208 = vadd.f32 0.0, %v5207
          %5209 = vmatmul.f32.gmra.mxu0 %v5146
          %v5210 = vpop.f32.mrf.mxu0
          %v5211 = vadd.f32 0.0, %v5210
          %5212 = vmatmul.f32.gmra.mxu0 %v5149
          %v5213 = vpop.f32.mrf.mxu0
          %v5214 = vadd.f32 0.0, %v5213
          %5215 = vmatmul.f32.gmra.mxu0 %v5152
          %v5216 = vpop.f32.mrf.mxu0
          %v5217 = vadd.f32 0.0, %v5216
          %5218 = vmatmul.f32.gmra.mxu0 %v5155
          %v5219 = vpop.f32.mrf.mxu0
          %v5220 = vadd.f32 0.0, %v5219
          %5221 = vmatmul.f32.gmra.mxu0 %v5158
          %v5222 = vpop.f32.mrf.mxu0
          %v5223 = vadd.f32 0.0, %v5222
          %5224 = vmatmul.f32.gmra.mxu0 %v5161
          %v5225 = vpop.f32.mrf.mxu0
          %v5226 = vadd.f32 0.0, %v5225
          %5227 = vmatmul.f32.gmra.mxu0 %v5164
          %v5228 = vpop.f32.mrf.mxu0
          %v5229 = vadd.f32 0.0, %v5228
          %5230 = vdwg.mxu0
          %v5231 = vadd.f32 %v5048, %v5184
          %v5232 = vadd.f32 %v5051, %v5187
          %v5233 = vadd.f32 %v5054, %v5190
          %v5234 = vadd.f32 %v5057, %v5193
          %v5235 = vadd.f32 %v5060, %v5196
          %v5236 = vadd.f32 %v5063, %v5199
          %v5237 = vadd.f32 %v5066, %v5202
          %v5238 = vadd.f32 %v5069, %v5205
          %v5239 = vadd.f32 %v5072, %v5208
          %v5240 = vadd.f32 %v5075, %v5211
          %v5241 = vadd.f32 %v5078, %v5214
          %v5242 = vadd.f32 %v5081, %v5217
          %v5243 = vadd.f32 %v5084, %v5220
          %v5244 = vadd.f32 %v5087, %v5223
          %v5245 = vadd.f32 %v5090, %v5226
          %v5246 = vadd.f32 %v5093, %v5229
          %s5247 = sadd.s32 %s4823, 38
          %s5248 = scalar_lea.vmem [#allocation6], %s5247
          %v5249 = vld [vmem:[%s5248] sm:$0xff]
          %v5250 = vld [vmem:[%s5248 + $0x8] sm:$0xff]
          %v5251 = vld [vmem:[%s5248 + $0x10] sm:$0xff]
          %v5252 = vld [vmem:[%s5248 + $0x18] sm:$0xff]
          %v5253 = vld [vmem:[%s5248 + $0x20] sm:$0xff]
          %v5254 = vld [vmem:[%s5248 + $0x28] sm:$0xff]
          %v5255 = vld [vmem:[%s5248 + $0x30] sm:$0xff]
          %v5256 = vld [vmem:[%s5248 + $0x38] sm:$0xff]
          %v5257 = vld [vmem:[%s5248 + $0x40] sm:$0xff]
          %v5258 = vld [vmem:[%s5248 + $0x48] sm:$0xff]
          %v5259 = vld [vmem:[%s5248 + $0x50] sm:$0xff]
          %v5260 = vld [vmem:[%s5248 + $0x58] sm:$0xff]
          %v5261 = vld [vmem:[%s5248 + $0x60] sm:$0xff]
          %v5262 = vld [vmem:[%s5248 + $0x68] sm:$0xff]
          %v5263 = vld [vmem:[%s5248 + $0x70] sm:$0xff]
          %v5264 = vld [vmem:[%s5248 + $0x78] sm:$0xff]
          %s5265 = scalar_lea.vmem %s5, 96
          %v5266 = vld [vmem:[%s5265] sm:$0xff]
          %v5267 = vld [vmem:[%s5265 + $0x8] sm:$0xff]
          %v5268 = vld [vmem:[%s5265 + $0x10] sm:$0xff]
          %v5269 = vld [vmem:[%s5265 + $0x18] sm:$0xff]
          %v5271 = vsel %vm540, %v5249, 0
          %v5274 = vsel %vm540, %v5250, 0
          %v5277 = vsel %vm540, %v5251, 0
          %v5280 = vsel %vm540, %v5252, 0
          %v5283 = vsel %vm540, %v5253, 0
          %v5286 = vsel %vm540, %v5254, 0
          %v5289 = vsel %vm540, %v5255, 0
          %v5292 = vsel %vm540, %v5256, 0
          %v5295 = vsel %vm540, %v5257, 0
          %v5298 = vsel %vm540, %v5258, 0
          %v5301 = vsel %vm540, %v5259, 0
          %v5304 = vsel %vm540, %v5260, 0
          %v5307 = vsel %vm540, %v5261, 0
          %v5310 = vsel %vm540, %v5262, 0
          %v5313 = vsel %vm540, %v5263, 0
          %v5316 = vsel %vm540, %v5264, 0
          %5318 = vmatpush.msra.mxu0 0.0
          %5319 = vmatpush.msra.mxu0 0.0
          %5320 = vmatpush.msra.mxu0 0.0
          %5321 = vmatpush.msra.mxu0 0.0
          %5322 = vmatpush.msra.mxu0 0.0
          %5323 = vmatpush.msra.mxu0 0.0
          %5324 = vmatpush.msra.mxu0 0.0
          %5325 = vmatpush.msra.mxu0 0.0
          %5326 = vmatpush.msra.mxu0 0.0
          %5327 = vmatpush.msra.mxu0 0.0
          %5328 = vmatpush.msra.mxu0 0.0
          %5329 = vmatpush.msra.mxu0 0.0
          %5330 = vmatpush.msra.mxu0 %v5269
          %5331 = vmatpush.msra.mxu0 %v5268
          %5332 = vmatpush.msra.mxu0 %v5267
          %5333 = vmatpush.msra.mxu0 %v5266
          %5334 = vmatmul.f32.gmra.mxu0 %v5271
          %v5335 = vpop.f32.mrf.mxu0
          %v5336 = vadd.f32 0.0, %v5335
          %5337 = vmatmul.f32.gmra.mxu0 %v5274
          %v5338 = vpop.f32.mrf.mxu0
          %v5339 = vadd.f32 0.0, %v5338
          %5340 = vmatmul.f32.gmra.mxu0 %v5277
          %v5341 = vpop.f32.mrf.mxu0
          %v5342 = vadd.f32 0.0, %v5341
          %5343 = vmatmul.f32.gmra.mxu0 %v5280
          %v5344 = vpop.f32.mrf.mxu0
          %v5345 = vadd.f32 0.0, %v5344
          %5346 = vmatmul.f32.gmra.mxu0 %v5283
          %v5347 = vpop.f32.mrf.mxu0
          %v5348 = vadd.f32 0.0, %v5347
          %5349 = vmatmul.f32.gmra.mxu0 %v5286
          %v5350 = vpop.f32.mrf.mxu0
          %v5351 = vadd.f32 0.0, %v5350
          %5352 = vmatmul.f32.gmra.mxu0 %v5289
          %v5353 = vpop.f32.mrf.mxu0
          %v5354 = vadd.f32 0.0, %v5353
          %5355 = vmatmul.f32.gmra.mxu0 %v5292
          %v5356 = vpop.f32.mrf.mxu0
          %v5357 = vadd.f32 0.0, %v5356
          %5358 = vmatmul.f32.gmra.mxu0 %v5295
          %v5359 = vpop.f32.mrf.mxu0
          %v5360 = vadd.f32 0.0, %v5359
          %5361 = vmatmul.f32.gmra.mxu0 %v5298
          %v5362 = vpop.f32.mrf.mxu0
          %v5363 = vadd.f32 0.0, %v5362
          %5364 = vmatmul.f32.gmra.mxu0 %v5301
          %v5365 = vpop.f32.mrf.mxu0
          %v5366 = vadd.f32 0.0, %v5365
          %5367 = vmatmul.f32.gmra.mxu0 %v5304
          %v5368 = vpop.f32.mrf.mxu0
          %v5369 = vadd.f32 0.0, %v5368
          %5370 = vmatmul.f32.gmra.mxu0 %v5307
          %v5371 = vpop.f32.mrf.mxu0
          %v5372 = vadd.f32 0.0, %v5371
          %5373 = vmatmul.f32.gmra.mxu0 %v5310
          %v5374 = vpop.f32.mrf.mxu0
          %v5375 = vadd.f32 0.0, %v5374
          %5376 = vmatmul.f32.gmra.mxu0 %v5313
          %v5377 = vpop.f32.mrf.mxu0
          %v5378 = vadd.f32 0.0, %v5377
          %5379 = vmatmul.f32.gmra.mxu0 %v5316
          %v5380 = vpop.f32.mrf.mxu0
          %v5381 = vadd.f32 0.0, %v5380
          %5382 = vdwg.mxu0
          %v5383 = vadd.f32 %v5231, %v5336
          %v5384 = vadd.f32 %v5232, %v5339
          %v5385 = vadd.f32 %v5233, %v5342
          %v5386 = vadd.f32 %v5234, %v5345
          %v5387 = vadd.f32 %v5235, %v5348
          %v5388 = vadd.f32 %v5236, %v5351
          %v5389 = vadd.f32 %v5237, %v5354
          %v5390 = vadd.f32 %v5238, %v5357
          %v5391 = vadd.f32 %v5239, %v5360
          %v5392 = vadd.f32 %v5240, %v5363
          %v5393 = vadd.f32 %v5241, %v5366
          %v5394 = vadd.f32 %v5242, %v5369
          %v5395 = vadd.f32 %v5243, %v5372
          %v5396 = vadd.f32 %v5244, %v5375
          %v5397 = vadd.f32 %v5245, %v5378
          %v5398 = vadd.f32 %v5246, %v5381
          %s5399 = sadd.s32 %s4823, 39
          %s5400 = scalar_lea.vmem [#allocation6], %s5399
          %v5401 = vld [vmem:[%s5400] sm:$0xff]
          %v5402 = vld [vmem:[%s5400 + $0x8] sm:$0xff]
          %v5403 = vld [vmem:[%s5400 + $0x10] sm:$0xff]
          %v5404 = vld [vmem:[%s5400 + $0x18] sm:$0xff]
          %v5405 = vld [vmem:[%s5400 + $0x20] sm:$0xff]
          %v5406 = vld [vmem:[%s5400 + $0x28] sm:$0xff]
          %v5407 = vld [vmem:[%s5400 + $0x30] sm:$0xff]
          %v5408 = vld [vmem:[%s5400 + $0x38] sm:$0xff]
          %v5409 = vld [vmem:[%s5400 + $0x40] sm:$0xff]
          %v5410 = vld [vmem:[%s5400 + $0x48] sm:$0xff]
          %v5411 = vld [vmem:[%s5400 + $0x50] sm:$0xff]
          %v5412 = vld [vmem:[%s5400 + $0x58] sm:$0xff]
          %v5413 = vld [vmem:[%s5400 + $0x60] sm:$0xff]
          %v5414 = vld [vmem:[%s5400 + $0x68] sm:$0xff]
          %v5415 = vld [vmem:[%s5400 + $0x70] sm:$0xff]
          %v5416 = vld [vmem:[%s5400 + $0x78] sm:$0xff]
          %s5417 = scalar_lea.vmem %s5, 128
          %v5418 = vld [vmem:[%s5417] sm:$0xff]
          %v5419 = vld [vmem:[%s5417 + $0x8] sm:$0xff]
          %v5420 = vld [vmem:[%s5417 + $0x10] sm:$0xff]
          %v5421 = vld [vmem:[%s5417 + $0x18] sm:$0xff]
          %v5423 = vsel %vm540, %v5401, 0
          %v5426 = vsel %vm540, %v5402, 0
          %v5429 = vsel %vm540, %v5403, 0
          %v5432 = vsel %vm540, %v5404, 0
          %v5435 = vsel %vm540, %v5405, 0
          %v5438 = vsel %vm540, %v5406, 0
          %v5441 = vsel %vm540, %v5407, 0
          %v5444 = vsel %vm540, %v5408, 0
          %v5447 = vsel %vm540, %v5409, 0
          %v5450 = vsel %vm540, %v5410, 0
          %v5453 = vsel %vm540, %v5411, 0
          %v5456 = vsel %vm540, %v5412, 0
          %v5459 = vsel %vm540, %v5413, 0
          %v5462 = vsel %vm540, %v5414, 0
          %v5465 = vsel %vm540, %v5415, 0
          %v5468 = vsel %vm540, %v5416, 0
          %5470 = vmatpush.msra.mxu0 0.0
          %5471 = vmatpush.msra.mxu0 0.0
          %5472 = vmatpush.msra.mxu0 0.0
          %5473 = vmatpush.msra.mxu0 0.0
          %5474 = vmatpush.msra.mxu0 0.0
          %5475 = vmatpush.msra.mxu0 0.0
          %5476 = vmatpush.msra.mxu0 0.0
          %5477 = vmatpush.msra.mxu0 0.0
          %5478 = vmatpush.msra.mxu0 0.0
          %5479 = vmatpush.msra.mxu0 0.0
          %5480 = vmatpush.msra.mxu0 0.0
          %5481 = vmatpush.msra.mxu0 0.0
          %5482 = vmatpush.msra.mxu0 %v5421
          %5483 = vmatpush.msra.mxu0 %v5420
          %5484 = vmatpush.msra.mxu0 %v5419
          %5485 = vmatpush.msra.mxu0 %v5418
          %5486 = vmatmul.f32.gmra.mxu0 %v5423
          %v5487 = vpop.f32.mrf.mxu0
          %v5488 = vadd.f32 0.0, %v5487
          %5489 = vmatmul.f32.gmra.mxu0 %v5426
          %v5490 = vpop.f32.mrf.mxu0
          %v5491 = vadd.f32 0.0, %v5490
          %5492 = vmatmul.f32.gmra.mxu0 %v5429
          %v5493 = vpop.f32.mrf.mxu0
          %v5494 = vadd.f32 0.0, %v5493
          %5495 = vmatmul.f32.gmra.mxu0 %v5432
          %v5496 = vpop.f32.mrf.mxu0
          %v5497 = vadd.f32 0.0, %v5496
          %5498 = vmatmul.f32.gmra.mxu0 %v5435
          %v5499 = vpop.f32.mrf.mxu0
          %v5500 = vadd.f32 0.0, %v5499
          %5501 = vmatmul.f32.gmra.mxu0 %v5438
          %v5502 = vpop.f32.mrf.mxu0
          %v5503 = vadd.f32 0.0, %v5502
          %5504 = vmatmul.f32.gmra.mxu0 %v5441
          %v5505 = vpop.f32.mrf.mxu0
          %v5506 = vadd.f32 0.0, %v5505
          %5507 = vmatmul.f32.gmra.mxu0 %v5444
          %v5508 = vpop.f32.mrf.mxu0
          %v5509 = vadd.f32 0.0, %v5508
          %5510 = vmatmul.f32.gmra.mxu0 %v5447
          %v5511 = vpop.f32.mrf.mxu0
          %v5512 = vadd.f32 0.0, %v5511
          %5513 = vmatmul.f32.gmra.mxu0 %v5450
          %v5514 = vpop.f32.mrf.mxu0
          %v5515 = vadd.f32 0.0, %v5514
          %5516 = vmatmul.f32.gmra.mxu0 %v5453
          %v5517 = vpop.f32.mrf.mxu0
          %v5518 = vadd.f32 0.0, %v5517
          %5519 = vmatmul.f32.gmra.mxu0 %v5456
          %v5520 = vpop.f32.mrf.mxu0
          %v5521 = vadd.f32 0.0, %v5520
          %5522 = vmatmul.f32.gmra.mxu0 %v5459
          %v5523 = vpop.f32.mrf.mxu0
          %v5524 = vadd.f32 0.0, %v5523
          %5525 = vmatmul.f32.gmra.mxu0 %v5462
          %v5526 = vpop.f32.mrf.mxu0
          %v5527 = vadd.f32 0.0, %v5526
          %5528 = vmatmul.f32.gmra.mxu0 %v5465
          %v5529 = vpop.f32.mrf.mxu0
          %v5530 = vadd.f32 0.0, %v5529
          %5531 = vmatmul.f32.gmra.mxu0 %v5468
          %v5532 = vpop.f32.mrf.mxu0
          %v5533 = vadd.f32 0.0, %v5532
          %5534 = vdwg.mxu0
          %v5535 = vadd.f32 %v5383, %v5488
          %v5536 = vadd.f32 %v5384, %v5491
          %v5537 = vadd.f32 %v5385, %v5494
          %v5538 = vadd.f32 %v5386, %v5497
          %v5539 = vadd.f32 %v5387, %v5500
          %v5540 = vadd.f32 %v5388, %v5503
          %v5541 = vadd.f32 %v5389, %v5506
          %v5542 = vadd.f32 %v5390, %v5509
          %v5543 = vadd.f32 %v5391, %v5512
          %v5544 = vadd.f32 %v5392, %v5515
          %v5545 = vadd.f32 %v5393, %v5518
          %v5546 = vadd.f32 %v5394, %v5521
          %v5547 = vadd.f32 %v5395, %v5524
          %v5548 = vadd.f32 %v5396, %v5527
          %v5549 = vadd.f32 %v5397, %v5530
          %v5550 = vadd.f32 %v5398, %v5533
          %s5551 = sadd.s32 %s4823, 40
          %s5552 = scalar_lea.vmem [#allocation6], %s5551
          %v5553 = vld [vmem:[%s5552] sm:$0xff]
          %v5554 = vld [vmem:[%s5552 + $0x8] sm:$0xff]
          %v5555 = vld [vmem:[%s5552 + $0x10] sm:$0xff]
          %v5556 = vld [vmem:[%s5552 + $0x18] sm:$0xff]
          %v5557 = vld [vmem:[%s5552 + $0x20] sm:$0xff]
          %v5558 = vld [vmem:[%s5552 + $0x28] sm:$0xff]
          %v5559 = vld [vmem:[%s5552 + $0x30] sm:$0xff]
          %v5560 = vld [vmem:[%s5552 + $0x38] sm:$0xff]
          %v5561 = vld [vmem:[%s5552 + $0x40] sm:$0xff]
          %v5562 = vld [vmem:[%s5552 + $0x48] sm:$0xff]
          %v5563 = vld [vmem:[%s5552 + $0x50] sm:$0xff]
          %v5564 = vld [vmem:[%s5552 + $0x58] sm:$0xff]
          %v5565 = vld [vmem:[%s5552 + $0x60] sm:$0xff]
          %v5566 = vld [vmem:[%s5552 + $0x68] sm:$0xff]
          %v5567 = vld [vmem:[%s5552 + $0x70] sm:$0xff]
          %v5568 = vld [vmem:[%s5552 + $0x78] sm:$0xff]
          %s5569 = scalar_lea.vmem %s5, 160
          %v5570 = vld [vmem:[%s5569] sm:$0xff]
          %v5571 = vld [vmem:[%s5569 + $0x8] sm:$0xff]
          %v5572 = vld [vmem:[%s5569 + $0x10] sm:$0xff]
          %v5573 = vld [vmem:[%s5569 + $0x18] sm:$0xff]
          %v5575 = vsel %vm540, %v5553, 0
          %v5578 = vsel %vm540, %v5554, 0
          %v5581 = vsel %vm540, %v5555, 0
          %v5584 = vsel %vm540, %v5556, 0
          %v5587 = vsel %vm540, %v5557, 0
          %v5590 = vsel %vm540, %v5558, 0
          %v5593 = vsel %vm540, %v5559, 0
          %v5596 = vsel %vm540, %v5560, 0
          %v5599 = vsel %vm540, %v5561, 0
          %v5602 = vsel %vm540, %v5562, 0
          %v5605 = vsel %vm540, %v5563, 0
          %v5608 = vsel %vm540, %v5564, 0
          %v5611 = vsel %vm540, %v5565, 0
          %v5614 = vsel %vm540, %v5566, 0
          %v5617 = vsel %vm540, %v5567, 0
          %v5620 = vsel %vm540, %v5568, 0
          %5622 = vmatpush.msra.mxu0 0.0
          %5623 = vmatpush.msra.mxu0 0.0
          %5624 = vmatpush.msra.mxu0 0.0
          %5625 = vmatpush.msra.mxu0 0.0
          %5626 = vmatpush.msra.mxu0 0.0
          %5627 = vmatpush.msra.mxu0 0.0
          %5628 = vmatpush.msra.mxu0 0.0
          %5629 = vmatpush.msra.mxu0 0.0
          %5630 = vmatpush.msra.mxu0 0.0
          %5631 = vmatpush.msra.mxu0 0.0
          %5632 = vmatpush.msra.mxu0 0.0
          %5633 = vmatpush.msra.mxu0 0.0
          %5634 = vmatpush.msra.mxu0 %v5573
          %5635 = vmatpush.msra.mxu0 %v5572
          %5636 = vmatpush.msra.mxu0 %v5571
          %5637 = vmatpush.msra.mxu0 %v5570
          %5638 = vmatmul.f32.gmra.mxu0 %v5575
          %v5639 = vpop.f32.mrf.mxu0
          %v5640 = vadd.f32 0.0, %v5639
          %5641 = vmatmul.f32.gmra.mxu0 %v5578
          %v5642 = vpop.f32.mrf.mxu0
          %v5643 = vadd.f32 0.0, %v5642
          %5644 = vmatmul.f32.gmra.mxu0 %v5581
          %v5645 = vpop.f32.mrf.mxu0
          %v5646 = vadd.f32 0.0, %v5645
          %5647 = vmatmul.f32.gmra.mxu0 %v5584
          %v5648 = vpop.f32.mrf.mxu0
          %v5649 = vadd.f32 0.0, %v5648
          %5650 = vmatmul.f32.gmra.mxu0 %v5587
          %v5651 = vpop.f32.mrf.mxu0
          %v5652 = vadd.f32 0.0, %v5651
          %5653 = vmatmul.f32.gmra.mxu0 %v5590
          %v5654 = vpop.f32.mrf.mxu0
          %v5655 = vadd.f32 0.0, %v5654
          %5656 = vmatmul.f32.gmra.mxu0 %v5593
          %v5657 = vpop.f32.mrf.mxu0
          %v5658 = vadd.f32 0.0, %v5657
          %5659 = vmatmul.f32.gmra.mxu0 %v5596
          %v5660 = vpop.f32.mrf.mxu0
          %v5661 = vadd.f32 0.0, %v5660
          %5662 = vmatmul.f32.gmra.mxu0 %v5599
          %v5663 = vpop.f32.mrf.mxu0
          %v5664 = vadd.f32 0.0, %v5663
          %5665 = vmatmul.f32.gmra.mxu0 %v5602
          %v5666 = vpop.f32.mrf.mxu0
          %v5667 = vadd.f32 0.0, %v5666
          %5668 = vmatmul.f32.gmra.mxu0 %v5605
          %v5669 = vpop.f32.mrf.mxu0
          %v5670 = vadd.f32 0.0, %v5669
          %5671 = vmatmul.f32.gmra.mxu0 %v5608
          %v5672 = vpop.f32.mrf.mxu0
          %v5673 = vadd.f32 0.0, %v5672
          %5674 = vmatmul.f32.gmra.mxu0 %v5611
          %v5675 = vpop.f32.mrf.mxu0
          %v5676 = vadd.f32 0.0, %v5675
          %5677 = vmatmul.f32.gmra.mxu0 %v5614
          %v5678 = vpop.f32.mrf.mxu0
          %v5679 = vadd.f32 0.0, %v5678
          %5680 = vmatmul.f32.gmra.mxu0 %v5617
          %v5681 = vpop.f32.mrf.mxu0
          %v5682 = vadd.f32 0.0, %v5681
          %5683 = vmatmul.f32.gmra.mxu0 %v5620
          %v5684 = vpop.f32.mrf.mxu0
          %v5685 = vadd.f32 0.0, %v5684
          %5686 = vdwg.mxu0
          %v5687 = vadd.f32 %v5535, %v5640
          %v5688 = vadd.f32 %v5536, %v5643
          %v5689 = vadd.f32 %v5537, %v5646
          %v5690 = vadd.f32 %v5538, %v5649
          %v5691 = vadd.f32 %v5539, %v5652
          %v5692 = vadd.f32 %v5540, %v5655
          %v5693 = vadd.f32 %v5541, %v5658
          %v5694 = vadd.f32 %v5542, %v5661
          %v5695 = vadd.f32 %v5543, %v5664
          %v5696 = vadd.f32 %v5544, %v5667
          %v5697 = vadd.f32 %v5545, %v5670
          %v5698 = vadd.f32 %v5546, %v5673
          %v5699 = vadd.f32 %v5547, %v5676
          %v5700 = vadd.f32 %v5548, %v5679
          %v5701 = vadd.f32 %v5549, %v5682
          %v5702 = vadd.f32 %v5550, %v5685
          %s5703 = sadd.s32 %s4823, 70
          %s5704 = scalar_lea.vmem [#allocation6], %s5703
          %v5705 = vld [vmem:[%s5704] sm:$0xff]
          %v5706 = vld [vmem:[%s5704 + $0x8] sm:$0xff]
          %v5707 = vld [vmem:[%s5704 + $0x10] sm:$0xff]
          %v5708 = vld [vmem:[%s5704 + $0x18] sm:$0xff]
          %v5709 = vld [vmem:[%s5704 + $0x20] sm:$0xff]
          %v5710 = vld [vmem:[%s5704 + $0x28] sm:$0xff]
          %v5711 = vld [vmem:[%s5704 + $0x30] sm:$0xff]
          %v5712 = vld [vmem:[%s5704 + $0x38] sm:$0xff]
          %v5713 = vld [vmem:[%s5704 + $0x40] sm:$0xff]
          %v5714 = vld [vmem:[%s5704 + $0x48] sm:$0xff]
          %v5715 = vld [vmem:[%s5704 + $0x50] sm:$0xff]
          %v5716 = vld [vmem:[%s5704 + $0x58] sm:$0xff]
          %v5717 = vld [vmem:[%s5704 + $0x60] sm:$0xff]
          %v5718 = vld [vmem:[%s5704 + $0x68] sm:$0xff]
          %v5719 = vld [vmem:[%s5704 + $0x70] sm:$0xff]
          %v5720 = vld [vmem:[%s5704 + $0x78] sm:$0xff]
          %s5721 = scalar_lea.vmem %s5, 192
          %v5722 = vld [vmem:[%s5721] sm:$0xff]
          %v5723 = vld [vmem:[%s5721 + $0x8] sm:$0xff]
          %v5724 = vld [vmem:[%s5721 + $0x10] sm:$0xff]
          %v5725 = vld [vmem:[%s5721 + $0x18] sm:$0xff]
          %v5727 = vsel %vm540, %v5705, 0
          %v5730 = vsel %vm540, %v5706, 0
          %v5733 = vsel %vm540, %v5707, 0
          %v5736 = vsel %vm540, %v5708, 0
          %v5739 = vsel %vm540, %v5709, 0
          %v5742 = vsel %vm540, %v5710, 0
          %v5745 = vsel %vm540, %v5711, 0
          %v5748 = vsel %vm540, %v5712, 0
          %v5751 = vsel %vm540, %v5713, 0
          %v5754 = vsel %vm540, %v5714, 0
          %v5757 = vsel %vm540, %v5715, 0
          %v5760 = vsel %vm540, %v5716, 0
          %v5763 = vsel %vm540, %v5717, 0
          %v5766 = vsel %vm540, %v5718, 0
          %v5769 = vsel %vm540, %v5719, 0
          %v5772 = vsel %vm540, %v5720, 0
          %5774 = vmatpush.msra.mxu0 0.0
          %5775 = vmatpush.msra.mxu0 0.0
          %5776 = vmatpush.msra.mxu0 0.0
          %5777 = vmatpush.msra.mxu0 0.0
          %5778 = vmatpush.msra.mxu0 0.0
          %5779 = vmatpush.msra.mxu0 0.0
          %5780 = vmatpush.msra.mxu0 0.0
          %5781 = vmatpush.msra.mxu0 0.0
          %5782 = vmatpush.msra.mxu0 0.0
          %5783 = vmatpush.msra.mxu0 0.0
          %5784 = vmatpush.msra.mxu0 0.0
          %5785 = vmatpush.msra.mxu0 0.0
          %5786 = vmatpush.msra.mxu0 %v5725
          %5787 = vmatpush.msra.mxu0 %v5724
          %5788 = vmatpush.msra.mxu0 %v5723
          %5789 = vmatpush.msra.mxu0 %v5722
          %5790 = vmatmul.f32.gmra.mxu0 %v5727
          %v5791 = vpop.f32.mrf.mxu0
          %v5792 = vadd.f32 0.0, %v5791
          %5793 = vmatmul.f32.gmra.mxu0 %v5730
          %v5794 = vpop.f32.mrf.mxu0
          %v5795 = vadd.f32 0.0, %v5794
          %5796 = vmatmul.f32.gmra.mxu0 %v5733
          %v5797 = vpop.f32.mrf.mxu0
          %v5798 = vadd.f32 0.0, %v5797
          %5799 = vmatmul.f32.gmra.mxu0 %v5736
          %v5800 = vpop.f32.mrf.mxu0
          %v5801 = vadd.f32 0.0, %v5800
          %5802 = vmatmul.f32.gmra.mxu0 %v5739
          %v5803 = vpop.f32.mrf.mxu0
          %v5804 = vadd.f32 0.0, %v5803
          %5805 = vmatmul.f32.gmra.mxu0 %v5742
          %v5806 = vpop.f32.mrf.mxu0
          %v5807 = vadd.f32 0.0, %v5806
          %5808 = vmatmul.f32.gmra.mxu0 %v5745
          %v5809 = vpop.f32.mrf.mxu0
          %v5810 = vadd.f32 0.0, %v5809
          %5811 = vmatmul.f32.gmra.mxu0 %v5748
          %v5812 = vpop.f32.mrf.mxu0
          %v5813 = vadd.f32 0.0, %v5812
          %5814 = vmatmul.f32.gmra.mxu0 %v5751
          %v5815 = vpop.f32.mrf.mxu0
          %v5816 = vadd.f32 0.0, %v5815
          %5817 = vmatmul.f32.gmra.mxu0 %v5754
          %v5818 = vpop.f32.mrf.mxu0
          %v5819 = vadd.f32 0.0, %v5818
          %5820 = vmatmul.f32.gmra.mxu0 %v5757
          %v5821 = vpop.f32.mrf.mxu0
          %v5822 = vadd.f32 0.0, %v5821
          %5823 = vmatmul.f32.gmra.mxu0 %v5760
          %v5824 = vpop.f32.mrf.mxu0
          %v5825 = vadd.f32 0.0, %v5824
          %5826 = vmatmul.f32.gmra.mxu0 %v5763
          %v5827 = vpop.f32.mrf.mxu0
          %v5828 = vadd.f32 0.0, %v5827
          %5829 = vmatmul.f32.gmra.mxu0 %v5766
          %v5830 = vpop.f32.mrf.mxu0
          %v5831 = vadd.f32 0.0, %v5830
          %5832 = vmatmul.f32.gmra.mxu0 %v5769
          %v5833 = vpop.f32.mrf.mxu0
          %v5834 = vadd.f32 0.0, %v5833
          %5835 = vmatmul.f32.gmra.mxu0 %v5772
          %v5836 = vpop.f32.mrf.mxu0
          %v5837 = vadd.f32 0.0, %v5836
          %5838 = vdwg.mxu0
          %v5839 = vadd.f32 %v5687, %v5792
          %v5840 = vadd.f32 %v5688, %v5795
          %v5841 = vadd.f32 %v5689, %v5798
          %v5842 = vadd.f32 %v5690, %v5801
          %v5843 = vadd.f32 %v5691, %v5804
          %v5844 = vadd.f32 %v5692, %v5807
          %v5845 = vadd.f32 %v5693, %v5810
          %v5846 = vadd.f32 %v5694, %v5813
          %v5847 = vadd.f32 %v5695, %v5816
          %v5848 = vadd.f32 %v5696, %v5819
          %v5849 = vadd.f32 %v5697, %v5822
          %v5850 = vadd.f32 %v5698, %v5825
          %v5851 = vadd.f32 %v5699, %v5828
          %v5852 = vadd.f32 %v5700, %v5831
          %v5853 = vadd.f32 %v5701, %v5834
          %v5854 = vadd.f32 %v5702, %v5837
          %s5855 = sadd.s32 %s4823, 71
          %s5856 = scalar_lea.vmem [#allocation6], %s5855
          %v5857 = vld [vmem:[%s5856] sm:$0xff]
          %v5858 = vld [vmem:[%s5856 + $0x8] sm:$0xff]
          %v5859 = vld [vmem:[%s5856 + $0x10] sm:$0xff]
          %v5860 = vld [vmem:[%s5856 + $0x18] sm:$0xff]
          %v5861 = vld [vmem:[%s5856 + $0x20] sm:$0xff]
          %v5862 = vld [vmem:[%s5856 + $0x28] sm:$0xff]
          %v5863 = vld [vmem:[%s5856 + $0x30] sm:$0xff]
          %v5864 = vld [vmem:[%s5856 + $0x38] sm:$0xff]
          %v5865 = vld [vmem:[%s5856 + $0x40] sm:$0xff]
          %v5866 = vld [vmem:[%s5856 + $0x48] sm:$0xff]
          %v5867 = vld [vmem:[%s5856 + $0x50] sm:$0xff]
          %v5868 = vld [vmem:[%s5856 + $0x58] sm:$0xff]
          %v5869 = vld [vmem:[%s5856 + $0x60] sm:$0xff]
          %v5870 = vld [vmem:[%s5856 + $0x68] sm:$0xff]
          %v5871 = vld [vmem:[%s5856 + $0x70] sm:$0xff]
          %v5872 = vld [vmem:[%s5856 + $0x78] sm:$0xff]
          %s5873 = scalar_lea.vmem %s5, 224
          %v5874 = vld [vmem:[%s5873] sm:$0xff]
          %v5875 = vld [vmem:[%s5873 + $0x8] sm:$0xff]
          %v5876 = vld [vmem:[%s5873 + $0x10] sm:$0xff]
          %v5877 = vld [vmem:[%s5873 + $0x18] sm:$0xff]
          %v5879 = vsel %vm540, %v5857, 0
          %v5882 = vsel %vm540, %v5858, 0
          %v5885 = vsel %vm540, %v5859, 0
          %v5888 = vsel %vm540, %v5860, 0
          %v5891 = vsel %vm540, %v5861, 0
          %v5894 = vsel %vm540, %v5862, 0
          %v5897 = vsel %vm540, %v5863, 0
          %v5900 = vsel %vm540, %v5864, 0
          %v5903 = vsel %vm540, %v5865, 0
          %v5906 = vsel %vm540, %v5866, 0
          %v5909 = vsel %vm540, %v5867, 0
          %v5912 = vsel %vm540, %v5868, 0
          %v5915 = vsel %vm540, %v5869, 0
          %v5918 = vsel %vm540, %v5870, 0
          %v5921 = vsel %vm540, %v5871, 0
          %v5924 = vsel %vm540, %v5872, 0
          %5926 = vmatpush.msra.mxu0 0.0
          %5927 = vmatpush.msra.mxu0 0.0
          %5928 = vmatpush.msra.mxu0 0.0
          %5929 = vmatpush.msra.mxu0 0.0
          %5930 = vmatpush.msra.mxu0 0.0
          %5931 = vmatpush.msra.mxu0 0.0
          %5932 = vmatpush.msra.mxu0 0.0
          %5933 = vmatpush.msra.mxu0 0.0
          %5934 = vmatpush.msra.mxu0 0.0
          %5935 = vmatpush.msra.mxu0 0.0
          %5936 = vmatpush.msra.mxu0 0.0
          %5937 = vmatpush.msra.mxu0 0.0
          %5938 = vmatpush.msra.mxu0 %v5877
          %5939 = vmatpush.msra.mxu0 %v5876
          %5940 = vmatpush.msra.mxu0 %v5875
          %5941 = vmatpush.msra.mxu0 %v5874
          %5942 = vmatmul.f32.gmra.mxu0 %v5879
          %v5943 = vpop.f32.mrf.mxu0
          %v5944 = vadd.f32 0.0, %v5943
          %5945 = vmatmul.f32.gmra.mxu0 %v5882
          %v5946 = vpop.f32.mrf.mxu0
          %v5947 = vadd.f32 0.0, %v5946
          %5948 = vmatmul.f32.gmra.mxu0 %v5885
          %v5949 = vpop.f32.mrf.mxu0
          %v5950 = vadd.f32 0.0, %v5949
          %5951 = vmatmul.f32.gmra.mxu0 %v5888
          %v5952 = vpop.f32.mrf.mxu0
          %v5953 = vadd.f32 0.0, %v5952
          %5954 = vmatmul.f32.gmra.mxu0 %v5891
          %v5955 = vpop.f32.mrf.mxu0
          %v5956 = vadd.f32 0.0, %v5955
          %5957 = vmatmul.f32.gmra.mxu0 %v5894
          %v5958 = vpop.f32.mrf.mxu0
          %v5959 = vadd.f32 0.0, %v5958
          %5960 = vmatmul.f32.gmra.mxu0 %v5897
          %v5961 = vpop.f32.mrf.mxu0
          %v5962 = vadd.f32 0.0, %v5961
          %5963 = vmatmul.f32.gmra.mxu0 %v5900
          %v5964 = vpop.f32.mrf.mxu0
          %v5965 = vadd.f32 0.0, %v5964
          %5966 = vmatmul.f32.gmra.mxu0 %v5903
          %v5967 = vpop.f32.mrf.mxu0
          %v5968 = vadd.f32 0.0, %v5967
          %5969 = vmatmul.f32.gmra.mxu0 %v5906
          %v5970 = vpop.f32.mrf.mxu0
          %v5971 = vadd.f32 0.0, %v5970
          %5972 = vmatmul.f32.gmra.mxu0 %v5909
          %v5973 = vpop.f32.mrf.mxu0
          %v5974 = vadd.f32 0.0, %v5973
          %5975 = vmatmul.f32.gmra.mxu0 %v5912
          %v5976 = vpop.f32.mrf.mxu0
          %v5977 = vadd.f32 0.0, %v5976
          %5978 = vmatmul.f32.gmra.mxu0 %v5915
          %v5979 = vpop.f32.mrf.mxu0
          %v5980 = vadd.f32 0.0, %v5979
          %5981 = vmatmul.f32.gmra.mxu0 %v5918
          %v5982 = vpop.f32.mrf.mxu0
          %v5983 = vadd.f32 0.0, %v5982
          %5984 = vmatmul.f32.gmra.mxu0 %v5921
          %v5985 = vpop.f32.mrf.mxu0
          %v5986 = vadd.f32 0.0, %v5985
          %5987 = vmatmul.f32.gmra.mxu0 %v5924
          %v5988 = vpop.f32.mrf.mxu0
          %v5989 = vadd.f32 0.0, %v5988
          %5990 = vdwg.mxu0
          %v5991 = vadd.f32 %v5839, %v5944
          %v5992 = vadd.f32 %v5840, %v5947
          %v5993 = vadd.f32 %v5841, %v5950
          %v5994 = vadd.f32 %v5842, %v5953
          %v5995 = vadd.f32 %v5843, %v5956
          %v5996 = vadd.f32 %v5844, %v5959
          %v5997 = vadd.f32 %v5845, %v5962
          %v5998 = vadd.f32 %v5846, %v5965
          %v5999 = vadd.f32 %v5847, %v5968
          %v6000 = vadd.f32 %v5848, %v5971
          %v6001 = vadd.f32 %v5849, %v5974
          %v6002 = vadd.f32 %v5850, %v5977
          %v6003 = vadd.f32 %v5851, %v5980
          %v6004 = vadd.f32 %v5852, %v5983
          %v6005 = vadd.f32 %v5853, %v5986
          %v6006 = vadd.f32 %v5854, %v5989
          %s6007 = sadd.s32 %s4823, 72
          %s6008 = scalar_lea.vmem [#allocation6], %s6007
          %v6009 = vld [vmem:[%s6008] sm:$0xff]
          %v6010 = vld [vmem:[%s6008 + $0x8] sm:$0xff]
          %v6011 = vld [vmem:[%s6008 + $0x10] sm:$0xff]
          %v6012 = vld [vmem:[%s6008 + $0x18] sm:$0xff]
          %v6013 = vld [vmem:[%s6008 + $0x20] sm:$0xff]
          %v6014 = vld [vmem:[%s6008 + $0x28] sm:$0xff]
          %v6015 = vld [vmem:[%s6008 + $0x30] sm:$0xff]
          %v6016 = vld [vmem:[%s6008 + $0x38] sm:$0xff]
          %v6017 = vld [vmem:[%s6008 + $0x40] sm:$0xff]
          %v6018 = vld [vmem:[%s6008 + $0x48] sm:$0xff]
          %v6019 = vld [vmem:[%s6008 + $0x50] sm:$0xff]
          %v6020 = vld [vmem:[%s6008 + $0x58] sm:$0xff]
          %v6021 = vld [vmem:[%s6008 + $0x60] sm:$0xff]
          %v6022 = vld [vmem:[%s6008 + $0x68] sm:$0xff]
          %v6023 = vld [vmem:[%s6008 + $0x70] sm:$0xff]
          %v6024 = vld [vmem:[%s6008 + $0x78] sm:$0xff]
          %s6025 = scalar_lea.vmem %s5, 256
          %v6026 = vld [vmem:[%s6025] sm:$0xff]
          %v6027 = vld [vmem:[%s6025 + $0x8] sm:$0xff]
          %v6028 = vld [vmem:[%s6025 + $0x10] sm:$0xff]
          %v6029 = vld [vmem:[%s6025 + $0x18] sm:$0xff]
          %v6031 = vsel %vm540, %v6009, 0
          %v6034 = vsel %vm540, %v6010, 0
          %v6037 = vsel %vm540, %v6011, 0
          %v6040 = vsel %vm540, %v6012, 0
          %v6043 = vsel %vm540, %v6013, 0
          %v6046 = vsel %vm540, %v6014, 0
          %v6049 = vsel %vm540, %v6015, 0
          %v6052 = vsel %vm540, %v6016, 0
          %v6055 = vsel %vm540, %v6017, 0
          %v6058 = vsel %vm540, %v6018, 0
          %v6061 = vsel %vm540, %v6019, 0
          %v6064 = vsel %vm540, %v6020, 0
          %v6067 = vsel %vm540, %v6021, 0
          %v6070 = vsel %vm540, %v6022, 0
          %v6073 = vsel %vm540, %v6023, 0
          %v6076 = vsel %vm540, %v6024, 0
          %6078 = vmatpush.msra.mxu0 0.0
          %6079 = vmatpush.msra.mxu0 0.0
          %6080 = vmatpush.msra.mxu0 0.0
          %6081 = vmatpush.msra.mxu0 0.0
          %6082 = vmatpush.msra.mxu0 0.0
          %6083 = vmatpush.msra.mxu0 0.0
          %6084 = vmatpush.msra.mxu0 0.0
          %6085 = vmatpush.msra.mxu0 0.0
          %6086 = vmatpush.msra.mxu0 0.0
          %6087 = vmatpush.msra.mxu0 0.0
          %6088 = vmatpush.msra.mxu0 0.0
          %6089 = vmatpush.msra.mxu0 0.0
          %6090 = vmatpush.msra.mxu0 %v6029
          %6091 = vmatpush.msra.mxu0 %v6028
          %6092 = vmatpush.msra.mxu0 %v6027
          %6093 = vmatpush.msra.mxu0 %v6026
          %6094 = vmatmul.f32.gmra.mxu0 %v6031
          %v6095 = vpop.f32.mrf.mxu0
          %v6096 = vadd.f32 0.0, %v6095
          %6097 = vmatmul.f32.gmra.mxu0 %v6034
          %v6098 = vpop.f32.mrf.mxu0
          %v6099 = vadd.f32 0.0, %v6098
          %6100 = vmatmul.f32.gmra.mxu0 %v6037
          %v6101 = vpop.f32.mrf.mxu0
          %v6102 = vadd.f32 0.0, %v6101
          %6103 = vmatmul.f32.gmra.mxu0 %v6040
          %v6104 = vpop.f32.mrf.mxu0
          %v6105 = vadd.f32 0.0, %v6104
          %6106 = vmatmul.f32.gmra.mxu0 %v6043
          %v6107 = vpop.f32.mrf.mxu0
          %v6108 = vadd.f32 0.0, %v6107
          %6109 = vmatmul.f32.gmra.mxu0 %v6046
          %v6110 = vpop.f32.mrf.mxu0
          %v6111 = vadd.f32 0.0, %v6110
          %6112 = vmatmul.f32.gmra.mxu0 %v6049
          %v6113 = vpop.f32.mrf.mxu0
          %v6114 = vadd.f32 0.0, %v6113
          %6115 = vmatmul.f32.gmra.mxu0 %v6052
          %v6116 = vpop.f32.mrf.mxu0
          %v6117 = vadd.f32 0.0, %v6116
          %6118 = vmatmul.f32.gmra.mxu0 %v6055
          %v6119 = vpop.f32.mrf.mxu0
          %v6120 = vadd.f32 0.0, %v6119
          %6121 = vmatmul.f32.gmra.mxu0 %v6058
          %v6122 = vpop.f32.mrf.mxu0
          %v6123 = vadd.f32 0.0, %v6122
          %6124 = vmatmul.f32.gmra.mxu0 %v6061
          %v6125 = vpop.f32.mrf.mxu0
          %v6126 = vadd.f32 0.0, %v6125
          %6127 = vmatmul.f32.gmra.mxu0 %v6064
          %v6128 = vpop.f32.mrf.mxu0
          %v6129 = vadd.f32 0.0, %v6128
          %6130 = vmatmul.f32.gmra.mxu0 %v6067
          %v6131 = vpop.f32.mrf.mxu0
          %v6132 = vadd.f32 0.0, %v6131
          %6133 = vmatmul.f32.gmra.mxu0 %v6070
          %v6134 = vpop.f32.mrf.mxu0
          %v6135 = vadd.f32 0.0, %v6134
          %6136 = vmatmul.f32.gmra.mxu0 %v6073
          %v6137 = vpop.f32.mrf.mxu0
          %v6138 = vadd.f32 0.0, %v6137
          %6139 = vmatmul.f32.gmra.mxu0 %v6076
          %v6140 = vpop.f32.mrf.mxu0
          %v6141 = vadd.f32 0.0, %v6140
          %6142 = vdwg.mxu0
          %v6143 = vadd.f32 %v5991, %v6096
          %v6144 = vadd.f32 %v5992, %v6099
          %v6145 = vadd.f32 %v5993, %v6102
          %v6146 = vadd.f32 %v5994, %v6105
          %v6147 = vadd.f32 %v5995, %v6108
          %v6148 = vadd.f32 %v5996, %v6111
          %v6149 = vadd.f32 %v5997, %v6114
          %v6150 = vadd.f32 %v5998, %v6117
          %v6151 = vadd.f32 %v5999, %v6120
          %v6152 = vadd.f32 %v6000, %v6123
          %v6153 = vadd.f32 %v6001, %v6126
          %v6154 = vadd.f32 %v6002, %v6129
          %v6155 = vadd.f32 %v6003, %v6132
          %v6156 = vadd.f32 %v6004, %v6135
          %v6157 = vadd.f32 %v6005, %v6138
          %v6158 = vadd.f32 %v6006, %v6141
          %v6160 = vperm.slane %v4812, 0
          %v6162 = vadd.f32 %v6143, %v6160
          %v6163 = vadd.f32 %v6144, %v6160
          %v6164 = vadd.f32 %v6145, %v6160
          %v6165 = vadd.f32 %v6146, %v6160
          %v6166 = vadd.f32 %v6147, %v6160
          %v6167 = vadd.f32 %v6148, %v6160
          %v6168 = vadd.f32 %v6149, %v6160
          %v6169 = vadd.f32 %v6150, %v6160
          %v6170 = vadd.f32 %v6151, %v6160
          %v6171 = vadd.f32 %v6152, %v6160
          %v6172 = vadd.f32 %v6153, %v6160
          %v6173 = vadd.f32 %v6154, %v6160
          %v6174 = vadd.f32 %v6155, %v6160
          %v6175 = vadd.f32 %v6156, %v6160
          %v6176 = vadd.f32 %v6157, %v6160
          %v6177 = vadd.f32 %v6158, %v6160
          %s6178 = sadd.s32 %s4823, 32
          %s6179 = scalar_lea.vmem [#allocation7], %s6178
          %6180 = vst.msk [vmem:[%s6179] sm:$0xff] %vm540, %v6162
          %6181 = vst.msk [vmem:[%s6179 + $0x8] sm:$0xff] %vm540, %v6163
          %6182 = vst.msk [vmem:[%s6179 + $0x10] sm:$0xff] %vm540, %v6164
          %6183 = vst.msk [vmem:[%s6179 + $0x18] sm:$0xff] %vm540, %v6165
          %6184 = vst.msk [vmem:[%s6179 + $0x20] sm:$0xff] %vm540, %v6166
          %6185 = vst.msk [vmem:[%s6179 + $0x28] sm:$0xff] %vm540, %v6167
          %6186 = vst.msk [vmem:[%s6179 + $0x30] sm:$0xff] %vm540, %v6168
          %6187 = vst.msk [vmem:[%s6179 + $0x38] sm:$0xff] %vm540, %v6169
          %6188 = vst.msk [vmem:[%s6179 + $0x40] sm:$0xff] %vm540, %v6170
          %6189 = vst.msk [vmem:[%s6179 + $0x48] sm:$0xff] %vm540, %v6171
          %6190 = vst.msk [vmem:[%s6179 + $0x50] sm:$0xff] %vm540, %v6172
          %6191 = vst.msk [vmem:[%s6179 + $0x58] sm:$0xff] %vm540, %v6173
          %6192 = vst.msk [vmem:[%s6179 + $0x60] sm:$0xff] %vm540, %v6174
          %6193 = vst.msk [vmem:[%s6179 + $0x68] sm:$0xff] %vm540, %v6175
          %6194 = vst.msk [vmem:[%s6179 + $0x70] sm:$0xff] %vm540, %v6176
          %6195 = vst.msk [vmem:[%s6179 + $0x78] sm:$0xff] %vm540, %v6177
        $region118: #{pallas_forward.1} parent=63 // loop_footer
          %s4822 = sadd.s32 1, %s4818
        $region119: #{pallas_forward.1} parent=63 // loop_footer_branch
          %4817 = sbr.rel target = $region115
        $region120: #{pallas_forward.1} parent=63 // loop_exit
          _
        %6196 = vst.msk [vmem:[#allocation7 + $0x2e0] sm:$0xff] %vm540, 0.0
        %6197 = vst.msk [vmem:[#allocation7 + $0x2e8] sm:$0xff] %vm540, 0.0
        %6198 = vst.msk [vmem:[#allocation7 + $0x2f0] sm:$0xff] %vm540, 0.0
        %6199 = vst.msk [vmem:[#allocation7 + $0x2f8] sm:$0xff] %vm540, 0.0
        %vm6200 = vcmp.lt.s32.totalorder %v2702, 23
        %vm6201 = vmand %vm2740, %vm6200
        %vm6202 = vmand %vm2741, %vm6200
        %v6203 = vsel %vm6201, 1, 0
        %v6204 = vsel %vm6202, 1, 0
        %v6205 = vcvt.s32.f32 %v6203
        %v6206 = vcvt.s32.f32 %v6204
        loop: start=0, step=1, limit=12
        $region121: #{pallas_forward.1} parent=63 // loop_pre_header
          _
        $region122: #{pallas_forward.1} parent=63 // loop_header
          %s6208 = sphi 0, %s6212
          %p6209 = scmp.ge.s32.totalorder %s6208, 12
        $region123: #{pallas_forward.1} parent=63 // loop_header_branch
          %6211 = sbr.rel (%p6209) target = $region127
        $region124: #{pallas_forward.1} parent=63 // loop_body
          %s6213 = smul.u32 %s6208, 64
          %s6214 = scalar_lea.vmem [#allocation7], %s6213
          %v6215 = vld [vmem:[%s6214] sm:$0xff]
          %v6216 = vld [vmem:[%s6214 + $0x8] sm:$0xff]
          %v6217 = vld [vmem:[%s6214 + $0x10] sm:$0xff]
          %s6218 = sadd.s32 %s6213, 32
          %s6219 = scalar_lea.vmem [#allocation7], %s6218
          %v6220 = vld [vmem:[%s6219] sm:$0xff]
          %v6221 = vld [vmem:[%s6219 + $0x8] sm:$0xff]
          %v6222 = vld [vmem:[%s6219 + $0x10] sm:$0xff]
          %v6223 = vmax.f32 %v6215, %v6220
          %v6224 = vmax.f32 %v6216, %v6221
          %v6225 = vmax.f32 %v6217, %v6222
          %vm6226 = vcmask 195584
          %v6228 = vsel %vm6226, %v2728, 0
          %v6231 = vsel %vm6226, %v2729, 0
          %6233 = vmatpush.msra.mxu0 0.0
          %6234 = vmatpush.msra.mxu0 0.0
          %6235 = vmatpush.msra.mxu0 0.0
          %6236 = vmatpush.msra.mxu0 0.0
          %6237 = vmatpush.msra.mxu0 0.0
          %6238 = vmatpush.msra.mxu0 0.0
          %6239 = vmatpush.msra.mxu0 0.0
          %6240 = vmatpush.msra.mxu0 0.0
          %6241 = vmatpush.msra.mxu0 0.0
          %6242 = vmatpush.msra.mxu0 0.0
          %6243 = vmatpush.msra.mxu0 0.0
          %6244 = vmatpush.msra.mxu0 0.0
          %6245 = vmatpush.msra.mxu0 0.0
          %6246 = vmatpush.msra.mxu0 %v6225
          %6247 = vmatpush.msra.mxu0 %v6224
          %6248 = vmatpush.msra.mxu0 %v6223
          %6249 = vmatmul.f32.gmra.mxu0 %v6228
          %v6250 = vpop.f32.mrf.mxu0
          %v6251 = vadd.f32 0.0, %v6250
          %6252 = vmatmul.f32.gmra.mxu0 %v6231
          %v6253 = vpop.f32.mrf.mxu0
          %v6254 = vadd.f32 0.0, %v6253
          %6255 = vdwg.mxu0
          %v6257 = vsel %vm6226, %v6205, 0
          %v6260 = vsel %vm6226, %v6206, 0
          %6262 = vmatpush.msra.mxu0 0.0
          %6263 = vmatpush.msra.mxu0 0.0
          %6264 = vmatpush.msra.mxu0 0.0
          %6265 = vmatpush.msra.mxu0 0.0
          %6266 = vmatpush.msra.mxu0 0.0
          %6267 = vmatpush.msra.mxu0 0.0
          %6268 = vmatpush.msra.mxu0 0.0
          %6269 = vmatpush.msra.mxu0 0.0
          %6270 = vmatpush.msra.mxu0 0.0
          %6271 = vmatpush.msra.mxu0 0.0
          %6272 = vmatpush.msra.mxu0 0.0
          %6273 = vmatpush.msra.mxu0 0.0
          %6274 = vmatpush.msra.mxu0 0.0
          %6275 = vmatpush.msra.mxu0 %v6225
          %6276 = vmatpush.msra.mxu0 %v6224
          %6277 = vmatpush.msra.mxu0 %v6223
          %6278 = vmatmul.f32.gmra.mxu0 %v6257
          %v6279 = vpop.f32.mrf.mxu0
          %v6280 = vadd.f32 0.0, %v6279
          %6281 = vmatmul.f32.gmra.mxu0 %v6260
          %v6282 = vpop.f32.mrf.mxu0
          %v6283 = vadd.f32 0.0, %v6282
          %6284 = vdwg.mxu0
          %v6285 = vmax.f32 %v6251, %v6280
          %v6286 = vmax.f32 %v6254, %v6283
          %v6287 = vmax.f32 %v6285, 0.0
          %v6288 = vmax.f32 %v6286, 0.0
          %s6289 = sadd.s32 %s6208, 1
          %s6290 = smul.u32 %s6289, 24
          %s6291 = sadd.s32 %s6290, 8
          %s6292 = scalar_lea.vmem [#allocation8], %s6291
          %6293 = vst.msk [vmem:[%s6292] sm:$0xff] %vm540, %v6287
          %vm6294 = vcmask 257024
          %6295 = vst.msk [vmem:[%s6292 + $0x8] sm:$0xf] %vm6294, %v6288
        $region125: #{pallas_forward.1} parent=63 // loop_footer
          %s6212 = sadd.s32 1, %s6208
        $region126: #{pallas_forward.1} parent=63 // loop_footer_branch
          %6207 = sbr.rel target = $region122
        $region127: #{pallas_forward.1} parent=63 // loop_exit
          _
        %v6296 = vld [vmem:[%s8] sm:$0x1]
        %6297 = vst.msk [vmem:[#allocation9] sm:$0xff] %vm540, 0.0
        %6298 = vst.msk [vmem:[#allocation9 + $0x8] sm:$0xff] %vm540, 0.0
        %6299 = vst.msk [vmem:[#allocation9 + $0x10] sm:$0xff] %vm540, 0.0
        loop: start=0, step=1, limit=2
        $region128: #{pallas_forward.1} parent=63 // loop_pre_header
          _
        $region129: #{pallas_forward.1} parent=63 // loop_header
          %s6301 = sphi 0, %s6305
          %p6302 = scmp.ge.s32.totalorder %s6301, 2
        $region130: #{pallas_forward.1} parent=63 // loop_header_branch
          %6304 = sbr.rel (%p6302) target = $region134
        $region131: #{pallas_forward.1} parent=63 // loop_body
          %s6306 = smul.u32 %s6301, 144
          %s6307 = sadd.s32 %s6306, 6
          %s6308 = scalar_lea.vmem [#allocation8], %s6307
          %v6309 = vld [vmem:[%s6308] sm:$0xff]
          %v6310 = vld [vmem:[%s6308 + $0x8] sm:$0xff]
          %v6311 = vld [vmem:[%s6308 + $0x10] sm:$0xff]
          %v6312 = vld [vmem:[%s6308 + $0x18] sm:$0xff]
          %v6313 = vld [vmem:[%s6308 + $0x20] sm:$0xff]
          %v6314 = vld [vmem:[%s6308 + $0x28] sm:$0xff]
          %v6315 = vld [vmem:[%s6308 + $0x30] sm:$0xff]
          %v6316 = vld [vmem:[%s6308 + $0x38] sm:$0xff]
          %v6317 = vld [vmem:[%s6308 + $0x40] sm:$0xff]
          %v6318 = vld [vmem:[%s6308 + $0x48] sm:$0xff]
          %v6319 = vld [vmem:[%s6308 + $0x50] sm:$0xff]
          %v6320 = vld [vmem:[%s6308 + $0x58] sm:$0xff]
          %v6321 = vld [vmem:[%s6308 + $0x60] sm:$0xff]
          %v6322 = vld [vmem:[%s6308 + $0x68] sm:$0xff]
          %v6323 = vld [vmem:[%s6308 + $0x70] sm:$0xff]
          %v6324 = vld [vmem:[%s6308 + $0x78] sm:$0xff]
          %v6325 = vld [vmem:[%s6308 + $0x80] sm:$0xff]
          %v6326 = vld [vmem:[%s6308 + $0x88] sm:$0xff]
          %v6327 = vld [vmem:[%s7] sm:$0xff]
          %v6328 = vld [vmem:[%s7 + $0x8] sm:$0xff]
          %v6329 = vld [vmem:[%s7 + $0x10] sm:$0xff]
          %v6330 = vld [vmem:[%s7 + $0x18] sm:$0xff]
          %s6331 = sadd.s32 %s6306, 7
          %s6332 = scalar_lea.vmem [#allocation8], %s6331
          %v6333 = vld [vmem:[%s6332] sm:$0xff]
          %v6334 = vld [vmem:[%s6332 + $0x8] sm:$0xff]
          %v6335 = vld [vmem:[%s6332 + $0x10] sm:$0xff]
          %v6336 = vld [vmem:[%s6332 + $0x18] sm:$0xff]
          %v6337 = vld [vmem:[%s6332 + $0x20] sm:$0xff]
          %v6338 = vld [vmem:[%s6332 + $0x28] sm:$0xff]
          %v6339 = vld [vmem:[%s6332 + $0x30] sm:$0xff]
          %v6340 = vld [vmem:[%s6332 + $0x38] sm:$0xff]
          %v6341 = vld [vmem:[%s6332 + $0x40] sm:$0xff]
          %v6342 = vld [vmem:[%s6332 + $0x48] sm:$0xff]
          %v6343 = vld [vmem:[%s6332 + $0x50] sm:$0xff]
          %v6344 = vld [vmem:[%s6332 + $0x58] sm:$0xff]
          %v6345 = vld [vmem:[%s6332 + $0x60] sm:$0xff]
          %v6346 = vld [vmem:[%s6332 + $0x68] sm:$0xff]
          %v6347 = vld [vmem:[%s6332 + $0x70] sm:$0xff]
          %v6348 = vld [vmem:[%s6332 + $0x78] sm:$0xff]
          %v6349 = vld [vmem:[%s6332 + $0x80] sm:$0xff]
          %v6350 = vld [vmem:[%s6332 + $0x88] sm:$0xff]
          %s6351 = scalar_lea.vmem %s7, 32
          %v6352 = vld [vmem:[%s6351] sm:$0xff]
          %v6353 = vld [vmem:[%s6351 + $0x8] sm:$0xff]
          %v6354 = vld [vmem:[%s6351 + $0x10] sm:$0xff]
          %v6355 = vld [vmem:[%s6351 + $0x18] sm:$0xff]
          %v6357 = vsel %vm540, %v6333, 0
          %v6360 = vsel %vm540, %v6334, 0
          %v6363 = vsel %vm540, %v6335, 0
          %v6366 = vsel %vm540, %v6336, 0
          %v6369 = vsel %vm540, %v6337, 0
          %v6372 = vsel %vm540, %v6338, 0
          %v6375 = vsel %vm540, %v6339, 0
          %v6378 = vsel %vm540, %v6340, 0
          %v6381 = vsel %vm540, %v6341, 0
          %v6384 = vsel %vm540, %v6342, 0
          %v6387 = vsel %vm540, %v6343, 0
          %v6390 = vsel %vm540, %v6344, 0
          %v6393 = vsel %vm540, %v6345, 0
          %v6396 = vsel %vm540, %v6346, 0
          %v6399 = vsel %vm540, %v6347, 0
          %v6402 = vsel %vm540, %v6348, 0
          %v6405 = vsel %vm540, %v6349, 0
          %v6408 = vsel %vm540, %v6350, 0
          %6410 = vmatpush.msra.mxu0 0.0
          %6411 = vmatpush.msra.mxu0 0.0
          %6412 = vmatpush.msra.mxu0 0.0
          %6413 = vmatpush.msra.mxu0 0.0
          %6414 = vmatpush.msra.mxu0 0.0
          %6415 = vmatpush.msra.mxu0 0.0
          %6416 = vmatpush.msra.mxu0 0.0
          %6417 = vmatpush.msra.mxu0 0.0
          %6418 = vmatpush.msra.mxu0 0.0
          %6419 = vmatpush.msra.mxu0 0.0
          %6420 = vmatpush.msra.mxu0 0.0
          %6421 = vmatpush.msra.mxu0 0.0
          %6422 = vmatpush.msra.mxu0 %v6355
          %6423 = vmatpush.msra.mxu0 %v6354
          %6424 = vmatpush.msra.mxu0 %v6353
          %6425 = vmatpush.msra.mxu0 %v6352
          %6426 = vmatmul.f32.gmra.mxu0 %v6357
          %v6427 = vpop.f32.mrf.mxu0
          %v6428 = vadd.f32 0.0, %v6427
          %6429 = vmatmul.f32.gmra.mxu0 %v6360
          %v6430 = vpop.f32.mrf.mxu0
          %v6431 = vadd.f32 0.0, %v6430
          %6432 = vmatmul.f32.gmra.mxu0 %v6363
          %v6433 = vpop.f32.mrf.mxu0
          %v6434 = vadd.f32 0.0, %v6433
          %6435 = vmatmul.f32.gmra.mxu0 %v6366
          %v6436 = vpop.f32.mrf.mxu0
          %v6437 = vadd.f32 0.0, %v6436
          %6438 = vmatmul.f32.gmra.mxu0 %v6369
          %v6439 = vpop.f32.mrf.mxu0
          %v6440 = vadd.f32 0.0, %v6439
          %6441 = vmatmul.f32.gmra.mxu0 %v6372
          %v6442 = vpop.f32.mrf.mxu0
          %v6443 = vadd.f32 0.0, %v6442
          %6444 = vmatmul.f32.gmra.mxu0 %v6375
          %v6445 = vpop.f32.mrf.mxu0
          %v6446 = vadd.f32 0.0, %v6445
          %6447 = vmatmul.f32.gmra.mxu0 %v6378
          %v6448 = vpop.f32.mrf.mxu0
          %v6449 = vadd.f32 0.0, %v6448
          %6450 = vmatmul.f32.gmra.mxu0 %v6381
          %v6451 = vpop.f32.mrf.mxu0
          %v6452 = vadd.f32 0.0, %v6451
          %6453 = vmatmul.f32.gmra.mxu0 %v6384
          %v6454 = vpop.f32.mrf.mxu0
          %v6455 = vadd.f32 0.0, %v6454
          %6456 = vmatmul.f32.gmra.mxu0 %v6387
          %v6457 = vpop.f32.mrf.mxu0
          %v6458 = vadd.f32 0.0, %v6457
          %6459 = vmatmul.f32.gmra.mxu0 %v6390
          %v6460 = vpop.f32.mrf.mxu0
          %v6461 = vadd.f32 0.0, %v6460
          %6462 = vmatmul.f32.gmra.mxu0 %v6393
          %v6463 = vpop.f32.mrf.mxu0
          %v6464 = vadd.f32 0.0, %v6463
          %6465 = vmatmul.f32.gmra.mxu0 %v6396
          %v6466 = vpop.f32.mrf.mxu0
          %v6467 = vadd.f32 0.0, %v6466
          %6468 = vmatmul.f32.gmra.mxu0 %v6399
          %v6469 = vpop.f32.mrf.mxu0
          %v6470 = vadd.f32 0.0, %v6469
          %6471 = vmatmul.f32.gmra.mxu0 %v6402
          %v6472 = vpop.f32.mrf.mxu0
          %v6473 = vadd.f32 0.0, %v6472
          %6474 = vmatmul.f32.gmra.mxu0 %v6405
          %v6475 = vpop.f32.mrf.mxu0
          %v6476 = vadd.f32 0.0, %v6475
          %6477 = vmatmul.f32.gmra.mxu0 %v6408
          %v6478 = vpop.f32.mrf.mxu0
          %v6479 = vadd.f32 0.0, %v6478
          %6480 = vdwg.mxu0
          %v6482 = vsel %vm540, %v6309, 0
          %v6485 = vsel %vm540, %v6310, 0
          %v6488 = vsel %vm540, %v6311, 0
          %v6491 = vsel %vm540, %v6312, 0
          %v6494 = vsel %vm540, %v6313, 0
          %v6497 = vsel %vm540, %v6314, 0
          %v6500 = vsel %vm540, %v6315, 0
          %v6503 = vsel %vm540, %v6316, 0
          %v6506 = vsel %vm540, %v6317, 0
          %v6509 = vsel %vm540, %v6318, 0
          %v6512 = vsel %vm540, %v6319, 0
          %v6515 = vsel %vm540, %v6320, 0
          %v6518 = vsel %vm540, %v6321, 0
          %v6521 = vsel %vm540, %v6322, 0
          %v6524 = vsel %vm540, %v6323, 0
          %v6527 = vsel %vm540, %v6324, 0
          %v6530 = vsel %vm540, %v6325, 0
          %v6533 = vsel %vm540, %v6326, 0
          %6535 = vmatpush.msra.mxu0 0.0
          %6536 = vmatpush.msra.mxu0 0.0
          %6537 = vmatpush.msra.mxu0 0.0
          %6538 = vmatpush.msra.mxu0 0.0
          %6539 = vmatpush.msra.mxu0 0.0
          %6540 = vmatpush.msra.mxu0 0.0
          %6541 = vmatpush.msra.mxu0 0.0
          %6542 = vmatpush.msra.mxu0 0.0
          %6543 = vmatpush.msra.mxu0 0.0
          %6544 = vmatpush.msra.mxu0 0.0
          %6545 = vmatpush.msra.mxu0 0.0
          %6546 = vmatpush.msra.mxu0 0.0
          %6547 = vmatpush.msra.mxu0 %v6330
          %6548 = vmatpush.msra.mxu0 %v6329
          %6549 = vmatpush.msra.mxu0 %v6328
          %6550 = vmatpush.msra.mxu0 %v6327
          %6551 = vmatmul.f32.gmra.mxu0 %v6482
          %v6552 = vpop.f32.mrf.mxu0
          %v6553 = vadd.f32 %v6428, %v6552
          %6554 = vmatmul.f32.gmra.mxu0 %v6485
          %v6555 = vpop.f32.mrf.mxu0
          %v6556 = vadd.f32 %v6431, %v6555
          %6557 = vmatmul.f32.gmra.mxu0 %v6488
          %v6558 = vpop.f32.mrf.mxu0
          %v6559 = vadd.f32 %v6434, %v6558
          %6560 = vmatmul.f32.gmra.mxu0 %v6491
          %v6561 = vpop.f32.mrf.mxu0
          %v6562 = vadd.f32 %v6437, %v6561
          %6563 = vmatmul.f32.gmra.mxu0 %v6494
          %v6564 = vpop.f32.mrf.mxu0
          %v6565 = vadd.f32 %v6440, %v6564
          %6566 = vmatmul.f32.gmra.mxu0 %v6497
          %v6567 = vpop.f32.mrf.mxu0
          %v6568 = vadd.f32 %v6443, %v6567
          %6569 = vmatmul.f32.gmra.mxu0 %v6500
          %v6570 = vpop.f32.mrf.mxu0
          %v6571 = vadd.f32 %v6446, %v6570
          %6572 = vmatmul.f32.gmra.mxu0 %v6503
          %v6573 = vpop.f32.mrf.mxu0
          %v6574 = vadd.f32 %v6449, %v6573
          %6575 = vmatmul.f32.gmra.mxu0 %v6506
          %v6576 = vpop.f32.mrf.mxu0
          %v6577 = vadd.f32 %v6452, %v6576
          %6578 = vmatmul.f32.gmra.mxu0 %v6509
          %v6579 = vpop.f32.mrf.mxu0
          %v6580 = vadd.f32 %v6455, %v6579
          %6581 = vmatmul.f32.gmra.mxu0 %v6512
          %v6582 = vpop.f32.mrf.mxu0
          %v6583 = vadd.f32 %v6458, %v6582
          %6584 = vmatmul.f32.gmra.mxu0 %v6515
          %v6585 = vpop.f32.mrf.mxu0
          %v6586 = vadd.f32 %v6461, %v6585
          %6587 = vmatmul.f32.gmra.mxu0 %v6518
          %v6588 = vpop.f32.mrf.mxu0
          %v6589 = vadd.f32 %v6464, %v6588
          %6590 = vmatmul.f32.gmra.mxu0 %v6521
          %v6591 = vpop.f32.mrf.mxu0
          %v6592 = vadd.f32 %v6467, %v6591
          %6593 = vmatmul.f32.gmra.mxu0 %v6524
          %v6594 = vpop.f32.mrf.mxu0
          %v6595 = vadd.f32 %v6470, %v6594
          %6596 = vmatmul.f32.gmra.mxu0 %v6527
          %v6597 = vpop.f32.mrf.mxu0
          %v6598 = vadd.f32 %v6473, %v6597
          %6599 = vmatmul.f32.gmra.mxu0 %v6530
          %v6600 = vpop.f32.mrf.mxu0
          %v6601 = vadd.f32 %v6476, %v6600
          %6602 = vmatmul.f32.gmra.mxu0 %v6533
          %v6603 = vpop.f32.mrf.mxu0
          %v6604 = vadd.f32 %v6479, %v6603
          %6605 = vdwg.mxu0
          %s6606 = sadd.s32 %s6306, 8
          %s6607 = scalar_lea.vmem [#allocation8], %s6606
          %v6608 = vld [vmem:[%s6607] sm:$0xff]
          %v6609 = vld [vmem:[%s6607 + $0x8] sm:$0xff]
          %v6610 = vld [vmem:[%s6607 + $0x10] sm:$0xff]
          %v6611 = vld [vmem:[%s6607 + $0x18] sm:$0xff]
          %v6612 = vld [vmem:[%s6607 + $0x20] sm:$0xff]
          %v6613 = vld [vmem:[%s6607 + $0x28] sm:$0xff]
          %v6614 = vld [vmem:[%s6607 + $0x30] sm:$0xff]
          %v6615 = vld [vmem:[%s6607 + $0x38] sm:$0xff]
          %v6616 = vld [vmem:[%s6607 + $0x40] sm:$0xff]
          %v6617 = vld [vmem:[%s6607 + $0x48] sm:$0xff]
          %v6618 = vld [vmem:[%s6607 + $0x50] sm:$0xff]
          %v6619 = vld [vmem:[%s6607 + $0x58] sm:$0xff]
          %v6620 = vld [vmem:[%s6607 + $0x60] sm:$0xff]
          %v6621 = vld [vmem:[%s6607 + $0x68] sm:$0xff]
          %v6622 = vld [vmem:[%s6607 + $0x70] sm:$0xff]
          %v6623 = vld [vmem:[%s6607 + $0x78] sm:$0xff]
          %v6624 = vld [vmem:[%s6607 + $0x80] sm:$0xff]
          %v6625 = vld [vmem:[%s6607 + $0x88] sm:$0xff]
          %s6626 = scalar_lea.vmem %s7, 64
          %v6627 = vld [vmem:[%s6626] sm:$0xff]
          %v6628 = vld [vmem:[%s6626 + $0x8] sm:$0xff]
          %v6629 = vld [vmem:[%s6626 + $0x10] sm:$0xff]
          %v6630 = vld [vmem:[%s6626 + $0x18] sm:$0xff]
          %v6632 = vsel %vm540, %v6608, 0
          %v6635 = vsel %vm540, %v6609, 0
          %v6638 = vsel %vm540, %v6610, 0
          %v6641 = vsel %vm540, %v6611, 0
          %v6644 = vsel %vm540, %v6612, 0
          %v6647 = vsel %vm540, %v6613, 0
          %v6650 = vsel %vm540, %v6614, 0
          %v6653 = vsel %vm540, %v6615, 0
          %v6656 = vsel %vm540, %v6616, 0
          %v6659 = vsel %vm540, %v6617, 0
          %v6662 = vsel %vm540, %v6618, 0
          %v6665 = vsel %vm540, %v6619, 0
          %v6668 = vsel %vm540, %v6620, 0
          %v6671 = vsel %vm540, %v6621, 0
          %v6674 = vsel %vm540, %v6622, 0
          %v6677 = vsel %vm540, %v6623, 0
          %v6680 = vsel %vm540, %v6624, 0
          %v6683 = vsel %vm540, %v6625, 0
          %6685 = vmatpush.msra.mxu0 0.0
          %6686 = vmatpush.msra.mxu0 0.0
          %6687 = vmatpush.msra.mxu0 0.0
          %6688 = vmatpush.msra.mxu0 0.0
          %6689 = vmatpush.msra.mxu0 0.0
          %6690 = vmatpush.msra.mxu0 0.0
          %6691 = vmatpush.msra.mxu0 0.0
          %6692 = vmatpush.msra.mxu0 0.0
          %6693 = vmatpush.msra.mxu0 0.0
          %6694 = vmatpush.msra.mxu0 0.0
          %6695 = vmatpush.msra.mxu0 0.0
          %6696 = vmatpush.msra.mxu0 0.0
          %6697 = vmatpush.msra.mxu0 %v6630
          %6698 = vmatpush.msra.mxu0 %v6629
          %6699 = vmatpush.msra.mxu0 %v6628
          %6700 = vmatpush.msra.mxu0 %v6627
          %6701 = vmatmul.f32.gmra.mxu0 %v6632
          %v6702 = vpop.f32.mrf.mxu0
          %v6703 = vadd.f32 0.0, %v6702
          %6704 = vmatmul.f32.gmra.mxu0 %v6635
          %v6705 = vpop.f32.mrf.mxu0
          %v6706 = vadd.f32 0.0, %v6705
          %6707 = vmatmul.f32.gmra.mxu0 %v6638
          %v6708 = vpop.f32.mrf.mxu0
          %v6709 = vadd.f32 0.0, %v6708
          %6710 = vmatmul.f32.gmra.mxu0 %v6641
          %v6711 = vpop.f32.mrf.mxu0
          %v6712 = vadd.f32 0.0, %v6711
          %6713 = vmatmul.f32.gmra.mxu0 %v6644
          %v6714 = vpop.f32.mrf.mxu0
          %v6715 = vadd.f32 0.0, %v6714
          %6716 = vmatmul.f32.gmra.mxu0 %v6647
          %v6717 = vpop.f32.mrf.mxu0
          %v6718 = vadd.f32 0.0, %v6717
          %6719 = vmatmul.f32.gmra.mxu0 %v6650
          %v6720 = vpop.f32.mrf.mxu0
          %v6721 = vadd.f32 0.0, %v6720
          %6722 = vmatmul.f32.gmra.mxu0 %v6653
          %v6723 = vpop.f32.mrf.mxu0
          %v6724 = vadd.f32 0.0, %v6723
          %6725 = vmatmul.f32.gmra.mxu0 %v6656
          %v6726 = vpop.f32.mrf.mxu0
          %v6727 = vadd.f32 0.0, %v6726
          %6728 = vmatmul.f32.gmra.mxu0 %v6659
          %v6729 = vpop.f32.mrf.mxu0
          %v6730 = vadd.f32 0.0, %v6729
          %6731 = vmatmul.f32.gmra.mxu0 %v6662
          %v6732 = vpop.f32.mrf.mxu0
          %v6733 = vadd.f32 0.0, %v6732
          %6734 = vmatmul.f32.gmra.mxu0 %v6665
          %v6735 = vpop.f32.mrf.mxu0
          %v6736 = vadd.f32 0.0, %v6735
          %6737 = vmatmul.f32.gmra.mxu0 %v6668
          %v6738 = vpop.f32.mrf.mxu0
          %v6739 = vadd.f32 0.0, %v6738
          %6740 = vmatmul.f32.gmra.mxu0 %v6671
          %v6741 = vpop.f32.mrf.mxu0
          %v6742 = vadd.f32 0.0, %v6741
          %6743 = vmatmul.f32.gmra.mxu0 %v6674
          %v6744 = vpop.f32.mrf.mxu0
          %v6745 = vadd.f32 0.0, %v6744
          %6746 = vmatmul.f32.gmra.mxu0 %v6677
          %v6747 = vpop.f32.mrf.mxu0
          %v6748 = vadd.f32 0.0, %v6747
          %6749 = vmatmul.f32.gmra.mxu0 %v6680
          %v6750 = vpop.f32.mrf.mxu0
          %v6751 = vadd.f32 0.0, %v6750
          %6752 = vmatmul.f32.gmra.mxu0 %v6683
          %v6753 = vpop.f32.mrf.mxu0
          %v6754 = vadd.f32 0.0, %v6753
          %6755 = vdwg.mxu0
          %v6756 = vadd.f32 %v6553, %v6703
          %v6757 = vadd.f32 %v6556, %v6706
          %v6758 = vadd.f32 %v6559, %v6709
          %v6759 = vadd.f32 %v6562, %v6712
          %v6760 = vadd.f32 %v6565, %v6715
          %v6761 = vadd.f32 %v6568, %v6718
          %v6762 = vadd.f32 %v6571, %v6721
          %v6763 = vadd.f32 %v6574, %v6724
          %v6764 = vadd.f32 %v6577, %v6727
          %v6765 = vadd.f32 %v6580, %v6730
          %v6766 = vadd.f32 %v6583, %v6733
          %v6767 = vadd.f32 %v6586, %v6736
          %v6768 = vadd.f32 %v6589, %v6739
          %v6769 = vadd.f32 %v6592, %v6742
          %v6770 = vadd.f32 %v6595, %v6745
          %v6771 = vadd.f32 %v6598, %v6748
          %v6772 = vadd.f32 %v6601, %v6751
          %v6773 = vadd.f32 %v6604, %v6754
          %s6774 = sadd.s32 %s6306, 30
          %s6775 = scalar_lea.vmem [#allocation8], %s6774
          %v6776 = vld [vmem:[%s6775] sm:$0xff]
          %v6777 = vld [vmem:[%s6775 + $0x8] sm:$0xff]
          %v6778 = vld [vmem:[%s6775 + $0x10] sm:$0xff]
          %v6779 = vld [vmem:[%s6775 + $0x18] sm:$0xff]
          %v6780 = vld [vmem:[%s6775 + $0x20] sm:$0xff]
          %v6781 = vld [vmem:[%s6775 + $0x28] sm:$0xff]
          %v6782 = vld [vmem:[%s6775 + $0x30] sm:$0xff]
          %v6783 = vld [vmem:[%s6775 + $0x38] sm:$0xff]
          %v6784 = vld [vmem:[%s6775 + $0x40] sm:$0xff]
          %v6785 = vld [vmem:[%s6775 + $0x48] sm:$0xff]
          %v6786 = vld [vmem:[%s6775 + $0x50] sm:$0xff]
          %v6787 = vld [vmem:[%s6775 + $0x58] sm:$0xff]
          %v6788 = vld [vmem:[%s6775 + $0x60] sm:$0xff]
          %v6789 = vld [vmem:[%s6775 + $0x68] sm:$0xff]
          %v6790 = vld [vmem:[%s6775 + $0x70] sm:$0xff]
          %v6791 = vld [vmem:[%s6775 + $0x78] sm:$0xff]
          %v6792 = vld [vmem:[%s6775 + $0x80] sm:$0xff]
          %v6793 = vld [vmem:[%s6775 + $0x88] sm:$0xff]
          %s6794 = scalar_lea.vmem %s7, 96
          %v6795 = vld [vmem:[%s6794] sm:$0xff]
          %v6796 = vld [vmem:[%s6794 + $0x8] sm:$0xff]
          %v6797 = vld [vmem:[%s6794 + $0x10] sm:$0xff]
          %v6798 = vld [vmem:[%s6794 + $0x18] sm:$0xff]
          %v6800 = vsel %vm540, %v6776, 0
          %v6803 = vsel %vm540, %v6777, 0
          %v6806 = vsel %vm540, %v6778, 0
          %v6809 = vsel %vm540, %v6779, 0
          %v6812 = vsel %vm540, %v6780, 0
          %v6815 = vsel %vm540, %v6781, 0
          %v6818 = vsel %vm540, %v6782, 0
          %v6821 = vsel %vm540, %v6783, 0
          %v6824 = vsel %vm540, %v6784, 0
          %v6827 = vsel %vm540, %v6785, 0
          %v6830 = vsel %vm540, %v6786, 0
          %v6833 = vsel %vm540, %v6787, 0
          %v6836 = vsel %vm540, %v6788, 0
          %v6839 = vsel %vm540, %v6789, 0
          %v6842 = vsel %vm540, %v6790, 0
          %v6845 = vsel %vm540, %v6791, 0
          %v6848 = vsel %vm540, %v6792, 0
          %v6851 = vsel %vm540, %v6793, 0
          %6853 = vmatpush.msra.mxu0 0.0
          %6854 = vmatpush.msra.mxu0 0.0
          %6855 = vmatpush.msra.mxu0 0.0
          %6856 = vmatpush.msra.mxu0 0.0
          %6857 = vmatpush.msra.mxu0 0.0
          %6858 = vmatpush.msra.mxu0 0.0
          %6859 = vmatpush.msra.mxu0 0.0
          %6860 = vmatpush.msra.mxu0 0.0
          %6861 = vmatpush.msra.mxu0 0.0
          %6862 = vmatpush.msra.mxu0 0.0
          %6863 = vmatpush.msra.mxu0 0.0
          %6864 = vmatpush.msra.mxu0 0.0
          %6865 = vmatpush.msra.mxu0 %v6798
          %6866 = vmatpush.msra.mxu0 %v6797
          %6867 = vmatpush.msra.mxu0 %v6796
          %6868 = vmatpush.msra.mxu0 %v6795
          %6869 = vmatmul.f32.gmra.mxu0 %v6800
          %v6870 = vpop.f32.mrf.mxu0
          %v6871 = vadd.f32 0.0, %v6870
          %6872 = vmatmul.f32.gmra.mxu0 %v6803
          %v6873 = vpop.f32.mrf.mxu0
          %v6874 = vadd.f32 0.0, %v6873
          %6875 = vmatmul.f32.gmra.mxu0 %v6806
          %v6876 = vpop.f32.mrf.mxu0
          %v6877 = vadd.f32 0.0, %v6876
          %6878 = vmatmul.f32.gmra.mxu0 %v6809
          %v6879 = vpop.f32.mrf.mxu0
          %v6880 = vadd.f32 0.0, %v6879
          %6881 = vmatmul.f32.gmra.mxu0 %v6812
          %v6882 = vpop.f32.mrf.mxu0
          %v6883 = vadd.f32 0.0, %v6882
          %6884 = vmatmul.f32.gmra.mxu0 %v6815
          %v6885 = vpop.f32.mrf.mxu0
          %v6886 = vadd.f32 0.0, %v6885
          %6887 = vmatmul.f32.gmra.mxu0 %v6818
          %v6888 = vpop.f32.mrf.mxu0
          %v6889 = vadd.f32 0.0, %v6888
          %6890 = vmatmul.f32.gmra.mxu0 %v6821
          %v6891 = vpop.f32.mrf.mxu0
          %v6892 = vadd.f32 0.0, %v6891
          %6893 = vmatmul.f32.gmra.mxu0 %v6824
          %v6894 = vpop.f32.mrf.mxu0
          %v6895 = vadd.f32 0.0, %v6894
          %6896 = vmatmul.f32.gmra.mxu0 %v6827
          %v6897 = vpop.f32.mrf.mxu0
          %v6898 = vadd.f32 0.0, %v6897
          %6899 = vmatmul.f32.gmra.mxu0 %v6830
          %v6900 = vpop.f32.mrf.mxu0
          %v6901 = vadd.f32 0.0, %v6900
          %6902 = vmatmul.f32.gmra.mxu0 %v6833
          %v6903 = vpop.f32.mrf.mxu0
          %v6904 = vadd.f32 0.0, %v6903
          %6905 = vmatmul.f32.gmra.mxu0 %v6836
          %v6906 = vpop.f32.mrf.mxu0
          %v6907 = vadd.f32 0.0, %v6906
          %6908 = vmatmul.f32.gmra.mxu0 %v6839
          %v6909 = vpop.f32.mrf.mxu0
          %v6910 = vadd.f32 0.0, %v6909
          %6911 = vmatmul.f32.gmra.mxu0 %v6842
          %v6912 = vpop.f32.mrf.mxu0
          %v6913 = vadd.f32 0.0, %v6912
          %6914 = vmatmul.f32.gmra.mxu0 %v6845
          %v6915 = vpop.f32.mrf.mxu0
          %v6916 = vadd.f32 0.0, %v6915
          %6917 = vmatmul.f32.gmra.mxu0 %v6848
          %v6918 = vpop.f32.mrf.mxu0
          %v6919 = vadd.f32 0.0, %v6918
          %6920 = vmatmul.f32.gmra.mxu0 %v6851
          %v6921 = vpop.f32.mrf.mxu0
          %v6922 = vadd.f32 0.0, %v6921
          %6923 = vdwg.mxu0
          %v6924 = vadd.f32 %v6756, %v6871
          %v6925 = vadd.f32 %v6757, %v6874
          %v6926 = vadd.f32 %v6758, %v6877
          %v6927 = vadd.f32 %v6759, %v6880
          %v6928 = vadd.f32 %v6760, %v6883
          %v6929 = vadd.f32 %v6761, %v6886
          %v6930 = vadd.f32 %v6762, %v6889
          %v6931 = vadd.f32 %v6763, %v6892
          %v6932 = vadd.f32 %v6764, %v6895
          %v6933 = vadd.f32 %v6765, %v6898
          %v6934 = vadd.f32 %v6766, %v6901
          %v6935 = vadd.f32 %v6767, %v6904
          %v6936 = vadd.f32 %v6768, %v6907
          %v6937 = vadd.f32 %v6769, %v6910
          %v6938 = vadd.f32 %v6770, %v6913
          %v6939 = vadd.f32 %v6771, %v6916
          %v6940 = vadd.f32 %v6772, %v6919
          %v6941 = vadd.f32 %v6773, %v6922
          %s6942 = sadd.s32 %s6306, 31
          %s6943 = scalar_lea.vmem [#allocation8], %s6942
          %v6944 = vld [vmem:[%s6943] sm:$0xff]
          %v6945 = vld [vmem:[%s6943 + $0x8] sm:$0xff]
          %v6946 = vld [vmem:[%s6943 + $0x10] sm:$0xff]
          %v6947 = vld [vmem:[%s6943 + $0x18] sm:$0xff]
          %v6948 = vld [vmem:[%s6943 + $0x20] sm:$0xff]
          %v6949 = vld [vmem:[%s6943 + $0x28] sm:$0xff]
          %v6950 = vld [vmem:[%s6943 + $0x30] sm:$0xff]
          %v6951 = vld [vmem:[%s6943 + $0x38] sm:$0xff]
          %v6952 = vld [vmem:[%s6943 + $0x40] sm:$0xff]
          %v6953 = vld [vmem:[%s6943 + $0x48] sm:$0xff]
          %v6954 = vld [vmem:[%s6943 + $0x50] sm:$0xff]
          %v6955 = vld [vmem:[%s6943 + $0x58] sm:$0xff]
          %v6956 = vld [vmem:[%s6943 + $0x60] sm:$0xff]
          %v6957 = vld [vmem:[%s6943 + $0x68] sm:$0xff]
          %v6958 = vld [vmem:[%s6943 + $0x70] sm:$0xff]
          %v6959 = vld [vmem:[%s6943 + $0x78] sm:$0xff]
          %v6960 = vld [vmem:[%s6943 + $0x80] sm:$0xff]
          %v6961 = vld [vmem:[%s6943 + $0x88] sm:$0xff]
          %s6962 = scalar_lea.vmem %s7, 128
          %v6963 = vld [vmem:[%s6962] sm:$0xff]
          %v6964 = vld [vmem:[%s6962 + $0x8] sm:$0xff]
          %v6965 = vld [vmem:[%s6962 + $0x10] sm:$0xff]
          %v6966 = vld [vmem:[%s6962 + $0x18] sm:$0xff]
          %v6968 = vsel %vm540, %v6944, 0
          %v6971 = vsel %vm540, %v6945, 0
          %v6974 = vsel %vm540, %v6946, 0
          %v6977 = vsel %vm540, %v6947, 0
          %v6980 = vsel %vm540, %v6948, 0
          %v6983 = vsel %vm540, %v6949, 0
          %v6986 = vsel %vm540, %v6950, 0
          %v6989 = vsel %vm540, %v6951, 0
          %v6992 = vsel %vm540, %v6952, 0
          %v6995 = vsel %vm540, %v6953, 0
          %v6998 = vsel %vm540, %v6954, 0
          %v7001 = vsel %vm540, %v6955, 0
          %v7004 = vsel %vm540, %v6956, 0
          %v7007 = vsel %vm540, %v6957, 0
          %v7010 = vsel %vm540, %v6958, 0
          %v7013 = vsel %vm540, %v6959, 0
          %v7016 = vsel %vm540, %v6960, 0
          %v7019 = vsel %vm540, %v6961, 0
          %7021 = vmatpush.msra.mxu0 0.0
          %7022 = vmatpush.msra.mxu0 0.0
          %7023 = vmatpush.msra.mxu0 0.0
          %7024 = vmatpush.msra.mxu0 0.0
          %7025 = vmatpush.msra.mxu0 0.0
          %7026 = vmatpush.msra.mxu0 0.0
          %7027 = vmatpush.msra.mxu0 0.0
          %7028 = vmatpush.msra.mxu0 0.0
          %7029 = vmatpush.msra.mxu0 0.0
          %7030 = vmatpush.msra.mxu0 0.0
          %7031 = vmatpush.msra.mxu0 0.0
          %7032 = vmatpush.msra.mxu0 0.0
          %7033 = vmatpush.msra.mxu0 %v6966
          %7034 = vmatpush.msra.mxu0 %v6965
          %7035 = vmatpush.msra.mxu0 %v6964
          %7036 = vmatpush.msra.mxu0 %v6963
          %7037 = vmatmul.f32.gmra.mxu0 %v6968
          %v7038 = vpop.f32.mrf.mxu0
          %v7039 = vadd.f32 0.0, %v7038
          %7040 = vmatmul.f32.gmra.mxu0 %v6971
          %v7041 = vpop.f32.mrf.mxu0
          %v7042 = vadd.f32 0.0, %v7041
          %7043 = vmatmul.f32.gmra.mxu0 %v6974
          %v7044 = vpop.f32.mrf.mxu0
          %v7045 = vadd.f32 0.0, %v7044
          %7046 = vmatmul.f32.gmra.mxu0 %v6977
          %v7047 = vpop.f32.mrf.mxu0
          %v7048 = vadd.f32 0.0, %v7047
          %7049 = vmatmul.f32.gmra.mxu0 %v6980
          %v7050 = vpop.f32.mrf.mxu0
          %v7051 = vadd.f32 0.0, %v7050
          %7052 = vmatmul.f32.gmra.mxu0 %v6983
          %v7053 = vpop.f32.mrf.mxu0
          %v7054 = vadd.f32 0.0, %v7053
          %7055 = vmatmul.f32.gmra.mxu0 %v6986
          %v7056 = vpop.f32.mrf.mxu0
          %v7057 = vadd.f32 0.0, %v7056
          %7058 = vmatmul.f32.gmra.mxu0 %v6989
          %v7059 = vpop.f32.mrf.mxu0
          %v7060 = vadd.f32 0.0, %v7059
          %7061 = vmatmul.f32.gmra.mxu0 %v6992
          %v7062 = vpop.f32.mrf.mxu0
          %v7063 = vadd.f32 0.0, %v7062
          %7064 = vmatmul.f32.gmra.mxu0 %v6995
          %v7065 = vpop.f32.mrf.mxu0
          %v7066 = vadd.f32 0.0, %v7065
          %7067 = vmatmul.f32.gmra.mxu0 %v6998
          %v7068 = vpop.f32.mrf.mxu0
          %v7069 = vadd.f32 0.0, %v7068
          %7070 = vmatmul.f32.gmra.mxu0 %v7001
          %v7071 = vpop.f32.mrf.mxu0
          %v7072 = vadd.f32 0.0, %v7071
          %7073 = vmatmul.f32.gmra.mxu0 %v7004
          %v7074 = vpop.f32.mrf.mxu0
          %v7075 = vadd.f32 0.0, %v7074
          %7076 = vmatmul.f32.gmra.mxu0 %v7007
          %v7077 = vpop.f32.mrf.mxu0
          %v7078 = vadd.f32 0.0, %v7077
          %7079 = vmatmul.f32.gmra.mxu0 %v7010
          %v7080 = vpop.f32.mrf.mxu0
          %v7081 = vadd.f32 0.0, %v7080
          %7082 = vmatmul.f32.gmra.mxu0 %v7013
          %v7083 = vpop.f32.mrf.mxu0
          %v7084 = vadd.f32 0.0, %v7083
          %7085 = vmatmul.f32.gmra.mxu0 %v7016
          %v7086 = vpop.f32.mrf.mxu0
          %v7087 = vadd.f32 0.0, %v7086
          %7088 = vmatmul.f32.gmra.mxu0 %v7019
          %v7089 = vpop.f32.mrf.mxu0
          %v7090 = vadd.f32 0.0, %v7089
          %7091 = vdwg.mxu0
          %v7092 = vadd.f32 %v6924, %v7039
          %v7093 = vadd.f32 %v6925, %v7042
          %v7094 = vadd.f32 %v6926, %v7045
          %v7095 = vadd.f32 %v6927, %v7048
          %v7096 = vadd.f32 %v6928, %v7051
          %v7097 = vadd.f32 %v6929, %v7054
          %v7098 = vadd.f32 %v6930, %v7057
          %v7099 = vadd.f32 %v6931, %v7060
          %v7100 = vadd.f32 %v6932, %v7063
          %v7101 = vadd.f32 %v6933, %v7066
          %v7102 = vadd.f32 %v6934, %v7069
          %v7103 = vadd.f32 %v6935, %v7072
          %v7104 = vadd.f32 %v6936, %v7075
          %v7105 = vadd.f32 %v6937, %v7078
          %v7106 = vadd.f32 %v6938, %v7081
          %v7107 = vadd.f32 %v6939, %v7084
          %v7108 = vadd.f32 %v6940, %v7087
          %v7109 = vadd.f32 %v6941, %v7090
          %s7110 = sadd.s32 %s6306, 32
          %s7111 = scalar_lea.vmem [#allocation8], %s7110
          %v7112 = vld [vmem:[%s7111] sm:$0xff]
          %v7113 = vld [vmem:[%s7111 + $0x8] sm:$0xff]
          %v7114 = vld [vmem:[%s7111 + $0x10] sm:$0xff]
          %v7115 = vld [vmem:[%s7111 + $0x18] sm:$0xff]
          %v7116 = vld [vmem:[%s7111 + $0x20] sm:$0xff]
          %v7117 = vld [vmem:[%s7111 + $0x28] sm:$0xff]
          %v7118 = vld [vmem:[%s7111 + $0x30] sm:$0xff]
          %v7119 = vld [vmem:[%s7111 + $0x38] sm:$0xff]
          %v7120 = vld [vmem:[%s7111 + $0x40] sm:$0xff]
          %v7121 = vld [vmem:[%s7111 + $0x48] sm:$0xff]
          %v7122 = vld [vmem:[%s7111 + $0x50] sm:$0xff]
          %v7123 = vld [vmem:[%s7111 + $0x58] sm:$0xff]
          %v7124 = vld [vmem:[%s7111 + $0x60] sm:$0xff]
          %v7125 = vld [vmem:[%s7111 + $0x68] sm:$0xff]
          %v7126 = vld [vmem:[%s7111 + $0x70] sm:$0xff]
          %v7127 = vld [vmem:[%s7111 + $0x78] sm:$0xff]
          %v7128 = vld [vmem:[%s7111 + $0x80] sm:$0xff]
          %v7129 = vld [vmem:[%s7111 + $0x88] sm:$0xff]
          %s7130 = scalar_lea.vmem %s7, 160
          %v7131 = vld [vmem:[%s7130] sm:$0xff]
          %v7132 = vld [vmem:[%s7130 + $0x8] sm:$0xff]
          %v7133 = vld [vmem:[%s7130 + $0x10] sm:$0xff]
          %v7134 = vld [vmem:[%s7130 + $0x18] sm:$0xff]
          %v7136 = vsel %vm540, %v7112, 0
          %v7139 = vsel %vm540, %v7113, 0
          %v7142 = vsel %vm540, %v7114, 0
          %v7145 = vsel %vm540, %v7115, 0
          %v7148 = vsel %vm540, %v7116, 0
          %v7151 = vsel %vm540, %v7117, 0
          %v7154 = vsel %vm540, %v7118, 0
          %v7157 = vsel %vm540, %v7119, 0
          %v7160 = vsel %vm540, %v7120, 0
          %v7163 = vsel %vm540, %v7121, 0
          %v7166 = vsel %vm540, %v7122, 0
          %v7169 = vsel %vm540, %v7123, 0
          %v7172 = vsel %vm540, %v7124, 0
          %v7175 = vsel %vm540, %v7125, 0
          %v7178 = vsel %vm540, %v7126, 0
          %v7181 = vsel %vm540, %v7127, 0
          %v7184 = vsel %vm540, %v7128, 0
          %v7187 = vsel %vm540, %v7129, 0
          %7189 = vmatpush.msra.mxu0 0.0
          %7190 = vmatpush.msra.mxu0 0.0
          %7191 = vmatpush.msra.mxu0 0.0
          %7192 = vmatpush.msra.mxu0 0.0
          %7193 = vmatpush.msra.mxu0 0.0
          %7194 = vmatpush.msra.mxu0 0.0
          %7195 = vmatpush.msra.mxu0 0.0
          %7196 = vmatpush.msra.mxu0 0.0
          %7197 = vmatpush.msra.mxu0 0.0
          %7198 = vmatpush.msra.mxu0 0.0
          %7199 = vmatpush.msra.mxu0 0.0
          %7200 = vmatpush.msra.mxu0 0.0
          %7201 = vmatpush.msra.mxu0 %v7134
          %7202 = vmatpush.msra.mxu0 %v7133
          %7203 = vmatpush.msra.mxu0 %v7132
          %7204 = vmatpush.msra.mxu0 %v7131
          %7205 = vmatmul.f32.gmra.mxu0 %v7136
          %v7206 = vpop.f32.mrf.mxu0
          %v7207 = vadd.f32 0.0, %v7206
          %7208 = vmatmul.f32.gmra.mxu0 %v7139
          %v7209 = vpop.f32.mrf.mxu0
          %v7210 = vadd.f32 0.0, %v7209
          %7211 = vmatmul.f32.gmra.mxu0 %v7142
          %v7212 = vpop.f32.mrf.mxu0
          %v7213 = vadd.f32 0.0, %v7212
          %7214 = vmatmul.f32.gmra.mxu0 %v7145
          %v7215 = vpop.f32.mrf.mxu0
          %v7216 = vadd.f32 0.0, %v7215
          %7217 = vmatmul.f32.gmra.mxu0 %v7148
          %v7218 = vpop.f32.mrf.mxu0
          %v7219 = vadd.f32 0.0, %v7218
          %7220 = vmatmul.f32.gmra.mxu0 %v7151
          %v7221 = vpop.f32.mrf.mxu0
          %v7222 = vadd.f32 0.0, %v7221
          %7223 = vmatmul.f32.gmra.mxu0 %v7154
          %v7224 = vpop.f32.mrf.mxu0
          %v7225 = vadd.f32 0.0, %v7224
          %7226 = vmatmul.f32.gmra.mxu0 %v7157
          %v7227 = vpop.f32.mrf.mxu0
          %v7228 = vadd.f32 0.0, %v7227
          %7229 = vmatmul.f32.gmra.mxu0 %v7160
          %v7230 = vpop.f32.mrf.mxu0
          %v7231 = vadd.f32 0.0, %v7230
          %7232 = vmatmul.f32.gmra.mxu0 %v7163
          %v7233 = vpop.f32.mrf.mxu0
          %v7234 = vadd.f32 0.0, %v7233
          %7235 = vmatmul.f32.gmra.mxu0 %v7166
          %v7236 = vpop.f32.mrf.mxu0
          %v7237 = vadd.f32 0.0, %v7236
          %7238 = vmatmul.f32.gmra.mxu0 %v7169
          %v7239 = vpop.f32.mrf.mxu0
          %v7240 = vadd.f32 0.0, %v7239
          %7241 = vmatmul.f32.gmra.mxu0 %v7172
          %v7242 = vpop.f32.mrf.mxu0
          %v7243 = vadd.f32 0.0, %v7242
          %7244 = vmatmul.f32.gmra.mxu0 %v7175
          %v7245 = vpop.f32.mrf.mxu0
          %v7246 = vadd.f32 0.0, %v7245
          %7247 = vmatmul.f32.gmra.mxu0 %v7178
          %v7248 = vpop.f32.mrf.mxu0
          %v7249 = vadd.f32 0.0, %v7248
          %7250 = vmatmul.f32.gmra.mxu0 %v7181
          %v7251 = vpop.f32.mrf.mxu0
          %v7252 = vadd.f32 0.0, %v7251
          %7253 = vmatmul.f32.gmra.mxu0 %v7184
          %v7254 = vpop.f32.mrf.mxu0
          %v7255 = vadd.f32 0.0, %v7254
          %7256 = vmatmul.f32.gmra.mxu0 %v7187
          %v7257 = vpop.f32.mrf.mxu0
          %v7258 = vadd.f32 0.0, %v7257
          %7259 = vdwg.mxu0
          %v7260 = vadd.f32 %v7092, %v7207
          %v7261 = vadd.f32 %v7093, %v7210
          %v7262 = vadd.f32 %v7094, %v7213
          %v7263 = vadd.f32 %v7095, %v7216
          %v7264 = vadd.f32 %v7096, %v7219
          %v7265 = vadd.f32 %v7097, %v7222
          %v7266 = vadd.f32 %v7098, %v7225
          %v7267 = vadd.f32 %v7099, %v7228
          %v7268 = vadd.f32 %v7100, %v7231
          %v7269 = vadd.f32 %v7101, %v7234
          %v7270 = vadd.f32 %v7102, %v7237
          %v7271 = vadd.f32 %v7103, %v7240
          %v7272 = vadd.f32 %v7104, %v7243
          %v7273 = vadd.f32 %v7105, %v7246
          %v7274 = vadd.f32 %v7106, %v7249
          %v7275 = vadd.f32 %v7107, %v7252
          %v7276 = vadd.f32 %v7108, %v7255
          %v7277 = vadd.f32 %v7109, %v7258
          %s7278 = sadd.s32 %s6306, 54
          %s7279 = scalar_lea.vmem [#allocation8], %s7278
          %v7280 = vld [vmem:[%s7279] sm:$0xff]
          %v7281 = vld [vmem:[%s7279 + $0x8] sm:$0xff]
          %v7282 = vld [vmem:[%s7279 + $0x10] sm:$0xff]
          %v7283 = vld [vmem:[%s7279 + $0x18] sm:$0xff]
          %v7284 = vld [vmem:[%s7279 + $0x20] sm:$0xff]
          %v7285 = vld [vmem:[%s7279 + $0x28] sm:$0xff]
          %v7286 = vld [vmem:[%s7279 + $0x30] sm:$0xff]
          %v7287 = vld [vmem:[%s7279 + $0x38] sm:$0xff]
          %v7288 = vld [vmem:[%s7279 + $0x40] sm:$0xff]
          %v7289 = vld [vmem:[%s7279 + $0x48] sm:$0xff]
          %v7290 = vld [vmem:[%s7279 + $0x50] sm:$0xff]
          %v7291 = vld [vmem:[%s7279 + $0x58] sm:$0xff]
          %v7292 = vld [vmem:[%s7279 + $0x60] sm:$0xff]
          %v7293 = vld [vmem:[%s7279 + $0x68] sm:$0xff]
          %v7294 = vld [vmem:[%s7279 + $0x70] sm:$0xff]
          %v7295 = vld [vmem:[%s7279 + $0x78] sm:$0xff]
          %v7296 = vld [vmem:[%s7279 + $0x80] sm:$0xff]
          %v7297 = vld [vmem:[%s7279 + $0x88] sm:$0xff]
          %s7298 = scalar_lea.vmem %s7, 192
          %v7299 = vld [vmem:[%s7298] sm:$0xff]
          %v7300 = vld [vmem:[%s7298 + $0x8] sm:$0xff]
          %v7301 = vld [vmem:[%s7298 + $0x10] sm:$0xff]
          %v7302 = vld [vmem:[%s7298 + $0x18] sm:$0xff]
          %v7304 = vsel %vm540, %v7280, 0
          %v7307 = vsel %vm540, %v7281, 0
          %v7310 = vsel %vm540, %v7282, 0
          %v7313 = vsel %vm540, %v7283, 0
          %v7316 = vsel %vm540, %v7284, 0
          %v7319 = vsel %vm540, %v7285, 0
          %v7322 = vsel %vm540, %v7286, 0
          %v7325 = vsel %vm540, %v7287, 0
          %v7328 = vsel %vm540, %v7288, 0
          %v7331 = vsel %vm540, %v7289, 0
          %v7334 = vsel %vm540, %v7290, 0
          %v7337 = vsel %vm540, %v7291, 0
          %v7340 = vsel %vm540, %v7292, 0
          %v7343 = vsel %vm540, %v7293, 0
          %v7346 = vsel %vm540, %v7294, 0
          %v7349 = vsel %vm540, %v7295, 0
          %v7352 = vsel %vm540, %v7296, 0
          %v7355 = vsel %vm540, %v7297, 0
          %7357 = vmatpush.msra.mxu0 0.0
          %7358 = vmatpush.msra.mxu0 0.0
          %7359 = vmatpush.msra.mxu0 0.0
          %7360 = vmatpush.msra.mxu0 0.0
          %7361 = vmatpush.msra.mxu0 0.0
          %7362 = vmatpush.msra.mxu0 0.0
          %7363 = vmatpush.msra.mxu0 0.0
          %7364 = vmatpush.msra.mxu0 0.0
          %7365 = vmatpush.msra.mxu0 0.0
          %7366 = vmatpush.msra.mxu0 0.0
          %7367 = vmatpush.msra.mxu0 0.0
          %7368 = vmatpush.msra.mxu0 0.0
          %7369 = vmatpush.msra.mxu0 %v7302
          %7370 = vmatpush.msra.mxu0 %v7301
          %7371 = vmatpush.msra.mxu0 %v7300
          %7372 = vmatpush.msra.mxu0 %v7299
          %7373 = vmatmul.f32.gmra.mxu0 %v7304
          %v7374 = vpop.f32.mrf.mxu0
          %v7375 = vadd.f32 0.0, %v7374
          %7376 = vmatmul.f32.gmra.mxu0 %v7307
          %v7377 = vpop.f32.mrf.mxu0
          %v7378 = vadd.f32 0.0, %v7377
          %7379 = vmatmul.f32.gmra.mxu0 %v7310
          %v7380 = vpop.f32.mrf.mxu0
          %v7381 = vadd.f32 0.0, %v7380
          %7382 = vmatmul.f32.gmra.mxu0 %v7313
          %v7383 = vpop.f32.mrf.mxu0
          %v7384 = vadd.f32 0.0, %v7383
          %7385 = vmatmul.f32.gmra.mxu0 %v7316
          %v7386 = vpop.f32.mrf.mxu0
          %v7387 = vadd.f32 0.0, %v7386
          %7388 = vmatmul.f32.gmra.mxu0 %v7319
          %v7389 = vpop.f32.mrf.mxu0
          %v7390 = vadd.f32 0.0, %v7389
          %7391 = vmatmul.f32.gmra.mxu0 %v7322
          %v7392 = vpop.f32.mrf.mxu0
          %v7393 = vadd.f32 0.0, %v7392
          %7394 = vmatmul.f32.gmra.mxu0 %v7325
          %v7395 = vpop.f32.mrf.mxu0
          %v7396 = vadd.f32 0.0, %v7395
          %7397 = vmatmul.f32.gmra.mxu0 %v7328
          %v7398 = vpop.f32.mrf.mxu0
          %v7399 = vadd.f32 0.0, %v7398
          %7400 = vmatmul.f32.gmra.mxu0 %v7331
          %v7401 = vpop.f32.mrf.mxu0
          %v7402 = vadd.f32 0.0, %v7401
          %7403 = vmatmul.f32.gmra.mxu0 %v7334
          %v7404 = vpop.f32.mrf.mxu0
          %v7405 = vadd.f32 0.0, %v7404
          %7406 = vmatmul.f32.gmra.mxu0 %v7337
          %v7407 = vpop.f32.mrf.mxu0
          %v7408 = vadd.f32 0.0, %v7407
          %7409 = vmatmul.f32.gmra.mxu0 %v7340
          %v7410 = vpop.f32.mrf.mxu0
          %v7411 = vadd.f32 0.0, %v7410
          %7412 = vmatmul.f32.gmra.mxu0 %v7343
          %v7413 = vpop.f32.mrf.mxu0
          %v7414 = vadd.f32 0.0, %v7413
          %7415 = vmatmul.f32.gmra.mxu0 %v7346
          %v7416 = vpop.f32.mrf.mxu0
          %v7417 = vadd.f32 0.0, %v7416
          %7418 = vmatmul.f32.gmra.mxu0 %v7349
          %v7419 = vpop.f32.mrf.mxu0
          %v7420 = vadd.f32 0.0, %v7419
          %7421 = vmatmul.f32.gmra.mxu0 %v7352
          %v7422 = vpop.f32.mrf.mxu0
          %v7423 = vadd.f32 0.0, %v7422
          %7424 = vmatmul.f32.gmra.mxu0 %v7355
          %v7425 = vpop.f32.mrf.mxu0
          %v7426 = vadd.f32 0.0, %v7425
          %7427 = vdwg.mxu0
          %v7428 = vadd.f32 %v7260, %v7375
          %v7429 = vadd.f32 %v7261, %v7378
          %v7430 = vadd.f32 %v7262, %v7381
          %v7431 = vadd.f32 %v7263, %v7384
          %v7432 = vadd.f32 %v7264, %v7387
          %v7433 = vadd.f32 %v7265, %v7390
          %v7434 = vadd.f32 %v7266, %v7393
          %v7435 = vadd.f32 %v7267, %v7396
          %v7436 = vadd.f32 %v7268, %v7399
          %v7437 = vadd.f32 %v7269, %v7402
          %v7438 = vadd.f32 %v7270, %v7405
          %v7439 = vadd.f32 %v7271, %v7408
          %v7440 = vadd.f32 %v7272, %v7411
          %v7441 = vadd.f32 %v7273, %v7414
          %v7442 = vadd.f32 %v7274, %v7417
          %v7443 = vadd.f32 %v7275, %v7420
          %v7444 = vadd.f32 %v7276, %v7423
          %v7445 = vadd.f32 %v7277, %v7426
          %s7446 = sadd.s32 %s6306, 55
          %s7447 = scalar_lea.vmem [#allocation8], %s7446
          %v7448 = vld [vmem:[%s7447] sm:$0xff]
          %v7449 = vld [vmem:[%s7447 + $0x8] sm:$0xff]
          %v7450 = vld [vmem:[%s7447 + $0x10] sm:$0xff]
          %v7451 = vld [vmem:[%s7447 + $0x18] sm:$0xff]
          %v7452 = vld [vmem:[%s7447 + $0x20] sm:$0xff]
          %v7453 = vld [vmem:[%s7447 + $0x28] sm:$0xff]
          %v7454 = vld [vmem:[%s7447 + $0x30] sm:$0xff]
          %v7455 = vld [vmem:[%s7447 + $0x38] sm:$0xff]
          %v7456 = vld [vmem:[%s7447 + $0x40] sm:$0xff]
          %v7457 = vld [vmem:[%s7447 + $0x48] sm:$0xff]
          %v7458 = vld [vmem:[%s7447 + $0x50] sm:$0xff]
          %v7459 = vld [vmem:[%s7447 + $0x58] sm:$0xff]
          %v7460 = vld [vmem:[%s7447 + $0x60] sm:$0xff]
          %v7461 = vld [vmem:[%s7447 + $0x68] sm:$0xff]
          %v7462 = vld [vmem:[%s7447 + $0x70] sm:$0xff]
          %v7463 = vld [vmem:[%s7447 + $0x78] sm:$0xff]
          %v7464 = vld [vmem:[%s7447 + $0x80] sm:$0xff]
          %v7465 = vld [vmem:[%s7447 + $0x88] sm:$0xff]
          %s7466 = scalar_lea.vmem %s7, 224
          %v7467 = vld [vmem:[%s7466] sm:$0xff]
          %v7468 = vld [vmem:[%s7466 + $0x8] sm:$0xff]
          %v7469 = vld [vmem:[%s7466 + $0x10] sm:$0xff]
          %v7470 = vld [vmem:[%s7466 + $0x18] sm:$0xff]
          %v7472 = vsel %vm540, %v7448, 0
          %v7475 = vsel %vm540, %v7449, 0
          %v7478 = vsel %vm540, %v7450, 0
          %v7481 = vsel %vm540, %v7451, 0
          %v7484 = vsel %vm540, %v7452, 0
          %v7487 = vsel %vm540, %v7453, 0
          %v7490 = vsel %vm540, %v7454, 0
          %v7493 = vsel %vm540, %v7455, 0
          %v7496 = vsel %vm540, %v7456, 0
          %v7499 = vsel %vm540, %v7457, 0
          %v7502 = vsel %vm540, %v7458, 0
          %v7505 = vsel %vm540, %v7459, 0
          %v7508 = vsel %vm540, %v7460, 0
          %v7511 = vsel %vm540, %v7461, 0
          %v7514 = vsel %vm540, %v7462, 0
          %v7517 = vsel %vm540, %v7463, 0
          %v7520 = vsel %vm540, %v7464, 0
          %v7523 = vsel %vm540, %v7465, 0
          %7525 = vmatpush.msra.mxu0 0.0
          %7526 = vmatpush.msra.mxu0 0.0
          %7527 = vmatpush.msra.mxu0 0.0
          %7528 = vmatpush.msra.mxu0 0.0
          %7529 = vmatpush.msra.mxu0 0.0
          %7530 = vmatpush.msra.mxu0 0.0
          %7531 = vmatpush.msra.mxu0 0.0
          %7532 = vmatpush.msra.mxu0 0.0
          %7533 = vmatpush.msra.mxu0 0.0
          %7534 = vmatpush.msra.mxu0 0.0
          %7535 = vmatpush.msra.mxu0 0.0
          %7536 = vmatpush.msra.mxu0 0.0
          %7537 = vmatpush.msra.mxu0 %v7470
          %7538 = vmatpush.msra.mxu0 %v7469
          %7539 = vmatpush.msra.mxu0 %v7468
          %7540 = vmatpush.msra.mxu0 %v7467
          %7541 = vmatmul.f32.gmra.mxu0 %v7472
          %v7542 = vpop.f32.mrf.mxu0
          %v7543 = vadd.f32 0.0, %v7542
          %7544 = vmatmul.f32.gmra.mxu0 %v7475
          %v7545 = vpop.f32.mrf.mxu0
          %v7546 = vadd.f32 0.0, %v7545
          %7547 = vmatmul.f32.gmra.mxu0 %v7478
          %v7548 = vpop.f32.mrf.mxu0
          %v7549 = vadd.f32 0.0, %v7548
          %7550 = vmatmul.f32.gmra.mxu0 %v7481
          %v7551 = vpop.f32.mrf.mxu0
          %v7552 = vadd.f32 0.0, %v7551
          %7553 = vmatmul.f32.gmra.mxu0 %v7484
          %v7554 = vpop.f32.mrf.mxu0
          %v7555 = vadd.f32 0.0, %v7554
          %7556 = vmatmul.f32.gmra.mxu0 %v7487
          %v7557 = vpop.f32.mrf.mxu0
          %v7558 = vadd.f32 0.0, %v7557
          %7559 = vmatmul.f32.gmra.mxu0 %v7490
          %v7560 = vpop.f32.mrf.mxu0
          %v7561 = vadd.f32 0.0, %v7560
          %7562 = vmatmul.f32.gmra.mxu0 %v7493
          %v7563 = vpop.f32.mrf.mxu0
          %v7564 = vadd.f32 0.0, %v7563
          %7565 = vmatmul.f32.gmra.mxu0 %v7496
          %v7566 = vpop.f32.mrf.mxu0
          %v7567 = vadd.f32 0.0, %v7566
          %7568 = vmatmul.f32.gmra.mxu0 %v7499
          %v7569 = vpop.f32.mrf.mxu0
          %v7570 = vadd.f32 0.0, %v7569
          %7571 = vmatmul.f32.gmra.mxu0 %v7502
          %v7572 = vpop.f32.mrf.mxu0
          %v7573 = vadd.f32 0.0, %v7572
          %7574 = vmatmul.f32.gmra.mxu0 %v7505
          %v7575 = vpop.f32.mrf.mxu0
          %v7576 = vadd.f32 0.0, %v7575
          %7577 = vmatmul.f32.gmra.mxu0 %v7508
          %v7578 = vpop.f32.mrf.mxu0
          %v7579 = vadd.f32 0.0, %v7578
          %7580 = vmatmul.f32.gmra.mxu0 %v7511
          %v7581 = vpop.f32.mrf.mxu0
          %v7582 = vadd.f32 0.0, %v7581
          %7583 = vmatmul.f32.gmra.mxu0 %v7514
          %v7584 = vpop.f32.mrf.mxu0
          %v7585 = vadd.f32 0.0, %v7584
          %7586 = vmatmul.f32.gmra.mxu0 %v7517
          %v7587 = vpop.f32.mrf.mxu0
          %v7588 = vadd.f32 0.0, %v7587
          %7589 = vmatmul.f32.gmra.mxu0 %v7520
          %v7590 = vpop.f32.mrf.mxu0
          %v7591 = vadd.f32 0.0, %v7590
          %7592 = vmatmul.f32.gmra.mxu0 %v7523
          %v7593 = vpop.f32.mrf.mxu0
          %v7594 = vadd.f32 0.0, %v7593
          %7595 = vdwg.mxu0
          %v7596 = vadd.f32 %v7428, %v7543
          %v7597 = vadd.f32 %v7429, %v7546
          %v7598 = vadd.f32 %v7430, %v7549
          %v7599 = vadd.f32 %v7431, %v7552
          %v7600 = vadd.f32 %v7432, %v7555
          %v7601 = vadd.f32 %v7433, %v7558
          %v7602 = vadd.f32 %v7434, %v7561
          %v7603 = vadd.f32 %v7435, %v7564
          %v7604 = vadd.f32 %v7436, %v7567
          %v7605 = vadd.f32 %v7437, %v7570
          %v7606 = vadd.f32 %v7438, %v7573
          %v7607 = vadd.f32 %v7439, %v7576
          %v7608 = vadd.f32 %v7440, %v7579
          %v7609 = vadd.f32 %v7441, %v7582
          %v7610 = vadd.f32 %v7442, %v7585
          %v7611 = vadd.f32 %v7443, %v7588
          %v7612 = vadd.f32 %v7444, %v7591
          %v7613 = vadd.f32 %v7445, %v7594
          %s7614 = sadd.s32 %s6306, 56
          %s7615 = scalar_lea.vmem [#allocation8], %s7614
          %v7616 = vld [vmem:[%s7615] sm:$0xff]
          %v7617 = vld [vmem:[%s7615 + $0x8] sm:$0xff]
          %v7618 = vld [vmem:[%s7615 + $0x10] sm:$0xff]
          %v7619 = vld [vmem:[%s7615 + $0x18] sm:$0xff]
          %v7620 = vld [vmem:[%s7615 + $0x20] sm:$0xff]
          %v7621 = vld [vmem:[%s7615 + $0x28] sm:$0xff]
          %v7622 = vld [vmem:[%s7615 + $0x30] sm:$0xff]
          %v7623 = vld [vmem:[%s7615 + $0x38] sm:$0xff]
          %v7624 = vld [vmem:[%s7615 + $0x40] sm:$0xff]
          %v7625 = vld [vmem:[%s7615 + $0x48] sm:$0xff]
          %v7626 = vld [vmem:[%s7615 + $0x50] sm:$0xff]
          %v7627 = vld [vmem:[%s7615 + $0x58] sm:$0xff]
          %v7628 = vld [vmem:[%s7615 + $0x60] sm:$0xff]
          %v7629 = vld [vmem:[%s7615 + $0x68] sm:$0xff]
          %v7630 = vld [vmem:[%s7615 + $0x70] sm:$0xff]
          %v7631 = vld [vmem:[%s7615 + $0x78] sm:$0xff]
          %v7632 = vld [vmem:[%s7615 + $0x80] sm:$0xff]
          %v7633 = vld [vmem:[%s7615 + $0x88] sm:$0xff]
          %s7634 = scalar_lea.vmem %s7, 256
          %v7635 = vld [vmem:[%s7634] sm:$0xff]
          %v7636 = vld [vmem:[%s7634 + $0x8] sm:$0xff]
          %v7637 = vld [vmem:[%s7634 + $0x10] sm:$0xff]
          %v7638 = vld [vmem:[%s7634 + $0x18] sm:$0xff]
          %v7640 = vsel %vm540, %v7616, 0
          %v7643 = vsel %vm540, %v7617, 0
          %v7646 = vsel %vm540, %v7618, 0
          %v7649 = vsel %vm540, %v7619, 0
          %v7652 = vsel %vm540, %v7620, 0
          %v7655 = vsel %vm540, %v7621, 0
          %v7658 = vsel %vm540, %v7622, 0
          %v7661 = vsel %vm540, %v7623, 0
          %v7664 = vsel %vm540, %v7624, 0
          %v7667 = vsel %vm540, %v7625, 0
          %v7670 = vsel %vm540, %v7626, 0
          %v7673 = vsel %vm540, %v7627, 0
          %v7676 = vsel %vm540, %v7628, 0
          %v7679 = vsel %vm540, %v7629, 0
          %v7682 = vsel %vm540, %v7630, 0
          %v7685 = vsel %vm540, %v7631, 0
          %v7688 = vsel %vm540, %v7632, 0
          %v7691 = vsel %vm540, %v7633, 0
          %7693 = vmatpush.msra.mxu0 0.0
          %7694 = vmatpush.msra.mxu0 0.0
          %7695 = vmatpush.msra.mxu0 0.0
          %7696 = vmatpush.msra.mxu0 0.0
          %7697 = vmatpush.msra.mxu0 0.0
          %7698 = vmatpush.msra.mxu0 0.0
          %7699 = vmatpush.msra.mxu0 0.0
          %7700 = vmatpush.msra.mxu0 0.0
          %7701 = vmatpush.msra.mxu0 0.0
          %7702 = vmatpush.msra.mxu0 0.0
          %7703 = vmatpush.msra.mxu0 0.0
          %7704 = vmatpush.msra.mxu0 0.0
          %7705 = vmatpush.msra.mxu0 %v7638
          %7706 = vmatpush.msra.mxu0 %v7637
          %7707 = vmatpush.msra.mxu0 %v7636
          %7708 = vmatpush.msra.mxu0 %v7635
          %7709 = vmatmul.f32.gmra.mxu0 %v7640
          %v7710 = vpop.f32.mrf.mxu0
          %v7711 = vadd.f32 0.0, %v7710
          %7712 = vmatmul.f32.gmra.mxu0 %v7643
          %v7713 = vpop.f32.mrf.mxu0
          %v7714 = vadd.f32 0.0, %v7713
          %7715 = vmatmul.f32.gmra.mxu0 %v7646
          %v7716 = vpop.f32.mrf.mxu0
          %v7717 = vadd.f32 0.0, %v7716
          %7718 = vmatmul.f32.gmra.mxu0 %v7649
          %v7719 = vpop.f32.mrf.mxu0
          %v7720 = vadd.f32 0.0, %v7719
          %7721 = vmatmul.f32.gmra.mxu0 %v7652
          %v7722 = vpop.f32.mrf.mxu0
          %v7723 = vadd.f32 0.0, %v7722
          %7724 = vmatmul.f32.gmra.mxu0 %v7655
          %v7725 = vpop.f32.mrf.mxu0
          %v7726 = vadd.f32 0.0, %v7725
          %7727 = vmatmul.f32.gmra.mxu0 %v7658
          %v7728 = vpop.f32.mrf.mxu0
          %v7729 = vadd.f32 0.0, %v7728
          %7730 = vmatmul.f32.gmra.mxu0 %v7661
          %v7731 = vpop.f32.mrf.mxu0
          %v7732 = vadd.f32 0.0, %v7731
          %7733 = vmatmul.f32.gmra.mxu0 %v7664
          %v7734 = vpop.f32.mrf.mxu0
          %v7735 = vadd.f32 0.0, %v7734
          %7736 = vmatmul.f32.gmra.mxu0 %v7667
          %v7737 = vpop.f32.mrf.mxu0
          %v7738 = vadd.f32 0.0, %v7737
          %7739 = vmatmul.f32.gmra.mxu0 %v7670
          %v7740 = vpop.f32.mrf.mxu0
          %v7741 = vadd.f32 0.0, %v7740
          %7742 = vmatmul.f32.gmra.mxu0 %v7673
          %v7743 = vpop.f32.mrf.mxu0
          %v7744 = vadd.f32 0.0, %v7743
          %7745 = vmatmul.f32.gmra.mxu0 %v7676
          %v7746 = vpop.f32.mrf.mxu0
          %v7747 = vadd.f32 0.0, %v7746
          %7748 = vmatmul.f32.gmra.mxu0 %v7679
          %v7749 = vpop.f32.mrf.mxu0
          %v7750 = vadd.f32 0.0, %v7749
          %7751 = vmatmul.f32.gmra.mxu0 %v7682
          %v7752 = vpop.f32.mrf.mxu0
          %v7753 = vadd.f32 0.0, %v7752
          %7754 = vmatmul.f32.gmra.mxu0 %v7685
          %v7755 = vpop.f32.mrf.mxu0
          %v7756 = vadd.f32 0.0, %v7755
          %7757 = vmatmul.f32.gmra.mxu0 %v7688
          %v7758 = vpop.f32.mrf.mxu0
          %v7759 = vadd.f32 0.0, %v7758
          %7760 = vmatmul.f32.gmra.mxu0 %v7691
          %v7761 = vpop.f32.mrf.mxu0
          %v7762 = vadd.f32 0.0, %v7761
          %7763 = vdwg.mxu0
          %v7764 = vadd.f32 %v7596, %v7711
          %v7765 = vadd.f32 %v7597, %v7714
          %v7766 = vadd.f32 %v7598, %v7717
          %v7767 = vadd.f32 %v7599, %v7720
          %v7768 = vadd.f32 %v7600, %v7723
          %v7769 = vadd.f32 %v7601, %v7726
          %v7770 = vadd.f32 %v7602, %v7729
          %v7771 = vadd.f32 %v7603, %v7732
          %v7772 = vadd.f32 %v7604, %v7735
          %v7773 = vadd.f32 %v7605, %v7738
          %v7774 = vadd.f32 %v7606, %v7741
          %v7775 = vadd.f32 %v7607, %v7744
          %v7776 = vadd.f32 %v7608, %v7747
          %v7777 = vadd.f32 %v7609, %v7750
          %v7778 = vadd.f32 %v7610, %v7753
          %v7779 = vadd.f32 %v7611, %v7756
          %v7780 = vadd.f32 %v7612, %v7759
          %v7781 = vadd.f32 %v7613, %v7762
          %v7783 = vperm.slane %v6296, 0
          %v7785 = vadd.f32 %v7764, %v7783
          %v7786 = vadd.f32 %v7765, %v7783
          %v7787 = vadd.f32 %v7766, %v7783
          %v7788 = vadd.f32 %v7767, %v7783
          %v7789 = vadd.f32 %v7768, %v7783
          %v7790 = vadd.f32 %v7769, %v7783
          %v7791 = vadd.f32 %v7770, %v7783
          %v7792 = vadd.f32 %v7771, %v7783
          %v7793 = vadd.f32 %v7772, %v7783
          %v7794 = vadd.f32 %v7773, %v7783
          %v7795 = vadd.f32 %v7774, %v7783
          %v7796 = vadd.f32 %v7775, %v7783
          %v7797 = vadd.f32 %v7776, %v7783
          %v7798 = vadd.f32 %v7777, %v7783
          %v7799 = vadd.f32 %v7778, %v7783
          %v7800 = vadd.f32 %v7779, %v7783
          %v7801 = vadd.f32 %v7780, %v7783
          %v7802 = vadd.f32 %v7781, %v7783
          %s7803 = sadd.s32 %s6306, 24
          %s7804 = scalar_lea.vmem [#allocation9], %s7803
          %7805 = vst.msk [vmem:[%s7804] sm:$0xff] %vm540, %v7785
          %7806 = vst.msk [vmem:[%s7804 + $0x8] sm:$0xff] %vm540, %v7786
          %7807 = vst.msk [vmem:[%s7804 + $0x10] sm:$0xff] %vm540, %v7787
          %7808 = vst.msk [vmem:[%s7804 + $0x18] sm:$0xff] %vm540, %v7788
          %7809 = vst.msk [vmem:[%s7804 + $0x20] sm:$0xff] %vm540, %v7789
          %7810 = vst.msk [vmem:[%s7804 + $0x28] sm:$0xff] %vm540, %v7790
          %7811 = vst.msk [vmem:[%s7804 + $0x30] sm:$0xff] %vm540, %v7791
          %7812 = vst.msk [vmem:[%s7804 + $0x38] sm:$0xff] %vm540, %v7792
          %7813 = vst.msk [vmem:[%s7804 + $0x40] sm:$0xff] %vm540, %v7793
          %7814 = vst.msk [vmem:[%s7804 + $0x48] sm:$0xff] %vm540, %v7794
          %7815 = vst.msk [vmem:[%s7804 + $0x50] sm:$0xff] %vm540, %v7795
          %7816 = vst.msk [vmem:[%s7804 + $0x58] sm:$0xff] %vm540, %v7796
          %7817 = vst.msk [vmem:[%s7804 + $0x60] sm:$0xff] %vm540, %v7797
          %7818 = vst.msk [vmem:[%s7804 + $0x68] sm:$0xff] %vm540, %v7798
          %7819 = vst.msk [vmem:[%s7804 + $0x70] sm:$0xff] %vm540, %v7799
          %7820 = vst.msk [vmem:[%s7804 + $0x78] sm:$0xff] %vm540, %v7800
          %7821 = vst.msk [vmem:[%s7804 + $0x80] sm:$0xff] %vm540, %v7801
          %7822 = vst.msk [vmem:[%s7804 + $0x88] sm:$0xff] %vm540, %v7802
        $region132: #{pallas_forward.1} parent=63 // loop_footer
          %s6305 = sadd.s32 1, %s6301
        $region133: #{pallas_forward.1} parent=63 // loop_footer_branch
          %6300 = sbr.rel target = $region129
        $region134: #{pallas_forward.1} parent=63 // loop_exit
          _
        %7823 = vst.msk [vmem:[#allocation9 + $0x138] sm:$0xff] %vm540, 0.0
        %7824 = vst.msk [vmem:[#allocation9 + $0x140] sm:$0xff] %vm540, 0.0
        %7825 = vst.msk [vmem:[#allocation9 + $0x148] sm:$0xff] %vm540, 0.0
        %vm7826 = vcmp.lt.s32.totalorder %v2702, 13
        %vm7827 = vmand %vm2740, %vm7826
        %v7828 = vsel %vm7827, 1, 0
        %v7829 = vcvt.s32.f32 %v7828
        loop: start=0, step=1, limit=7
        $region135: #{pallas_forward.1} parent=63 // loop_pre_header
          _
        $region136: #{pallas_forward.1} parent=63 // loop_header
          %s7831 = sphi 0, %s7835
          %p7832 = scmp.ge.s32.totalorder %s7831, 7
        $region137: #{pallas_forward.1} parent=63 // loop_header_branch
          %7834 = sbr.rel (%p7832) target = $region141
        $region138: #{pallas_forward.1} parent=63 // loop_body
          %s7836 = smul.u32 %s7831, 48
          %s7837 = scalar_lea.vmem [#allocation9], %s7836
          %v7838 = vld [vmem:[%s7837] sm:$0xff]
          %v7839 = vld [vmem:[%s7837 + $0x8] sm:$0x3f]
          %s7840 = sadd.s32 %s7836, 24
          %s7841 = scalar_lea.vmem [#allocation9], %s7840
          %v7842 = vld [vmem:[%s7841] sm:$0xff]
          %v7843 = vld [vmem:[%s7841 + $0x8] sm:$0x3f]
          %v7844 = vmax.f32 %v7838, %v7842
          %v7845 = vmax.f32 %v7839, %v7843
          %vm7846 = vcmask 113664
          %v7848 = vsel %vm7846, %v2728, 0
          %vm7850 = vcmask 1045504
          %v7852 = vsel %vm7850, %v7845, 0
          %7854 = vmatpush.msra.mxu0 0.0
          %7855 = vmatpush.msra.mxu0 0.0
          %7856 = vmatpush.msra.mxu0 0.0
          %7857 = vmatpush.msra.mxu0 0.0
          %7858 = vmatpush.msra.mxu0 0.0
          %7859 = vmatpush.msra.mxu0 0.0
          %7860 = vmatpush.msra.mxu0 0.0
          %7861 = vmatpush.msra.mxu0 0.0
          %7862 = vmatpush.msra.mxu0 0.0
          %7863 = vmatpush.msra.mxu0 0.0
          %7864 = vmatpush.msra.mxu0 0.0
          %7865 = vmatpush.msra.mxu0 0.0
          %7866 = vmatpush.msra.mxu0 0.0
          %7867 = vmatpush.msra.mxu0 0.0
          %7868 = vmatpush.msra.mxu0 %v7852
          %7869 = vmatpush.msra.mxu0 %v7844
          %7870 = vmatmul.f32.gmra.mxu0 %v7848
          %v7871 = vpop.f32.mrf.mxu0
          %v7872 = vadd.f32 0.0, %v7871
          %7873 = vdwg.mxu0
          %v7875 = vsel %vm7846, %v7829, 0
          %7877 = vmatpush.msra.mxu0 0.0
          %7878 = vmatpush.msra.mxu0 0.0
          %7879 = vmatpush.msra.mxu0 0.0
          %7880 = vmatpush.msra.mxu0 0.0
          %7881 = vmatpush.msra.mxu0 0.0
          %7882 = vmatpush.msra.mxu0 0.0
          %7883 = vmatpush.msra.mxu0 0.0
          %7884 = vmatpush.msra.mxu0 0.0
          %7885 = vmatpush.msra.mxu0 0.0
          %7886 = vmatpush.msra.mxu0 0.0
          %7887 = vmatpush.msra.mxu0 0.0
          %7888 = vmatpush.msra.mxu0 0.0
          %7889 = vmatpush.msra.mxu0 0.0
          %7890 = vmatpush.msra.mxu0 0.0
          %7891 = vmatpush.msra.mxu0 %v7852
          %7892 = vmatpush.msra.mxu0 %v7844
          %7893 = vmatmul.f32.gmra.mxu0 %v7875
          %v7894 = vpop.f32.mrf.mxu0
          %v7895 = vadd.f32 0.0, %v7894
          %7896 = vdwg.mxu0
          %v7897 = vmax.f32 %v7872, %v7895
          %v7898 = vmax.f32 %v7897, 0.0
          %s7899 = smul.u32 %s7831, 8
          %s7900 = scalar_lea.vmem [#allocation10], %s7899
          %vm7901 = vcmask 260096
          %7902 = vst.msk [vmem:[%s7900] sm:$0x7f] %vm7901, %v7898
        $region139: #{pallas_forward.1} parent=63 // loop_footer
          %s7835 = sadd.s32 1, %s7831
        $region140: #{pallas_forward.1} parent=63 // loop_footer_branch
          %7830 = sbr.rel target = $region136
        $region141: #{pallas_forward.1} parent=63 // loop_exit
          _
        %v7903 = vld [vmem:[#allocation10] sm:$0xff]
        %v7904 = vld [vmem:[#allocation10 + $0x8] sm:$0xff]
        %v7905 = vld [vmem:[#allocation10 + $0x10] sm:$0xff]
        %v7906 = vld [vmem:[#allocation10 + $0x18] sm:$0xff]
        %v7907 = vld [vmem:[#allocation10 + $0x20] sm:$0xff]
        %v7908 = vld [vmem:[#allocation10 + $0x28] sm:$0xff]
        %v7909 = vld [vmem:[#allocation10 + $0x30] sm:$0xff]
        %v7910 = vld [vmem:[%s10] sm:$0x1]
        %vm7911 = vcmp.eq.s32.totalorder %v2702, 0
        %v7912 = vld [vmem:[%s9] sm:$0xff]
        %v7913 = vld [vmem:[%s9 + $0x8] sm:$0xff]
        %v7914 = vld [vmem:[%s9 + $0x10] sm:$0xff]
        %v7915 = vld [vmem:[%s9 + $0x18] sm:$0xff]
        %v7916 = vld [vmem:[%s9 + $0x20] sm:$0xff]
        %v7917 = vld [vmem:[%s9 + $0x28] sm:$0xff]
        %v7918 = vld [vmem:[%s9 + $0x30] sm:$0xff]
        %v7919 = vmul.f32 %v7903, %v7912
        %v7920 = vmul.f32 %v7904, %v7913
        %v7921 = vmul.f32 %v7905, %v7914
        %v7922 = vmul.f32 %v7906, %v7915
        %v7923 = vmul.f32 %v7907, %v7916
        %v7924 = vmul.f32 %v7908, %v7917
        %v7925 = vmul.f32 %v7909, %v7918
        %v7926 = vsel %vm540, %v7919, 0.0
        %v7927 = vsel %vm540, %v7920, 0.0
        %v7928 = vadd.f32 %v7926, %v7927
        %v7929 = vsel %vm540, %v7921, 0.0
        %v7930 = vadd.f32 %v7928, %v7929
        %v7931 = vsel %vm540, %v7922, 0.0
        %v7932 = vadd.f32 %v7930, %v7931
        %v7933 = vsel %vm540, %v7923, 0.0
        %v7934 = vadd.f32 %v7932, %v7933
        %v7935 = vsel %vm540, %v7924, 0.0
        %v7936 = vadd.f32 %v7934, %v7935
        %v7937 = vsel %vm540, %v7925, 0.0
        %v7938 = vadd.f32 %v7936, %v7937
        %7939 = vadd.xlane.f32.xlu0 %v7938
        %v7940 = vpop.xlane.xlu0 %7939
        %v7941 = vrot.slane %v7940, 4
        %v7942 = vadd.f32 %v7940, %v7941
        %v7943 = vrot.slane %v7942, 2
        %v7944 = vadd.f32 %v7942, %v7943
        %v7945 = vrot.slane %v7944, 1
        %v7946 = vadd.f32 %v7944, %v7945
        %s7947 = vtos %v7946
        %v7948 = vstv %s7947
        %v7949 = vsel %vm7911, %v7948, 0.0
        %v7950 = vadd.f32 %v7910, %v7949
        %vm7951 = vcmp.eq.s32.totalorder %v2702, 1
        %s7952 = scalar_lea.vmem %s9, 56
        %v7953 = vld [vmem:[%s7952] sm:$0xff]
        %v7954 = vld [vmem:[%s7952 + $0x8] sm:$0xff]
        %v7955 = vld [vmem:[%s7952 + $0x10] sm:$0xff]
        %v7956 = vld [vmem:[%s7952 + $0x18] sm:$0xff]
        %v7957 = vld [vmem:[%s7952 + $0x20] sm:$0xff]
        %v7958 = vld [vmem:[%s7952 + $0x28] sm:$0xff]
        %v7959 = vld [vmem:[%s7952 + $0x30] sm:$0xff]
        %v7960 = vmul.f32 %v7903, %v7953
        %v7961 = vmul.f32 %v7904, %v7954
        %v7962 = vmul.f32 %v7905, %v7955
        %v7963 = vmul.f32 %v7906, %v7956
        %v7964 = vmul.f32 %v7907, %v7957
        %v7965 = vmul.f32 %v7908, %v7958
        %v7966 = vmul.f32 %v7909, %v7959
        %v7967 = vsel %vm540, %v7960, 0.0
        %v7968 = vsel %vm540, %v7961, 0.0
        %v7969 = vadd.f32 %v7967, %v7968
        %v7970 = vsel %vm540, %v7962, 0.0
        %v7971 = vadd.f32 %v7969, %v7970
        %v7972 = vsel %vm540, %v7963, 0.0
        %v7973 = vadd.f32 %v7971, %v7972
        %v7974 = vsel %vm540, %v7964, 0.0
        %v7975 = vadd.f32 %v7973, %v7974
        %v7976 = vsel %vm540, %v7965, 0.0
        %v7977 = vadd.f32 %v7975, %v7976
        %v7978 = vsel %vm540, %v7966, 0.0
        %v7979 = vadd.f32 %v7977, %v7978
        %7980 = vadd.xlane.f32.xlu0 %v7979
        %v7981 = vpop.xlane.xlu0 %7980
        %v7982 = vrot.slane %v7981, 4
        %v7983 = vadd.f32 %v7981, %v7982
        %v7984 = vrot.slane %v7983, 2
        %v7985 = vadd.f32 %v7983, %v7984
        %v7986 = vrot.slane %v7985, 1
        %v7987 = vadd.f32 %v7985, %v7986
        %s7988 = vtos %v7987
        %v7989 = vstv %s7988
        %v7990 = vsel %vm7951, %v7989, 0.0
        %v7991 = vadd.f32 %v7950, %v7990
        %vm7992 = vcmask 8192
        %7993 = vst.msk [vmem:[%s378] sm:$0x1] %vm7992, %v7991
        %s7994 = sand.u32 %s269, 1
        %s7995 = scalar_lea.sflag [#allocation12], %s7994
        %s7996 = sand.u32 %s269, 1
        %s7997 = scalar_lea.vmem [#allocation11], %s7996
        // Predicated region
        $region142: #{pallas_forward.1} parent=63 // pred_check
          %p7998 = pneg %p279
        $region143: #{pallas_forward.1} parent=63 // pred_check_branch
          %8000 = sbr.rel (%p7998) target = $region145
        $region144: #{pallas_forward.1} parent=63 // pred_region
          %8002 = vsyncadd %s7995, 0
          %s8003 = scalar_lea.hbm %s11, %s25
          %s8005 = sshll.u32 %s7997, 4
          %s8006 = int_to_ptr.vmem [resolvable:$true] %s8005
          %s8007 = sshll.u32 %s8003, 4
          %s8008 = int_to_ptr.hbm [resolvable:$true] %s8007
          %8010 = dma.vmem_to_hbm [thread:$0]  %s8006, 16, %s8008, %s7995
        $region145: #{pallas_forward.1} parent=63 // pred_fallthru
          _
      $region64: #{pallas_forward.1} parent=5 // pred_fallthru
        _
      %p8011 = scmp.le.s32.totalorder 2, %s20
      // Predicated region
      $region146: #{pallas_forward.1} parent=5 // pred_check
        %p8012 = pneg %p8011
      $region147: #{pallas_forward.1} parent=5 // pred_check_branch
        %8014 = sbr.rel (%p8012) target = $region149
      $region148: #{pallas_forward.1} parent=5 // pred_region
        %s8015 = ssub.s32 %s20, 2
        // Predicated region
        $region150: #{pallas_forward.1} parent=148 // pred_check
          %p8016 = pneg %p285
        $region151: #{pallas_forward.1} parent=148 // pred_check_branch
          %8018 = sbr.rel (%p8016) target = $region153
        $region152: #{pallas_forward.1} parent=148 // pred_region
          %s8019 = sand.u32 %s270, 1
          %s8020 = scalar_lea.sflag [#allocation12], %s8019
          %s8021 = sand.u32 %s270, 1
          %s8022 = scalar_lea.vmem [#allocation11], %s8021
          %8024 = dma.done %s8020, 16
        $region153: #{pallas_forward.1} parent=148 // pred_fallthru
          _
      $region149: #{pallas_forward.1} parent=5 // pred_fallthru
        _
    $region6: #{pallas_forward.1} parent=1 // loop_footer
      %s24 = sadd.s32 1, %s20
    $region7: #{pallas_forward.1} parent=1 // loop_footer_branch
      %19 = sbr.rel target = $region3
    $region8: #{pallas_forward.1} parent=1 // loop_exit
      _
    %8025 = vsyncpa [#allocation12], 1
    %s8026 = scalar_lea.sflag [#allocation12], 1
    %8027 = vsyncpa %s8026, 1

</llo_original>
